<compile_context>
chip_gen: v5e
topology: v5e:2x2
jax: 0.10.0
libtpu: 0.0.40
codegen_flags: <defaults>
</compile_context>

<pallas_src>
import jax
import jax.numpy as jnp
from jax.experimental import pallas as pl
from jax.experimental.pallas import tpu as pltpu


# --------------------------- in-kernel helpers -------------------------------

def _swish(z):
    return z * jax.nn.sigmoid(z)


def _conv3x3_wide(src_ref, h, w, wmat, bias):
    """3x3 conv (pad=1, stride=1) over a zero-padded flat activation buffer.

    src_ref holds the padded image flattened row-major to
    (>= (h+2)*(w+2)+2, cin) with channels on lanes.  Returns the conv output
    in "wide" layout (h*(w+2), cout); the last 2 columns of every image row
    are junk and are masked out by the caller before being stored.
    The 9 taps form one K = 9*cin MXU matmul.
    """
    wp = w + 2
    n = h * wp
    taps = [src_ref[pl.ds(ky * wp + kx, n), :]
            for ky in range(3) for kx in range(3)]
    patches = jnp.concatenate(taps, axis=1)                 # (n, 9*cin)
    return jnp.dot(patches, wmat, preferred_element_type=jnp.float32) + bias


def _downsample2x(src_ref, dst_ref, h, w):
    """Copy even-indexed interior pixels of src (res h,w) into the interior of
    the half-resolution padded buffer dst (res h/2, w/2)."""
    wp = w + 2
    hh, wh = h // 2, w // 2
    whp = wh + 2
    for y2 in range(hh):
        row = src_ref[pl.ds((1 + 2 * y2) * wp + 1, wh, stride=2), :]
        dst_ref[pl.ds((1 + y2) * whp + 1, wh), :] = row


def _interior_wide(src_ref, h, w):
    """Interior of a padded buffer read in wide layout.  The junk columns read
    the zero padding, so they contribute 0 to residual adds / reductions."""
    return src_ref[pl.ds(w + 3, h * (w + 2)), :]


# ------------------------------- wrapper -------------------------------------

def resnet_ebm_cat_apply(params, x_flat, shape, n_cat):
    B = x_flat.shape[0]
    H, W = shape[1], shape[2]
    assert H % 4 == 0 and W % 4 == 0, "two stride-2 blocks need H, W % 4 == 0"
    n_proj = params["proj_w"].shape[-1]
    C = params["proj2_w"].shape[-1]
    n_blocks = len(params["blocks"])
    assert n_blocks == 8

    H1, W1 = H // 2, W // 2
    H2, W2 = H1 // 2, W1 // 2
    L0, L1, L2 = H * (W + 2), H1 * (W1 + 2), H2 * (W2 + 2)

    def buf_rows(h, w):
        # +2: last 3x3 tap slice reads two rows past the padded image end
        n = (h + 2) * (w + 2) + 2
        return ((n + 7) // 8) * 8

    # ---- one-time layout prep (wrapper side) ----
    x = x_flat.reshape(B, H, W, n_cat)
    # "wide" layout: every image row followed by 2 junk (zero) columns
    x_wide = jnp.pad(x, ((0, 0), (0, 0), (0, 2), (0, 0))).reshape(B, L0, n_cat)

    def valid_mask(h, w):
        col = jnp.arange(h * (w + 2)) % (w + 2)
        return (col < w).astype(jnp.float32)[:, None]        # (h*(w+2), 1)

    m0, m1, m2 = valid_mask(H, W), valid_mask(H1, W1), valid_mask(H2, W2)

    pjw = params["proj_w"]                                    # (n_cat, n_proj)
    pjb = params["proj_b"].reshape(1, n_proj)
    p2w = params["proj2_w"].reshape(9 * n_proj, C)            # K = 9*n_proj
    p2b = params["proj2_b"].reshape(1, C)
    w1 = jnp.stack([b["w1"].reshape(9 * C, C) for b in params["blocks"]])
    b1 = jnp.stack([b["b1"].reshape(1, C) for b in params["blocks"]])
    w2 = jnp.stack([b["w2"].reshape(9 * C, C) for b in params["blocks"]])
    b2 = jnp.stack([b["b2"].reshape(1, C) for b in params["blocks"]])
    wsc = jnp.stack([params["blocks"][i]["wsc"] for i in range(2)])
    bsc = jnp.stack([params["blocks"][i]["bsc"].reshape(1, C) for i in range(2)])
    lw = params["lin_w"].reshape(1, C)
    lb = params["lin_b"].reshape(1, 1)

    def kernel(x_ref, pjw_ref, pjb_ref, p2w_ref, p2b_ref,
               w1_ref, b1_ref, w2_ref, b2_ref, wsc_ref, bsc_ref,
               lw_ref, lb_ref, m0_ref, m1_ref, m2_ref,
               out_ref,
               p0, a0, s1, hh1, a1, s2, hh2, a2):
        # padded scratch buffers: borders (and tail rows) must read as zeros.
        # Re-zeroed every grid step so megacore ("parallel") splitting is safe.
        for buf in (p0, a0, s1, hh1, a1, s2, hh2, a2):
            buf[...] = jnp.zeros_like(buf)

        m0v, m1v, m2v = m0_ref[...], m1_ref[...], m2_ref[...]

        # ---- proj: 1x1 conv n_cat -> n_proj (directly in wide layout) ----
        pj = jnp.dot(x_ref[0], pjw_ref[...],
                     preferred_element_type=jnp.float32) + pjb_ref[...]
        p0[pl.ds(W + 3, L0), :] = pj * m0v

        # ---- proj2: 3x3 conv n_proj -> C (single K=9*n_proj matmul) ----
        p2 = _conv3x3_wide(p0, H, W, p2w_ref[...], p2b_ref[...])
        a0[pl.ds(W + 3, L0), :] = p2 * m0v

        # ---- BasicBlock 0 (stride 2): res0 -> res1 ----
        _downsample2x(a0, s1, H, W)                 # shortcut input (even px)
        hf = _swish(_conv3x3_wide(a0, H, W, w1_ref[0], b1_ref[0]))
        a0[pl.ds(W + 3, L0), :] = hf * m0v          # reuse a0 as full-res temp
        _downsample2x(a0, hh1, H, W)                # stride-2 conv1 output
        y = _conv3x3_wide(hh1, H1, W1, w2_ref[0], b2_ref[0])
        sc = jnp.dot(_interior_wide(s1, H1, W1), wsc_ref[0],
                     preferred_element_type=jnp.float32) + bsc_ref[0]
        a1[pl.ds(W1 + 3, L1), :] = _swish(y + sc) * m1v

        # ---- BasicBlock 1 (stride 2): res1 -> res2 ----
        _downsample2x(a1, s2, H1, W1)
        hf = _swish(_conv3x3_wide(a1, H1, W1, w1_ref[1], b1_ref[1]))
        a1[pl.ds(W1 + 3, L1), :] = hf * m1v
        _downsample2x(a1, hh2, H1, W1)
        y = _conv3x3_wide(hh2, H2, W2, w2_ref[1], b2_ref[1])
        sc = jnp.dot(_interior_wide(s2, H2, W2), wsc_ref[1],
                     preferred_element_type=jnp.float32) + bsc_ref[1]
        a2[pl.ds(W2 + 3, L2), :] = _swish(y + sc) * m2v

        # ---- BasicBlocks 2..7 (stride 1) at res2, in place on a2 ----
        for i in range(2, n_blocks):
            hb = _swish(_conv3x3_wide(a2, H2, W2, w1_ref[i], b1_ref[i]))
            hh2[pl.ds(W2 + 3, L2), :] = hb * m2v
            y = _conv3x3_wide(hh2, H2, W2, w2_ref[i], b2_ref[i])
            res = _interior_wide(a2, H2, W2)        # padding cells read 0
            a2[pl.ds(W2 + 3, L2), :] = _swish(y + res) * m2v

        # ---- head: spatial mean + Linear(C, 1), fused (no N=1 MXU matmul) --
        tot = jnp.sum(_interior_wide(a2, H2, W2), axis=0, keepdims=True)
        mean = tot * (1.0 / float(H2 * W2))                           # (1, C)
        out_ref[0] = (jnp.sum(mean * lw_ref[...], axis=1, keepdims=True)
                      + lb_ref[...])

    def rep_spec(a):
        # grid-invariant block: weight stays VMEM-resident across the batch
        return pl.BlockSpec(a.shape, lambda b, _n=a.ndim: (0,) * _n)

    weights = (pjw, pjb, p2w, p2b, w1, b1, w2, b2, wsc, bsc, lw, lb, m0, m1, m2)
    in_specs = [pl.BlockSpec((1, L0, n_cat), lambda b: (b, 0, 0))]
    in_specs += [rep_spec(a) for a in weights]

    out = pl.pallas_call(
        kernel,
        out_shape=jax.ShapeDtypeStruct((B, 1, 1), jnp.float32),
        grid=(B,),
        in_specs=in_specs,
        out_specs=pl.BlockSpec((1, 1, 1), lambda b: (b, 0, 0)),
        scratch_shapes=[
            pltpu.VMEM((buf_rows(H, W), n_proj), jnp.float32),    # p0
            pltpu.VMEM((buf_rows(H, W), C), jnp.float32),         # a0
            pltpu.VMEM((buf_rows(H1, W1), C), jnp.float32),       # s1
            pltpu.VMEM((buf_rows(H1, W1), C), jnp.float32),       # hh1
            pltpu.VMEM((buf_rows(H1, W1), C), jnp.float32),       # a1
            pltpu.VMEM((buf_rows(H2, W2), C), jnp.float32),       # s2
            pltpu.VMEM((buf_rows(H2, W2), C), jnp.float32),       # hh2
            pltpu.VMEM((buf_rows(H2, W2), C), jnp.float32),       # a2
        ],
        compiler_params=pltpu.CompilerParams(
            dimension_semantics=("parallel",)),
    )(x_wide, *weights)

    return out[:, 0, 0]


# ------------------------------ parameters -----------------------------------

def init_params(key, n_cat, n_proj, n_channels):
    keys = iter(jax.random.split(key, 64))

    def nrm(shape, fan_in):
        return (jax.random.normal(next(keys), shape, jnp.float32)
                / jnp.sqrt(float(fan_in)))

    params = {
        "proj_w": nrm((n_cat, n_proj), n_cat),
        "proj_b": nrm((n_proj,), n_cat),
        "proj2_w": nrm((9, n_proj, n_channels), 9 * n_proj),
        "proj2_b": nrm((n_channels,), 9 * n_proj),
        "blocks": [],
        "lin_w": nrm((n_channels, 1), n_channels),
        "lin_b": nrm((1,), n_channels),
    }
    strides = [2, 2, 1, 1, 1, 1, 1, 1]   # 2 downsample blocks + 6 main blocks
    for s in strides:
        blk = {
            "stride": s,
            "w1": nrm((9, n_channels, n_channels), 9 * n_channels),
            "b1": nrm((n_channels,), 9 * n_channels),
            "w2": nrm((9, n_channels, n_channels), 9 * n_channels),
            "b2": nrm((n_channels,), 9 * n_channels),
        }
        if s != 1:   # in_planes == planes, so shortcut conv only if stride != 1
            blk["wsc"] = nrm((n_channels, n_channels), n_channels)
            blk["bsc"] = nrm((n_channels,), n_channels)
        params["blocks"].append(blk)
    return params


# --------------------------- pure-JAX reference ------------------------------

def ref_forward(params, x_flat, shape, n_cat):
    b = x_flat.shape[0]
    h, w = shape[1], shape[2]
    x = x_flat.reshape(b, h, w, n_cat)

    def conv(x, w_, b_, stride, ksize):
        if ksize == 3:
            wt = w_.reshape(3, 3, w_.shape[-2], w_.shape[-1])
            pad = ((1, 1), (1, 1))
        else:
            wt = w_.reshape(1, 1, w_.shape[-2], w_.shape[-1])
            pad = ((0, 0), (0, 0))
        y = jax.lax.conv_general_dilated(
            x, wt, (stride, stride), pad,
            dimension_numbers=("NHWC", "HWIO", "NHWC"),
            precision=jax.lax.Precision.HIGHEST)
        return y + b_

    def swish(z):
        return z * jax.nn.sigmoid(z)

    x = conv(x, params["proj_w"], params["proj_b"], 1, 1)
    x = conv(x, params["proj2_w"], params["proj2_b"], 1, 3)
    for blk in params["blocks"]:
        s = blk["stride"]
        h1 = swish(conv(x, blk["w1"], blk["b1"], s, 3))
        h2 = conv(h1, blk["w2"], blk["b2"], 1, 3)
        sc = conv(x, blk["wsc"], blk["bsc"], s, 1) if "wsc" in blk else x
        x = swish(h2 + sc)
    m = x.reshape(b, -1, x.shape[-1]).mean(axis=1)
    return (m @ params["lin_w"] + params["lin_b"])[:, 0]


# ---------------------------------- main --------------------------------------

if __name__ == "__main__":
    B, H, W = 2, 8, 8
    n_cat, n_proj, n_channels = 16, 8, 32
    shape = (n_cat, H, W)

    key = jax.random.PRNGKey(0)
    kp, kx = jax.random.split(key)
    params = init_params(kp, n_cat, n_proj, n_channels)
    x = jax.random.normal(kx, (B, H * W * n_cat), jnp.float32)

    out = resnet_ebm_cat_apply(params, x, shape, n_cat)
    out = jax.block_until_ready(out)
    assert out.shape == (B,), out.shape

    ref = ref_forward(params, x, shape, n_cat)
    if not jnp.allclose(out, ref, atol=5e-3, rtol=5e-3):
        raise AssertionError(f"Pallas/reference mismatch: {out} vs {ref}")

    print("KERNEL_OK")
</pallas_src>

<mosaic_0001>
module attributes {stable_mosaic.version = 11 : i64} {
  func.func @kernel(%arg0: i32, %arg1: memref<1x80x16xf32, #tpu.memory_space<vmem>>, %arg2: memref<16x8xf32, #tpu.memory_space<vmem>>, %arg3: memref<1x8xf32, #tpu.memory_space<vmem>>, %arg4: memref<72x32xf32, #tpu.memory_space<vmem>>, %arg5: memref<1x32xf32, #tpu.memory_space<vmem>>, %arg6: memref<8x288x32xf32, #tpu.memory_space<vmem>>, %arg7: memref<8x1x32xf32, #tpu.memory_space<vmem>>, %arg8: memref<8x288x32xf32, #tpu.memory_space<vmem>>, %arg9: memref<8x1x32xf32, #tpu.memory_space<vmem>>, %arg10: memref<2x32x32xf32, #tpu.memory_space<vmem>>, %arg11: memref<2x1x32xf32, #tpu.memory_space<vmem>>, %arg12: memref<1x32xf32, #tpu.memory_space<vmem>>, %arg13: memref<1x1xf32, #tpu.memory_space<vmem>>, %arg14: memref<80x1xf32, #tpu.memory_space<vmem>>, %arg15: memref<24x1xf32, #tpu.memory_space<vmem>>, %arg16: memref<8x1xf32, #tpu.memory_space<vmem>>, %arg17: memref<1x1x1xf32, #tpu.memory_space<vmem>>, %arg18: memref<104x8xf32, #tpu.memory_space<vmem>>, %arg19: memref<104x32xf32, #tpu.memory_space<vmem>>, %arg20: memref<40x32xf32, #tpu.memory_space<vmem>>, %arg21: memref<40x32xf32, #tpu.memory_space<vmem>>, %arg22: memref<40x32xf32, #tpu.memory_space<vmem>>, %arg23: memref<24x32xf32, #tpu.memory_space<vmem>>, %arg24: memref<24x32xf32, #tpu.memory_space<vmem>>, %arg25: memref<24x32xf32, #tpu.memory_space<vmem>>) attributes {dimension_semantics = [#tpu.dimension_semantics<parallel>], iteration_bounds = array<i64: 2>, scalar_prefetch = 0 : i64, scratch_operands = 8 : i64, tpu.core_type = #tpu.core_type<tc>, window_params = [{transform_indices = @transform_0, window_bounds = array<i64: 1, 80, 16>}, {pipeline_mode = #tpu.pipeline_mode<synchronous>, transform_indices = @transform_1, window_bounds = array<i64: 16, 8>}, {pipeline_mode = #tpu.pipeline_mode<synchronous>, transform_indices = @transform_2, window_bounds = array<i64: 1, 8>}, {pipeline_mode = #tpu.pipeline_mode<synchronous>, transform_indices = @transform_3, window_bounds = array<i64: 72, 32>}, {pipeline_mode = #tpu.pipeline_mode<synchronous>, transform_indices = @transform_4, window_bounds = array<i64: 1, 32>}, {pipeline_mode = #tpu.pipeline_mode<synchronous>, transform_indices = @transform_5, window_bounds = array<i64: 8, 288, 32>}, {pipeline_mode = #tpu.pipeline_mode<synchronous>, transform_indices = @transform_6, window_bounds = array<i64: 8, 1, 32>}, {pipeline_mode = #tpu.pipeline_mode<synchronous>, transform_indices = @transform_7, window_bounds = array<i64: 8, 288, 32>}, {pipeline_mode = #tpu.pipeline_mode<synchronous>, transform_indices = @transform_8, window_bounds = array<i64: 8, 1, 32>}, {pipeline_mode = #tpu.pipeline_mode<synchronous>, transform_indices = @transform_9, window_bounds = array<i64: 2, 32, 32>}, {pipeline_mode = #tpu.pipeline_mode<synchronous>, transform_indices = @transform_10, window_bounds = array<i64: 2, 1, 32>}, {pipeline_mode = #tpu.pipeline_mode<synchronous>, transform_indices = @transform_11, window_bounds = array<i64: 1, 32>}, {pipeline_mode = #tpu.pipeline_mode<synchronous>, transform_indices = @transform_12, window_bounds = array<i64: 1, 1>}, {pipeline_mode = #tpu.pipeline_mode<synchronous>, transform_indices = @transform_13, window_bounds = array<i64: 80, 1>}, {pipeline_mode = #tpu.pipeline_mode<synchronous>, transform_indices = @transform_14, window_bounds = array<i64: 24, 1>}, {pipeline_mode = #tpu.pipeline_mode<synchronous>, transform_indices = @transform_15, window_bounds = array<i64: 8, 1>}, {transform_indices = @transform_16, window_bounds = array<i64: 1, 1, 1>}]} {
    %cst = arith.constant 0.000000e+00 : f32
    %0 = vector.broadcast %cst : f32 to vector<104x8xf32>
    %c0 = arith.constant 0 : index
    %c0_0 = arith.constant 0 : index
    %1 = vector.load %arg18[%c0, %c0_0] : memref<104x8xf32, #tpu.memory_space<vmem>>, vector<104x8xf32>
    tpu.vector_store %arg18[%c0, %c0_0], %0 {strides = array<i32>} : memref<104x8xf32, #tpu.memory_space<vmem>>, vector<104x8xf32>,
    %cst_1 = arith.constant 0.000000e+00 : f32
    %2 = vector.broadcast %cst_1 : f32 to vector<104x32xf32>
    %c0_2 = arith.constant 0 : index
    %c0_3 = arith.constant 0 : index
    %3 = vector.load %arg19[%c0_2, %c0_3] : memref<104x32xf32, #tpu.memory_space<vmem>>, vector<104x32xf32>
    tpu.vector_store %arg19[%c0_2, %c0_3], %2 {strides = array<i32>} : memref<104x32xf32, #tpu.memory_space<vmem>>, vector<104x32xf32>,
    %cst_4 = arith.constant 0.000000e+00 : f32
    %4 = vector.broadcast %cst_4 : f32 to vector<40x32xf32>
    %c0_5 = arith.constant 0 : index
    %c0_6 = arith.constant 0 : index
    %5 = vector.load %arg20[%c0_5, %c0_6] : memref<40x32xf32, #tpu.memory_space<vmem>>, vector<40x32xf32>
    tpu.vector_store %arg20[%c0_5, %c0_6], %4 {strides = array<i32>} : memref<40x32xf32, #tpu.memory_space<vmem>>, vector<40x32xf32>,
    %cst_7 = arith.constant 0.000000e+00 : f32
    %6 = vector.broadcast %cst_7 : f32 to vector<40x32xf32>
    %c0_8 = arith.constant 0 : index
    %c0_9 = arith.constant 0 : index
    %7 = vector.load %arg21[%c0_8, %c0_9] : memref<40x32xf32, #tpu.memory_space<vmem>>, vector<40x32xf32>
    tpu.vector_store %arg21[%c0_8, %c0_9], %6 {strides = array<i32>} : memref<40x32xf32, #tpu.memory_space<vmem>>, vector<40x32xf32>,
    %cst_10 = arith.constant 0.000000e+00 : f32
    %8 = vector.broadcast %cst_10 : f32 to vector<40x32xf32>
    %c0_11 = arith.constant 0 : index
    %c0_12 = arith.constant 0 : index
    %9 = vector.load %arg22[%c0_11, %c0_12] : memref<40x32xf32, #tpu.memory_space<vmem>>, vector<40x32xf32>
    tpu.vector_store %arg22[%c0_11, %c0_12], %8 {strides = array<i32>} : memref<40x32xf32, #tpu.memory_space<vmem>>, vector<40x32xf32>,
    %cst_13 = arith.constant 0.000000e+00 : f32
    %10 = vector.broadcast %cst_13 : f32 to vector<24x32xf32>
    %c0_14 = arith.constant 0 : index
    %c0_15 = arith.constant 0 : index
    %11 = vector.load %arg23[%c0_14, %c0_15] : memref<24x32xf32, #tpu.memory_space<vmem>>, vector<24x32xf32>
    tpu.vector_store %arg23[%c0_14, %c0_15], %10 {strides = array<i32>} : memref<24x32xf32, #tpu.memory_space<vmem>>, vector<24x32xf32>,
    %cst_16 = arith.constant 0.000000e+00 : f32
    %12 = vector.broadcast %cst_16 : f32 to vector<24x32xf32>
    %c0_17 = arith.constant 0 : index
    %c0_18 = arith.constant 0 : index
    %13 = vector.load %arg24[%c0_17, %c0_18] : memref<24x32xf32, #tpu.memory_space<vmem>>, vector<24x32xf32>
    tpu.vector_store %arg24[%c0_17, %c0_18], %12 {strides = array<i32>} : memref<24x32xf32, #tpu.memory_space<vmem>>, vector<24x32xf32>,
    %cst_19 = arith.constant 0.000000e+00 : f32
    %14 = vector.broadcast %cst_19 : f32 to vector<24x32xf32>
    %c0_20 = arith.constant 0 : index
    %c0_21 = arith.constant 0 : index
    %15 = vector.load %arg25[%c0_20, %c0_21] : memref<24x32xf32, #tpu.memory_space<vmem>>, vector<24x32xf32>
    tpu.vector_store %arg25[%c0_20, %c0_21], %14 {strides = array<i32>} : memref<24x32xf32, #tpu.memory_space<vmem>>, vector<24x32xf32>,
    %c0_22 = arith.constant 0 : index
    %c0_23 = arith.constant 0 : index
    %16 = vector.load %arg14[%c0_22, %c0_23] : memref<80x1xf32, #tpu.memory_space<vmem>>, vector<80x1xf32>
    %c0_24 = arith.constant 0 : index
    %c0_25 = arith.constant 0 : index
    %17 = vector.load %arg15[%c0_24, %c0_25] : memref<24x1xf32, #tpu.memory_space<vmem>>, vector<24x1xf32>
    %c0_26 = arith.constant 0 : index
    %c0_27 = arith.constant 0 : index
    %18 = vector.load %arg16[%c0_26, %c0_27] : memref<8x1xf32, #tpu.memory_space<vmem>>, vector<8x1xf32>
    %c0_28 = arith.constant 0 : index
    %c0_29 = arith.constant 0 : index
    %c0_30 = arith.constant 0 : index
    %19 = vector.load %arg1[%c0_28, %c0_29, %c0_30] : memref<1x80x16xf32, #tpu.memory_space<vmem>>, vector<1x80x16xf32>
    %20 = vector.shape_cast %19 : vector<1x80x16xf32> to vector<80x16xf32>
    %c0_31 = arith.constant 0 : index
    %c0_32 = arith.constant 0 : index
    %21 = vector.load %arg2[%c0_31, %c0_32] : memref<16x8xf32, #tpu.memory_space<vmem>>, vector<16x8xf32>
    %cst_33 = arith.constant dense<0.000000e+00> : vector<80x8xf32>
    %22 = tpu.matmul %20, %21, %cst_33 {dimension_numbers = #tpu.dot_dimension_numbers<[1], [0], [0], [1], [0, 0, 1, 1], [], []>} : vector<80x16xf32>, vector<16x8xf32>, vector<80x8xf32> -> vector<80x8xf32>
    %c0_34 = arith.constant 0 : index
    %c0_35 = arith.constant 0 : index
    %23 = vector.load %arg3[%c0_34, %c0_35] : memref<1x8xf32, #tpu.memory_space<vmem>>, vector<1x8xf32>
    %24 = vector.broadcast %23 : vector<1x8xf32> to vector<80x8xf32>
    %25 = arith.addf %22, %24 : vector<80x8xf32>
    %26 = vector.broadcast %16 : vector<80x1xf32> to vector<80x8xf32>
    %27 = arith.mulf %25, %26 : vector<80x8xf32>
    %c11 = arith.constant 11 : index
    %c0_36 = arith.constant 0 : index
    %28 = vector.load %arg18[%c11, %c0_36] : memref<104x8xf32, #tpu.memory_space<vmem>>, vector<80x8xf32>
    tpu.vector_store %arg18[%c11, %c0_36], %27 {strides = array<i32>} : memref<104x8xf32, #tpu.memory_space<vmem>>, vector<80x8xf32>,
    %c0_37 = arith.constant 0 : index
    %c0_38 = arith.constant 0 : index
    %29 = vector.load %arg4[%c0_37, %c0_38] : memref<72x32xf32, #tpu.memory_space<vmem>>, vector<72x32xf32>
    %c0_39 = arith.constant 0 : index
    %c0_40 = arith.constant 0 : index
    %30 = vector.load %arg5[%c0_39, %c0_40] : memref<1x32xf32, #tpu.memory_space<vmem>>, vector<1x32xf32>
    %c0_41 = arith.constant 0 : index
    %c0_42 = arith.constant 0 : index
    %31 = vector.load %arg18[%c0_41, %c0_42] : memref<104x8xf32, #tpu.memory_space<vmem>>, vector<80x8xf32>
    %c1 = arith.constant 1 : index
    %c0_43 = arith.constant 0 : index
    %32 = vector.load %arg18[%c1, %c0_43] : memref<104x8xf32, #tpu.memory_space<vmem>>, vector<80x8xf32>
    %c2 = arith.constant 2 : index
    %c0_44 = arith.constant 0 : index
    %33 = vector.load %arg18[%c2, %c0_44] : memref<104x8xf32, #tpu.memory_space<vmem>>, vector<80x8xf32>
    %c10 = arith.constant 10 : index
    %c0_45 = arith.constant 0 : index
    %34 = vector.load %arg18[%c10, %c0_45] : memref<104x8xf32, #tpu.memory_space<vmem>>, vector<80x8xf32>
    %c11_46 = arith.constant 11 : index
    %c0_47 = arith.constant 0 : index
    %35 = vector.load %arg18[%c11_46, %c0_47] : memref<104x8xf32, #tpu.memory_space<vmem>>, vector<80x8xf32>
    %c12 = arith.constant 12 : index
    %c0_48 = arith.constant 0 : index
    %36 = vector.load %arg18[%c12, %c0_48] : memref<104x8xf32, #tpu.memory_space<vmem>>, vector<80x8xf32>
    %c20 = arith.constant 20 : index
    %c0_49 = arith.constant 0 : index
    %37 = vector.load %arg18[%c20, %c0_49] : memref<104x8xf32, #tpu.memory_space<vmem>>, vector<80x8xf32>
    %c21 = arith.constant 21 : index
    %c0_50 = arith.constant 0 : index
    %38 = vector.load %arg18[%c21, %c0_50] : memref<104x8xf32, #tpu.memory_space<vmem>>, vector<80x8xf32>
    %c22 = arith.constant 22 : index
    %c0_51 = arith.constant 0 : index
    %39 = vector.load %arg18[%c22, %c0_51] : memref<104x8xf32, #tpu.memory_space<vmem>>, vector<80x8xf32>
    %40 = tpu.concatenate %31, %32, %33, %34, %35, %36, %37, %38, %39 in 1 : vector<80x8xf32>, vector<80x8xf32>, vector<80x8xf32>, vector<80x8xf32>, vector<80x8xf32>, vector<80x8xf32>, vector<80x8xf32>, vector<80x8xf32>, vector<80x8xf32> -> vector<80x72xf32>
    %cst_52 = arith.constant dense<0.000000e+00> : vector<80x32xf32>
    %41 = tpu.matmul %40, %29, %cst_52 {dimension_numbers = #tpu.dot_dimension_numbers<[1], [0], [0], [1], [0, 0, 1, 1], [], []>} : vector<80x72xf32>, vector<72x32xf32>, vector<80x32xf32> -> vector<80x32xf32>
    %42 = vector.broadcast %30 : vector<1x32xf32> to vector<80x32xf32>
    %43 = arith.addf %41, %42 : vector<80x32xf32>
    %44 = vector.broadcast %16 : vector<80x1xf32> to vector<80x32xf32>
    %45 = arith.mulf %43, %44 : vector<80x32xf32>
    %c11_53 = arith.constant 11 : index
    %c0_54 = arith.constant 0 : index
    %46 = vector.load %arg19[%c11_53, %c0_54] : memref<104x32xf32, #tpu.memory_space<vmem>>, vector<80x32xf32>
    tpu.vector_store %arg19[%c11_53, %c0_54], %45 {strides = array<i32>} : memref<104x32xf32, #tpu.memory_space<vmem>>, vector<80x32xf32>,
    %c11_55 = arith.constant 11 : index
    %c0_56 = arith.constant 0 : index
    %47 = tpu.strided_load %arg19[%c11_55, %c0_56] {strides = array<i32: 2, 1>} : memref<104x32xf32, #tpu.memory_space<vmem>>, vector<4x32xf32>
    %c7 = arith.constant 7 : index
    %c0_57 = arith.constant 0 : index
    %48 = vector.load %arg20[%c7, %c0_57] : memref<40x32xf32, #tpu.memory_space<vmem>>, vector<4x32xf32>
    tpu.vector_store %arg20[%c7, %c0_57], %47 {strides = array<i32>} : memref<40x32xf32, #tpu.memory_space<vmem>>, vector<4x32xf32>,
    %c31 = arith.constant 31 : index
    %c0_58 = arith.constant 0 : index
    %49 = tpu.strided_load %arg19[%c31, %c0_58] {strides = array<i32: 2, 1>} : memref<104x32xf32, #tpu.memory_space<vmem>>, vector<4x32xf32>
    %c13 = arith.constant 13 : index
    %c0_59 = arith.constant 0 : index
    %50 = vector.load %arg20[%c13, %c0_59] : memref<40x32xf32, #tpu.memory_space<vmem>>, vector<4x32xf32>
    tpu.vector_store %arg20[%c13, %c0_59], %49 {strides = array<i32>} : memref<40x32xf32, #tpu.memory_space<vmem>>, vector<4x32xf32>,
    %c51 = arith.constant 51 : index
    %c0_60 = arith.constant 0 : index
    %51 = tpu.strided_load %arg19[%c51, %c0_60] {strides = array<i32: 2, 1>} : memref<104x32xf32, #tpu.memory_space<vmem>>, vector<4x32xf32>
    %c19 = arith.constant 19 : index
    %c0_61 = arith.constant 0 : index
    %52 = vector.load %arg20[%c19, %c0_61] : memref<40x32xf32, #tpu.memory_space<vmem>>, vector<4x32xf32>
    tpu.vector_store %arg20[%c19, %c0_61], %51 {strides = array<i32>} : memref<40x32xf32, #tpu.memory_space<vmem>>, vector<4x32xf32>,
    %c71 = arith.constant 71 : index
    %c0_62 = arith.constant 0 : index
    %53 = tpu.strided_load %arg19[%c71, %c0_62] {strides = array<i32: 2, 1>} : memref<104x32xf32, #tpu.memory_space<vmem>>, vector<4x32xf32>
    %c25 = arith.constant 25 : index
    %c0_63 = arith.constant 0 : index
    %54 = vector.load %arg20[%c25, %c0_63] : memref<40x32xf32, #tpu.memory_space<vmem>>, vector<4x32xf32>
    tpu.vector_store %arg20[%c25, %c0_63], %53 {strides = array<i32>} : memref<40x32xf32, #tpu.memory_space<vmem>>, vector<4x32xf32>,
    %c0_64 = arith.constant 0 : index
    %c0_65 = arith.constant 0 : index
    %c0_66 = arith.constant 0 : index
    %55 = vector.load %arg6[%c0_64, %c0_65, %c0_66] : memref<8x288x32xf32, #tpu.memory_space<vmem>>, vector<1x288x32xf32>
    %56 = vector.shape_cast %55 : vector<1x288x32xf32> to vector<288x32xf32>
    %c0_67 = arith.constant 0 : index
    %c0_68 = arith.constant 0 : index
    %c0_69 = arith.constant 0 : index
    %57 = vector.load %arg7[%c0_67, %c0_68, %c0_69] : memref<8x1x32xf32, #tpu.memory_space<vmem>>, vector<1x1x32xf32>
    %58 = vector.shape_cast %57 : vector<1x1x32xf32> to vector<1x32xf32>
    %c0_70 = arith.constant 0 : index
    %c0_71 = arith.constant 0 : index
    %59 = vector.load %arg19[%c0_70, %c0_71] : memref<104x32xf32, #tpu.memory_space<vmem>>, vector<80x32xf32>
    %c1_72 = arith.constant 1 : index
    %c0_73 = arith.constant 0 : index
    %60 = vector.load %arg19[%c1_72, %c0_73] : memref<104x32xf32, #tpu.memory_space<vmem>>, vector<80x32xf32>
    %c2_74 = arith.constant 2 : index
    %c0_75 = arith.constant 0 : index
    %61 = vector.load %arg19[%c2_74, %c0_75] : memref<104x32xf32, #tpu.memory_space<vmem>>, vector<80x32xf32>
    %c10_76 = arith.constant 10 : index
    %c0_77 = arith.constant 0 : index
    %62 = vector.load %arg19[%c10_76, %c0_77] : memref<104x32xf32, #tpu.memory_space<vmem>>, vector<80x32xf32>
    %c11_78 = arith.constant 11 : index
    %c0_79 = arith.constant 0 : index
    %63 = vector.load %arg19[%c11_78, %c0_79] : memref<104x32xf32, #tpu.memory_space<vmem>>, vector<80x32xf32>
    %c12_80 = arith.constant 12 : index
    %c0_81 = arith.constant 0 : index
    %64 = vector.load %arg19[%c12_80, %c0_81] : memref<104x32xf32, #tpu.memory_space<vmem>>, vector<80x32xf32>
    %c20_82 = arith.constant 20 : index
    %c0_83 = arith.constant 0 : index
    %65 = vector.load %arg19[%c20_82, %c0_83] : memref<104x32xf32, #tpu.memory_space<vmem>>, vector<80x32xf32>
    %c21_84 = arith.constant 21 : index
    %c0_85 = arith.constant 0 : index
    %66 = vector.load %arg19[%c21_84, %c0_85] : memref<104x32xf32, #tpu.memory_space<vmem>>, vector<80x32xf32>
    %c22_86 = arith.constant 22 : index
    %c0_87 = arith.constant 0 : index
    %67 = vector.load %arg19[%c22_86, %c0_87] : memref<104x32xf32, #tpu.memory_space<vmem>>, vector<80x32xf32>
    %68 = tpu.concatenate %59, %60, %61, %62, %63, %64, %65, %66, %67 in 1 : vector<80x32xf32>, vector<80x32xf32>, vector<80x32xf32>, vector<80x32xf32>, vector<80x32xf32>, vector<80x32xf32>, vector<80x32xf32>, vector<80x32xf32>, vector<80x32xf32> -> vector<80x288xf32>
    %cst_88 = arith.constant dense<0.000000e+00> : vector<80x32xf32>
    %69 = tpu.matmul %68, %56, %cst_88 {dimension_numbers = #tpu.dot_dimension_numbers<[1], [0], [0], [1], [0, 0, 1, 1], [], []>} : vector<80x288xf32>, vector<288x32xf32>, vector<80x32xf32> -> vector<80x32xf32>
    %70 = vector.broadcast %58 : vector<1x32xf32> to vector<80x32xf32>
    %71 = arith.addf %69, %70 : vector<80x32xf32>
    %72 = arith.negf %71 : vector<80x32xf32>
    %73 = math.exp %72 : vector<80x32xf32>
    %cst_89 = arith.constant 1.000000e+00 : f32
    %74 = vector.broadcast %cst_89 : f32 to vector<80x32xf32>
    %75 = arith.addf %74, %73 : vector<80x32xf32>
    %76 = arith.divf %74, %75 : vector<80x32xf32>
    %77 = arith.mulf %71, %76 : vector<80x32xf32>
    %78 = vector.broadcast %16 : vector<80x1xf32> to vector<80x32xf32>
    %79 = arith.mulf %77, %78 : vector<80x32xf32>
    %c11_90 = arith.constant 11 : index
    %c0_91 = arith.constant 0 : index
    %80 = vector.load %arg19[%c11_90, %c0_91] : memref<104x32xf32, #tpu.memory_space<vmem>>, vector<80x32xf32>
    tpu.vector_store %arg19[%c11_90, %c0_91], %79 {strides = array<i32>} : memref<104x32xf32, #tpu.memory_space<vmem>>, vector<80x32xf32>,
    %c11_92 = arith.constant 11 : index
    %c0_93 = arith.constant 0 : index
    %81 = tpu.strided_load %arg19[%c11_92, %c0_93] {strides = array<i32: 2, 1>} : memref<104x32xf32, #tpu.memory_space<vmem>>, vector<4x32xf32>
    %c7_94 = arith.constant 7 : index
    %c0_95 = arith.constant 0 : index
    %82 = vector.load %arg21[%c7_94, %c0_95] : memref<40x32xf32, #tpu.memory_space<vmem>>, vector<4x32xf32>
    tpu.vector_store %arg21[%c7_94, %c0_95], %81 {strides = array<i32>} : memref<40x32xf32, #tpu.memory_space<vmem>>, vector<4x32xf32>,
    %c31_96 = arith.constant 31 : index
    %c0_97 = arith.constant 0 : index
    %83 = tpu.strided_load %arg19[%c31_96, %c0_97] {strides = array<i32: 2, 1>} : memref<104x32xf32, #tpu.memory_space<vmem>>, vector<4x32xf32>
    %c13_98 = arith.constant 13 : index
    %c0_99 = arith.constant 0 : index
    %84 = vector.load %arg21[%c13_98, %c0_99] : memref<40x32xf32, #tpu.memory_space<vmem>>, vector<4x32xf32>
    tpu.vector_store %arg21[%c13_98, %c0_99], %83 {strides = array<i32>} : memref<40x32xf32, #tpu.memory_space<vmem>>, vector<4x32xf32>,
    %c51_100 = arith.constant 51 : index
    %c0_101 = arith.constant 0 : index
    %85 = tpu.strided_load %arg19[%c51_100, %c0_101] {strides = array<i32: 2, 1>} : memref<104x32xf32, #tpu.memory_space<vmem>>, vector<4x32xf32>
    %c19_102 = arith.constant 19 : index
    %c0_103 = arith.constant 0 : index
    %86 = vector.load %arg21[%c19_102, %c0_103] : memref<40x32xf32, #tpu.memory_space<vmem>>, vector<4x32xf32>
    tpu.vector_store %arg21[%c19_102, %c0_103], %85 {strides = array<i32>} : memref<40x32xf32, #tpu.memory_space<vmem>>, vector<4x32xf32>,
    %c71_104 = arith.constant 71 : index
    %c0_105 = arith.constant 0 : index
    %87 = tpu.strided_load %arg19[%c71_104, %c0_105] {strides = array<i32: 2, 1>} : memref<104x32xf32, #tpu.memory_space<vmem>>, vector<4x32xf32>
    %c25_106 = arith.constant 25 : index
    %c0_107 = arith.constant 0 : index
    %88 = vector.load %arg21[%c25_106, %c0_107] : memref<40x32xf32, #tpu.memory_space<vmem>>, vector<4x32xf32>
    tpu.vector_store %arg21[%c25_106, %c0_107], %87 {strides = array<i32>} : memref<40x32xf32, #tpu.memory_space<vmem>>, vector<4x32xf32>,
    %c0_108 = arith.constant 0 : index
    %c0_109 = arith.constant 0 : index
    %c0_110 = arith.constant 0 : index
    %89 = vector.load %arg8[%c0_108, %c0_109, %c0_110] : memref<8x288x32xf32, #tpu.memory_space<vmem>>, vector<1x288x32xf32>
    %90 = vector.shape_cast %89 : vector<1x288x32xf32> to vector<288x32xf32>
    %c0_111 = arith.constant 0 : index
    %c0_112 = arith.constant 0 : index
    %c0_113 = arith.constant 0 : index
    %91 = vector.load %arg9[%c0_111, %c0_112, %c0_113] : memref<8x1x32xf32, #tpu.memory_space<vmem>>, vector<1x1x32xf32>
    %92 = vector.shape_cast %91 : vector<1x1x32xf32> to vector<1x32xf32>
    %c0_114 = arith.constant 0 : index
    %c0_115 = arith.constant 0 : index
    %93 = vector.load %arg21[%c0_114, %c0_115] : memref<40x32xf32, #tpu.memory_space<vmem>>, vector<24x32xf32>
    %c1_116 = arith.constant 1 : index
    %c0_117 = arith.constant 0 : index
    %94 = vector.load %arg21[%c1_116, %c0_117] : memref<40x32xf32, #tpu.memory_space<vmem>>, vector<24x32xf32>
    %c2_118 = arith.constant 2 : index
    %c0_119 = arith.constant 0 : index
    %95 = vector.load %arg21[%c2_118, %c0_119] : memref<40x32xf32, #tpu.memory_space<vmem>>, vector<24x32xf32>
    %c6 = arith.constant 6 : index
    %c0_120 = arith.constant 0 : index
    %96 = vector.load %arg21[%c6, %c0_120] : memref<40x32xf32, #tpu.memory_space<vmem>>, vector<24x32xf32>
    %c7_121 = arith.constant 7 : index
    %c0_122 = arith.constant 0 : index
    %97 = vector.load %arg21[%c7_121, %c0_122] : memref<40x32xf32, #tpu.memory_space<vmem>>, vector<24x32xf32>
    %c8 = arith.constant 8 : index
    %c0_123 = arith.constant 0 : index
    %98 = vector.load %arg21[%c8, %c0_123] : memref<40x32xf32, #tpu.memory_space<vmem>>, vector<24x32xf32>
    %c12_124 = arith.constant 12 : index
    %c0_125 = arith.constant 0 : index
    %99 = vector.load %arg21[%c12_124, %c0_125] : memref<40x32xf32, #tpu.memory_space<vmem>>, vector<24x32xf32>
    %c13_126 = arith.constant 13 : index
    %c0_127 = arith.constant 0 : index
    %100 = vector.load %arg21[%c13_126, %c0_127] : memref<40x32xf32, #tpu.memory_space<vmem>>, vector<24x32xf32>
    %c14 = arith.constant 14 : index
    %c0_128 = arith.constant 0 : index
    %101 = vector.load %arg21[%c14, %c0_128] : memref<40x32xf32, #tpu.memory_space<vmem>>, vector<24x32xf32>
    %102 = tpu.concatenate %93, %94, %95, %96, %97, %98, %99, %100, %101 in 1 : vector<24x32xf32>, vector<24x32xf32>, vector<24x32xf32>, vector<24x32xf32>, vector<24x32xf32>, vector<24x32xf32>, vector<24x32xf32>, vector<24x32xf32>, vector<24x32xf32> -> vector<24x288xf32>
    %cst_129 = arith.constant dense<0.000000e+00> : vector<24x32xf32>
    %103 = tpu.matmul %102, %90, %cst_129 {dimension_numbers = #tpu.dot_dimension_numbers<[1], [0], [0], [1], [0, 0, 1, 1], [], []>} : vector<24x288xf32>, vector<288x32xf32>, vector<24x32xf32> -> vector<24x32xf32>
    %104 = vector.broadcast %92 : vector<1x32xf32> to vector<24x32xf32>
    %105 = arith.addf %103, %104 : vector<24x32xf32>
    %c7_130 = arith.constant 7 : index
    %c0_131 = arith.constant 0 : index
    %106 = vector.load %arg20[%c7_130, %c0_131] : memref<40x32xf32, #tpu.memory_space<vmem>>, vector<24x32xf32>
    %c0_132 = arith.constant 0 : index
    %c0_133 = arith.constant 0 : index
    %c0_134 = arith.constant 0 : index
    %107 = vector.load %arg10[%c0_132, %c0_133, %c0_134] : memref<2x32x32xf32, #tpu.memory_space<vmem>>, vector<1x32x32xf32>
    %108 = vector.shape_cast %107 : vector<1x32x32xf32> to vector<32x32xf32>
    %cst_135 = arith.constant dense<0.000000e+00> : vector<24x32xf32>
    %109 = tpu.matmul %106, %108, %cst_135 {dimension_numbers = #tpu.dot_dimension_numbers<[1], [0], [0], [1], [0, 0, 1, 1], [], []>} : vector<24x32xf32>, vector<32x32xf32>, vector<24x32xf32> -> vector<24x32xf32>
    %c0_136 = arith.constant 0 : index
    %c0_137 = arith.constant 0 : index
    %c0_138 = arith.constant 0 : index
    %110 = vector.load %arg11[%c0_136, %c0_137, %c0_138] : memref<2x1x32xf32, #tpu.memory_space<vmem>>, vector<1x1x32xf32>
    %111 = vector.shape_cast %110 : vector<1x1x32xf32> to vector<1x32xf32>
    %112 = vector.broadcast %111 : vector<1x32xf32> to vector<24x32xf32>
    %113 = arith.addf %109, %112 : vector<24x32xf32>
    %114 = arith.addf %105, %113 : vector<24x32xf32>
    %115 = arith.negf %114 : vector<24x32xf32>
    %116 = math.exp %115 : vector<24x32xf32>
    %cst_139 = arith.constant 1.000000e+00 : f32
    %117 = vector.broadcast %cst_139 : f32 to vector<24x32xf32>
    %118 = arith.addf %117, %116 : vector<24x32xf32>
    %119 = arith.divf %117, %118 : vector<24x32xf32>
    %120 = arith.mulf %114, %119 : vector<24x32xf32>
    %121 = vector.broadcast %17 : vector<24x1xf32> to vector<24x32xf32>
    %122 = arith.mulf %120, %121 : vector<24x32xf32>
    %c7_140 = arith.constant 7 : index
    %c0_141 = arith.constant 0 : index
    %123 = vector.load %arg22[%c7_140, %c0_141] : memref<40x32xf32, #tpu.memory_space<vmem>>, vector<24x32xf32>
    tpu.vector_store %arg22[%c7_140, %c0_141], %122 {strides = array<i32>} : memref<40x32xf32, #tpu.memory_space<vmem>>, vector<24x32xf32>,
    %c7_142 = arith.constant 7 : index
    %c0_143 = arith.constant 0 : index
    %124 = tpu.strided_load %arg22[%c7_142, %c0_143] {strides = array<i32: 2, 1>} : memref<40x32xf32, #tpu.memory_space<vmem>>, vector<2x32xf32>
    %c5 = arith.constant 5 : index
    %c0_144 = arith.constant 0 : index
    %125 = vector.load %arg23[%c5, %c0_144] : memref<24x32xf32, #tpu.memory_space<vmem>>, vector<2x32xf32>
    tpu.vector_store %arg23[%c5, %c0_144], %124 {strides = array<i32>} : memref<24x32xf32, #tpu.memory_space<vmem>>, vector<2x32xf32>,
    %c19_145 = arith.constant 19 : index
    %c0_146 = arith.constant 0 : index
    %126 = tpu.strided_load %arg22[%c19_145, %c0_146] {strides = array<i32: 2, 1>} : memref<40x32xf32, #tpu.memory_space<vmem>>, vector<2x32xf32>
    %c9 = arith.constant 9 : index
    %c0_147 = arith.constant 0 : index
    %127 = vector.load %arg23[%c9, %c0_147] : memref<24x32xf32, #tpu.memory_space<vmem>>, vector<2x32xf32>
    tpu.vector_store %arg23[%c9, %c0_147], %126 {strides = array<i32>} : memref<24x32xf32, #tpu.memory_space<vmem>>, vector<2x32xf32>,
    %c1_148 = arith.constant 1 : index
    %c0_149 = arith.constant 0 : index
    %c0_150 = arith.constant 0 : index
    %128 = vector.load %arg6[%c1_148, %c0_149, %c0_150] : memref<8x288x32xf32, #tpu.memory_space<vmem>>, vector<1x288x32xf32>
    %129 = vector.shape_cast %128 : vector<1x288x32xf32> to vector<288x32xf32>
    %c1_151 = arith.constant 1 : index
    %c0_152 = arith.constant 0 : index
    %c0_153 = arith.constant 0 : index
    %130 = vector.load %arg7[%c1_151, %c0_152, %c0_153] : memref<8x1x32xf32, #tpu.memory_space<vmem>>, vector<1x1x32xf32>
    %131 = vector.shape_cast %130 : vector<1x1x32xf32> to vector<1x32xf32>
    %c0_154 = arith.constant 0 : index
    %c0_155 = arith.constant 0 : index
    %132 = vector.load %arg22[%c0_154, %c0_155] : memref<40x32xf32, #tpu.memory_space<vmem>>, vector<24x32xf32>
    %c1_156 = arith.constant 1 : index
    %c0_157 = arith.constant 0 : index
    %133 = vector.load %arg22[%c1_156, %c0_157] : memref<40x32xf32, #tpu.memory_space<vmem>>, vector<24x32xf32>
    %c2_158 = arith.constant 2 : index
    %c0_159 = arith.constant 0 : index
    %134 = vector.load %arg22[%c2_158, %c0_159] : memref<40x32xf32, #tpu.memory_space<vmem>>, vector<24x32xf32>
    %c6_160 = arith.constant 6 : index
    %c0_161 = arith.constant 0 : index
    %135 = vector.load %arg22[%c6_160, %c0_161] : memref<40x32xf32, #tpu.memory_space<vmem>>, vector<24x32xf32>
    %c7_162 = arith.constant 7 : index
    %c0_163 = arith.constant 0 : index
    %136 = vector.load %arg22[%c7_162, %c0_163] : memref<40x32xf32, #tpu.memory_space<vmem>>, vector<24x32xf32>
    %c8_164 = arith.constant 8 : index
    %c0_165 = arith.constant 0 : index
    %137 = vector.load %arg22[%c8_164, %c0_165] : memref<40x32xf32, #tpu.memory_space<vmem>>, vector<24x32xf32>
    %c12_166 = arith.constant 12 : index
    %c0_167 = arith.constant 0 : index
    %138 = vector.load %arg22[%c12_166, %c0_167] : memref<40x32xf32, #tpu.memory_space<vmem>>, vector<24x32xf32>
    %c13_168 = arith.constant 13 : index
    %c0_169 = arith.constant 0 : index
    %139 = vector.load %arg22[%c13_168, %c0_169] : memref<40x32xf32, #tpu.memory_space<vmem>>, vector<24x32xf32>
    %c14_170 = arith.constant 14 : index
    %c0_171 = arith.constant 0 : index
    %140 = vector.load %arg22[%c14_170, %c0_171] : memref<40x32xf32, #tpu.memory_space<vmem>>, vector<24x32xf32>
    %141 = tpu.concatenate %132, %133, %134, %135, %136, %137, %138, %139, %140 in 1 : vector<24x32xf32>, vector<24x32xf32>, vector<24x32xf32>, vector<24x32xf32>, vector<24x32xf32>, vector<24x32xf32>, vector<24x32xf32>, vector<24x32xf32>, vector<24x32xf32> -> vector<24x288xf32>
    %cst_172 = arith.constant dense<0.000000e+00> : vector<24x32xf32>
    %142 = tpu.matmul %141, %129, %cst_172 {dimension_numbers = #tpu.dot_dimension_numbers<[1], [0], [0], [1], [0, 0, 1, 1], [], []>} : vector<24x288xf32>, vector<288x32xf32>, vector<24x32xf32> -> vector<24x32xf32>
    %143 = vector.broadcast %131 : vector<1x32xf32> to vector<24x32xf32>
    %144 = arith.addf %142, %143 : vector<24x32xf32>
    %145 = arith.negf %144 : vector<24x32xf32>
    %146 = math.exp %145 : vector<24x32xf32>
    %cst_173 = arith.constant 1.000000e+00 : f32
    %147 = vector.broadcast %cst_173 : f32 to vector<24x32xf32>
    %148 = arith.addf %147, %146 : vector<24x32xf32>
    %149 = arith.divf %147, %148 : vector<24x32xf32>
    %150 = arith.mulf %144, %149 : vector<24x32xf32>
    %151 = vector.broadcast %17 : vector<24x1xf32> to vector<24x32xf32>
    %152 = arith.mulf %150, %151 : vector<24x32xf32>
    %c7_174 = arith.constant 7 : index
    %c0_175 = arith.constant 0 : index
    %153 = vector.load %arg22[%c7_174, %c0_175] : memref<40x32xf32, #tpu.memory_space<vmem>>, vector<24x32xf32>
    tpu.vector_store %arg22[%c7_174, %c0_175], %152 {strides = array<i32>} : memref<40x32xf32, #tpu.memory_space<vmem>>, vector<24x32xf32>,
    %c7_176 = arith.constant 7 : index
    %c0_177 = arith.constant 0 : index
    %154 = tpu.strided_load %arg22[%c7_176, %c0_177] {strides = array<i32: 2, 1>} : memref<40x32xf32, #tpu.memory_space<vmem>>, vector<2x32xf32>
    %c5_178 = arith.constant 5 : index
    %c0_179 = arith.constant 0 : index
    %155 = vector.load %arg24[%c5_178, %c0_179] : memref<24x32xf32, #tpu.memory_space<vmem>>, vector<2x32xf32>
    tpu.vector_store %arg24[%c5_178, %c0_179], %154 {strides = array<i32>} : memref<24x32xf32, #tpu.memory_space<vmem>>, vector<2x32xf32>,
    %c19_180 = arith.constant 19 : index
    %c0_181 = arith.constant 0 : index
    %156 = tpu.strided_load %arg22[%c19_180, %c0_181] {strides = array<i32: 2, 1>} : memref<40x32xf32, #tpu.memory_space<vmem>>, vector<2x32xf32>
    %c9_182 = arith.constant 9 : index
    %c0_183 = arith.constant 0 : index
    %157 = vector.load %arg24[%c9_182, %c0_183] : memref<24x32xf32, #tpu.memory_space<vmem>>, vector<2x32xf32>
    tpu.vector_store %arg24[%c9_182, %c0_183], %156 {strides = array<i32>} : memref<24x32xf32, #tpu.memory_space<vmem>>, vector<2x32xf32>,
    %c1_184 = arith.constant 1 : index
    %c0_185 = arith.constant 0 : index
    %c0_186 = arith.constant 0 : index
    %158 = vector.load %arg8[%c1_184, %c0_185, %c0_186] : memref<8x288x32xf32, #tpu.memory_space<vmem>>, vector<1x288x32xf32>
    %159 = vector.shape_cast %158 : vector<1x288x32xf32> to vector<288x32xf32>
    %c1_187 = arith.constant 1 : index
    %c0_188 = arith.constant 0 : index
    %c0_189 = arith.constant 0 : index
    %160 = vector.load %arg9[%c1_187, %c0_188, %c0_189] : memref<8x1x32xf32, #tpu.memory_space<vmem>>, vector<1x1x32xf32>
    %161 = vector.shape_cast %160 : vector<1x1x32xf32> to vector<1x32xf32>
    %c0_190 = arith.constant 0 : index
    %c0_191 = arith.constant 0 : index
    %162 = vector.load %arg24[%c0_190, %c0_191] : memref<24x32xf32, #tpu.memory_space<vmem>>, vector<8x32xf32>
    %c1_192 = arith.constant 1 : index
    %c0_193 = arith.constant 0 : index
    %163 = vector.load %arg24[%c1_192, %c0_193] : memref<24x32xf32, #tpu.memory_space<vmem>>, vector<8x32xf32>
    %c2_194 = arith.constant 2 : index
    %c0_195 = arith.constant 0 : index
    %164 = vector.load %arg24[%c2_194, %c0_195] : memref<24x32xf32, #tpu.memory_space<vmem>>, vector<8x32xf32>
    %c4 = arith.constant 4 : index
    %c0_196 = arith.constant 0 : index
    %165 = vector.load %arg24[%c4, %c0_196] : memref<24x32xf32, #tpu.memory_space<vmem>>, vector<8x32xf32>
    %c5_197 = arith.constant 5 : index
    %c0_198 = arith.constant 0 : index
    %166 = vector.load %arg24[%c5_197, %c0_198] : memref<24x32xf32, #tpu.memory_space<vmem>>, vector<8x32xf32>
    %c6_199 = arith.constant 6 : index
    %c0_200 = arith.constant 0 : index
    %167 = vector.load %arg24[%c6_199, %c0_200] : memref<24x32xf32, #tpu.memory_space<vmem>>, vector<8x32xf32>
    %c8_201 = arith.constant 8 : index
    %c0_202 = arith.constant 0 : index
    %168 = vector.load %arg24[%c8_201, %c0_202] : memref<24x32xf32, #tpu.memory_space<vmem>>, vector<8x32xf32>
    %c9_203 = arith.constant 9 : index
    %c0_204 = arith.constant 0 : index
    %169 = vector.load %arg24[%c9_203, %c0_204] : memref<24x32xf32, #tpu.memory_space<vmem>>, vector<8x32xf32>
    %c10_205 = arith.constant 10 : index
    %c0_206 = arith.constant 0 : index
    %170 = vector.load %arg24[%c10_205, %c0_206] : memref<24x32xf32, #tpu.memory_space<vmem>>, vector<8x32xf32>
    %171 = tpu.concatenate %162, %163, %164, %165, %166, %167, %168, %169, %170 in 1 : vector<8x32xf32>, vector<8x32xf32>, vector<8x32xf32>, vector<8x32xf32>, vector<8x32xf32>, vector<8x32xf32>, vector<8x32xf32>, vector<8x32xf32>, vector<8x32xf32> -> vector<8x288xf32>
    %cst_207 = arith.constant dense<0.000000e+00> : vector<8x32xf32>
    %172 = tpu.matmul %171, %159, %cst_207 {dimension_numbers = #tpu.dot_dimension_numbers<[1], [0], [0], [1], [0, 0, 1, 1], [], []>} : vector<8x288xf32>, vector<288x32xf32>, vector<8x32xf32> -> vector<8x32xf32>
    %173 = vector.broadcast %161 : vector<1x32xf32> to vector<8x32xf32>
    %174 = arith.addf %172, %173 : vector<8x32xf32>
    %c5_208 = arith.constant 5 : index
    %c0_209 = arith.constant 0 : index
    %175 = vector.load %arg23[%c5_208, %c0_209] : memref<24x32xf32, #tpu.memory_space<vmem>>, vector<8x32xf32>
    %c1_210 = arith.constant 1 : index
    %c0_211 = arith.constant 0 : index
    %c0_212 = arith.constant 0 : index
    %176 = vector.load %arg10[%c1_210, %c0_211, %c0_212] : memref<2x32x32xf32, #tpu.memory_space<vmem>>, vector<1x32x32xf32>
    %177 = vector.shape_cast %176 : vector<1x32x32xf32> to vector<32x32xf32>
    %cst_213 = arith.constant dense<0.000000e+00> : vector<8x32xf32>
    %178 = tpu.matmul %175, %177, %cst_213 {dimension_numbers = #tpu.dot_dimension_numbers<[1], [0], [0], [1], [0, 0, 1, 1], [], []>} : vector<8x32xf32>, vector<32x32xf32>, vector<8x32xf32> -> vector<8x32xf32>
    %c1_214 = arith.constant 1 : index
    %c0_215 = arith.constant 0 : index
    %c0_216 = arith.constant 0 : index
    %179 = vector.load %arg11[%c1_214, %c0_215, %c0_216] : memref<2x1x32xf32, #tpu.memory_space<vmem>>, vector<1x1x32xf32>
    %180 = vector.shape_cast %179 : vector<1x1x32xf32> to vector<1x32xf32>
    %181 = vector.broadcast %180 : vector<1x32xf32> to vector<8x32xf32>
    %182 = arith.addf %178, %181 : vector<8x32xf32>
    %183 = arith.addf %174, %182 : vector<8x32xf32>
    %184 = arith.negf %183 : vector<8x32xf32>
    %185 = math.exp %184 : vector<8x32xf32>
    %cst_217 = arith.constant 1.000000e+00 : f32
    %186 = vector.broadcast %cst_217 : f32 to vector<8x32xf32>
    %187 = arith.addf %186, %185 : vector<8x32xf32>
    %188 = arith.divf %186, %187 : vector<8x32xf32>
    %189 = arith.mulf %183, %188 : vector<8x32xf32>
    %190 = vector.broadcast %18 : vector<8x1xf32> to vector<8x32xf32>
    %191 = arith.mulf %189, %190 : vector<8x32xf32>
    %c5_218 = arith.constant 5 : index
    %c0_219 = arith.constant 0 : index
    %192 = vector.load %arg25[%c5_218, %c0_219] : memref<24x32xf32, #tpu.memory_space<vmem>>, vector<8x32xf32>
    tpu.vector_store %arg25[%c5_218, %c0_219], %191 {strides = array<i32>} : memref<24x32xf32, #tpu.memory_space<vmem>>, vector<8x32xf32>,
    %c2_220 = arith.constant 2 : index
    %c0_221 = arith.constant 0 : index
    %c0_222 = arith.constant 0 : index
    %193 = vector.load %arg6[%c2_220, %c0_221, %c0_222] : memref<8x288x32xf32, #tpu.memory_space<vmem>>, vector<1x288x32xf32>
    %194 = vector.shape_cast %193 : vector<1x288x32xf32> to vector<288x32xf32>
    %c2_223 = arith.constant 2 : index
    %c0_224 = arith.constant 0 : index
    %c0_225 = arith.constant 0 : index
    %195 = vector.load %arg7[%c2_223, %c0_224, %c0_225] : memref<8x1x32xf32, #tpu.memory_space<vmem>>, vector<1x1x32xf32>
    %196 = vector.shape_cast %195 : vector<1x1x32xf32> to vector<1x32xf32>
    %c0_226 = arith.constant 0 : index
    %c0_227 = arith.constant 0 : index
    %197 = vector.load %arg25[%c0_226, %c0_227] : memref<24x32xf32, #tpu.memory_space<vmem>>, vector<8x32xf32>
    %c1_228 = arith.constant 1 : index
    %c0_229 = arith.constant 0 : index
    %198 = vector.load %arg25[%c1_228, %c0_229] : memref<24x32xf32, #tpu.memory_space<vmem>>, vector<8x32xf32>
    %c2_230 = arith.constant 2 : index
    %c0_231 = arith.constant 0 : index
    %199 = vector.load %arg25[%c2_230, %c0_231] : memref<24x32xf32, #tpu.memory_space<vmem>>, vector<8x32xf32>
    %c4_232 = arith.constant 4 : index
    %c0_233 = arith.constant 0 : index
    %200 = vector.load %arg25[%c4_232, %c0_233] : memref<24x32xf32, #tpu.memory_space<vmem>>, vector<8x32xf32>
    %c5_234 = arith.constant 5 : index
    %c0_235 = arith.constant 0 : index
    %201 = vector.load %arg25[%c5_234, %c0_235] : memref<24x32xf32, #tpu.memory_space<vmem>>, vector<8x32xf32>
    %c6_236 = arith.constant 6 : index
    %c0_237 = arith.constant 0 : index
    %202 = vector.load %arg25[%c6_236, %c0_237] : memref<24x32xf32, #tpu.memory_space<vmem>>, vector<8x32xf32>
    %c8_238 = arith.constant 8 : index
    %c0_239 = arith.constant 0 : index
    %203 = vector.load %arg25[%c8_238, %c0_239] : memref<24x32xf32, #tpu.memory_space<vmem>>, vector<8x32xf32>
    %c9_240 = arith.constant 9 : index
    %c0_241 = arith.constant 0 : index
    %204 = vector.load %arg25[%c9_240, %c0_241] : memref<24x32xf32, #tpu.memory_space<vmem>>, vector<8x32xf32>
    %c10_242 = arith.constant 10 : index
    %c0_243 = arith.constant 0 : index
    %205 = vector.load %arg25[%c10_242, %c0_243] : memref<24x32xf32, #tpu.memory_space<vmem>>, vector<8x32xf32>
    %206 = tpu.concatenate %197, %198, %199, %200, %201, %202, %203, %204, %205 in 1 : vector<8x32xf32>, vector<8x32xf32>, vector<8x32xf32>, vector<8x32xf32>, vector<8x32xf32>, vector<8x32xf32>, vector<8x32xf32>, vector<8x32xf32>, vector<8x32xf32> -> vector<8x288xf32>
    %cst_244 = arith.constant dense<0.000000e+00> : vector<8x32xf32>
    %207 = tpu.matmul %206, %194, %cst_244 {dimension_numbers = #tpu.dot_dimension_numbers<[1], [0], [0], [1], [0, 0, 1, 1], [], []>} : vector<8x288xf32>, vector<288x32xf32>, vector<8x32xf32> -> vector<8x32xf32>
    %208 = vector.broadcast %196 : vector<1x32xf32> to vector<8x32xf32>
    %209 = arith.addf %207, %208 : vector<8x32xf32>
    %210 = arith.negf %209 : vector<8x32xf32>
    %211 = math.exp %210 : vector<8x32xf32>
    %cst_245 = arith.constant 1.000000e+00 : f32
    %212 = vector.broadcast %cst_245 : f32 to vector<8x32xf32>
    %213 = arith.addf %212, %211 : vector<8x32xf32>
    %214 = arith.divf %212, %213 : vector<8x32xf32>
    %215 = arith.mulf %209, %214 : vector<8x32xf32>
    %216 = vector.broadcast %18 : vector<8x1xf32> to vector<8x32xf32>
    %217 = arith.mulf %215, %216 : vector<8x32xf32>
    %c5_246 = arith.constant 5 : index
    %c0_247 = arith.constant 0 : index
    %218 = vector.load %arg24[%c5_246, %c0_247] : memref<24x32xf32, #tpu.memory_space<vmem>>, vector<8x32xf32>
    tpu.vector_store %arg24[%c5_246, %c0_247], %217 {strides = array<i32>} : memref<24x32xf32, #tpu.memory_space<vmem>>, vector<8x32xf32>,
    %c2_248 = arith.constant 2 : index
    %c0_249 = arith.constant 0 : index
    %c0_250 = arith.constant 0 : index
    %219 = vector.load %arg8[%c2_248, %c0_249, %c0_250] : memref<8x288x32xf32, #tpu.memory_space<vmem>>, vector<1x288x32xf32>
    %220 = vector.shape_cast %219 : vector<1x288x32xf32> to vector<288x32xf32>
    %c2_251 = arith.constant 2 : index
    %c0_252 = arith.constant 0 : index
    %c0_253 = arith.constant 0 : index
    %221 = vector.load %arg9[%c2_251, %c0_252, %c0_253] : memref<8x1x32xf32, #tpu.memory_space<vmem>>, vector<1x1x32xf32>
    %222 = vector.shape_cast %221 : vector<1x1x32xf32> to vector<1x32xf32>
    %c0_254 = arith.constant 0 : index
    %c0_255 = arith.constant 0 : index
    %223 = vector.load %arg24[%c0_254, %c0_255] : memref<24x32xf32, #tpu.memory_space<vmem>>, vector<8x32xf32>
    %c1_256 = arith.constant 1 : index
    %c0_257 = arith.constant 0 : index
    %224 = vector.load %arg24[%c1_256, %c0_257] : memref<24x32xf32, #tpu.memory_space<vmem>>, vector<8x32xf32>
    %c2_258 = arith.constant 2 : index
    %c0_259 = arith.constant 0 : index
    %225 = vector.load %arg24[%c2_258, %c0_259] : memref<24x32xf32, #tpu.memory_space<vmem>>, vector<8x32xf32>
    %c4_260 = arith.constant 4 : index
    %c0_261 = arith.constant 0 : index
    %226 = vector.load %arg24[%c4_260, %c0_261] : memref<24x32xf32, #tpu.memory_space<vmem>>, vector<8x32xf32>
    %c5_262 = arith.constant 5 : index
    %c0_263 = arith.constant 0 : index
    %227 = vector.load %arg24[%c5_262, %c0_263] : memref<24x32xf32, #tpu.memory_space<vmem>>, vector<8x32xf32>
    %c6_264 = arith.constant 6 : index
    %c0_265 = arith.constant 0 : index
    %228 = vector.load %arg24[%c6_264, %c0_265] : memref<24x32xf32, #tpu.memory_space<vmem>>, vector<8x32xf32>
    %c8_266 = arith.constant 8 : index
    %c0_267 = arith.constant 0 : index
    %229 = vector.load %arg24[%c8_266, %c0_267] : memref<24x32xf32, #tpu.memory_space<vmem>>, vector<8x32xf32>
    %c9_268 = arith.constant 9 : index
    %c0_269 = arith.constant 0 : index
    %230 = vector.load %arg24[%c9_268, %c0_269] : memref<24x32xf32, #tpu.memory_space<vmem>>, vector<8x32xf32>
    %c10_270 = arith.constant 10 : index
    %c0_271 = arith.constant 0 : index
    %231 = vector.load %arg24[%c10_270, %c0_271] : memref<24x32xf32, #tpu.memory_space<vmem>>, vector<8x32xf32>
    %232 = tpu.concatenate %223, %224, %225, %226, %227, %228, %229, %230, %231 in 1 : vector<8x32xf32>, vector<8x32xf32>, vector<8x32xf32>, vector<8x32xf32>, vector<8x32xf32>, vector<8x32xf32>, vector<8x32xf32>, vector<8x32xf32>, vector<8x32xf32> -> vector<8x288xf32>
    %cst_272 = arith.constant dense<0.000000e+00> : vector<8x32xf32>
    %233 = tpu.matmul %232, %220, %cst_272 {dimension_numbers = #tpu.dot_dimension_numbers<[1], [0], [0], [1], [0, 0, 1, 1], [], []>} : vector<8x288xf32>, vector<288x32xf32>, vector<8x32xf32> -> vector<8x32xf32>
    %234 = vector.broadcast %222 : vector<1x32xf32> to vector<8x32xf32>
    %235 = arith.addf %233, %234 : vector<8x32xf32>
    %c5_273 = arith.constant 5 : index
    %c0_274 = arith.constant 0 : index
    %236 = vector.load %arg25[%c5_273, %c0_274] : memref<24x32xf32, #tpu.memory_space<vmem>>, vector<8x32xf32>
    %237 = arith.addf %235, %236 : vector<8x32xf32>
    %238 = arith.negf %237 : vector<8x32xf32>
    %239 = math.exp %238 : vector<8x32xf32>
    %cst_275 = arith.constant 1.000000e+00 : f32
    %240 = vector.broadcast %cst_275 : f32 to vector<8x32xf32>
    %241 = arith.addf %240, %239 : vector<8x32xf32>
    %242 = arith.divf %240, %241 : vector<8x32xf32>
    %243 = arith.mulf %237, %242 : vector<8x32xf32>
    %244 = vector.broadcast %18 : vector<8x1xf32> to vector<8x32xf32>
    %245 = arith.mulf %243, %244 : vector<8x32xf32>
    %c5_276 = arith.constant 5 : index
    %c0_277 = arith.constant 0 : index
    %246 = vector.load %arg25[%c5_276, %c0_277] : memref<24x32xf32, #tpu.memory_space<vmem>>, vector<8x32xf32>
    tpu.vector_store %arg25[%c5_276, %c0_277], %245 {strides = array<i32>} : memref<24x32xf32, #tpu.memory_space<vmem>>, vector<8x32xf32>,
    %c3 = arith.constant 3 : index
    %c0_278 = arith.constant 0 : index
    %c0_279 = arith.constant 0 : index
    %247 = vector.load %arg6[%c3, %c0_278, %c0_279] : memref<8x288x32xf32, #tpu.memory_space<vmem>>, vector<1x288x32xf32>
    %248 = vector.shape_cast %247 : vector<1x288x32xf32> to vector<288x32xf32>
    %c3_280 = arith.constant 3 : index
    %c0_281 = arith.constant 0 : index
    %c0_282 = arith.constant 0 : index
    %249 = vector.load %arg7[%c3_280, %c0_281, %c0_282] : memref<8x1x32xf32, #tpu.memory_space<vmem>>, vector<1x1x32xf32>
    %250 = vector.shape_cast %249 : vector<1x1x32xf32> to vector<1x32xf32>
    %c0_283 = arith.constant 0 : index
    %c0_284 = arith.constant 0 : index
    %251 = vector.load %arg25[%c0_283, %c0_284] : memref<24x32xf32, #tpu.memory_space<vmem>>, vector<8x32xf32>
    %c1_285 = arith.constant 1 : index
    %c0_286 = arith.constant 0 : index
    %252 = vector.load %arg25[%c1_285, %c0_286] : memref<24x32xf32, #tpu.memory_space<vmem>>, vector<8x32xf32>
    %c2_287 = arith.constant 2 : index
    %c0_288 = arith.constant 0 : index
    %253 = vector.load %arg25[%c2_287, %c0_288] : memref<24x32xf32, #tpu.memory_space<vmem>>, vector<8x32xf32>
    %c4_289 = arith.constant 4 : index
    %c0_290 = arith.constant 0 : index
    %254 = vector.load %arg25[%c4_289, %c0_290] : memref<24x32xf32, #tpu.memory_space<vmem>>, vector<8x32xf32>
    %c5_291 = arith.constant 5 : index
    %c0_292 = arith.constant 0 : index
    %255 = vector.load %arg25[%c5_291, %c0_292] : memref<24x32xf32, #tpu.memory_space<vmem>>, vector<8x32xf32>
    %c6_293 = arith.constant 6 : index
    %c0_294 = arith.constant 0 : index
    %256 = vector.load %arg25[%c6_293, %c0_294] : memref<24x32xf32, #tpu.memory_space<vmem>>, vector<8x32xf32>
    %c8_295 = arith.constant 8 : index
    %c0_296 = arith.constant 0 : index
    %257 = vector.load %arg25[%c8_295, %c0_296] : memref<24x32xf32, #tpu.memory_space<vmem>>, vector<8x32xf32>
    %c9_297 = arith.constant 9 : index
    %c0_298 = arith.constant 0 : index
    %258 = vector.load %arg25[%c9_297, %c0_298] : memref<24x32xf32, #tpu.memory_space<vmem>>, vector<8x32xf32>
    %c10_299 = arith.constant 10 : index
    %c0_300 = arith.constant 0 : index
    %259 = vector.load %arg25[%c10_299, %c0_300] : memref<24x32xf32, #tpu.memory_space<vmem>>, vector<8x32xf32>
    %260 = tpu.concatenate %251, %252, %253, %254, %255, %256, %257, %258, %259 in 1 : vector<8x32xf32>, vector<8x32xf32>, vector<8x32xf32>, vector<8x32xf32>, vector<8x32xf32>, vector<8x32xf32>, vector<8x32xf32>, vector<8x32xf32>, vector<8x32xf32> -> vector<8x288xf32>
    %cst_301 = arith.constant dense<0.000000e+00> : vector<8x32xf32>
    %261 = tpu.matmul %260, %248, %cst_301 {dimension_numbers = #tpu.dot_dimension_numbers<[1], [0], [0], [1], [0, 0, 1, 1], [], []>} : vector<8x288xf32>, vector<288x32xf32>, vector<8x32xf32> -> vector<8x32xf32>
    %262 = vector.broadcast %250 : vector<1x32xf32> to vector<8x32xf32>
    %263 = arith.addf %261, %262 : vector<8x32xf32>
    %264 = arith.negf %263 : vector<8x32xf32>
    %265 = math.exp %264 : vector<8x32xf32>
    %cst_302 = arith.constant 1.000000e+00 : f32
    %266 = vector.broadcast %cst_302 : f32 to vector<8x32xf32>
    %267 = arith.addf %266, %265 : vector<8x32xf32>
    %268 = arith.divf %266, %267 : vector<8x32xf32>
    %269 = arith.mulf %263, %268 : vector<8x32xf32>
    %270 = vector.broadcast %18 : vector<8x1xf32> to vector<8x32xf32>
    %271 = arith.mulf %269, %270 : vector<8x32xf32>
    %c5_303 = arith.constant 5 : index
    %c0_304 = arith.constant 0 : index
    %272 = vector.load %arg24[%c5_303, %c0_304] : memref<24x32xf32, #tpu.memory_space<vmem>>, vector<8x32xf32>
    tpu.vector_store %arg24[%c5_303, %c0_304], %271 {strides = array<i32>} : memref<24x32xf32, #tpu.memory_space<vmem>>, vector<8x32xf32>,
    %c3_305 = arith.constant 3 : index
    %c0_306 = arith.constant 0 : index
    %c0_307 = arith.constant 0 : index
    %273 = vector.load %arg8[%c3_305, %c0_306, %c0_307] : memref<8x288x32xf32, #tpu.memory_space<vmem>>, vector<1x288x32xf32>
    %274 = vector.shape_cast %273 : vector<1x288x32xf32> to vector<288x32xf32>
    %c3_308 = arith.constant 3 : index
    %c0_309 = arith.constant 0 : index
    %c0_310 = arith.constant 0 : index
    %275 = vector.load %arg9[%c3_308, %c0_309, %c0_310] : memref<8x1x32xf32, #tpu.memory_space<vmem>>, vector<1x1x32xf32>
    %276 = vector.shape_cast %275 : vector<1x1x32xf32> to vector<1x32xf32>
    %c0_311 = arith.constant 0 : index
    %c0_312 = arith.constant 0 : index
    %277 = vector.load %arg24[%c0_311, %c0_312] : memref<24x32xf32, #tpu.memory_space<vmem>>, vector<8x32xf32>
    %c1_313 = arith.constant 1 : index
    %c0_314 = arith.constant 0 : index
    %278 = vector.load %arg24[%c1_313, %c0_314] : memref<24x32xf32, #tpu.memory_space<vmem>>, vector<8x32xf32>
    %c2_315 = arith.constant 2 : index
    %c0_316 = arith.constant 0 : index
    %279 = vector.load %arg24[%c2_315, %c0_316] : memref<24x32xf32, #tpu.memory_space<vmem>>, vector<8x32xf32>
    %c4_317 = arith.constant 4 : index
    %c0_318 = arith.constant 0 : index
    %280 = vector.load %arg24[%c4_317, %c0_318] : memref<24x32xf32, #tpu.memory_space<vmem>>, vector<8x32xf32>
    %c5_319 = arith.constant 5 : index
    %c0_320 = arith.constant 0 : index
    %281 = vector.load %arg24[%c5_319, %c0_320] : memref<24x32xf32, #tpu.memory_space<vmem>>, vector<8x32xf32>
    %c6_321 = arith.constant 6 : index
    %c0_322 = arith.constant 0 : index
    %282 = vector.load %arg24[%c6_321, %c0_322] : memref<24x32xf32, #tpu.memory_space<vmem>>, vector<8x32xf32>
    %c8_323 = arith.constant 8 : index
    %c0_324 = arith.constant 0 : index
    %283 = vector.load %arg24[%c8_323, %c0_324] : memref<24x32xf32, #tpu.memory_space<vmem>>, vector<8x32xf32>
    %c9_325 = arith.constant 9 : index
    %c0_326 = arith.constant 0 : index
    %284 = vector.load %arg24[%c9_325, %c0_326] : memref<24x32xf32, #tpu.memory_space<vmem>>, vector<8x32xf32>
    %c10_327 = arith.constant 10 : index
    %c0_328 = arith.constant 0 : index
    %285 = vector.load %arg24[%c10_327, %c0_328] : memref<24x32xf32, #tpu.memory_space<vmem>>, vector<8x32xf32>
    %286 = tpu.concatenate %277, %278, %279, %280, %281, %282, %283, %284, %285 in 1 : vector<8x32xf32>, vector<8x32xf32>, vector<8x32xf32>, vector<8x32xf32>, vector<8x32xf32>, vector<8x32xf32>, vector<8x32xf32>, vector<8x32xf32>, vector<8x32xf32> -> vector<8x288xf32>
    %cst_329 = arith.constant dense<0.000000e+00> : vector<8x32xf32>
    %287 = tpu.matmul %286, %274, %cst_329 {dimension_numbers = #tpu.dot_dimension_numbers<[1], [0], [0], [1], [0, 0, 1, 1], [], []>} : vector<8x288xf32>, vector<288x32xf32>, vector<8x32xf32> -> vector<8x32xf32>
    %288 = vector.broadcast %276 : vector<1x32xf32> to vector<8x32xf32>
    %289 = arith.addf %287, %288 : vector<8x32xf32>
    %c5_330 = arith.constant 5 : index
    %c0_331 = arith.constant 0 : index
    %290 = vector.load %arg25[%c5_330, %c0_331] : memref<24x32xf32, #tpu.memory_space<vmem>>, vector<8x32xf32>
    %291 = arith.addf %289, %290 : vector<8x32xf32>
    %292 = arith.negf %291 : vector<8x32xf32>
    %293 = math.exp %292 : vector<8x32xf32>
    %cst_332 = arith.constant 1.000000e+00 : f32
    %294 = vector.broadcast %cst_332 : f32 to vector<8x32xf32>
    %295 = arith.addf %294, %293 : vector<8x32xf32>
    %296 = arith.divf %294, %295 : vector<8x32xf32>
    %297 = arith.mulf %291, %296 : vector<8x32xf32>
    %298 = vector.broadcast %18 : vector<8x1xf32> to vector<8x32xf32>
    %299 = arith.mulf %297, %298 : vector<8x32xf32>
    %c5_333 = arith.constant 5 : index
    %c0_334 = arith.constant 0 : index
    %300 = vector.load %arg25[%c5_333, %c0_334] : memref<24x32xf32, #tpu.memory_space<vmem>>, vector<8x32xf32>
    tpu.vector_store %arg25[%c5_333, %c0_334], %299 {strides = array<i32>} : memref<24x32xf32, #tpu.memory_space<vmem>>, vector<8x32xf32>,
    %c4_335 = arith.constant 4 : index
    %c0_336 = arith.constant 0 : index
    %c0_337 = arith.constant 0 : index
    %301 = vector.load %arg6[%c4_335, %c0_336, %c0_337] : memref<8x288x32xf32, #tpu.memory_space<vmem>>, vector<1x288x32xf32>
    %302 = vector.shape_cast %301 : vector<1x288x32xf32> to vector<288x32xf32>
    %c4_338 = arith.constant 4 : index
    %c0_339 = arith.constant 0 : index
    %c0_340 = arith.constant 0 : index
    %303 = vector.load %arg7[%c4_338, %c0_339, %c0_340] : memref<8x1x32xf32, #tpu.memory_space<vmem>>, vector<1x1x32xf32>
    %304 = vector.shape_cast %303 : vector<1x1x32xf32> to vector<1x32xf32>
    %c0_341 = arith.constant 0 : index
    %c0_342 = arith.constant 0 : index
    %305 = vector.load %arg25[%c0_341, %c0_342] : memref<24x32xf32, #tpu.memory_space<vmem>>, vector<8x32xf32>
    %c1_343 = arith.constant 1 : index
    %c0_344 = arith.constant 0 : index
    %306 = vector.load %arg25[%c1_343, %c0_344] : memref<24x32xf32, #tpu.memory_space<vmem>>, vector<8x32xf32>
    %c2_345 = arith.constant 2 : index
    %c0_346 = arith.constant 0 : index
    %307 = vector.load %arg25[%c2_345, %c0_346] : memref<24x32xf32, #tpu.memory_space<vmem>>, vector<8x32xf32>
    %c4_347 = arith.constant 4 : index
    %c0_348 = arith.constant 0 : index
    %308 = vector.load %arg25[%c4_347, %c0_348] : memref<24x32xf32, #tpu.memory_space<vmem>>, vector<8x32xf32>
    %c5_349 = arith.constant 5 : index
    %c0_350 = arith.constant 0 : index
    %309 = vector.load %arg25[%c5_349, %c0_350] : memref<24x32xf32, #tpu.memory_space<vmem>>, vector<8x32xf32>
    %c6_351 = arith.constant 6 : index
    %c0_352 = arith.constant 0 : index
    %310 = vector.load %arg25[%c6_351, %c0_352] : memref<24x32xf32, #tpu.memory_space<vmem>>, vector<8x32xf32>
    %c8_353 = arith.constant 8 : index
    %c0_354 = arith.constant 0 : index
    %311 = vector.load %arg25[%c8_353, %c0_354] : memref<24x32xf32, #tpu.memory_space<vmem>>, vector<8x32xf32>
    %c9_355 = arith.constant 9 : index
    %c0_356 = arith.constant 0 : index
    %312 = vector.load %arg25[%c9_355, %c0_356] : memref<24x32xf32, #tpu.memory_space<vmem>>, vector<8x32xf32>
    %c10_357 = arith.constant 10 : index
    %c0_358 = arith.constant 0 : index
    %313 = vector.load %arg25[%c10_357, %c0_358] : memref<24x32xf32, #tpu.memory_space<vmem>>, vector<8x32xf32>
    %314 = tpu.concatenate %305, %306, %307, %308, %309, %310, %311, %312, %313 in 1 : vector<8x32xf32>, vector<8x32xf32>, vector<8x32xf32>, vector<8x32xf32>, vector<8x32xf32>, vector<8x32xf32>, vector<8x32xf32>, vector<8x32xf32>, vector<8x32xf32> -> vector<8x288xf32>
    %cst_359 = arith.constant dense<0.000000e+00> : vector<8x32xf32>
    %315 = tpu.matmul %314, %302, %cst_359 {dimension_numbers = #tpu.dot_dimension_numbers<[1], [0], [0], [1], [0, 0, 1, 1], [], []>} : vector<8x288xf32>, vector<288x32xf32>, vector<8x32xf32> -> vector<8x32xf32>
    %316 = vector.broadcast %304 : vector<1x32xf32> to vector<8x32xf32>
    %317 = arith.addf %315, %316 : vector<8x32xf32>
    %318 = arith.negf %317 : vector<8x32xf32>
    %319 = math.exp %318 : vector<8x32xf32>
    %cst_360 = arith.constant 1.000000e+00 : f32
    %320 = vector.broadcast %cst_360 : f32 to vector<8x32xf32>
    %321 = arith.addf %320, %319 : vector<8x32xf32>
    %322 = arith.divf %320, %321 : vector<8x32xf32>
    %323 = arith.mulf %317, %322 : vector<8x32xf32>
    %324 = vector.broadcast %18 : vector<8x1xf32> to vector<8x32xf32>
    %325 = arith.mulf %323, %324 : vector<8x32xf32>
    %c5_361 = arith.constant 5 : index
    %c0_362 = arith.constant 0 : index
    %326 = vector.load %arg24[%c5_361, %c0_362] : memref<24x32xf32, #tpu.memory_space<vmem>>, vector<8x32xf32>
    tpu.vector_store %arg24[%c5_361, %c0_362], %325 {strides = array<i32>} : memref<24x32xf32, #tpu.memory_space<vmem>>, vector<8x32xf32>,
    %c4_363 = arith.constant 4 : index
    %c0_364 = arith.constant 0 : index
    %c0_365 = arith.constant 0 : index
    %327 = vector.load %arg8[%c4_363, %c0_364, %c0_365] : memref<8x288x32xf32, #tpu.memory_space<vmem>>, vector<1x288x32xf32>
    %328 = vector.shape_cast %327 : vector<1x288x32xf32> to vector<288x32xf32>
    %c4_366 = arith.constant 4 : index
    %c0_367 = arith.constant 0 : index
    %c0_368 = arith.constant 0 : index
    %329 = vector.load %arg9[%c4_366, %c0_367, %c0_368] : memref<8x1x32xf32, #tpu.memory_space<vmem>>, vector<1x1x32xf32>
    %330 = vector.shape_cast %329 : vector<1x1x32xf32> to vector<1x32xf32>
    %c0_369 = arith.constant 0 : index
    %c0_370 = arith.constant 0 : index
    %331 = vector.load %arg24[%c0_369, %c0_370] : memref<24x32xf32, #tpu.memory_space<vmem>>, vector<8x32xf32>
    %c1_371 = arith.constant 1 : index
    %c0_372 = arith.constant 0 : index
    %332 = vector.load %arg24[%c1_371, %c0_372] : memref<24x32xf32, #tpu.memory_space<vmem>>, vector<8x32xf32>
    %c2_373 = arith.constant 2 : index
    %c0_374 = arith.constant 0 : index
    %333 = vector.load %arg24[%c2_373, %c0_374] : memref<24x32xf32, #tpu.memory_space<vmem>>, vector<8x32xf32>
    %c4_375 = arith.constant 4 : index
    %c0_376 = arith.constant 0 : index
    %334 = vector.load %arg24[%c4_375, %c0_376] : memref<24x32xf32, #tpu.memory_space<vmem>>, vector<8x32xf32>
    %c5_377 = arith.constant 5 : index
    %c0_378 = arith.constant 0 : index
    %335 = vector.load %arg24[%c5_377, %c0_378] : memref<24x32xf32, #tpu.memory_space<vmem>>, vector<8x32xf32>
    %c6_379 = arith.constant 6 : index
    %c0_380 = arith.constant 0 : index
    %336 = vector.load %arg24[%c6_379, %c0_380] : memref<24x32xf32, #tpu.memory_space<vmem>>, vector<8x32xf32>
    %c8_381 = arith.constant 8 : index
    %c0_382 = arith.constant 0 : index
    %337 = vector.load %arg24[%c8_381, %c0_382] : memref<24x32xf32, #tpu.memory_space<vmem>>, vector<8x32xf32>
    %c9_383 = arith.constant 9 : index
    %c0_384 = arith.constant 0 : index
    %338 = vector.load %arg24[%c9_383, %c0_384] : memref<24x32xf32, #tpu.memory_space<vmem>>, vector<8x32xf32>
    %c10_385 = arith.constant 10 : index
    %c0_386 = arith.constant 0 : index
    %339 = vector.load %arg24[%c10_385, %c0_386] : memref<24x32xf32, #tpu.memory_space<vmem>>, vector<8x32xf32>
    %340 = tpu.concatenate %331, %332, %333, %334, %335, %336, %337, %338, %339 in 1 : vector<8x32xf32>, vector<8x32xf32>, vector<8x32xf32>, vector<8x32xf32>, vector<8x32xf32>, vector<8x32xf32>, vector<8x32xf32>, vector<8x32xf32>, vector<8x32xf32> -> vector<8x288xf32>
    %cst_387 = arith.constant dense<0.000000e+00> : vector<8x32xf32>
    %341 = tpu.matmul %340, %328, %cst_387 {dimension_numbers = #tpu.dot_dimension_numbers<[1], [0], [0], [1], [0, 0, 1, 1], [], []>} : vector<8x288xf32>, vector<288x32xf32>, vector<8x32xf32> -> vector<8x32xf32>
    %342 = vector.broadcast %330 : vector<1x32xf32> to vector<8x32xf32>
    %343 = arith.addf %341, %342 : vector<8x32xf32>
    %c5_388 = arith.constant 5 : index
    %c0_389 = arith.constant 0 : index
    %344 = vector.load %arg25[%c5_388, %c0_389] : memref<24x32xf32, #tpu.memory_space<vmem>>, vector<8x32xf32>
    %345 = arith.addf %343, %344 : vector<8x32xf32>
    %346 = arith.negf %345 : vector<8x32xf32>
    %347 = math.exp %346 : vector<8x32xf32>
    %cst_390 = arith.constant 1.000000e+00 : f32
    %348 = vector.broadcast %cst_390 : f32 to vector<8x32xf32>
    %349 = arith.addf %348, %347 : vector<8x32xf32>
    %350 = arith.divf %348, %349 : vector<8x32xf32>
    %351 = arith.mulf %345, %350 : vector<8x32xf32>
    %352 = vector.broadcast %18 : vector<8x1xf32> to vector<8x32xf32>
    %353 = arith.mulf %351, %352 : vector<8x32xf32>
    %c5_391 = arith.constant 5 : index
    %c0_392 = arith.constant 0 : index
    %354 = vector.load %arg25[%c5_391, %c0_392] : memref<24x32xf32, #tpu.memory_space<vmem>>, vector<8x32xf32>
    tpu.vector_store %arg25[%c5_391, %c0_392], %353 {strides = array<i32>} : memref<24x32xf32, #tpu.memory_space<vmem>>, vector<8x32xf32>,
    %c5_393 = arith.constant 5 : index
    %c0_394 = arith.constant 0 : index
    %c0_395 = arith.constant 0 : index
    %355 = vector.load %arg6[%c5_393, %c0_394, %c0_395] : memref<8x288x32xf32, #tpu.memory_space<vmem>>, vector<1x288x32xf32>
    %356 = vector.shape_cast %355 : vector<1x288x32xf32> to vector<288x32xf32>
    %c5_396 = arith.constant 5 : index
    %c0_397 = arith.constant 0 : index
    %c0_398 = arith.constant 0 : index
    %357 = vector.load %arg7[%c5_396, %c0_397, %c0_398] : memref<8x1x32xf32, #tpu.memory_space<vmem>>, vector<1x1x32xf32>
    %358 = vector.shape_cast %357 : vector<1x1x32xf32> to vector<1x32xf32>
    %c0_399 = arith.constant 0 : index
    %c0_400 = arith.constant 0 : index
    %359 = vector.load %arg25[%c0_399, %c0_400] : memref<24x32xf32, #tpu.memory_space<vmem>>, vector<8x32xf32>
    %c1_401 = arith.constant 1 : index
    %c0_402 = arith.constant 0 : index
    %360 = vector.load %arg25[%c1_401, %c0_402] : memref<24x32xf32, #tpu.memory_space<vmem>>, vector<8x32xf32>
    %c2_403 = arith.constant 2 : index
    %c0_404 = arith.constant 0 : index
    %361 = vector.load %arg25[%c2_403, %c0_404] : memref<24x32xf32, #tpu.memory_space<vmem>>, vector<8x32xf32>
    %c4_405 = arith.constant 4 : index
    %c0_406 = arith.constant 0 : index
    %362 = vector.load %arg25[%c4_405, %c0_406] : memref<24x32xf32, #tpu.memory_space<vmem>>, vector<8x32xf32>
    %c5_407 = arith.constant 5 : index
    %c0_408 = arith.constant 0 : index
    %363 = vector.load %arg25[%c5_407, %c0_408] : memref<24x32xf32, #tpu.memory_space<vmem>>, vector<8x32xf32>
    %c6_409 = arith.constant 6 : index
    %c0_410 = arith.constant 0 : index
    %364 = vector.load %arg25[%c6_409, %c0_410] : memref<24x32xf32, #tpu.memory_space<vmem>>, vector<8x32xf32>
    %c8_411 = arith.constant 8 : index
    %c0_412 = arith.constant 0 : index
    %365 = vector.load %arg25[%c8_411, %c0_412] : memref<24x32xf32, #tpu.memory_space<vmem>>, vector<8x32xf32>
    %c9_413 = arith.constant 9 : index
    %c0_414 = arith.constant 0 : index
    %366 = vector.load %arg25[%c9_413, %c0_414] : memref<24x32xf32, #tpu.memory_space<vmem>>, vector<8x32xf32>
    %c10_415 = arith.constant 10 : index
    %c0_416 = arith.constant 0 : index
    %367 = vector.load %arg25[%c10_415, %c0_416] : memref<24x32xf32, #tpu.memory_space<vmem>>, vector<8x32xf32>
    %368 = tpu.concatenate %359, %360, %361, %362, %363, %364, %365, %366, %367 in 1 : vector<8x32xf32>, vector<8x32xf32>, vector<8x32xf32>, vector<8x32xf32>, vector<8x32xf32>, vector<8x32xf32>, vector<8x32xf32>, vector<8x32xf32>, vector<8x32xf32> -> vector<8x288xf32>
    %cst_417 = arith.constant dense<0.000000e+00> : vector<8x32xf32>
    %369 = tpu.matmul %368, %356, %cst_417 {dimension_numbers = #tpu.dot_dimension_numbers<[1], [0], [0], [1], [0, 0, 1, 1], [], []>} : vector<8x288xf32>, vector<288x32xf32>, vector<8x32xf32> -> vector<8x32xf32>
    %370 = vector.broadcast %358 : vector<1x32xf32> to vector<8x32xf32>
    %371 = arith.addf %369, %370 : vector<8x32xf32>
    %372 = arith.negf %371 : vector<8x32xf32>
    %373 = math.exp %372 : vector<8x32xf32>
    %cst_418 = arith.constant 1.000000e+00 : f32
    %374 = vector.broadcast %cst_418 : f32 to vector<8x32xf32>
    %375 = arith.addf %374, %373 : vector<8x32xf32>
    %376 = arith.divf %374, %375 : vector<8x32xf32>
    %377 = arith.mulf %371, %376 : vector<8x32xf32>
    %378 = vector.broadcast %18 : vector<8x1xf32> to vector<8x32xf32>
    %379 = arith.mulf %377, %378 : vector<8x32xf32>
    %c5_419 = arith.constant 5 : index
    %c0_420 = arith.constant 0 : index
    %380 = vector.load %arg24[%c5_419, %c0_420] : memref<24x32xf32, #tpu.memory_space<vmem>>, vector<8x32xf32>
    tpu.vector_store %arg24[%c5_419, %c0_420], %379 {strides = array<i32>} : memref<24x32xf32, #tpu.memory_space<vmem>>, vector<8x32xf32>,
    %c5_421 = arith.constant 5 : index
    %c0_422 = arith.constant 0 : index
    %c0_423 = arith.constant 0 : index
    %381 = vector.load %arg8[%c5_421, %c0_422, %c0_423] : memref<8x288x32xf32, #tpu.memory_space<vmem>>, vector<1x288x32xf32>
    %382 = vector.shape_cast %381 : vector<1x288x32xf32> to vector<288x32xf32>
    %c5_424 = arith.constant 5 : index
    %c0_425 = arith.constant 0 : index
    %c0_426 = arith.constant 0 : index
    %383 = vector.load %arg9[%c5_424, %c0_425, %c0_426] : memref<8x1x32xf32, #tpu.memory_space<vmem>>, vector<1x1x32xf32>
    %384 = vector.shape_cast %383 : vector<1x1x32xf32> to vector<1x32xf32>
    %c0_427 = arith.constant 0 : index
    %c0_428 = arith.constant 0 : index
    %385 = vector.load %arg24[%c0_427, %c0_428] : memref<24x32xf32, #tpu.memory_space<vmem>>, vector<8x32xf32>
    %c1_429 = arith.constant 1 : index
    %c0_430 = arith.constant 0 : index
    %386 = vector.load %arg24[%c1_429, %c0_430] : memref<24x32xf32, #tpu.memory_space<vmem>>, vector<8x32xf32>
    %c2_431 = arith.constant 2 : index
    %c0_432 = arith.constant 0 : index
    %387 = vector.load %arg24[%c2_431, %c0_432] : memref<24x32xf32, #tpu.memory_space<vmem>>, vector<8x32xf32>
    %c4_433 = arith.constant 4 : index
    %c0_434 = arith.constant 0 : index
    %388 = vector.load %arg24[%c4_433, %c0_434] : memref<24x32xf32, #tpu.memory_space<vmem>>, vector<8x32xf32>
    %c5_435 = arith.constant 5 : index
    %c0_436 = arith.constant 0 : index
    %389 = vector.load %arg24[%c5_435, %c0_436] : memref<24x32xf32, #tpu.memory_space<vmem>>, vector<8x32xf32>
    %c6_437 = arith.constant 6 : index
    %c0_438 = arith.constant 0 : index
    %390 = vector.load %arg24[%c6_437, %c0_438] : memref<24x32xf32, #tpu.memory_space<vmem>>, vector<8x32xf32>
    %c8_439 = arith.constant 8 : index
    %c0_440 = arith.constant 0 : index
    %391 = vector.load %arg24[%c8_439, %c0_440] : memref<24x32xf32, #tpu.memory_space<vmem>>, vector<8x32xf32>
    %c9_441 = arith.constant 9 : index
    %c0_442 = arith.constant 0 : index
    %392 = vector.load %arg24[%c9_441, %c0_442] : memref<24x32xf32, #tpu.memory_space<vmem>>, vector<8x32xf32>
    %c10_443 = arith.constant 10 : index
    %c0_444 = arith.constant 0 : index
    %393 = vector.load %arg24[%c10_443, %c0_444] : memref<24x32xf32, #tpu.memory_space<vmem>>, vector<8x32xf32>
    %394 = tpu.concatenate %385, %386, %387, %388, %389, %390, %391, %392, %393 in 1 : vector<8x32xf32>, vector<8x32xf32>, vector<8x32xf32>, vector<8x32xf32>, vector<8x32xf32>, vector<8x32xf32>, vector<8x32xf32>, vector<8x32xf32>, vector<8x32xf32> -> vector<8x288xf32>
    %cst_445 = arith.constant dense<0.000000e+00> : vector<8x32xf32>
    %395 = tpu.matmul %394, %382, %cst_445 {dimension_numbers = #tpu.dot_dimension_numbers<[1], [0], [0], [1], [0, 0, 1, 1], [], []>} : vector<8x288xf32>, vector<288x32xf32>, vector<8x32xf32> -> vector<8x32xf32>
    %396 = vector.broadcast %384 : vector<1x32xf32> to vector<8x32xf32>
    %397 = arith.addf %395, %396 : vector<8x32xf32>
    %c5_446 = arith.constant 5 : index
    %c0_447 = arith.constant 0 : index
    %398 = vector.load %arg25[%c5_446, %c0_447] : memref<24x32xf32, #tpu.memory_space<vmem>>, vector<8x32xf32>
    %399 = arith.addf %397, %398 : vector<8x32xf32>
    %400 = arith.negf %399 : vector<8x32xf32>
    %401 = math.exp %400 : vector<8x32xf32>
    %cst_448 = arith.constant 1.000000e+00 : f32
    %402 = vector.broadcast %cst_448 : f32 to vector<8x32xf32>
    %403 = arith.addf %402, %401 : vector<8x32xf32>
    %404 = arith.divf %402, %403 : vector<8x32xf32>
    %405 = arith.mulf %399, %404 : vector<8x32xf32>
    %406 = vector.broadcast %18 : vector<8x1xf32> to vector<8x32xf32>
    %407 = arith.mulf %405, %406 : vector<8x32xf32>
    %c5_449 = arith.constant 5 : index
    %c0_450 = arith.constant 0 : index
    %408 = vector.load %arg25[%c5_449, %c0_450] : memref<24x32xf32, #tpu.memory_space<vmem>>, vector<8x32xf32>
    tpu.vector_store %arg25[%c5_449, %c0_450], %407 {strides = array<i32>} : memref<24x32xf32, #tpu.memory_space<vmem>>, vector<8x32xf32>,
    %c6_451 = arith.constant 6 : index
    %c0_452 = arith.constant 0 : index
    %c0_453 = arith.constant 0 : index
    %409 = vector.load %arg6[%c6_451, %c0_452, %c0_453] : memref<8x288x32xf32, #tpu.memory_space<vmem>>, vector<1x288x32xf32>
    %410 = vector.shape_cast %409 : vector<1x288x32xf32> to vector<288x32xf32>
    %c6_454 = arith.constant 6 : index
    %c0_455 = arith.constant 0 : index
    %c0_456 = arith.constant 0 : index
    %411 = vector.load %arg7[%c6_454, %c0_455, %c0_456] : memref<8x1x32xf32, #tpu.memory_space<vmem>>, vector<1x1x32xf32>
    %412 = vector.shape_cast %411 : vector<1x1x32xf32> to vector<1x32xf32>
    %c0_457 = arith.constant 0 : index
    %c0_458 = arith.constant 0 : index
    %413 = vector.load %arg25[%c0_457, %c0_458] : memref<24x32xf32, #tpu.memory_space<vmem>>, vector<8x32xf32>
    %c1_459 = arith.constant 1 : index
    %c0_460 = arith.constant 0 : index
    %414 = vector.load %arg25[%c1_459, %c0_460] : memref<24x32xf32, #tpu.memory_space<vmem>>, vector<8x32xf32>
    %c2_461 = arith.constant 2 : index
    %c0_462 = arith.constant 0 : index
    %415 = vector.load %arg25[%c2_461, %c0_462] : memref<24x32xf32, #tpu.memory_space<vmem>>, vector<8x32xf32>
    %c4_463 = arith.constant 4 : index
    %c0_464 = arith.constant 0 : index
    %416 = vector.load %arg25[%c4_463, %c0_464] : memref<24x32xf32, #tpu.memory_space<vmem>>, vector<8x32xf32>
    %c5_465 = arith.constant 5 : index
    %c0_466 = arith.constant 0 : index
    %417 = vector.load %arg25[%c5_465, %c0_466] : memref<24x32xf32, #tpu.memory_space<vmem>>, vector<8x32xf32>
    %c6_467 = arith.constant 6 : index
    %c0_468 = arith.constant 0 : index
    %418 = vector.load %arg25[%c6_467, %c0_468] : memref<24x32xf32, #tpu.memory_space<vmem>>, vector<8x32xf32>
    %c8_469 = arith.constant 8 : index
    %c0_470 = arith.constant 0 : index
    %419 = vector.load %arg25[%c8_469, %c0_470] : memref<24x32xf32, #tpu.memory_space<vmem>>, vector<8x32xf32>
    %c9_471 = arith.constant 9 : index
    %c0_472 = arith.constant 0 : index
    %420 = vector.load %arg25[%c9_471, %c0_472] : memref<24x32xf32, #tpu.memory_space<vmem>>, vector<8x32xf32>
    %c10_473 = arith.constant 10 : index
    %c0_474 = arith.constant 0 : index
    %421 = vector.load %arg25[%c10_473, %c0_474] : memref<24x32xf32, #tpu.memory_space<vmem>>, vector<8x32xf32>
    %422 = tpu.concatenate %413, %414, %415, %416, %417, %418, %419, %420, %421 in 1 : vector<8x32xf32>, vector<8x32xf32>, vector<8x32xf32>, vector<8x32xf32>, vector<8x32xf32>, vector<8x32xf32>, vector<8x32xf32>, vector<8x32xf32>, vector<8x32xf32> -> vector<8x288xf32>
    %cst_475 = arith.constant dense<0.000000e+00> : vector<8x32xf32>
    %423 = tpu.matmul %422, %410, %cst_475 {dimension_numbers = #tpu.dot_dimension_numbers<[1], [0], [0], [1], [0, 0, 1, 1], [], []>} : vector<8x288xf32>, vector<288x32xf32>, vector<8x32xf32> -> vector<8x32xf32>
    %424 = vector.broadcast %412 : vector<1x32xf32> to vector<8x32xf32>
    %425 = arith.addf %423, %424 : vector<8x32xf32>
    %426 = arith.negf %425 : vector<8x32xf32>
    %427 = math.exp %426 : vector<8x32xf32>
    %cst_476 = arith.constant 1.000000e+00 : f32
    %428 = vector.broadcast %cst_476 : f32 to vector<8x32xf32>
    %429 = arith.addf %428, %427 : vector<8x32xf32>
    %430 = arith.divf %428, %429 : vector<8x32xf32>
    %431 = arith.mulf %425, %430 : vector<8x32xf32>
    %432 = vector.broadcast %18 : vector<8x1xf32> to vector<8x32xf32>
    %433 = arith.mulf %431, %432 : vector<8x32xf32>
    %c5_477 = arith.constant 5 : index
    %c0_478 = arith.constant 0 : index
    %434 = vector.load %arg24[%c5_477, %c0_478] : memref<24x32xf32, #tpu.memory_space<vmem>>, vector<8x32xf32>
    tpu.vector_store %arg24[%c5_477, %c0_478], %433 {strides = array<i32>} : memref<24x32xf32, #tpu.memory_space<vmem>>, vector<8x32xf32>,
    %c6_479 = arith.constant 6 : index
    %c0_480 = arith.constant 0 : index
    %c0_481 = arith.constant 0 : index
    %435 = vector.load %arg8[%c6_479, %c0_480, %c0_481] : memref<8x288x32xf32, #tpu.memory_space<vmem>>, vector<1x288x32xf32>
    %436 = vector.shape_cast %435 : vector<1x288x32xf32> to vector<288x32xf32>
    %c6_482 = arith.constant 6 : index
    %c0_483 = arith.constant 0 : index
    %c0_484 = arith.constant 0 : index
    %437 = vector.load %arg9[%c6_482, %c0_483, %c0_484] : memref<8x1x32xf32, #tpu.memory_space<vmem>>, vector<1x1x32xf32>
    %438 = vector.shape_cast %437 : vector<1x1x32xf32> to vector<1x32xf32>
    %c0_485 = arith.constant 0 : index
    %c0_486 = arith.constant 0 : index
    %439 = vector.load %arg24[%c0_485, %c0_486] : memref<24x32xf32, #tpu.memory_space<vmem>>, vector<8x32xf32>
    %c1_487 = arith.constant 1 : index
    %c0_488 = arith.constant 0 : index
    %440 = vector.load %arg24[%c1_487, %c0_488] : memref<24x32xf32, #tpu.memory_space<vmem>>, vector<8x32xf32>
    %c2_489 = arith.constant 2 : index
    %c0_490 = arith.constant 0 : index
    %441 = vector.load %arg24[%c2_489, %c0_490] : memref<24x32xf32, #tpu.memory_space<vmem>>, vector<8x32xf32>
    %c4_491 = arith.constant 4 : index
    %c0_492 = arith.constant 0 : index
    %442 = vector.load %arg24[%c4_491, %c0_492] : memref<24x32xf32, #tpu.memory_space<vmem>>, vector<8x32xf32>
    %c5_493 = arith.constant 5 : index
    %c0_494 = arith.constant 0 : index
    %443 = vector.load %arg24[%c5_493, %c0_494] : memref<24x32xf32, #tpu.memory_space<vmem>>, vector<8x32xf32>
    %c6_495 = arith.constant 6 : index
    %c0_496 = arith.constant 0 : index
    %444 = vector.load %arg24[%c6_495, %c0_496] : memref<24x32xf32, #tpu.memory_space<vmem>>, vector<8x32xf32>
    %c8_497 = arith.constant 8 : index
    %c0_498 = arith.constant 0 : index
    %445 = vector.load %arg24[%c8_497, %c0_498] : memref<24x32xf32, #tpu.memory_space<vmem>>, vector<8x32xf32>
    %c9_499 = arith.constant 9 : index
    %c0_500 = arith.constant 0 : index
    %446 = vector.load %arg24[%c9_499, %c0_500] : memref<24x32xf32, #tpu.memory_space<vmem>>, vector<8x32xf32>
    %c10_501 = arith.constant 10 : index
    %c0_502 = arith.constant 0 : index
    %447 = vector.load %arg24[%c10_501, %c0_502] : memref<24x32xf32, #tpu.memory_space<vmem>>, vector<8x32xf32>
    %448 = tpu.concatenate %439, %440, %441, %442, %443, %444, %445, %446, %447 in 1 : vector<8x32xf32>, vector<8x32xf32>, vector<8x32xf32>, vector<8x32xf32>, vector<8x32xf32>, vector<8x32xf32>, vector<8x32xf32>, vector<8x32xf32>, vector<8x32xf32> -> vector<8x288xf32>
    %cst_503 = arith.constant dense<0.000000e+00> : vector<8x32xf32>
    %449 = tpu.matmul %448, %436, %cst_503 {dimension_numbers = #tpu.dot_dimension_numbers<[1], [0], [0], [1], [0, 0, 1, 1], [], []>} : vector<8x288xf32>, vector<288x32xf32>, vector<8x32xf32> -> vector<8x32xf32>
    %450 = vector.broadcast %438 : vector<1x32xf32> to vector<8x32xf32>
    %451 = arith.addf %449, %450 : vector<8x32xf32>
    %c5_504 = arith.constant 5 : index
    %c0_505 = arith.constant 0 : index
    %452 = vector.load %arg25[%c5_504, %c0_505] : memref<24x32xf32, #tpu.memory_space<vmem>>, vector<8x32xf32>
    %453 = arith.addf %451, %452 : vector<8x32xf32>
    %454 = arith.negf %453 : vector<8x32xf32>
    %455 = math.exp %454 : vector<8x32xf32>
    %cst_506 = arith.constant 1.000000e+00 : f32
    %456 = vector.broadcast %cst_506 : f32 to vector<8x32xf32>
    %457 = arith.addf %456, %455 : vector<8x32xf32>
    %458 = arith.divf %456, %457 : vector<8x32xf32>
    %459 = arith.mulf %453, %458 : vector<8x32xf32>
    %460 = vector.broadcast %18 : vector<8x1xf32> to vector<8x32xf32>
    %461 = arith.mulf %459, %460 : vector<8x32xf32>
    %c5_507 = arith.constant 5 : index
    %c0_508 = arith.constant 0 : index
    %462 = vector.load %arg25[%c5_507, %c0_508] : memref<24x32xf32, #tpu.memory_space<vmem>>, vector<8x32xf32>
    tpu.vector_store %arg25[%c5_507, %c0_508], %461 {strides = array<i32>} : memref<24x32xf32, #tpu.memory_space<vmem>>, vector<8x32xf32>,
    %c7_509 = arith.constant 7 : index
    %c0_510 = arith.constant 0 : index
    %c0_511 = arith.constant 0 : index
    %463 = vector.load %arg6[%c7_509, %c0_510, %c0_511] : memref<8x288x32xf32, #tpu.memory_space<vmem>>, vector<1x288x32xf32>
    %464 = vector.shape_cast %463 : vector<1x288x32xf32> to vector<288x32xf32>
    %c7_512 = arith.constant 7 : index
    %c0_513 = arith.constant 0 : index
    %c0_514 = arith.constant 0 : index
    %465 = vector.load %arg7[%c7_512, %c0_513, %c0_514] : memref<8x1x32xf32, #tpu.memory_space<vmem>>, vector<1x1x32xf32>
    %466 = vector.shape_cast %465 : vector<1x1x32xf32> to vector<1x32xf32>
    %c0_515 = arith.constant 0 : index
    %c0_516 = arith.constant 0 : index
    %467 = vector.load %arg25[%c0_515, %c0_516] : memref<24x32xf32, #tpu.memory_space<vmem>>, vector<8x32xf32>
    %c1_517 = arith.constant 1 : index
    %c0_518 = arith.constant 0 : index
    %468 = vector.load %arg25[%c1_517, %c0_518] : memref<24x32xf32, #tpu.memory_space<vmem>>, vector<8x32xf32>
    %c2_519 = arith.constant 2 : index
    %c0_520 = arith.constant 0 : index
    %469 = vector.load %arg25[%c2_519, %c0_520] : memref<24x32xf32, #tpu.memory_space<vmem>>, vector<8x32xf32>
    %c4_521 = arith.constant 4 : index
    %c0_522 = arith.constant 0 : index
    %470 = vector.load %arg25[%c4_521, %c0_522] : memref<24x32xf32, #tpu.memory_space<vmem>>, vector<8x32xf32>
    %c5_523 = arith.constant 5 : index
    %c0_524 = arith.constant 0 : index
    %471 = vector.load %arg25[%c5_523, %c0_524] : memref<24x32xf32, #tpu.memory_space<vmem>>, vector<8x32xf32>
    %c6_525 = arith.constant 6 : index
    %c0_526 = arith.constant 0 : index
    %472 = vector.load %arg25[%c6_525, %c0_526] : memref<24x32xf32, #tpu.memory_space<vmem>>, vector<8x32xf32>
    %c8_527 = arith.constant 8 : index
    %c0_528 = arith.constant 0 : index
    %473 = vector.load %arg25[%c8_527, %c0_528] : memref<24x32xf32, #tpu.memory_space<vmem>>, vector<8x32xf32>
    %c9_529 = arith.constant 9 : index
    %c0_530 = arith.constant 0 : index
    %474 = vector.load %arg25[%c9_529, %c0_530] : memref<24x32xf32, #tpu.memory_space<vmem>>, vector<8x32xf32>
    %c10_531 = arith.constant 10 : index
    %c0_532 = arith.constant 0 : index
    %475 = vector.load %arg25[%c10_531, %c0_532] : memref<24x32xf32, #tpu.memory_space<vmem>>, vector<8x32xf32>
    %476 = tpu.concatenate %467, %468, %469, %470, %471, %472, %473, %474, %475 in 1 : vector<8x32xf32>, vector<8x32xf32>, vector<8x32xf32>, vector<8x32xf32>, vector<8x32xf32>, vector<8x32xf32>, vector<8x32xf32>, vector<8x32xf32>, vector<8x32xf32> -> vector<8x288xf32>
    %cst_533 = arith.constant dense<0.000000e+00> : vector<8x32xf32>
    %477 = tpu.matmul %476, %464, %cst_533 {dimension_numbers = #tpu.dot_dimension_numbers<[1], [0], [0], [1], [0, 0, 1, 1], [], []>} : vector<8x288xf32>, vector<288x32xf32>, vector<8x32xf32> -> vector<8x32xf32>
    %478 = vector.broadcast %466 : vector<1x32xf32> to vector<8x32xf32>
    %479 = arith.addf %477, %478 : vector<8x32xf32>
    %480 = arith.negf %479 : vector<8x32xf32>
    %481 = math.exp %480 : vector<8x32xf32>
    %cst_534 = arith.constant 1.000000e+00 : f32
    %482 = vector.broadcast %cst_534 : f32 to vector<8x32xf32>
    %483 = arith.addf %482, %481 : vector<8x32xf32>
    %484 = arith.divf %482, %483 : vector<8x32xf32>
    %485 = arith.mulf %479, %484 : vector<8x32xf32>
    %486 = vector.broadcast %18 : vector<8x1xf32> to vector<8x32xf32>
    %487 = arith.mulf %485, %486 : vector<8x32xf32>
    %c5_535 = arith.constant 5 : index
    %c0_536 = arith.constant 0 : index
    %488 = vector.load %arg24[%c5_535, %c0_536] : memref<24x32xf32, #tpu.memory_space<vmem>>, vector<8x32xf32>
    tpu.vector_store %arg24[%c5_535, %c0_536], %487 {strides = array<i32>} : memref<24x32xf32, #tpu.memory_space<vmem>>, vector<8x32xf32>,
    %c7_537 = arith.constant 7 : index
    %c0_538 = arith.constant 0 : index
    %c0_539 = arith.constant 0 : index
    %489 = vector.load %arg8[%c7_537, %c0_538, %c0_539] : memref<8x288x32xf32, #tpu.memory_space<vmem>>, vector<1x288x32xf32>
    %490 = vector.shape_cast %489 : vector<1x288x32xf32> to vector<288x32xf32>
    %c7_540 = arith.constant 7 : index
    %c0_541 = arith.constant 0 : index
    %c0_542 = arith.constant 0 : index
    %491 = vector.load %arg9[%c7_540, %c0_541, %c0_542] : memref<8x1x32xf32, #tpu.memory_space<vmem>>, vector<1x1x32xf32>
    %492 = vector.shape_cast %491 : vector<1x1x32xf32> to vector<1x32xf32>
    %c0_543 = arith.constant 0 : index
    %c0_544 = arith.constant 0 : index
    %493 = vector.load %arg24[%c0_543, %c0_544] : memref<24x32xf32, #tpu.memory_space<vmem>>, vector<8x32xf32>
    %c1_545 = arith.constant 1 : index
    %c0_546 = arith.constant 0 : index
    %494 = vector.load %arg24[%c1_545, %c0_546] : memref<24x32xf32, #tpu.memory_space<vmem>>, vector<8x32xf32>
    %c2_547 = arith.constant 2 : index
    %c0_548 = arith.constant 0 : index
    %495 = vector.load %arg24[%c2_547, %c0_548] : memref<24x32xf32, #tpu.memory_space<vmem>>, vector<8x32xf32>
    %c4_549 = arith.constant 4 : index
    %c0_550 = arith.constant 0 : index
    %496 = vector.load %arg24[%c4_549, %c0_550] : memref<24x32xf32, #tpu.memory_space<vmem>>, vector<8x32xf32>
    %c5_551 = arith.constant 5 : index
    %c0_552 = arith.constant 0 : index
    %497 = vector.load %arg24[%c5_551, %c0_552] : memref<24x32xf32, #tpu.memory_space<vmem>>, vector<8x32xf32>
    %c6_553 = arith.constant 6 : index
    %c0_554 = arith.constant 0 : index
    %498 = vector.load %arg24[%c6_553, %c0_554] : memref<24x32xf32, #tpu.memory_space<vmem>>, vector<8x32xf32>
    %c8_555 = arith.constant 8 : index
    %c0_556 = arith.constant 0 : index
    %499 = vector.load %arg24[%c8_555, %c0_556] : memref<24x32xf32, #tpu.memory_space<vmem>>, vector<8x32xf32>
    %c9_557 = arith.constant 9 : index
    %c0_558 = arith.constant 0 : index
    %500 = vector.load %arg24[%c9_557, %c0_558] : memref<24x32xf32, #tpu.memory_space<vmem>>, vector<8x32xf32>
    %c10_559 = arith.constant 10 : index
    %c0_560 = arith.constant 0 : index
    %501 = vector.load %arg24[%c10_559, %c0_560] : memref<24x32xf32, #tpu.memory_space<vmem>>, vector<8x32xf32>
    %502 = tpu.concatenate %493, %494, %495, %496, %497, %498, %499, %500, %501 in 1 : vector<8x32xf32>, vector<8x32xf32>, vector<8x32xf32>, vector<8x32xf32>, vector<8x32xf32>, vector<8x32xf32>, vector<8x32xf32>, vector<8x32xf32>, vector<8x32xf32> -> vector<8x288xf32>
    %cst_561 = arith.constant dense<0.000000e+00> : vector<8x32xf32>
    %503 = tpu.matmul %502, %490, %cst_561 {dimension_numbers = #tpu.dot_dimension_numbers<[1], [0], [0], [1], [0, 0, 1, 1], [], []>} : vector<8x288xf32>, vector<288x32xf32>, vector<8x32xf32> -> vector<8x32xf32>
    %504 = vector.broadcast %492 : vector<1x32xf32> to vector<8x32xf32>
    %505 = arith.addf %503, %504 : vector<8x32xf32>
    %c5_562 = arith.constant 5 : index
    %c0_563 = arith.constant 0 : index
    %506 = vector.load %arg25[%c5_562, %c0_563] : memref<24x32xf32, #tpu.memory_space<vmem>>, vector<8x32xf32>
    %507 = arith.addf %505, %506 : vector<8x32xf32>
    %508 = arith.negf %507 : vector<8x32xf32>
    %509 = math.exp %508 : vector<8x32xf32>
    %cst_564 = arith.constant 1.000000e+00 : f32
    %510 = vector.broadcast %cst_564 : f32 to vector<8x32xf32>
    %511 = arith.addf %510, %509 : vector<8x32xf32>
    %512 = arith.divf %510, %511 : vector<8x32xf32>
    %513 = arith.mulf %507, %512 : vector<8x32xf32>
    %514 = vector.broadcast %18 : vector<8x1xf32> to vector<8x32xf32>
    %515 = arith.mulf %513, %514 : vector<8x32xf32>
    %c5_565 = arith.constant 5 : index
    %c0_566 = arith.constant 0 : index
    %516 = vector.load %arg25[%c5_565, %c0_566] : memref<24x32xf32, #tpu.memory_space<vmem>>, vector<8x32xf32>
    tpu.vector_store %arg25[%c5_565, %c0_566], %515 {strides = array<i32>} : memref<24x32xf32, #tpu.memory_space<vmem>>, vector<8x32xf32>,
    %c5_567 = arith.constant 5 : index
    %c0_568 = arith.constant 0 : index
    %517 = vector.load %arg25[%c5_567, %c0_568] : memref<24x32xf32, #tpu.memory_space<vmem>>, vector<8x32xf32>
    %cst_569 = arith.constant dense<0.000000e+00> : vector<32xf32>
    %518 = vector.multi_reduction <add>, %517, %cst_569 [0] : vector<8x32xf32> to vector<32xf32>
    %519 = vector.shape_cast %518 : vector<32xf32> to vector<1x32xf32>
    %cst_570 = arith.constant 2.500000e-01 : f32
    %520 = vector.broadcast %cst_570 : f32 to vector<1x32xf32>
    %521 = arith.mulf %519, %520 : vector<1x32xf32>
    %c0_571 = arith.constant 0 : index
    %c0_572 = arith.constant 0 : index
    %522 = vector.load %arg12[%c0_571, %c0_572] : memref<1x32xf32, #tpu.memory_space<vmem>>, vector<1x32xf32>
    %523 = arith.mulf %521, %522 : vector<1x32xf32>
    %cst_573 = arith.constant dense<0.000000e+00> : vector<1xf32>
    %524 = vector.multi_reduction <add>, %523, %cst_573 [1] : vector<1x32xf32> to vector<1xf32>
    %525 = vector.shape_cast %524 : vector<1xf32> to vector<1x1xf32>
    %c0_574 = arith.constant 0 : index
    %c0_575 = arith.constant 0 : index
    %526 = vector.load %arg13[%c0_574, %c0_575] : memref<1x1xf32, #tpu.memory_space<vmem>>, vector<1x1xf32>
    %527 = arith.addf %525, %526 : vector<1x1xf32>
    %c0_576 = arith.constant 0 : index
    %c0_577 = arith.constant 0 : index
    %c0_578 = arith.constant 0 : index
    %528 = vector.load %arg17[%c0_576, %c0_577, %c0_578] : memref<1x1x1xf32, #tpu.memory_space<vmem>>, vector<1x1x1xf32>
    %529 = vector.shape_cast %528 : vector<1x1x1xf32> to vector<1x1xf32>
    %530 = vector.shape_cast %527 : vector<1x1xf32> to vector<1x1x1xf32>
    tpu.vector_store %arg17[%c0_576, %c0_577, %c0_578], %530 {strides = array<i32>} : memref<1x1x1xf32, #tpu.memory_space<vmem>>, vector<1x1x1xf32>,
    return
  }
  func.func @transform_0(%arg0: i32) -> (i32, i32, i32) {
    %c0_i32 = arith.constant 0 : i32
    %c0_i32_0 = arith.constant 0 : i32
    %c0_i32_1 = arith.constant 0 : i32
    return %arg0, %c0_i32, %c0_i32_0 : i32, i32, i32
  }
  func.func @transform_1(%arg0: i32) -> (i32, i32) {
    %c0_i32 = arith.constant 0 : i32
    %c0_i32_0 = arith.constant 0 : i32
    %c0_i32_1 = arith.constant 0 : i32
    return %c0_i32, %c0_i32_0 : i32, i32
  }
  func.func @transform_2(%arg0: i32) -> (i32, i32) {
    %c0_i32 = arith.constant 0 : i32
    %c0_i32_0 = arith.constant 0 : i32
    %c0_i32_1 = arith.constant 0 : i32
    return %c0_i32, %c0_i32_0 : i32, i32
  }
  func.func @transform_3(%arg0: i32) -> (i32, i32) {
    %c0_i32 = arith.constant 0 : i32
    %c0_i32_0 = arith.constant 0 : i32
    %c0_i32_1 = arith.constant 0 : i32
    return %c0_i32, %c0_i32_0 : i32, i32
  }
  func.func @transform_4(%arg0: i32) -> (i32, i32) {
    %c0_i32 = arith.constant 0 : i32
    %c0_i32_0 = arith.constant 0 : i32
    %c0_i32_1 = arith.constant 0 : i32
    return %c0_i32, %c0_i32_0 : i32, i32
  }
  func.func @transform_5(%arg0: i32) -> (i32, i32, i32) {
    %c0_i32 = arith.constant 0 : i32
    %c0_i32_0 = arith.constant 0 : i32
    %c0_i32_1 = arith.constant 0 : i32
    %c0_i32_2 = arith.constant 0 : i32
    return %c0_i32, %c0_i32_0, %c0_i32_1 : i32, i32, i32
  }
  func.func @transform_6(%arg0: i32) -> (i32, i32, i32) {
    %c0_i32 = arith.constant 0 : i32
    %c0_i32_0 = arith.constant 0 : i32
    %c0_i32_1 = arith.constant 0 : i32
    %c0_i32_2 = arith.constant 0 : i32
    return %c0_i32, %c0_i32_0, %c0_i32_1 : i32, i32, i32
  }
  func.func @transform_7(%arg0: i32) -> (i32, i32, i32) {
    %c0_i32 = arith.constant 0 : i32
    %c0_i32_0 = arith.constant 0 : i32
    %c0_i32_1 = arith.constant 0 : i32
    %c0_i32_2 = arith.constant 0 : i32
    return %c0_i32, %c0_i32_0, %c0_i32_1 : i32, i32, i32
  }
  func.func @transform_8(%arg0: i32) -> (i32, i32, i32) {
    %c0_i32 = arith.constant 0 : i32
    %c0_i32_0 = arith.constant 0 : i32
    %c0_i32_1 = arith.constant 0 : i32
    %c0_i32_2 = arith.constant 0 : i32
    return %c0_i32, %c0_i32_0, %c0_i32_1 : i32, i32, i32
  }
  func.func @transform_9(%arg0: i32) -> (i32, i32, i32) {
    %c0_i32 = arith.constant 0 : i32
    %c0_i32_0 = arith.constant 0 : i32
    %c0_i32_1 = arith.constant 0 : i32
    %c0_i32_2 = arith.constant 0 : i32
    return %c0_i32, %c0_i32_0, %c0_i32_1 : i32, i32, i32
  }
  func.func @transform_10(%arg0: i32) -> (i32, i32, i32) {
    %c0_i32 = arith.constant 0 : i32
    %c0_i32_0 = arith.constant 0 : i32
    %c0_i32_1 = arith.constant 0 : i32
    %c0_i32_2 = arith.constant 0 : i32
    return %c0_i32, %c0_i32_0, %c0_i32_1 : i32, i32, i32
  }
  func.func @transform_11(%arg0: i32) -> (i32, i32) {
    %c0_i32 = arith.constant 0 : i32
    %c0_i32_0 = arith.constant 0 : i32
    %c0_i32_1 = arith.constant 0 : i32
    return %c0_i32, %c0_i32_0 : i32, i32
  }
  func.func @transform_12(%arg0: i32) -> (i32, i32) {
    %c0_i32 = arith.constant 0 : i32
    %c0_i32_0 = arith.constant 0 : i32
    %c0_i32_1 = arith.constant 0 : i32
    return %c0_i32, %c0_i32_0 : i32, i32
  }
  func.func @transform_13(%arg0: i32) -> (i32, i32) {
    %c0_i32 = arith.constant 0 : i32
    %c0_i32_0 = arith.constant 0 : i32
    %c0_i32_1 = arith.constant 0 : i32
    return %c0_i32, %c0_i32_0 : i32, i32
  }
  func.func @transform_14(%arg0: i32) -> (i32, i32) {
    %c0_i32 = arith.constant 0 : i32
    %c0_i32_0 = arith.constant 0 : i32
    %c0_i32_1 = arith.constant 0 : i32
    return %c0_i32, %c0_i32_0 : i32, i32
  }
  func.func @transform_15(%arg0: i32) -> (i32, i32) {
    %c0_i32 = arith.constant 0 : i32
    %c0_i32_0 = arith.constant 0 : i32
    %c0_i32_1 = arith.constant 0 : i32
    return %c0_i32, %c0_i32_0 : i32, i32
  }
  func.func @transform_16(%arg0: i32) -> (i32, i32, i32) {
    %c0_i32 = arith.constant 0 : i32
    %c0_i32_0 = arith.constant 0 : i32
    %c0_i32_1 = arith.constant 0 : i32
    return %arg0, %c0_i32, %c0_i32_0 : i32, i32, i32
  }
}

</mosaic_0001>

<llo_original>
// kernel: tpu_custom_call.1
$region0: #{tpu_custom_call.1}
  #allocation0 [shape = 'u32[]', space=smem, size = 0x4, offset = 0x4, fixed_abs, tag = 'smem constant byte address 0x4 - core index']
  #allocation1 [shape = 'u32[72,128]{1,0:T(1,128)}', space=vmem, size = 0x9000, scoped, tag = 'internal scratch']
  #allocation2 [shape = 'f32[104,8]{1,0:T(8,128)}', space=vmem, size = 0xd000, scoped, tag = 'scratch operand']
  #allocation3 [shape = 'f32[104,32]{1,0:T(8,128)}', space=vmem, size = 0xd000, scoped, tag = 'scratch operand']
  #allocation4 [shape = 'f32[40,32]{1,0:T(8,128)}', space=vmem, size = 0x5000, scoped, tag = 'scratch operand']
  #allocation5 [shape = 'f32[40,32]{1,0:T(8,128)}', space=vmem, size = 0x5000, scoped, tag = 'scratch operand']
  #allocation6 [shape = 'f32[40,32]{1,0:T(8,128)}', space=vmem, size = 0x5000, scoped, tag = 'scratch operand']
  #allocation7 [shape = 'f32[24,32]{1,0:T(8,128)}', space=vmem, size = 0x3000, scoped, tag = 'scratch operand']
  #allocation8 [shape = 'f32[24,32]{1,0:T(8,128)}', space=vmem, size = 0x3000, scoped, tag = 'scratch operand']
  #allocation9 [shape = 'f32[24,32]{1,0:T(8,128)}', space=vmem, size = 0x3000, scoped, tag = 'scratch operand']
  #allocation10 [shape = 'f32[1,1]{1,0:T(1,128)S(1)}', space=vmem, size = 0x200, scoped, tag = 'scoped memory for tpu_custom_call.1']
  %s0 = inlined_call_operand.vmem [shape: f32[2,80,16], index: 0, kind: input, shape index: {}]
  %s1 = inlined_call_operand.vmem [shape: f32[16,8], index: 1, kind: input, shape index: {}]
  %s2 = inlined_call_operand.vmem [shape: f32[1,8], index: 2, kind: input, shape index: {}]
  %s3 = inlined_call_operand.vmem [shape: f32[72,32], index: 3, kind: input, shape index: {}]
  %s4 = inlined_call_operand.vmem [shape: f32[1,32], index: 4, kind: input, shape index: {}]
  %s5 = inlined_call_operand.vmem [shape: f32[8,288,32], index: 5, kind: input, shape index: {}]
  %s6 = inlined_call_operand.vmem [shape: f32[8,1,32], index: 6, kind: input, shape index: {}]
  %s7 = inlined_call_operand.vmem [shape: f32[8,288,32], index: 7, kind: input, shape index: {}]
  %s8 = inlined_call_operand.vmem [shape: f32[8,1,32], index: 8, kind: input, shape index: {}]
  %s9 = inlined_call_operand.vmem [shape: f32[2,32,32], index: 9, kind: input, shape index: {}]
  %s10 = inlined_call_operand.vmem [shape: f32[2,1,32], index: 10, kind: input, shape index: {}]
  %s11 = inlined_call_operand.vmem [shape: f32[1,32], index: 11, kind: input, shape index: {}]
  %s12 = inlined_call_operand.<no memory space> [shape: f32[1,1], index: 12, kind: input, shape index: {}]
  %s13 = inlined_call_operand.vmem [shape: f32[80,1], index: 13, kind: input, shape index: {}]
  %s14 = inlined_call_operand.vmem [shape: f32[24,1], index: 14, kind: input, shape index: {}]
  %s15 = inlined_call_operand.vmem [shape: f32[8,1], index: 15, kind: input, shape index: {}]
  %s16 = inlined_call_operand.vmem [shape: f32[2,1,1], index: 16, kind: output, shape index: {}]
  %s17 = sld [smem:[#allocation0]]
  $region97: #{tpu_custom_call.1} parent=0
    _
  %s19 = ssub.s32 1, %s17
  %s20 = scalar_select 0, %s19, %s17
  %v21 = vstv %s12
  %22 = vst [vmem:[#allocation10] sm:$0x1] %v21
  loop: start=0, step=1, limit=4
  $region2: #{tpu_custom_call.1} parent=0 // loop_pre_header
    _
  $region3: #{tpu_custom_call.1} parent=0 // loop_header
    %s24 = sphi 0, %s28
    %p25 = scmp.ge.s32.totalorder %s24, 4
    %s34 = sphi 0, %s36
    %s37 = sphi 0, %s34
    %s38 = sphi 0, %s37
    %s54 = sphi 0, %s38
    %s58 = sphi 0, %s58
    %s60 = sphi 0, %s58
    %s61 = sphi 0, %s60
    %s75 = sphi 0, %s61
    %s79 = sphi 0, %s79
    %s81 = sphi 0, %s79
    %s82 = sphi 0, %s81
    %s96 = sphi 0, %s82
    %s100 = sphi 0, %s100
    %s102 = sphi 0, %s100
    %s103 = sphi 0, %s102
    %s117 = sphi 0, %s103
    %s121 = sphi 0, %s121
    %s123 = sphi 0, %s121
    %s124 = sphi 0, %s123
    %s138 = sphi 0, %s124
    %s142 = sphi 0, %s142
    %s144 = sphi 0, %s142
    %s145 = sphi 0, %s144
    %s159 = sphi 0, %s145
    %s163 = sphi 0, %s163
    %s165 = sphi 0, %s163
    %s166 = sphi 0, %s165
    %s180 = sphi 0, %s166
    %s184 = sphi 0, %s184
    %s186 = sphi 0, %s184
    %s187 = sphi 0, %s186
    %s201 = sphi 0, %s187
    %s205 = sphi 0, %s205
    %s207 = sphi 0, %s205
    %s208 = sphi 0, %s207
    %s222 = sphi 0, %s208
    %s226 = sphi 0, %s226
    %s228 = sphi 0, %s226
    %s229 = sphi 0, %s228
    %s243 = sphi 0, %s229
    %s247 = sphi 0, %s247
    %s249 = sphi 0, %s247
    %s250 = sphi 0, %s249
    %s264 = sphi 0, %s250
    %s268 = sphi 0, %s268
    %s270 = sphi 0, %s268
    %s271 = sphi 0, %s270
    %s285 = sphi 0, %s271
    %s289 = sphi 0, %s289
    %s291 = sphi 0, %s289
    %s292 = sphi 0, %s291
    %s306 = sphi 0, %s292
    %s310 = sphi 0, %s310
    %s312 = sphi 0, %s310
    %s313 = sphi 0, %s312
    %s327 = sphi 0, %s313
    %s331 = sphi 0, %s331
    %s333 = sphi 0, %s331
    %s334 = sphi 0, %s333
    %s348 = sphi 0, %s334
    %s352 = sphi 0, %s352
    %s354 = sphi 0, %s352
    %s355 = sphi 0, %s354
    %s369 = sphi 0, %s355
    %s375 = sphi 0, %s377
    %s378 = sphi 0, %s375
    %s379 = sphi 0, %s378
    %s395 = sphi 0, %s379
  $region4: #{tpu_custom_call.1} parent=0 // loop_header_branch
    %27 = sbr.rel (%p25) target = $region8
  $region5: #{tpu_custom_call.1} parent=0 // loop_body
    %s29 = ssub.s32 %s24, 1
    %s30 = ssub.s32 %s24, 2
    %s31 = sadd.s32 %s24, 1
    %s32 = ssub.s32 %s24, %s31
    %p33 = scmp.eq.s32.totalorder %s32, 0
    %s35 = sadd.s32 %s34, 1
    %s36 = scalar_select %p33, %s34, %s35
    %p39 = pneg %p33
    %p40 = scmp.eq.s32.totalorder %s24, 1
    %p41 = por %p39, %p40
    %p42 = scmp.ne.s32.totalorder %s34, %s37
    %p43 = scmp.eq.s32.totalorder %s24, 0
    %p44 = por %p42, %p43
    %p45 = scmp.ne.s32.totalorder %s34, %s37
    %p46 = scmp.eq.s32.totalorder %s29, 1
    %p47 = por %p45, %p46
    %p48 = scmp.ne.s32.totalorder %s37, %s38
    %p49 = scmp.eq.s32.totalorder %s29, 0
    %p50 = por %p48, %p49
    %p51 = scmp.ne.s32.totalorder %s37, %s38
    %p52 = scmp.eq.s32.totalorder %s30, 1
    %p53 = por %p51, %p52
    %p55 = scmp.ne.s32.totalorder %s38, %s54
    %p56 = scmp.eq.s32.totalorder %s30, 0
    %p57 = por %p55, %p56
    %s59 = sadd.s32 %s58, 1
    %p62 = scmp.eq.s32.totalorder %s24, 1
    %p63 = scmp.ne.s32.totalorder %s58, %s60
    %p64 = scmp.eq.s32.totalorder %s24, 0
    %p65 = por %p63, %p64
    %p66 = scmp.ne.s32.totalorder %s58, %s60
    %p67 = scmp.eq.s32.totalorder %s29, 1
    %p68 = por %p66, %p67
    %p69 = scmp.ne.s32.totalorder %s60, %s61
    %p70 = scmp.eq.s32.totalorder %s29, 0
    %p71 = por %p69, %p70
    %p72 = scmp.ne.s32.totalorder %s60, %s61
    %p73 = scmp.eq.s32.totalorder %s30, 1
    %p74 = por %p72, %p73
    %p76 = scmp.ne.s32.totalorder %s61, %s75
    %p77 = scmp.eq.s32.totalorder %s30, 0
    %p78 = por %p76, %p77
    %s80 = sadd.s32 %s79, 1
    %p83 = scmp.eq.s32.totalorder %s24, 1
    %p84 = scmp.ne.s32.totalorder %s79, %s81
    %p85 = scmp.eq.s32.totalorder %s24, 0
    %p86 = por %p84, %p85
    %p87 = scmp.ne.s32.totalorder %s79, %s81
    %p88 = scmp.eq.s32.totalorder %s29, 1
    %p89 = por %p87, %p88
    %p90 = scmp.ne.s32.totalorder %s81, %s82
    %p91 = scmp.eq.s32.totalorder %s29, 0
    %p92 = por %p90, %p91
    %p93 = scmp.ne.s32.totalorder %s81, %s82
    %p94 = scmp.eq.s32.totalorder %s30, 1
    %p95 = por %p93, %p94
    %p97 = scmp.ne.s32.totalorder %s82, %s96
    %p98 = scmp.eq.s32.totalorder %s30, 0
    %p99 = por %p97, %p98
    %s101 = sadd.s32 %s100, 1
    %p104 = scmp.eq.s32.totalorder %s24, 1
    %p105 = scmp.ne.s32.totalorder %s100, %s102
    %p106 = scmp.eq.s32.totalorder %s24, 0
    %p107 = por %p105, %p106
    %p108 = scmp.ne.s32.totalorder %s100, %s102
    %p109 = scmp.eq.s32.totalorder %s29, 1
    %p110 = por %p108, %p109
    %p111 = scmp.ne.s32.totalorder %s102, %s103
    %p112 = scmp.eq.s32.totalorder %s29, 0
    %p113 = por %p111, %p112
    %p114 = scmp.ne.s32.totalorder %s102, %s103
    %p115 = scmp.eq.s32.totalorder %s30, 1
    %p116 = por %p114, %p115
    %p118 = scmp.ne.s32.totalorder %s103, %s117
    %p119 = scmp.eq.s32.totalorder %s30, 0
    %p120 = por %p118, %p119
    %s122 = sadd.s32 %s121, 1
    %p125 = scmp.eq.s32.totalorder %s24, 1
    %p126 = scmp.ne.s32.totalorder %s121, %s123
    %p127 = scmp.eq.s32.totalorder %s24, 0
    %p128 = por %p126, %p127
    %p129 = scmp.ne.s32.totalorder %s121, %s123
    %p130 = scmp.eq.s32.totalorder %s29, 1
    %p131 = por %p129, %p130
    %p132 = scmp.ne.s32.totalorder %s123, %s124
    %p133 = scmp.eq.s32.totalorder %s29, 0
    %p134 = por %p132, %p133
    %p135 = scmp.ne.s32.totalorder %s123, %s124
    %p136 = scmp.eq.s32.totalorder %s30, 1
    %p137 = por %p135, %p136
    %p139 = scmp.ne.s32.totalorder %s124, %s138
    %p140 = scmp.eq.s32.totalorder %s30, 0
    %p141 = por %p139, %p140
    %s143 = sadd.s32 %s142, 1
    %p146 = scmp.eq.s32.totalorder %s24, 1
    %p147 = scmp.ne.s32.totalorder %s142, %s144
    %p148 = scmp.eq.s32.totalorder %s24, 0
    %p149 = por %p147, %p148
    %p150 = scmp.ne.s32.totalorder %s142, %s144
    %p151 = scmp.eq.s32.totalorder %s29, 1
    %p152 = por %p150, %p151
    %p153 = scmp.ne.s32.totalorder %s144, %s145
    %p154 = scmp.eq.s32.totalorder %s29, 0
    %p155 = por %p153, %p154
    %p156 = scmp.ne.s32.totalorder %s144, %s145
    %p157 = scmp.eq.s32.totalorder %s30, 1
    %p158 = por %p156, %p157
    %p160 = scmp.ne.s32.totalorder %s145, %s159
    %p161 = scmp.eq.s32.totalorder %s30, 0
    %p162 = por %p160, %p161
    %s164 = sadd.s32 %s163, 1
    %p167 = scmp.eq.s32.totalorder %s24, 1
    %p168 = scmp.ne.s32.totalorder %s163, %s165
    %p169 = scmp.eq.s32.totalorder %s24, 0
    %p170 = por %p168, %p169
    %p171 = scmp.ne.s32.totalorder %s163, %s165
    %p172 = scmp.eq.s32.totalorder %s29, 1
    %p173 = por %p171, %p172
    %p174 = scmp.ne.s32.totalorder %s165, %s166
    %p175 = scmp.eq.s32.totalorder %s29, 0
    %p176 = por %p174, %p175
    %p177 = scmp.ne.s32.totalorder %s165, %s166
    %p178 = scmp.eq.s32.totalorder %s30, 1
    %p179 = por %p177, %p178
    %p181 = scmp.ne.s32.totalorder %s166, %s180
    %p182 = scmp.eq.s32.totalorder %s30, 0
    %p183 = por %p181, %p182
    %s185 = sadd.s32 %s184, 1
    %p188 = scmp.eq.s32.totalorder %s24, 1
    %p189 = scmp.ne.s32.totalorder %s184, %s186
    %p190 = scmp.eq.s32.totalorder %s24, 0
    %p191 = por %p189, %p190
    %p192 = scmp.ne.s32.totalorder %s184, %s186
    %p193 = scmp.eq.s32.totalorder %s29, 1
    %p194 = por %p192, %p193
    %p195 = scmp.ne.s32.totalorder %s186, %s187
    %p196 = scmp.eq.s32.totalorder %s29, 0
    %p197 = por %p195, %p196
    %p198 = scmp.ne.s32.totalorder %s186, %s187
    %p199 = scmp.eq.s32.totalorder %s30, 1
    %p200 = por %p198, %p199
    %p202 = scmp.ne.s32.totalorder %s187, %s201
    %p203 = scmp.eq.s32.totalorder %s30, 0
    %p204 = por %p202, %p203
    %s206 = sadd.s32 %s205, 1
    %p209 = scmp.eq.s32.totalorder %s24, 1
    %p210 = scmp.ne.s32.totalorder %s205, %s207
    %p211 = scmp.eq.s32.totalorder %s24, 0
    %p212 = por %p210, %p211
    %p213 = scmp.ne.s32.totalorder %s205, %s207
    %p214 = scmp.eq.s32.totalorder %s29, 1
    %p215 = por %p213, %p214
    %p216 = scmp.ne.s32.totalorder %s207, %s208
    %p217 = scmp.eq.s32.totalorder %s29, 0
    %p218 = por %p216, %p217
    %p219 = scmp.ne.s32.totalorder %s207, %s208
    %p220 = scmp.eq.s32.totalorder %s30, 1
    %p221 = por %p219, %p220
    %p223 = scmp.ne.s32.totalorder %s208, %s222
    %p224 = scmp.eq.s32.totalorder %s30, 0
    %p225 = por %p223, %p224
    %s227 = sadd.s32 %s226, 1
    %p230 = scmp.eq.s32.totalorder %s24, 1
    %p231 = scmp.ne.s32.totalorder %s226, %s228
    %p232 = scmp.eq.s32.totalorder %s24, 0
    %p233 = por %p231, %p232
    %p234 = scmp.ne.s32.totalorder %s226, %s228
    %p235 = scmp.eq.s32.totalorder %s29, 1
    %p236 = por %p234, %p235
    %p237 = scmp.ne.s32.totalorder %s228, %s229
    %p238 = scmp.eq.s32.totalorder %s29, 0
    %p239 = por %p237, %p238
    %p240 = scmp.ne.s32.totalorder %s228, %s229
    %p241 = scmp.eq.s32.totalorder %s30, 1
    %p242 = por %p240, %p241
    %p244 = scmp.ne.s32.totalorder %s229, %s243
    %p245 = scmp.eq.s32.totalorder %s30, 0
    %p246 = por %p244, %p245
    %s248 = sadd.s32 %s247, 1
    %p251 = scmp.eq.s32.totalorder %s24, 1
    %p252 = scmp.ne.s32.totalorder %s247, %s249
    %p253 = scmp.eq.s32.totalorder %s24, 0
    %p254 = por %p252, %p253
    %p255 = scmp.ne.s32.totalorder %s247, %s249
    %p256 = scmp.eq.s32.totalorder %s29, 1
    %p257 = por %p255, %p256
    %p258 = scmp.ne.s32.totalorder %s249, %s250
    %p259 = scmp.eq.s32.totalorder %s29, 0
    %p260 = por %p258, %p259
    %p261 = scmp.ne.s32.totalorder %s249, %s250
    %p262 = scmp.eq.s32.totalorder %s30, 1
    %p263 = por %p261, %p262
    %p265 = scmp.ne.s32.totalorder %s250, %s264
    %p266 = scmp.eq.s32.totalorder %s30, 0
    %p267 = por %p265, %p266
    %s269 = sadd.s32 %s268, 1
    %p272 = scmp.eq.s32.totalorder %s24, 1
    %p273 = scmp.ne.s32.totalorder %s268, %s270
    %p274 = scmp.eq.s32.totalorder %s24, 0
    %p275 = por %p273, %p274
    %p276 = scmp.ne.s32.totalorder %s268, %s270
    %p277 = scmp.eq.s32.totalorder %s29, 1
    %p278 = por %p276, %p277
    %p279 = scmp.ne.s32.totalorder %s270, %s271
    %p280 = scmp.eq.s32.totalorder %s29, 0
    %p281 = por %p279, %p280
    %p282 = scmp.ne.s32.totalorder %s270, %s271
    %p283 = scmp.eq.s32.totalorder %s30, 1
    %p284 = por %p282, %p283
    %p286 = scmp.ne.s32.totalorder %s271, %s285
    %p287 = scmp.eq.s32.totalorder %s30, 0
    %p288 = por %p286, %p287
    %s290 = sadd.s32 %s289, 1
    %p293 = scmp.eq.s32.totalorder %s24, 1
    %p294 = scmp.ne.s32.totalorder %s289, %s291
    %p295 = scmp.eq.s32.totalorder %s24, 0
    %p296 = por %p294, %p295
    %p297 = scmp.ne.s32.totalorder %s289, %s291
    %p298 = scmp.eq.s32.totalorder %s29, 1
    %p299 = por %p297, %p298
    %p300 = scmp.ne.s32.totalorder %s291, %s292
    %p301 = scmp.eq.s32.totalorder %s29, 0
    %p302 = por %p300, %p301
    %p303 = scmp.ne.s32.totalorder %s291, %s292
    %p304 = scmp.eq.s32.totalorder %s30, 1
    %p305 = por %p303, %p304
    %p307 = scmp.ne.s32.totalorder %s292, %s306
    %p308 = scmp.eq.s32.totalorder %s30, 0
    %p309 = por %p307, %p308
    %s311 = sadd.s32 %s310, 1
    %p314 = scmp.eq.s32.totalorder %s24, 1
    %p315 = scmp.ne.s32.totalorder %s310, %s312
    %p316 = scmp.eq.s32.totalorder %s24, 0
    %p317 = por %p315, %p316
    %p318 = scmp.ne.s32.totalorder %s310, %s312
    %p319 = scmp.eq.s32.totalorder %s29, 1
    %p320 = por %p318, %p319
    %p321 = scmp.ne.s32.totalorder %s312, %s313
    %p322 = scmp.eq.s32.totalorder %s29, 0
    %p323 = por %p321, %p322
    %p324 = scmp.ne.s32.totalorder %s312, %s313
    %p325 = scmp.eq.s32.totalorder %s30, 1
    %p326 = por %p324, %p325
    %p328 = scmp.ne.s32.totalorder %s313, %s327
    %p329 = scmp.eq.s32.totalorder %s30, 0
    %p330 = por %p328, %p329
    %s332 = sadd.s32 %s331, 1
    %p335 = scmp.eq.s32.totalorder %s24, 1
    %p336 = scmp.ne.s32.totalorder %s331, %s333
    %p337 = scmp.eq.s32.totalorder %s24, 0
    %p338 = por %p336, %p337
    %p339 = scmp.ne.s32.totalorder %s331, %s333
    %p340 = scmp.eq.s32.totalorder %s29, 1
    %p341 = por %p339, %p340
    %p342 = scmp.ne.s32.totalorder %s333, %s334
    %p343 = scmp.eq.s32.totalorder %s29, 0
    %p344 = por %p342, %p343
    %p345 = scmp.ne.s32.totalorder %s333, %s334
    %p346 = scmp.eq.s32.totalorder %s30, 1
    %p347 = por %p345, %p346
    %p349 = scmp.ne.s32.totalorder %s334, %s348
    %p350 = scmp.eq.s32.totalorder %s30, 0
    %p351 = por %p349, %p350
    %s353 = sadd.s32 %s352, 1
    %p356 = scmp.eq.s32.totalorder %s24, 1
    %p357 = scmp.ne.s32.totalorder %s352, %s354
    %p358 = scmp.eq.s32.totalorder %s24, 0
    %p359 = por %p357, %p358
    %p360 = scmp.ne.s32.totalorder %s352, %s354
    %p361 = scmp.eq.s32.totalorder %s29, 1
    %p362 = por %p360, %p361
    %p363 = scmp.ne.s32.totalorder %s354, %s355
    %p364 = scmp.eq.s32.totalorder %s29, 0
    %p365 = por %p363, %p364
    %p366 = scmp.ne.s32.totalorder %s354, %s355
    %p367 = scmp.eq.s32.totalorder %s30, 1
    %p368 = por %p366, %p367
    %p370 = scmp.ne.s32.totalorder %s355, %s369
    %p371 = scmp.eq.s32.totalorder %s30, 0
    %p372 = por %p370, %p371
    %s373 = ssub.s32 %s24, %s31
    %p374 = scmp.eq.s32.totalorder %s373, 0
    %s376 = sadd.s32 %s375, 1
    %s377 = scalar_select %p374, %s375, %s376
    %p380 = pneg %p374
    %p381 = scmp.eq.s32.totalorder %s24, 1
    %p382 = por %p380, %p381
    %p383 = scmp.ne.s32.totalorder %s375, %s378
    %p384 = scmp.eq.s32.totalorder %s24, 0
    %p385 = por %p383, %p384
    %p386 = scmp.ne.s32.totalorder %s375, %s378
    %p387 = scmp.eq.s32.totalorder %s29, 1
    %p388 = por %p386, %p387
    %p389 = scmp.ne.s32.totalorder %s378, %s379
    %p390 = scmp.eq.s32.totalorder %s29, 0
    %p391 = por %p389, %p390
    %p392 = scmp.ne.s32.totalorder %s378, %s379
    %p393 = scmp.eq.s32.totalorder %s30, 1
    %p394 = por %p392, %p393
    %p396 = scmp.ne.s32.totalorder %s379, %s395
    %p397 = scmp.eq.s32.totalorder %s30, 0
    %p398 = por %p396, %p397
    %p399 = scmp.le.s32.totalorder 1, %s24
    %p400 = scmp.lt.s32.totalorder %s24, 3
    %p401 = pnand %p399, %p400
    %p402 = pneg %p401
    // Predicated region
    $region9: #{tpu_custom_call.1} parent=5 // pred_check
      _
    $region10: #{tpu_custom_call.1} parent=5 // pred_check_branch
      %404 = sbr.rel (%p401) target = $region12
    $region11: #{tpu_custom_call.1} parent=5 // pred_region
      %s405 = ssub.s32 %s24, 1
      // Predicated region
      $region13: #{tpu_custom_call.1} parent=11 // pred_check
        %p406 = pneg %p71
      $region14: #{tpu_custom_call.1} parent=11 // pred_check_branch
        %408 = sbr.rel (%p406) target = $region16
      $region15: #{tpu_custom_call.1} parent=11 // pred_region
        _
      $region16: #{tpu_custom_call.1} parent=11 // pred_fallthru
        _
      // Predicated region
      $region17: #{tpu_custom_call.1} parent=11 // pred_check
        %p409 = pneg %p92
      $region18: #{tpu_custom_call.1} parent=11 // pred_check_branch
        %411 = sbr.rel (%p409) target = $region20
      $region19: #{tpu_custom_call.1} parent=11 // pred_region
        _
      $region20: #{tpu_custom_call.1} parent=11 // pred_fallthru
        _
      // Predicated region
      $region21: #{tpu_custom_call.1} parent=11 // pred_check
        %p412 = pneg %p113
      $region22: #{tpu_custom_call.1} parent=11 // pred_check_branch
        %414 = sbr.rel (%p412) target = $region24
      $region23: #{tpu_custom_call.1} parent=11 // pred_region
        _
      $region24: #{tpu_custom_call.1} parent=11 // pred_fallthru
        _
      // Predicated region
      $region25: #{tpu_custom_call.1} parent=11 // pred_check
        %p415 = pneg %p134
      $region26: #{tpu_custom_call.1} parent=11 // pred_check_branch
        %417 = sbr.rel (%p415) target = $region28
      $region27: #{tpu_custom_call.1} parent=11 // pred_region
        _
      $region28: #{tpu_custom_call.1} parent=11 // pred_fallthru
        _
      // Predicated region
      $region29: #{tpu_custom_call.1} parent=11 // pred_check
        %p418 = pneg %p155
      $region30: #{tpu_custom_call.1} parent=11 // pred_check_branch
        %420 = sbr.rel (%p418) target = $region32
      $region31: #{tpu_custom_call.1} parent=11 // pred_region
        _
      $region32: #{tpu_custom_call.1} parent=11 // pred_fallthru
        _
      // Predicated region
      $region33: #{tpu_custom_call.1} parent=11 // pred_check
        %p421 = pneg %p176
      $region34: #{tpu_custom_call.1} parent=11 // pred_check_branch
        %423 = sbr.rel (%p421) target = $region36
      $region35: #{tpu_custom_call.1} parent=11 // pred_region
        _
      $region36: #{tpu_custom_call.1} parent=11 // pred_fallthru
        _
      // Predicated region
      $region37: #{tpu_custom_call.1} parent=11 // pred_check
        %p424 = pneg %p197
      $region38: #{tpu_custom_call.1} parent=11 // pred_check_branch
        %426 = sbr.rel (%p424) target = $region40
      $region39: #{tpu_custom_call.1} parent=11 // pred_region
        _
      $region40: #{tpu_custom_call.1} parent=11 // pred_fallthru
        _
      // Predicated region
      $region41: #{tpu_custom_call.1} parent=11 // pred_check
        %p427 = pneg %p218
      $region42: #{tpu_custom_call.1} parent=11 // pred_check_branch
        %429 = sbr.rel (%p427) target = $region44
      $region43: #{tpu_custom_call.1} parent=11 // pred_region
        _
      $region44: #{tpu_custom_call.1} parent=11 // pred_fallthru
        _
      // Predicated region
      $region45: #{tpu_custom_call.1} parent=11 // pred_check
        %p430 = pneg %p239
      $region46: #{tpu_custom_call.1} parent=11 // pred_check_branch
        %432 = sbr.rel (%p430) target = $region48
      $region47: #{tpu_custom_call.1} parent=11 // pred_region
        _
      $region48: #{tpu_custom_call.1} parent=11 // pred_fallthru
        _
      // Predicated region
      $region49: #{tpu_custom_call.1} parent=11 // pred_check
        %p433 = pneg %p260
      $region50: #{tpu_custom_call.1} parent=11 // pred_check_branch
        %435 = sbr.rel (%p433) target = $region52
      $region51: #{tpu_custom_call.1} parent=11 // pred_region
        _
      $region52: #{tpu_custom_call.1} parent=11 // pred_fallthru
        _
      // Predicated region
      $region53: #{tpu_custom_call.1} parent=11 // pred_check
        %p436 = pneg %p281
      $region54: #{tpu_custom_call.1} parent=11 // pred_check_branch
        %438 = sbr.rel (%p436) target = $region56
      $region55: #{tpu_custom_call.1} parent=11 // pred_region
        _
      $region56: #{tpu_custom_call.1} parent=11 // pred_fallthru
        _
      // Predicated region
      $region57: #{tpu_custom_call.1} parent=11 // pred_check
        %p439 = pneg %p302
      $region58: #{tpu_custom_call.1} parent=11 // pred_check_branch
        %441 = sbr.rel (%p439) target = $region60
      $region59: #{tpu_custom_call.1} parent=11 // pred_region
        _
      $region60: #{tpu_custom_call.1} parent=11 // pred_fallthru
        _
      // Predicated region
      $region61: #{tpu_custom_call.1} parent=11 // pred_check
        %p442 = pneg %p323
      $region62: #{tpu_custom_call.1} parent=11 // pred_check_branch
        %444 = sbr.rel (%p442) target = $region64
      $region63: #{tpu_custom_call.1} parent=11 // pred_region
        _
      $region64: #{tpu_custom_call.1} parent=11 // pred_fallthru
        _
      // Predicated region
      $region65: #{tpu_custom_call.1} parent=11 // pred_check
        %p445 = pneg %p344
      $region66: #{tpu_custom_call.1} parent=11 // pred_check_branch
        %447 = sbr.rel (%p445) target = $region68
      $region67: #{tpu_custom_call.1} parent=11 // pred_region
        _
      $region68: #{tpu_custom_call.1} parent=11 // pred_fallthru
        _
      // Predicated region
      $region69: #{tpu_custom_call.1} parent=11 // pred_check
        %p448 = pneg %p365
      $region70: #{tpu_custom_call.1} parent=11 // pred_check_branch
        %450 = sbr.rel (%p448) target = $region72
      $region71: #{tpu_custom_call.1} parent=11 // pred_region
        _
      $region72: #{tpu_custom_call.1} parent=11 // pred_fallthru
        _
    $region12: #{tpu_custom_call.1} parent=5 // pred_fallthru
      _
    %p451 = scmp.lt.s32.totalorder %s24, 2
    // Predicated region
    $region73: #{tpu_custom_call.1} parent=5 // pred_check
      %p452 = pneg %p451
    $region74: #{tpu_custom_call.1} parent=5 // pred_check_branch
      %454 = sbr.rel (%p452) target = $region76
    $region75: #{tpu_custom_call.1} parent=5 // pred_region
      // Predicated region
      $region77: #{tpu_custom_call.1} parent=75 // pred_check
        %p455 = pneg %p44
      $region78: #{tpu_custom_call.1} parent=75 // pred_check_branch
        %457 = sbr.rel (%p455) target = $region80
      $region79: #{tpu_custom_call.1} parent=75 // pred_region
        %p458 = scmp.lt.s32.totalorder %s24, 1
        %s459 = scalar_select %p458, %s24, 1
        %s460 = smul.addr %s459, 10
        %s461 = smul.addr %s460, 8
        %s462 = scalar_lea.vmem %s0, %s461
      $region80: #{tpu_custom_call.1} parent=75 // pred_fallthru
        _
    $region76: #{tpu_custom_call.1} parent=5 // pred_fallthru
      _
    %p463 = scmp.le.s32.totalorder 1, %s24
    %p464 = scmp.lt.s32.totalorder %s24, 3
    %p465 = pnand %p463, %p464
    %p466 = pneg %p465
    // Predicated region
    $region81: #{tpu_custom_call.1} parent=5 // pred_check
      _
    $region82: #{tpu_custom_call.1} parent=5 // pred_check_branch
      %468 = sbr.rel (%p465) target = $region84
    $region83: #{tpu_custom_call.1} parent=5 // pred_region
      %s469 = ssub.s32 %s24, 1
      %p470 = scmp.lt.s32.totalorder %s29, 1
      %s471 = scalar_select %p470, %s29, 1
      %s472 = smul.addr %s471, 10
      %s473 = smul.addr %s472, 8
      %s474 = scalar_lea.vmem %s0, %s473
      %p475 = pneg %p50
      %p476 = pneg %p47
      %p477 = pneg %p71
      %p478 = pneg %p68
      %p479 = pneg %p92
      %p480 = pneg %p89
      %p481 = pneg %p113
      %p482 = pneg %p110
      %p483 = pneg %p134
      %p484 = pneg %p131
      %p485 = pneg %p155
      %p486 = pneg %p152
      %p487 = pneg %p176
      %p488 = pneg %p173
      %p489 = pneg %p197
      %p490 = pneg %p194
      %p491 = pneg %p218
      %p492 = pneg %p215
      %p493 = pneg %p239
      %p494 = pneg %p236
      %p495 = pneg %p260
      %p496 = pneg %p257
      %p497 = pneg %p281
      %p498 = pneg %p278
      %p499 = pneg %p302
      %p500 = pneg %p299
      %p501 = pneg %p323
      %p502 = pneg %p320
      %p503 = pneg %p344
      %p504 = pneg %p341
      %p505 = pneg %p365
      %p506 = pneg %p362
      %p507 = pneg %p391
      %p508 = pneg %p388
      %p509 = scmp.lt.s32.totalorder %s29, 1
      %s510 = scalar_select %p509, %s29, 1
      %s511 = scalar_lea.vmem %s16, %s510
      %p512 = scmp.lt.s32.totalorder %s29, 1
      %s513 = scalar_select %p512, %s29, 1
      %s514 = smul.addr %s513, 10
      %s515 = smul.addr %s514, 8
      %s516 = scalar_lea.vmem %s0, %s515
      %p517 = scmp.lt.s32.totalorder %s29, 1
      %s518 = scalar_select %p517, %s29, 1
      %s519 = scalar_lea.vmem %s16, %s518
      %vm520 = vcmask 64512
      %521 = vst.msk [vmem:[#allocation2] sm:$0xff] %vm520, 0.0
      %522 = vst.msk [vmem:[#allocation2 + $0x8] sm:$0xff] %vm520, 0.0
      %523 = vst.msk [vmem:[#allocation2 + $0x10] sm:$0xff] %vm520, 0.0
      %524 = vst.msk [vmem:[#allocation2 + $0x18] sm:$0xff] %vm520, 0.0
      %525 = vst.msk [vmem:[#allocation2 + $0x20] sm:$0xff] %vm520, 0.0
      %526 = vst.msk [vmem:[#allocation2 + $0x28] sm:$0xff] %vm520, 0.0
      %527 = vst.msk [vmem:[#allocation2 + $0x30] sm:$0xff] %vm520, 0.0
      %528 = vst.msk [vmem:[#allocation2 + $0x38] sm:$0xff] %vm520, 0.0
      %529 = vst.msk [vmem:[#allocation2 + $0x40] sm:$0xff] %vm520, 0.0
      %530 = vst.msk [vmem:[#allocation2 + $0x48] sm:$0xff] %vm520, 0.0
      %531 = vst.msk [vmem:[#allocation2 + $0x50] sm:$0xff] %vm520, 0.0
      %532 = vst.msk [vmem:[#allocation2 + $0x58] sm:$0xff] %vm520, 0.0
      %533 = vst.msk [vmem:[#allocation2 + $0x60] sm:$0xff] %vm520, 0.0
      %vm534 = vcmask 261120
      %535 = vst.msk [vmem:[#allocation3] sm:$0xff] %vm534, 0.0
      %536 = vst.msk [vmem:[#allocation3 + $0x8] sm:$0xff] %vm534, 0.0
      %537 = vst.msk [vmem:[#allocation3 + $0x10] sm:$0xff] %vm534, 0.0
      %538 = vst.msk [vmem:[#allocation3 + $0x18] sm:$0xff] %vm534, 0.0
      %539 = vst.msk [vmem:[#allocation3 + $0x20] sm:$0xff] %vm534, 0.0
      %540 = vst.msk [vmem:[#allocation3 + $0x28] sm:$0xff] %vm534, 0.0
      %541 = vst.msk [vmem:[#allocation3 + $0x30] sm:$0xff] %vm534, 0.0
      %542 = vst.msk [vmem:[#allocation3 + $0x38] sm:$0xff] %vm534, 0.0
      %543 = vst.msk [vmem:[#allocation3 + $0x40] sm:$0xff] %vm534, 0.0
      %544 = vst.msk [vmem:[#allocation3 + $0x48] sm:$0xff] %vm534, 0.0
      %545 = vst.msk [vmem:[#allocation3 + $0x50] sm:$0xff] %vm534, 0.0
      %546 = vst.msk [vmem:[#allocation3 + $0x58] sm:$0xff] %vm534, 0.0
      %547 = vst.msk [vmem:[#allocation3 + $0x60] sm:$0xff] %vm534, 0.0
      %548 = vst.msk [vmem:[#allocation4] sm:$0xff] %vm534, 0.0
      %549 = vst.msk [vmem:[#allocation4 + $0x8] sm:$0xff] %vm534, 0.0
      %550 = vst.msk [vmem:[#allocation4 + $0x10] sm:$0xff] %vm534, 0.0
      %551 = vst.msk [vmem:[#allocation4 + $0x18] sm:$0xff] %vm534, 0.0
      %552 = vst.msk [vmem:[#allocation4 + $0x20] sm:$0xff] %vm534, 0.0
      %553 = vst.msk [vmem:[#allocation5] sm:$0xff] %vm534, 0.0
      %554 = vst.msk [vmem:[#allocation5 + $0x8] sm:$0xff] %vm534, 0.0
      %555 = vst.msk [vmem:[#allocation5 + $0x10] sm:$0xff] %vm534, 0.0
      %556 = vst.msk [vmem:[#allocation5 + $0x18] sm:$0xff] %vm534, 0.0
      %557 = vst.msk [vmem:[#allocation5 + $0x20] sm:$0xff] %vm534, 0.0
      %558 = vst.msk [vmem:[#allocation6] sm:$0xff] %vm534, 0.0
      %559 = vst.msk [vmem:[#allocation6 + $0x8] sm:$0xff] %vm534, 0.0
      %560 = vst.msk [vmem:[#allocation6 + $0x10] sm:$0xff] %vm534, 0.0
      %561 = vst.msk [vmem:[#allocation6 + $0x18] sm:$0xff] %vm534, 0.0
      %562 = vst.msk [vmem:[#allocation6 + $0x20] sm:$0xff] %vm534, 0.0
      %563 = vst.msk [vmem:[#allocation7] sm:$0xff] %vm534, 0.0
      %564 = vst.msk [vmem:[#allocation7 + $0x8] sm:$0xff] %vm534, 0.0
      %565 = vst.msk [vmem:[#allocation7 + $0x10] sm:$0xff] %vm534, 0.0
      %566 = vst.msk [vmem:[#allocation8] sm:$0xff] %vm534, 0.0
      %567 = vst.msk [vmem:[#allocation8 + $0x8] sm:$0xff] %vm534, 0.0
      %568 = vst.msk [vmem:[#allocation8 + $0x10] sm:$0xff] %vm534, 0.0
      %569 = vst.msk [vmem:[#allocation9] sm:$0xff] %vm534, 0.0
      %570 = vst.msk [vmem:[#allocation9 + $0x8] sm:$0xff] %vm534, 0.0
      %571 = vst.msk [vmem:[#allocation9 + $0x10] sm:$0xff] %vm534, 0.0
      %v572 = vld [vmem:[%s13] sm:$0xff]
      %v573 = vld [vmem:[%s13 + $0x8] sm:$0xff]
      %v574 = vld [vmem:[%s13 + $0x10] sm:$0xff]
      %v575 = vld [vmem:[%s13 + $0x18] sm:$0xff]
      %v576 = vld [vmem:[%s13 + $0x20] sm:$0xff]
      %v577 = vld [vmem:[%s13 + $0x28] sm:$0xff]
      %v578 = vld [vmem:[%s13 + $0x30] sm:$0xff]
      %v579 = vld [vmem:[%s13 + $0x38] sm:$0xff]
      %v580 = vld [vmem:[%s13 + $0x40] sm:$0xff]
      %v581 = vld [vmem:[%s13 + $0x48] sm:$0xff]
      %v582 = vld [vmem:[%s14] sm:$0xff]
      %v583 = vld [vmem:[%s14 + $0x8] sm:$0xff]
      %v584 = vld [vmem:[%s14 + $0x10] sm:$0xff]
      %v585 = vld [vmem:[%s15] sm:$0xff]
      %v586 = vld [vmem:[%s516] sm:$0xff]
      %v587 = vld [vmem:[%s516 + $0x8] sm:$0xff]
      %v588 = vld [vmem:[%s516 + $0x10] sm:$0xff]
      %v589 = vld [vmem:[%s516 + $0x18] sm:$0xff]
      %v590 = vld [vmem:[%s516 + $0x20] sm:$0xff]
      %v591 = vld [vmem:[%s516 + $0x28] sm:$0xff]
      %v592 = vld [vmem:[%s516 + $0x30] sm:$0xff]
      %v593 = vld [vmem:[%s516 + $0x38] sm:$0xff]
      %v594 = vld [vmem:[%s516 + $0x40] sm:$0xff]
      %v595 = vld [vmem:[%s516 + $0x48] sm:$0xff]
      %v596 = vld [vmem:[%s1] sm:$0xff]
      %v597 = vld [vmem:[%s1 + $0x8] sm:$0xff]
      %v598 = vld [vmem:[%s2] sm:$0x1]
      %v600 = vperm.slane %v598, 0
      %vm602 = vcmask 130048
      %v604 = vsel %vm602, %v586, 0
      %v607 = vsel %vm602, %v587, 0
      %v610 = vsel %vm602, %v588, 0
      %v613 = vsel %vm602, %v589, 0
      %v616 = vsel %vm602, %v590, 0
      %v619 = vsel %vm602, %v591, 0
      %v622 = vsel %vm602, %v592, 0
      %v625 = vsel %vm602, %v593, 0
      %v628 = vsel %vm602, %v594, 0
      %v631 = vsel %vm602, %v595, 0
      %633 = vmatpush.msra.mxu0 0.0
      %634 = vmatpush.msra.mxu0 0.0
      %635 = vmatpush.msra.mxu0 0.0
      %636 = vmatpush.msra.mxu0 0.0
      %637 = vmatpush.msra.mxu0 0.0
      %638 = vmatpush.msra.mxu0 0.0
      %639 = vmatpush.msra.mxu0 0.0
      %640 = vmatpush.msra.mxu0 0.0
      %641 = vmatpush.msra.mxu0 0.0
      %642 = vmatpush.msra.mxu0 0.0
      %643 = vmatpush.msra.mxu0 0.0
      %644 = vmatpush.msra.mxu0 0.0
      %645 = vmatpush.msra.mxu0 0.0
      %646 = vmatpush.msra.mxu0 0.0
      %647 = vmatpush.msra.mxu0 %v597
      %648 = vmatpush.msra.mxu0 %v596
      %649 = vmatmul.f32.gmra.mxu0 %v604
      %v650 = vpop.f32.mrf.mxu0
      %v651 = vadd.f32 %v600, %v650
      %652 = vmatmul.f32.gmra.mxu0 %v607
      %v653 = vpop.f32.mrf.mxu0
      %v654 = vadd.f32 %v600, %v653
      %655 = vmatmul.f32.gmra.mxu0 %v610
      %v656 = vpop.f32.mrf.mxu0
      %v657 = vadd.f32 %v600, %v656
      %658 = vmatmul.f32.gmra.mxu0 %v613
      %v659 = vpop.f32.mrf.mxu0
      %v660 = vadd.f32 %v600, %v659
      %661 = vmatmul.f32.gmra.mxu0 %v616
      %v662 = vpop.f32.mrf.mxu0
      %v663 = vadd.f32 %v600, %v662
      %664 = vmatmul.f32.gmra.mxu0 %v619
      %v665 = vpop.f32.mrf.mxu0
      %v666 = vadd.f32 %v600, %v665
      %667 = vmatmul.f32.gmra.mxu0 %v622
      %v668 = vpop.f32.mrf.mxu0
      %v669 = vadd.f32 %v600, %v668
      %670 = vmatmul.f32.gmra.mxu0 %v625
      %v671 = vpop.f32.mrf.mxu0
      %v672 = vadd.f32 %v600, %v671
      %673 = vmatmul.f32.gmra.mxu0 %v628
      %v674 = vpop.f32.mrf.mxu0
      %v675 = vadd.f32 %v600, %v674
      %676 = vmatmul.f32.gmra.mxu0 %v631
      %v677 = vpop.f32.mrf.mxu0
      %v678 = vadd.f32 %v600, %v677
      %679 = vdwg.mxu0
      %681 = vset.pattern.permute.xlu0 0
      %682 = vperm.xlu0 %681, %v572
      %v683 = vpop.permute.xlu0 %682
      %686 = vset.pattern.permute.xlu0 0
      %687 = vperm.xlu0 %686, %v573
      %v688 = vpop.permute.xlu0 %687
      %691 = vset.pattern.permute.xlu0 0
      %692 = vperm.xlu0 %691, %v574
      %v693 = vpop.permute.xlu0 %692
      %696 = vset.pattern.permute.xlu0 0
      %697 = vperm.xlu0 %696, %v575
      %v698 = vpop.permute.xlu0 %697
      %701 = vset.pattern.permute.xlu0 0
      %702 = vperm.xlu0 %701, %v576
      %v703 = vpop.permute.xlu0 %702
      %706 = vset.pattern.permute.xlu0 0
      %707 = vperm.xlu0 %706, %v577
      %v708 = vpop.permute.xlu0 %707
      %711 = vset.pattern.permute.xlu0 0
      %712 = vperm.xlu0 %711, %v578
      %v713 = vpop.permute.xlu0 %712
      %716 = vset.pattern.permute.xlu0 0
      %717 = vperm.xlu0 %716, %v579
      %v718 = vpop.permute.xlu0 %717
      %721 = vset.pattern.permute.xlu0 0
      %722 = vperm.xlu0 %721, %v580
      %v723 = vpop.permute.xlu0 %722
      %726 = vset.pattern.permute.xlu0 0
      %727 = vperm.xlu0 %726, %v581
      %v728 = vpop.permute.xlu0 %727
      %v730 = vmul.f32 %v651, %v683
      %v731 = vmul.f32 %v654, %v688
      %v732 = vmul.f32 %v657, %v693
      %v733 = vmul.f32 %v660, %v698
      %v734 = vmul.f32 %v663, %v703
      %v735 = vmul.f32 %v666, %v708
      %v736 = vmul.f32 %v669, %v713
      %v737 = vmul.f32 %v672, %v718
      %v738 = vmul.f32 %v675, %v723
      %v739 = vmul.f32 %v678, %v728
      %740 = vst.msk [vmem:[#allocation2 + $0xb] sm:$0xff] %vm520, %v730
      %741 = vst.msk [vmem:[#allocation2 + $0x13] sm:$0xff] %vm520, %v731
      %742 = vst.msk [vmem:[#allocation2 + $0x1b] sm:$0xff] %vm520, %v732
      %743 = vst.msk [vmem:[#allocation2 + $0x23] sm:$0xff] %vm520, %v733
      %744 = vst.msk [vmem:[#allocation2 + $0x2b] sm:$0xff] %vm520, %v734
      %745 = vst.msk [vmem:[#allocation2 + $0x33] sm:$0xff] %vm520, %v735
      %746 = vst.msk [vmem:[#allocation2 + $0x3b] sm:$0xff] %vm520, %v736
      %747 = vst.msk [vmem:[#allocation2 + $0x43] sm:$0xff] %vm520, %v737
      %748 = vst.msk [vmem:[#allocation2 + $0x4b] sm:$0xff] %vm520, %v738
      %749 = vst.msk [vmem:[#allocation2 + $0x53] sm:$0xff] %vm520, %v739
      %v750 = vld [vmem:[%s3] sm:$0xff]
      %v751 = vld [vmem:[%s3 + $0x8] sm:$0xff]
      %v752 = vld [vmem:[%s3 + $0x10] sm:$0xff]
      %v753 = vld [vmem:[%s3 + $0x18] sm:$0xff]
      %v754 = vld [vmem:[%s3 + $0x20] sm:$0xff]
      %v755 = vld [vmem:[%s3 + $0x28] sm:$0xff]
      %v756 = vld [vmem:[%s3 + $0x30] sm:$0xff]
      %v757 = vld [vmem:[%s3 + $0x38] sm:$0xff]
      %v758 = vld [vmem:[%s3 + $0x40] sm:$0xff]
      %v759 = vld [vmem:[%s4] sm:$0x1]
      %v760 = vld [vmem:[#allocation2] sm:$0xff]
      %v761 = vld [vmem:[#allocation2 + $0x8] sm:$0xff]
      %v762 = vld [vmem:[#allocation2 + $0x10] sm:$0xff]
      %v763 = vld [vmem:[#allocation2 + $0x18] sm:$0xff]
      %v764 = vld [vmem:[#allocation2 + $0x20] sm:$0xff]
      %v765 = vld [vmem:[#allocation2 + $0x28] sm:$0xff]
      %v766 = vld [vmem:[#allocation2 + $0x30] sm:$0xff]
      %v767 = vld [vmem:[#allocation2 + $0x38] sm:$0xff]
      %v768 = vld [vmem:[#allocation2 + $0x40] sm:$0xff]
      %v769 = vld [vmem:[#allocation2 + $0x48] sm:$0xff]
      %v770 = vld [vmem:[#allocation2 + $0x1] sm:$0xff]
      %v771 = vld [vmem:[#allocation2 + $0x9] sm:$0xff]
      %v772 = vld [vmem:[#allocation2 + $0x11] sm:$0xff]
      %v773 = vld [vmem:[#allocation2 + $0x19] sm:$0xff]
      %v774 = vld [vmem:[#allocation2 + $0x21] sm:$0xff]
      %v775 = vld [vmem:[#allocation2 + $0x29] sm:$0xff]
      %v776 = vld [vmem:[#allocation2 + $0x31] sm:$0xff]
      %v777 = vld [vmem:[#allocation2 + $0x39] sm:$0xff]
      %v778 = vld [vmem:[#allocation2 + $0x41] sm:$0xff]
      %v779 = vld [vmem:[#allocation2 + $0x49] sm:$0xff]
      %v780 = vld [vmem:[#allocation2 + $0x2] sm:$0xff]
      %v781 = vld [vmem:[#allocation2 + $0xa] sm:$0xff]
      %v782 = vld [vmem:[#allocation2 + $0x12] sm:$0xff]
      %v783 = vld [vmem:[#allocation2 + $0x1a] sm:$0xff]
      %v784 = vld [vmem:[#allocation2 + $0x22] sm:$0xff]
      %v785 = vld [vmem:[#allocation2 + $0x2a] sm:$0xff]
      %v786 = vld [vmem:[#allocation2 + $0x32] sm:$0xff]
      %v787 = vld [vmem:[#allocation2 + $0x3a] sm:$0xff]
      %v788 = vld [vmem:[#allocation2 + $0x42] sm:$0xff]
      %v789 = vld [vmem:[#allocation2 + $0x4a] sm:$0xff]
      %v790 = vld [vmem:[#allocation2 + $0x52] sm:$0xff]
      %v791 = vld [vmem:[#allocation2 + $0xb] sm:$0xff]
      %v792 = vld [vmem:[#allocation2 + $0x13] sm:$0xff]
      %v793 = vld [vmem:[#allocation2 + $0x1b] sm:$0xff]
      %v794 = vld [vmem:[#allocation2 + $0x23] sm:$0xff]
      %v795 = vld [vmem:[#allocation2 + $0x2b] sm:$0xff]
      %v796 = vld [vmem:[#allocation2 + $0x33] sm:$0xff]
      %v797 = vld [vmem:[#allocation2 + $0x3b] sm:$0xff]
      %v798 = vld [vmem:[#allocation2 + $0x43] sm:$0xff]
      %v799 = vld [vmem:[#allocation2 + $0x4b] sm:$0xff]
      %v800 = vld [vmem:[#allocation2 + $0x53] sm:$0xff]
      %v801 = vld [vmem:[#allocation2 + $0xc] sm:$0xff]
      %v802 = vld [vmem:[#allocation2 + $0x14] sm:$0xff]
      %v803 = vld [vmem:[#allocation2 + $0x1c] sm:$0xff]
      %v804 = vld [vmem:[#allocation2 + $0x24] sm:$0xff]
      %v805 = vld [vmem:[#allocation2 + $0x2c] sm:$0xff]
      %v806 = vld [vmem:[#allocation2 + $0x34] sm:$0xff]
      %v807 = vld [vmem:[#allocation2 + $0x3c] sm:$0xff]
      %v808 = vld [vmem:[#allocation2 + $0x44] sm:$0xff]
      %v809 = vld [vmem:[#allocation2 + $0x4c] sm:$0xff]
      %v810 = vld [vmem:[#allocation2 + $0x54] sm:$0xff]
      %v811 = vld [vmem:[#allocation2 + $0x5c] sm:$0xff]
      %v812 = vld [vmem:[#allocation2 + $0x15] sm:$0xff]
      %v813 = vld [vmem:[#allocation2 + $0x1d] sm:$0xff]
      %v814 = vld [vmem:[#allocation2 + $0x25] sm:$0xff]
      %v815 = vld [vmem:[#allocation2 + $0x2d] sm:$0xff]
      %v816 = vld [vmem:[#allocation2 + $0x35] sm:$0xff]
      %v817 = vld [vmem:[#allocation2 + $0x3d] sm:$0xff]
      %v818 = vld [vmem:[#allocation2 + $0x45] sm:$0xff]
      %v819 = vld [vmem:[#allocation2 + $0x4d] sm:$0xff]
      %v820 = vld [vmem:[#allocation2 + $0x55] sm:$0xff]
      %v821 = vld [vmem:[#allocation2 + $0x5d] sm:$0xff]
      %v822 = vld [vmem:[#allocation2 + $0x16] sm:$0xff]
      %v823 = vld [vmem:[#allocation2 + $0x1e] sm:$0xff]
      %v824 = vld [vmem:[#allocation2 + $0x26] sm:$0xff]
      %v825 = vld [vmem:[#allocation2 + $0x2e] sm:$0xff]
      %v826 = vld [vmem:[#allocation2 + $0x36] sm:$0xff]
      %v827 = vld [vmem:[#allocation2 + $0x3e] sm:$0xff]
      %v828 = vld [vmem:[#allocation2 + $0x46] sm:$0xff]
      %v829 = vld [vmem:[#allocation2 + $0x4e] sm:$0xff]
      %v830 = vld [vmem:[#allocation2 + $0x56] sm:$0xff]
      %v831 = vld [vmem:[#allocation2 + $0x5e] sm:$0xff]
      %842 = vrot.lane.b32.xlu0 %v770, 8
      %v843 = vpop.permute.xlu0 %842
      %844 = vrot.lane.b32.xlu0 %v771, 8
      %v845 = vpop.permute.xlu0 %844
      %846 = vrot.lane.b32.xlu0 %v772, 8
      %v847 = vpop.permute.xlu0 %846
      %848 = vrot.lane.b32.xlu0 %v773, 8
      %v849 = vpop.permute.xlu0 %848
      %850 = vrot.lane.b32.xlu0 %v774, 8
      %v851 = vpop.permute.xlu0 %850
      %852 = vrot.lane.b32.xlu0 %v775, 8
      %v853 = vpop.permute.xlu0 %852
      %854 = vrot.lane.b32.xlu0 %v776, 8
      %v855 = vpop.permute.xlu0 %854
      %856 = vrot.lane.b32.xlu0 %v777, 8
      %v857 = vpop.permute.xlu0 %856
      %858 = vrot.lane.b32.xlu0 %v778, 8
      %v859 = vpop.permute.xlu0 %858
      %860 = vrot.lane.b32.xlu0 %v779, 8
      %v861 = vpop.permute.xlu0 %860
      %882 = vrot.lane.b32.xlu0 %v780, 16
      %v883 = vpop.permute.xlu0 %882
      %884 = vrot.lane.b32.xlu0 %v781, 16
      %v885 = vpop.permute.xlu0 %884
      %886 = vrot.lane.b32.xlu0 %v782, 16
      %v887 = vpop.permute.xlu0 %886
      %888 = vrot.lane.b32.xlu0 %v783, 16
      %v889 = vpop.permute.xlu0 %888
      %890 = vrot.lane.b32.xlu0 %v784, 16
      %v891 = vpop.permute.xlu0 %890
      %892 = vrot.lane.b32.xlu0 %v785, 16
      %v893 = vpop.permute.xlu0 %892
      %894 = vrot.lane.b32.xlu0 %v786, 16
      %v895 = vpop.permute.xlu0 %894
      %896 = vrot.lane.b32.xlu0 %v787, 16
      %v897 = vpop.permute.xlu0 %896
      %898 = vrot.lane.b32.xlu0 %v788, 16
      %v899 = vpop.permute.xlu0 %898
      %900 = vrot.lane.b32.xlu0 %v789, 16
      %v901 = vpop.permute.xlu0 %900
      %913 = vrot.lane.b32.xlu0 %v781, 24
      %v914 = vpop.permute.xlu0 %913
      %915 = vrot.lane.b32.xlu0 %v782, 24
      %v916 = vpop.permute.xlu0 %915
      %917 = vrot.lane.b32.xlu0 %v783, 24
      %v918 = vpop.permute.xlu0 %917
      %919 = vrot.lane.b32.xlu0 %v784, 24
      %v920 = vpop.permute.xlu0 %919
      %921 = vrot.lane.b32.xlu0 %v785, 24
      %v922 = vpop.permute.xlu0 %921
      %923 = vrot.lane.b32.xlu0 %v786, 24
      %v924 = vpop.permute.xlu0 %923
      %925 = vrot.lane.b32.xlu0 %v787, 24
      %v926 = vpop.permute.xlu0 %925
      %927 = vrot.lane.b32.xlu0 %v788, 24
      %v928 = vpop.permute.xlu0 %927
      %929 = vrot.lane.b32.xlu0 %v789, 24
      %v930 = vpop.permute.xlu0 %929
      %931 = vrot.lane.b32.xlu0 %v790, 24
      %v932 = vpop.permute.xlu0 %931
      %953 = vrot.lane.b32.xlu0 %v791, 32
      %v954 = vpop.permute.xlu0 %953
      %955 = vrot.lane.b32.xlu0 %v792, 32
      %v956 = vpop.permute.xlu0 %955
      %957 = vrot.lane.b32.xlu0 %v793, 32
      %v958 = vpop.permute.xlu0 %957
      %959 = vrot.lane.b32.xlu0 %v794, 32
      %v960 = vpop.permute.xlu0 %959
      %961 = vrot.lane.b32.xlu0 %v795, 32
      %v962 = vpop.permute.xlu0 %961
      %963 = vrot.lane.b32.xlu0 %v796, 32
      %v964 = vpop.permute.xlu0 %963
      %965 = vrot.lane.b32.xlu0 %v797, 32
      %v966 = vpop.permute.xlu0 %965
      %967 = vrot.lane.b32.xlu0 %v798, 32
      %v968 = vpop.permute.xlu0 %967
      %969 = vrot.lane.b32.xlu0 %v799, 32
      %v970 = vpop.permute.xlu0 %969
      %971 = vrot.lane.b32.xlu0 %v800, 32
      %v972 = vpop.permute.xlu0 %971
      %993 = vrot.lane.b32.xlu0 %v801, 40
      %v994 = vpop.permute.xlu0 %993
      %995 = vrot.lane.b32.xlu0 %v802, 40
      %v996 = vpop.permute.xlu0 %995
      %997 = vrot.lane.b32.xlu0 %v803, 40
      %v998 = vpop.permute.xlu0 %997
      %999 = vrot.lane.b32.xlu0 %v804, 40
      %v1000 = vpop.permute.xlu0 %999
      %1001 = vrot.lane.b32.xlu0 %v805, 40
      %v1002 = vpop.permute.xlu0 %1001
      %1003 = vrot.lane.b32.xlu0 %v806, 40
      %v1004 = vpop.permute.xlu0 %1003
      %1005 = vrot.lane.b32.xlu0 %v807, 40
      %v1006 = vpop.permute.xlu0 %1005
      %1007 = vrot.lane.b32.xlu0 %v808, 40
      %v1008 = vpop.permute.xlu0 %1007
      %1009 = vrot.lane.b32.xlu0 %v809, 40
      %v1010 = vpop.permute.xlu0 %1009
      %1011 = vrot.lane.b32.xlu0 %v810, 40
      %v1012 = vpop.permute.xlu0 %1011
      %1024 = vrot.lane.b32.xlu0 %v802, 48
      %v1025 = vpop.permute.xlu0 %1024
      %1026 = vrot.lane.b32.xlu0 %v803, 48
      %v1027 = vpop.permute.xlu0 %1026
      %1028 = vrot.lane.b32.xlu0 %v804, 48
      %v1029 = vpop.permute.xlu0 %1028
      %1030 = vrot.lane.b32.xlu0 %v805, 48
      %v1031 = vpop.permute.xlu0 %1030
      %1032 = vrot.lane.b32.xlu0 %v806, 48
      %v1033 = vpop.permute.xlu0 %1032
      %1034 = vrot.lane.b32.xlu0 %v807, 48
      %v1035 = vpop.permute.xlu0 %1034
      %1036 = vrot.lane.b32.xlu0 %v808, 48
      %v1037 = vpop.permute.xlu0 %1036
      %1038 = vrot.lane.b32.xlu0 %v809, 48
      %v1039 = vpop.permute.xlu0 %1038
      %1040 = vrot.lane.b32.xlu0 %v810, 48
      %v1041 = vpop.permute.xlu0 %1040
      %1042 = vrot.lane.b32.xlu0 %v811, 48
      %v1043 = vpop.permute.xlu0 %1042
      %1064 = vrot.lane.b32.xlu0 %v812, 56
      %v1065 = vpop.permute.xlu0 %1064
      %1066 = vrot.lane.b32.xlu0 %v813, 56
      %v1067 = vpop.permute.xlu0 %1066
      %1068 = vrot.lane.b32.xlu0 %v814, 56
      %v1069 = vpop.permute.xlu0 %1068
      %1070 = vrot.lane.b32.xlu0 %v815, 56
      %v1071 = vpop.permute.xlu0 %1070
      %1072 = vrot.lane.b32.xlu0 %v816, 56
      %v1073 = vpop.permute.xlu0 %1072
      %1074 = vrot.lane.b32.xlu0 %v817, 56
      %v1075 = vpop.permute.xlu0 %1074
      %1076 = vrot.lane.b32.xlu0 %v818, 56
      %v1077 = vpop.permute.xlu0 %1076
      %1078 = vrot.lane.b32.xlu0 %v819, 56
      %v1079 = vpop.permute.xlu0 %1078
      %1080 = vrot.lane.b32.xlu0 %v820, 56
      %v1081 = vpop.permute.xlu0 %1080
      %1082 = vrot.lane.b32.xlu0 %v821, 56
      %v1083 = vpop.permute.xlu0 %1082
      %1104 = vrot.lane.b32.xlu0 %v822, 64
      %v1105 = vpop.permute.xlu0 %1104
      %1106 = vrot.lane.b32.xlu0 %v823, 64
      %v1107 = vpop.permute.xlu0 %1106
      %1108 = vrot.lane.b32.xlu0 %v824, 64
      %v1109 = vpop.permute.xlu0 %1108
      %1110 = vrot.lane.b32.xlu0 %v825, 64
      %v1111 = vpop.permute.xlu0 %1110
      %1112 = vrot.lane.b32.xlu0 %v826, 64
      %v1113 = vpop.permute.xlu0 %1112
      %1114 = vrot.lane.b32.xlu0 %v827, 64
      %v1115 = vpop.permute.xlu0 %1114
      %1116 = vrot.lane.b32.xlu0 %v828, 64
      %v1117 = vpop.permute.xlu0 %1116
      %1118 = vrot.lane.b32.xlu0 %v829, 64
      %v1119 = vpop.permute.xlu0 %1118
      %1120 = vrot.lane.b32.xlu0 %v830, 64
      %v1121 = vpop.permute.xlu0 %1120
      %1122 = vrot.lane.b32.xlu0 %v831, 64
      %v1123 = vpop.permute.xlu0 %1122
      %v1134 = vsel %vm520, %v760, %v843
      %v1135 = vsel %vm520, %v761, %v845
      %v1136 = vsel %vm520, %v762, %v847
      %v1137 = vsel %vm520, %v763, %v849
      %v1138 = vsel %vm520, %v764, %v851
      %v1139 = vsel %vm520, %v765, %v853
      %v1140 = vsel %vm520, %v766, %v855
      %v1141 = vsel %vm520, %v767, %v857
      %v1142 = vsel %vm520, %v768, %v859
      %v1143 = vsel %vm520, %v769, %v861
      %v1144 = vsel %vm602, %v1134, %v883
      %v1145 = vsel %vm602, %v1135, %v885
      %v1146 = vsel %vm602, %v1136, %v887
      %v1147 = vsel %vm602, %v1137, %v889
      %v1148 = vsel %vm602, %v1138, %v891
      %v1149 = vsel %vm602, %v1139, %v893
      %v1150 = vsel %vm602, %v1140, %v895
      %v1151 = vsel %vm602, %v1141, %v897
      %v1152 = vsel %vm602, %v1142, %v899
      %v1153 = vsel %vm602, %v1143, %v901
      %vm1154 = vcmask 195584
      %v1155 = vsel %vm1154, %v1144, %v914
      %v1156 = vsel %vm1154, %v1145, %v916
      %v1157 = vsel %vm1154, %v1146, %v918
      %v1158 = vsel %vm1154, %v1147, %v920
      %v1159 = vsel %vm1154, %v1148, %v922
      %v1160 = vsel %vm1154, %v1149, %v924
      %v1161 = vsel %vm1154, %v1150, %v926
      %v1162 = vsel %vm1154, %v1151, %v928
      %v1163 = vsel %vm1154, %v1152, %v930
      %v1164 = vsel %vm1154, %v1153, %v932
      %v1165 = vsel %vm534, %v1155, %v954
      %v1166 = vsel %vm534, %v1156, %v956
      %v1167 = vsel %vm534, %v1157, %v958
      %v1168 = vsel %vm534, %v1158, %v960
      %v1169 = vsel %vm534, %v1159, %v962
      %v1170 = vsel %vm534, %v1160, %v964
      %v1171 = vsel %vm534, %v1161, %v966
      %v1172 = vsel %vm534, %v1162, %v968
      %v1173 = vsel %vm534, %v1163, %v970
      %v1174 = vsel %vm534, %v1164, %v972
      %vm1175 = vcmask 326656
      %v1176 = vsel %vm1175, %v1165, %v994
      %v1177 = vsel %vm1175, %v1166, %v996
      %v1178 = vsel %vm1175, %v1167, %v998
      %v1179 = vsel %vm1175, %v1168, %v1000
      %v1180 = vsel %vm1175, %v1169, %v1002
      %v1181 = vsel %vm1175, %v1170, %v1004
      %v1182 = vsel %vm1175, %v1171, %v1006
      %v1183 = vsel %vm1175, %v1172, %v1008
      %v1184 = vsel %vm1175, %v1173, %v1010
      %v1185 = vsel %vm1175, %v1174, %v1012
      %vm1186 = vcmask 392192
      %v1187 = vsel %vm1186, %v1176, %v1025
      %v1188 = vsel %vm1186, %v1177, %v1027
      %v1189 = vsel %vm1186, %v1178, %v1029
      %v1190 = vsel %vm1186, %v1179, %v1031
      %v1191 = vsel %vm1186, %v1180, %v1033
      %v1192 = vsel %vm1186, %v1181, %v1035
      %v1193 = vsel %vm1186, %v1182, %v1037
      %v1194 = vsel %vm1186, %v1183, %v1039
      %v1195 = vsel %vm1186, %v1184, %v1041
      %v1196 = vsel %vm1186, %v1185, %v1043
      %vm1197 = vcmask 457728
      %v1198 = vsel %vm1197, %v1187, %v1065
      %v1199 = vsel %vm1197, %v1188, %v1067
      %v1200 = vsel %vm1197, %v1189, %v1069
      %v1201 = vsel %vm1197, %v1190, %v1071
      %v1202 = vsel %vm1197, %v1191, %v1073
      %v1203 = vsel %vm1197, %v1192, %v1075
      %v1204 = vsel %vm1197, %v1193, %v1077
      %v1205 = vsel %vm1197, %v1194, %v1079
      %v1206 = vsel %vm1197, %v1195, %v1081
      %v1207 = vsel %vm1197, %v1196, %v1083
      %vm1208 = vcmask 523264
      %v1209 = vsel %vm1208, %v1198, %v1105
      %v1210 = vsel %vm1208, %v1199, %v1107
      %v1211 = vsel %vm1208, %v1200, %v1109
      %v1212 = vsel %vm1208, %v1201, %v1111
      %v1213 = vsel %vm1208, %v1202, %v1113
      %v1214 = vsel %vm1208, %v1203, %v1115
      %v1215 = vsel %vm1208, %v1204, %v1117
      %v1216 = vsel %vm1208, %v1205, %v1119
      %v1217 = vsel %vm1208, %v1206, %v1121
      %v1218 = vsel %vm1208, %v1207, %v1123
      %v1220 = vperm.slane %v759, 0
      %vm1222 = vcmask 588800
      %v1224 = vsel %vm1222, %v1209, 0
      %v1227 = vsel %vm1222, %v1210, 0
      %v1230 = vsel %vm1222, %v1211, 0
      %v1233 = vsel %vm1222, %v1212, 0
      %v1236 = vsel %vm1222, %v1213, 0
      %v1239 = vsel %vm1222, %v1214, 0
      %v1242 = vsel %vm1222, %v1215, 0
      %v1245 = vsel %vm1222, %v1216, 0
      %v1248 = vsel %vm1222, %v1217, 0
      %v1251 = vsel %vm1222, %v1218, 0
      %1253 = vmatpush.msra.mxu0 0.0
      %1254 = vmatpush.msra.mxu0 0.0
      %1255 = vmatpush.msra.mxu0 0.0
      %1256 = vmatpush.msra.mxu0 0.0
      %1257 = vmatpush.msra.mxu0 0.0
      %1258 = vmatpush.msra.mxu0 0.0
      %1259 = vmatpush.msra.mxu0 0.0
      %1260 = vmatpush.msra.mxu0 %v758
      %1261 = vmatpush.msra.mxu0 %v757
      %1262 = vmatpush.msra.mxu0 %v756
      %1263 = vmatpush.msra.mxu0 %v755
      %1264 = vmatpush.msra.mxu0 %v754
      %1265 = vmatpush.msra.mxu0 %v753
      %1266 = vmatpush.msra.mxu0 %v752
      %1267 = vmatpush.msra.mxu0 %v751
      %1268 = vmatpush.msra.mxu0 %v750
      %1269 = vmatmul.f32.gmra.mxu0 %v1224
      %v1270 = vpop.f32.mrf.mxu0
      %v1271 = vadd.f32 %v1220, %v1270
      %1272 = vmatmul.f32.gmra.mxu0 %v1227
      %v1273 = vpop.f32.mrf.mxu0
      %v1274 = vadd.f32 %v1220, %v1273
      %1275 = vmatmul.f32.gmra.mxu0 %v1230
      %v1276 = vpop.f32.mrf.mxu0
      %v1277 = vadd.f32 %v1220, %v1276
      %1278 = vmatmul.f32.gmra.mxu0 %v1233
      %v1279 = vpop.f32.mrf.mxu0
      %v1280 = vadd.f32 %v1220, %v1279
      %1281 = vmatmul.f32.gmra.mxu0 %v1236
      %v1282 = vpop.f32.mrf.mxu0
      %v1283 = vadd.f32 %v1220, %v1282
      %1284 = vmatmul.f32.gmra.mxu0 %v1239
      %v1285 = vpop.f32.mrf.mxu0
      %v1286 = vadd.f32 %v1220, %v1285
      %1287 = vmatmul.f32.gmra.mxu0 %v1242
      %v1288 = vpop.f32.mrf.mxu0
      %v1289 = vadd.f32 %v1220, %v1288
      %1290 = vmatmul.f32.gmra.mxu0 %v1245
      %v1291 = vpop.f32.mrf.mxu0
      %v1292 = vadd.f32 %v1220, %v1291
      %1293 = vmatmul.f32.gmra.mxu0 %v1248
      %v1294 = vpop.f32.mrf.mxu0
      %v1295 = vadd.f32 %v1220, %v1294
      %1296 = vmatmul.f32.gmra.mxu0 %v1251
      %v1297 = vpop.f32.mrf.mxu0
      %v1298 = vadd.f32 %v1220, %v1297
      %1299 = vdwg.mxu0
      %v1300 = vmul.f32 %v1271, %v683
      %v1301 = vmul.f32 %v1274, %v688
      %v1302 = vmul.f32 %v1277, %v693
      %v1303 = vmul.f32 %v1280, %v698
      %v1304 = vmul.f32 %v1283, %v703
      %v1305 = vmul.f32 %v1286, %v708
      %v1306 = vmul.f32 %v1289, %v713
      %v1307 = vmul.f32 %v1292, %v718
      %v1308 = vmul.f32 %v1295, %v723
      %v1309 = vmul.f32 %v1298, %v728
      %1310 = vst.msk [vmem:[#allocation3 + $0xb] sm:$0xff] %vm534, %v1300
      %1311 = vst.msk [vmem:[#allocation3 + $0x13] sm:$0xff] %vm534, %v1301
      %1312 = vst.msk [vmem:[#allocation3 + $0x1b] sm:$0xff] %vm534, %v1302
      %1313 = vst.msk [vmem:[#allocation3 + $0x23] sm:$0xff] %vm534, %v1303
      %1314 = vst.msk [vmem:[#allocation3 + $0x2b] sm:$0xff] %vm534, %v1304
      %1315 = vst.msk [vmem:[#allocation3 + $0x33] sm:$0xff] %vm534, %v1305
      %1316 = vst.msk [vmem:[#allocation3 + $0x3b] sm:$0xff] %vm534, %v1306
      %1317 = vst.msk [vmem:[#allocation3 + $0x43] sm:$0xff] %vm534, %v1307
      %1318 = vst.msk [vmem:[#allocation3 + $0x4b] sm:$0xff] %vm534, %v1308
      %1319 = vst.msk [vmem:[#allocation3 + $0x53] sm:$0xff] %vm534, %v1309
      %s1320 = scalar_lea.vmem [#allocation3], 11
      %v1321 = vld [vmem:[%s1320] ss:$2 sm:$0xf]
      %vm1322 = vcmask 257024
      %1323 = vst.msk [vmem:[#allocation4 + $0x7] sm:$0xf] %vm1322, %v1321
      %s1324 = scalar_lea.vmem [#allocation3], 31
      %v1325 = vld [vmem:[%s1324] ss:$2 sm:$0xf]
      %1326 = vst.msk [vmem:[#allocation4 + $0xd] sm:$0xf] %vm1322, %v1325
      %s1327 = scalar_lea.vmem [#allocation3], 51
      %v1328 = vld [vmem:[%s1327] ss:$2 sm:$0xf]
      %1329 = vst.msk [vmem:[#allocation4 + $0x13] sm:$0xf] %vm1322, %v1328
      %s1330 = scalar_lea.vmem [#allocation3], 71
      %v1331 = vld [vmem:[%s1330] ss:$2 sm:$0xf]
      %1332 = vst.msk [vmem:[#allocation4 + $0x19] sm:$0xf] %vm1322, %v1331
      %v1333 = vld [vmem:[%s5] sm:$0xff]
      %v1334 = vld [vmem:[%s5 + $0x8] sm:$0xff]
      %v1335 = vld [vmem:[%s5 + $0x10] sm:$0xff]
      %v1336 = vld [vmem:[%s5 + $0x18] sm:$0xff]
      %v1337 = vld [vmem:[%s5 + $0x20] sm:$0xff]
      %v1338 = vld [vmem:[%s5 + $0x28] sm:$0xff]
      %v1339 = vld [vmem:[%s5 + $0x30] sm:$0xff]
      %v1340 = vld [vmem:[%s5 + $0x38] sm:$0xff]
      %v1341 = vld [vmem:[%s5 + $0x40] sm:$0xff]
      %v1342 = vld [vmem:[%s5 + $0x48] sm:$0xff]
      %v1343 = vld [vmem:[%s5 + $0x50] sm:$0xff]
      %v1344 = vld [vmem:[%s5 + $0x58] sm:$0xff]
      %v1345 = vld [vmem:[%s5 + $0x60] sm:$0xff]
      %v1346 = vld [vmem:[%s5 + $0x68] sm:$0xff]
      %v1347 = vld [vmem:[%s5 + $0x70] sm:$0xff]
      %v1348 = vld [vmem:[%s5 + $0x78] sm:$0xff]
      %v1349 = vld [vmem:[%s5 + $0x80] sm:$0xff]
      %v1350 = vld [vmem:[%s5 + $0x88] sm:$0xff]
      %v1351 = vld [vmem:[%s5 + $0x90] sm:$0xff]
      %v1352 = vld [vmem:[%s5 + $0x98] sm:$0xff]
      %v1353 = vld [vmem:[%s5 + $0xa0] sm:$0xff]
      %v1354 = vld [vmem:[%s5 + $0xa8] sm:$0xff]
      %v1355 = vld [vmem:[%s5 + $0xb0] sm:$0xff]
      %v1356 = vld [vmem:[%s5 + $0xb8] sm:$0xff]
      %v1357 = vld [vmem:[%s5 + $0xc0] sm:$0xff]
      %v1358 = vld [vmem:[%s5 + $0xc8] sm:$0xff]
      %v1359 = vld [vmem:[%s5 + $0xd0] sm:$0xff]
      %v1360 = vld [vmem:[%s5 + $0xd8] sm:$0xff]
      %v1361 = vld [vmem:[%s5 + $0xe0] sm:$0xff]
      %v1362 = vld [vmem:[%s5 + $0xe8] sm:$0xff]
      %v1363 = vld [vmem:[%s5 + $0xf0] sm:$0xff]
      %v1364 = vld [vmem:[%s5 + $0xf8] sm:$0xff]
      %v1365 = vld [vmem:[%s5 + $0x100] sm:$0xff]
      %v1366 = vld [vmem:[%s5 + $0x108] sm:$0xff]
      %v1367 = vld [vmem:[%s5 + $0x110] sm:$0xff]
      %v1368 = vld [vmem:[%s5 + $0x118] sm:$0xff]
      %v1369 = vld [vmem:[%s6] sm:$0x1]
      %v1370 = vld [vmem:[#allocation3] sm:$0xff]
      %v1371 = vld [vmem:[#allocation3 + $0x8] sm:$0xff]
      %v1372 = vld [vmem:[#allocation3 + $0x10] sm:$0xff]
      %v1373 = vld [vmem:[#allocation3 + $0x18] sm:$0xff]
      %v1374 = vld [vmem:[#allocation3 + $0x20] sm:$0xff]
      %v1375 = vld [vmem:[#allocation3 + $0x28] sm:$0xff]
      %v1376 = vld [vmem:[#allocation3 + $0x30] sm:$0xff]
      %v1377 = vld [vmem:[#allocation3 + $0x38] sm:$0xff]
      %v1378 = vld [vmem:[#allocation3 + $0x40] sm:$0xff]
      %v1379 = vld [vmem:[#allocation3 + $0x48] sm:$0xff]
      %v1380 = vld [vmem:[#allocation3 + $0x1] sm:$0xff]
      %v1381 = vld [vmem:[#allocation3 + $0x9] sm:$0xff]
      %v1382 = vld [vmem:[#allocation3 + $0x11] sm:$0xff]
      %v1383 = vld [vmem:[#allocation3 + $0x19] sm:$0xff]
      %v1384 = vld [vmem:[#allocation3 + $0x21] sm:$0xff]
      %v1385 = vld [vmem:[#allocation3 + $0x29] sm:$0xff]
      %v1386 = vld [vmem:[#allocation3 + $0x31] sm:$0xff]
      %v1387 = vld [vmem:[#allocation3 + $0x39] sm:$0xff]
      %v1388 = vld [vmem:[#allocation3 + $0x41] sm:$0xff]
      %v1389 = vld [vmem:[#allocation3 + $0x49] sm:$0xff]
      %v1390 = vld [vmem:[#allocation3 + $0x2] sm:$0xff]
      %v1391 = vld [vmem:[#allocation3 + $0xa] sm:$0xff]
      %v1392 = vld [vmem:[#allocation3 + $0x12] sm:$0xff]
      %v1393 = vld [vmem:[#allocation3 + $0x1a] sm:$0xff]
      %v1394 = vld [vmem:[#allocation3 + $0x22] sm:$0xff]
      %v1395 = vld [vmem:[#allocation3 + $0x2a] sm:$0xff]
      %v1396 = vld [vmem:[#allocation3 + $0x32] sm:$0xff]
      %v1397 = vld [vmem:[#allocation3 + $0x3a] sm:$0xff]
      %v1398 = vld [vmem:[#allocation3 + $0x42] sm:$0xff]
      %v1399 = vld [vmem:[#allocation3 + $0x4a] sm:$0xff]
      %v1400 = vld [vmem:[#allocation3 + $0x52] sm:$0xff]
      %v1401 = vld [vmem:[#allocation3 + $0xb] sm:$0xff]
      %v1402 = vld [vmem:[#allocation3 + $0x13] sm:$0xff]
      %v1403 = vld [vmem:[#allocation3 + $0x1b] sm:$0xff]
      %v1404 = vld [vmem:[#allocation3 + $0x23] sm:$0xff]
      %v1405 = vld [vmem:[#allocation3 + $0x2b] sm:$0xff]
      %v1406 = vld [vmem:[#allocation3 + $0x33] sm:$0xff]
      %v1407 = vld [vmem:[#allocation3 + $0x3b] sm:$0xff]
      %v1408 = vld [vmem:[#allocation3 + $0x43] sm:$0xff]
      %v1409 = vld [vmem:[#allocation3 + $0x4b] sm:$0xff]
      %v1410 = vld [vmem:[#allocation3 + $0x53] sm:$0xff]
      %v1411 = vld [vmem:[#allocation3 + $0xc] sm:$0xff]
      %v1412 = vld [vmem:[#allocation3 + $0x14] sm:$0xff]
      %v1413 = vld [vmem:[#allocation3 + $0x1c] sm:$0xff]
      %v1414 = vld [vmem:[#allocation3 + $0x24] sm:$0xff]
      %v1415 = vld [vmem:[#allocation3 + $0x2c] sm:$0xff]
      %v1416 = vld [vmem:[#allocation3 + $0x34] sm:$0xff]
      %v1417 = vld [vmem:[#allocation3 + $0x3c] sm:$0xff]
      %v1418 = vld [vmem:[#allocation3 + $0x44] sm:$0xff]
      %v1419 = vld [vmem:[#allocation3 + $0x4c] sm:$0xff]
      %v1420 = vld [vmem:[#allocation3 + $0x54] sm:$0xff]
      %v1421 = vld [vmem:[#allocation3 + $0x5c] sm:$0xff]
      %v1422 = vld [vmem:[#allocation3 + $0x15] sm:$0xff]
      %v1423 = vld [vmem:[#allocation3 + $0x1d] sm:$0xff]
      %v1424 = vld [vmem:[#allocation3 + $0x25] sm:$0xff]
      %v1425 = vld [vmem:[#allocation3 + $0x2d] sm:$0xff]
      %v1426 = vld [vmem:[#allocation3 + $0x35] sm:$0xff]
      %v1427 = vld [vmem:[#allocation3 + $0x3d] sm:$0xff]
      %v1428 = vld [vmem:[#allocation3 + $0x45] sm:$0xff]
      %v1429 = vld [vmem:[#allocation3 + $0x4d] sm:$0xff]
      %v1430 = vld [vmem:[#allocation3 + $0x55] sm:$0xff]
      %v1431 = vld [vmem:[#allocation3 + $0x5d] sm:$0xff]
      %v1432 = vld [vmem:[#allocation3 + $0x16] sm:$0xff]
      %v1433 = vld [vmem:[#allocation3 + $0x1e] sm:$0xff]
      %v1434 = vld [vmem:[#allocation3 + $0x26] sm:$0xff]
      %v1435 = vld [vmem:[#allocation3 + $0x2e] sm:$0xff]
      %v1436 = vld [vmem:[#allocation3 + $0x36] sm:$0xff]
      %v1437 = vld [vmem:[#allocation3 + $0x3e] sm:$0xff]
      %v1438 = vld [vmem:[#allocation3 + $0x46] sm:$0xff]
      %v1439 = vld [vmem:[#allocation3 + $0x4e] sm:$0xff]
      %v1440 = vld [vmem:[#allocation3 + $0x56] sm:$0xff]
      %v1441 = vld [vmem:[#allocation3 + $0x5e] sm:$0xff]
      %1452 = vrot.lane.b32.xlu0 %v1380, 32
      %v1453 = vpop.permute.xlu0 %1452
      %1454 = vrot.lane.b32.xlu0 %v1381, 32
      %v1455 = vpop.permute.xlu0 %1454
      %1456 = vrot.lane.b32.xlu0 %v1382, 32
      %v1457 = vpop.permute.xlu0 %1456
      %1458 = vrot.lane.b32.xlu0 %v1383, 32
      %v1459 = vpop.permute.xlu0 %1458
      %1460 = vrot.lane.b32.xlu0 %v1384, 32
      %v1461 = vpop.permute.xlu0 %1460
      %1462 = vrot.lane.b32.xlu0 %v1385, 32
      %v1463 = vpop.permute.xlu0 %1462
      %1464 = vrot.lane.b32.xlu0 %v1386, 32
      %v1465 = vpop.permute.xlu0 %1464
      %1466 = vrot.lane.b32.xlu0 %v1387, 32
      %v1467 = vpop.permute.xlu0 %1466
      %1468 = vrot.lane.b32.xlu0 %v1388, 32
      %v1469 = vpop.permute.xlu0 %1468
      %1470 = vrot.lane.b32.xlu0 %v1389, 32
      %v1471 = vpop.permute.xlu0 %1470
      %1492 = vrot.lane.b32.xlu0 %v1390, 64
      %v1493 = vpop.permute.xlu0 %1492
      %1494 = vrot.lane.b32.xlu0 %v1391, 64
      %v1495 = vpop.permute.xlu0 %1494
      %1496 = vrot.lane.b32.xlu0 %v1392, 64
      %v1497 = vpop.permute.xlu0 %1496
      %1498 = vrot.lane.b32.xlu0 %v1393, 64
      %v1499 = vpop.permute.xlu0 %1498
      %1500 = vrot.lane.b32.xlu0 %v1394, 64
      %v1501 = vpop.permute.xlu0 %1500
      %1502 = vrot.lane.b32.xlu0 %v1395, 64
      %v1503 = vpop.permute.xlu0 %1502
      %1504 = vrot.lane.b32.xlu0 %v1396, 64
      %v1505 = vpop.permute.xlu0 %1504
      %1506 = vrot.lane.b32.xlu0 %v1397, 64
      %v1507 = vpop.permute.xlu0 %1506
      %1508 = vrot.lane.b32.xlu0 %v1398, 64
      %v1509 = vpop.permute.xlu0 %1508
      %1510 = vrot.lane.b32.xlu0 %v1399, 64
      %v1511 = vpop.permute.xlu0 %1510
      %1523 = vrot.lane.b32.xlu0 %v1391, 96
      %v1524 = vpop.permute.xlu0 %1523
      %1525 = vrot.lane.b32.xlu0 %v1392, 96
      %v1526 = vpop.permute.xlu0 %1525
      %1527 = vrot.lane.b32.xlu0 %v1393, 96
      %v1528 = vpop.permute.xlu0 %1527
      %1529 = vrot.lane.b32.xlu0 %v1394, 96
      %v1530 = vpop.permute.xlu0 %1529
      %1531 = vrot.lane.b32.xlu0 %v1395, 96
      %v1532 = vpop.permute.xlu0 %1531
      %1533 = vrot.lane.b32.xlu0 %v1396, 96
      %v1534 = vpop.permute.xlu0 %1533
      %1535 = vrot.lane.b32.xlu0 %v1397, 96
      %v1536 = vpop.permute.xlu0 %1535
      %1537 = vrot.lane.b32.xlu0 %v1398, 96
      %v1538 = vpop.permute.xlu0 %1537
      %1539 = vrot.lane.b32.xlu0 %v1399, 96
      %v1540 = vpop.permute.xlu0 %1539
      %1541 = vrot.lane.b32.xlu0 %v1400, 96
      %v1542 = vpop.permute.xlu0 %1541
      %1563 = vrot.lane.b32.xlu0 %v1411, 32
      %v1564 = vpop.permute.xlu0 %1563
      %1565 = vrot.lane.b32.xlu0 %v1412, 32
      %v1566 = vpop.permute.xlu0 %1565
      %1567 = vrot.lane.b32.xlu0 %v1413, 32
      %v1568 = vpop.permute.xlu0 %1567
      %1569 = vrot.lane.b32.xlu0 %v1414, 32
      %v1570 = vpop.permute.xlu0 %1569
      %1571 = vrot.lane.b32.xlu0 %v1415, 32
      %v1572 = vpop.permute.xlu0 %1571
      %1573 = vrot.lane.b32.xlu0 %v1416, 32
      %v1574 = vpop.permute.xlu0 %1573
      %1575 = vrot.lane.b32.xlu0 %v1417, 32
      %v1576 = vpop.permute.xlu0 %1575
      %1577 = vrot.lane.b32.xlu0 %v1418, 32
      %v1578 = vpop.permute.xlu0 %1577
      %1579 = vrot.lane.b32.xlu0 %v1419, 32
      %v1580 = vpop.permute.xlu0 %1579
      %1581 = vrot.lane.b32.xlu0 %v1420, 32
      %v1582 = vpop.permute.xlu0 %1581
      %1594 = vrot.lane.b32.xlu0 %v1412, 64
      %v1595 = vpop.permute.xlu0 %1594
      %1596 = vrot.lane.b32.xlu0 %v1413, 64
      %v1597 = vpop.permute.xlu0 %1596
      %1598 = vrot.lane.b32.xlu0 %v1414, 64
      %v1599 = vpop.permute.xlu0 %1598
      %1600 = vrot.lane.b32.xlu0 %v1415, 64
      %v1601 = vpop.permute.xlu0 %1600
      %1602 = vrot.lane.b32.xlu0 %v1416, 64
      %v1603 = vpop.permute.xlu0 %1602
      %1604 = vrot.lane.b32.xlu0 %v1417, 64
      %v1605 = vpop.permute.xlu0 %1604
      %1606 = vrot.lane.b32.xlu0 %v1418, 64
      %v1607 = vpop.permute.xlu0 %1606
      %1608 = vrot.lane.b32.xlu0 %v1419, 64
      %v1609 = vpop.permute.xlu0 %1608
      %1610 = vrot.lane.b32.xlu0 %v1420, 64
      %v1611 = vpop.permute.xlu0 %1610
      %1612 = vrot.lane.b32.xlu0 %v1421, 64
      %v1613 = vpop.permute.xlu0 %1612
      %1634 = vrot.lane.b32.xlu0 %v1422, 96
      %v1635 = vpop.permute.xlu0 %1634
      %1636 = vrot.lane.b32.xlu0 %v1423, 96
      %v1637 = vpop.permute.xlu0 %1636
      %1638 = vrot.lane.b32.xlu0 %v1424, 96
      %v1639 = vpop.permute.xlu0 %1638
      %1640 = vrot.lane.b32.xlu0 %v1425, 96
      %v1641 = vpop.permute.xlu0 %1640
      %1642 = vrot.lane.b32.xlu0 %v1426, 96
      %v1643 = vpop.permute.xlu0 %1642
      %1644 = vrot.lane.b32.xlu0 %v1427, 96
      %v1645 = vpop.permute.xlu0 %1644
      %1646 = vrot.lane.b32.xlu0 %v1428, 96
      %v1647 = vpop.permute.xlu0 %1646
      %1648 = vrot.lane.b32.xlu0 %v1429, 96
      %v1649 = vpop.permute.xlu0 %1648
      %1650 = vrot.lane.b32.xlu0 %v1430, 96
      %v1651 = vpop.permute.xlu0 %1650
      %1652 = vrot.lane.b32.xlu0 %v1431, 96
      %v1653 = vpop.permute.xlu0 %1652
      %v1664 = vsel %vm534, %v1370, %v1453
      %v1665 = vsel %vm534, %v1371, %v1455
      %v1666 = vsel %vm534, %v1372, %v1457
      %v1667 = vsel %vm534, %v1373, %v1459
      %v1668 = vsel %vm534, %v1374, %v1461
      %v1669 = vsel %vm534, %v1375, %v1463
      %v1670 = vsel %vm534, %v1376, %v1465
      %v1671 = vsel %vm534, %v1377, %v1467
      %v1672 = vsel %vm534, %v1378, %v1469
      %v1673 = vsel %vm534, %v1379, %v1471
      %v1674 = vsel %vm1208, %v1664, %v1493
      %v1675 = vsel %vm1208, %v1665, %v1495
      %v1676 = vsel %vm1208, %v1666, %v1497
      %v1677 = vsel %vm1208, %v1667, %v1499
      %v1678 = vsel %vm1208, %v1668, %v1501
      %v1679 = vsel %vm1208, %v1669, %v1503
      %v1680 = vsel %vm1208, %v1670, %v1505
      %v1681 = vsel %vm1208, %v1671, %v1507
      %v1682 = vsel %vm1208, %v1672, %v1509
      %v1683 = vsel %vm1208, %v1673, %v1511
      %vm1684 = vcmask 785408
      %v1685 = vsel %vm1684, %v1674, %v1524
      %v1686 = vsel %vm1684, %v1675, %v1526
      %v1687 = vsel %vm1684, %v1676, %v1528
      %v1688 = vsel %vm1684, %v1677, %v1530
      %v1689 = vsel %vm1684, %v1678, %v1532
      %v1690 = vsel %vm1684, %v1679, %v1534
      %v1691 = vsel %vm1684, %v1680, %v1536
      %v1692 = vsel %vm1684, %v1681, %v1538
      %v1693 = vsel %vm1684, %v1682, %v1540
      %v1694 = vsel %vm1684, %v1683, %v1542
      %v1695 = vsel %vm534, %v1401, %v1564
      %v1696 = vsel %vm534, %v1402, %v1566
      %v1697 = vsel %vm534, %v1403, %v1568
      %v1698 = vsel %vm534, %v1404, %v1570
      %v1699 = vsel %vm534, %v1405, %v1572
      %v1700 = vsel %vm534, %v1406, %v1574
      %v1701 = vsel %vm534, %v1407, %v1576
      %v1702 = vsel %vm534, %v1408, %v1578
      %v1703 = vsel %vm534, %v1409, %v1580
      %v1704 = vsel %vm534, %v1410, %v1582
      %v1705 = vsel %vm1208, %v1695, %v1595
      %v1706 = vsel %vm1208, %v1696, %v1597
      %v1707 = vsel %vm1208, %v1697, %v1599
      %v1708 = vsel %vm1208, %v1698, %v1601
      %v1709 = vsel %vm1208, %v1699, %v1603
      %v1710 = vsel %vm1208, %v1700, %v1605
      %v1711 = vsel %vm1208, %v1701, %v1607
      %v1712 = vsel %vm1208, %v1702, %v1609
      %v1713 = vsel %vm1208, %v1703, %v1611
      %v1714 = vsel %vm1208, %v1704, %v1613
      %v1715 = vsel %vm1684, %v1705, %v1635
      %v1716 = vsel %vm1684, %v1706, %v1637
      %v1717 = vsel %vm1684, %v1707, %v1639
      %v1718 = vsel %vm1684, %v1708, %v1641
      %v1719 = vsel %vm1684, %v1709, %v1643
      %v1720 = vsel %vm1684, %v1710, %v1645
      %v1721 = vsel %vm1684, %v1711, %v1647
      %v1722 = vsel %vm1684, %v1712, %v1649
      %v1723 = vsel %vm1684, %v1713, %v1651
      %v1724 = vsel %vm1684, %v1714, %v1653
      %v1726 = vperm.slane %v1369, 0
      %v1729 = vsel %vm534, %v1432, 0
      %v1732 = vsel %vm534, %v1433, 0
      %v1735 = vsel %vm534, %v1434, 0
      %v1738 = vsel %vm534, %v1435, 0
      %v1741 = vsel %vm534, %v1436, 0
      %v1744 = vsel %vm534, %v1437, 0
      %v1747 = vsel %vm534, %v1438, 0
      %v1750 = vsel %vm534, %v1439, 0
      %v1753 = vsel %vm534, %v1440, 0
      %v1756 = vsel %vm534, %v1441, 0
      %1758 = vmatpush.msra.mxu0 %v1348
      %1759 = vmatpush.msra.mxu0 %v1347
      %1760 = vmatpush.msra.mxu0 %v1346
      %1761 = vmatpush.msra.mxu0 %v1345
      %1762 = vmatpush.msra.mxu0 %v1344
      %1763 = vmatpush.msra.mxu0 %v1343
      %1764 = vmatpush.msra.mxu0 %v1342
      %1765 = vmatpush.msra.mxu0 %v1341
      %1766 = vmatpush.msra.mxu0 %v1340
      %1767 = vmatpush.msra.mxu0 %v1339
      %1768 = vmatpush.msra.mxu0 %v1338
      %1769 = vmatpush.msra.mxu0 %v1337
      %1770 = vmatpush.msra.mxu0 %v1336
      %1771 = vmatpush.msra.mxu0 %v1335
      %1772 = vmatpush.msra.mxu0 %v1334
      %1773 = vmatpush.msra.mxu0 %v1333
      %1774 = vmatmul.f32.gmra.mxu0 %v1685
      %v1775 = vpop.f32.mrf.mxu0
      %v1776 = vadd.f32 %v1726, %v1775
      %1777 = vmatmul.f32.gmra.mxu0 %v1686
      %v1778 = vpop.f32.mrf.mxu0
      %v1779 = vadd.f32 %v1726, %v1778
      %1780 = vmatmul.f32.gmra.mxu0 %v1687
      %v1781 = vpop.f32.mrf.mxu0
      %v1782 = vadd.f32 %v1726, %v1781
      %1783 = vmatmul.f32.gmra.mxu0 %v1688
      %v1784 = vpop.f32.mrf.mxu0
      %v1785 = vadd.f32 %v1726, %v1784
      %1786 = vmatmul.f32.gmra.mxu0 %v1689
      %v1787 = vpop.f32.mrf.mxu0
      %v1788 = vadd.f32 %v1726, %v1787
      %1789 = vmatmul.f32.gmra.mxu0 %v1690
      %v1790 = vpop.f32.mrf.mxu0
      %v1791 = vadd.f32 %v1726, %v1790
      %1792 = vmatmul.f32.gmra.mxu0 %v1691
      %v1793 = vpop.f32.mrf.mxu0
      %v1794 = vadd.f32 %v1726, %v1793
      %1795 = vmatmul.f32.gmra.mxu0 %v1692
      %v1796 = vpop.f32.mrf.mxu0
      %v1797 = vadd.f32 %v1726, %v1796
      %1798 = vmatmul.f32.gmra.mxu0 %v1693
      %v1799 = vpop.f32.mrf.mxu0
      %v1800 = vadd.f32 %v1726, %v1799
      %1801 = vmatmul.f32.gmra.mxu0 %v1694
      %v1802 = vpop.f32.mrf.mxu0
      %v1803 = vadd.f32 %v1726, %v1802
      %1804 = vdwg.mxu0
      %1805 = vmatpush.msra.mxu0 %v1364
      %1806 = vmatpush.msra.mxu0 %v1363
      %1807 = vmatpush.msra.mxu0 %v1362
      %1808 = vmatpush.msra.mxu0 %v1361
      %1809 = vmatpush.msra.mxu0 %v1360
      %1810 = vmatpush.msra.mxu0 %v1359
      %1811 = vmatpush.msra.mxu0 %v1358
      %1812 = vmatpush.msra.mxu0 %v1357
      %1813 = vmatpush.msra.mxu0 %v1356
      %1814 = vmatpush.msra.mxu0 %v1355
      %1815 = vmatpush.msra.mxu0 %v1354
      %1816 = vmatpush.msra.mxu0 %v1353
      %1817 = vmatpush.msra.mxu0 %v1352
      %1818 = vmatpush.msra.mxu0 %v1351
      %1819 = vmatpush.msra.mxu0 %v1350
      %1820 = vmatpush.msra.mxu0 %v1349
      %1821 = vmatmul.f32.gmra.mxu0 %v1715
      %v1822 = vpop.f32.mrf.mxu0
      %v1823 = vadd.f32 %v1776, %v1822
      %1824 = vmatmul.f32.gmra.mxu0 %v1716
      %v1825 = vpop.f32.mrf.mxu0
      %v1826 = vadd.f32 %v1779, %v1825
      %1827 = vmatmul.f32.gmra.mxu0 %v1717
      %v1828 = vpop.f32.mrf.mxu0
      %v1829 = vadd.f32 %v1782, %v1828
      %1830 = vmatmul.f32.gmra.mxu0 %v1718
      %v1831 = vpop.f32.mrf.mxu0
      %v1832 = vadd.f32 %v1785, %v1831
      %1833 = vmatmul.f32.gmra.mxu0 %v1719
      %v1834 = vpop.f32.mrf.mxu0
      %v1835 = vadd.f32 %v1788, %v1834
      %1836 = vmatmul.f32.gmra.mxu0 %v1720
      %v1837 = vpop.f32.mrf.mxu0
      %v1838 = vadd.f32 %v1791, %v1837
      %1839 = vmatmul.f32.gmra.mxu0 %v1721
      %v1840 = vpop.f32.mrf.mxu0
      %v1841 = vadd.f32 %v1794, %v1840
      %1842 = vmatmul.f32.gmra.mxu0 %v1722
      %v1843 = vpop.f32.mrf.mxu0
      %v1844 = vadd.f32 %v1797, %v1843
      %1845 = vmatmul.f32.gmra.mxu0 %v1723
      %v1846 = vpop.f32.mrf.mxu0
      %v1847 = vadd.f32 %v1800, %v1846
      %1848 = vmatmul.f32.gmra.mxu0 %v1724
      %v1849 = vpop.f32.mrf.mxu0
      %v1850 = vadd.f32 %v1803, %v1849
      %1851 = vdwg.mxu0
      %1852 = vmatpush.msra.mxu0 0.0
      %1853 = vmatpush.msra.mxu0 0.0
      %1854 = vmatpush.msra.mxu0 0.0
      %1855 = vmatpush.msra.mxu0 0.0
      %1856 = vmatpush.msra.mxu0 0.0
      %1857 = vmatpush.msra.mxu0 0.0
      %1858 = vmatpush.msra.mxu0 0.0
      %1859 = vmatpush.msra.mxu0 0.0
      %1860 = vmatpush.msra.mxu0 0.0
      %1861 = vmatpush.msra.mxu0 0.0
      %1862 = vmatpush.msra.mxu0 0.0
      %1863 = vmatpush.msra.mxu0 0.0
      %1864 = vmatpush.msra.mxu0 %v1368
      %1865 = vmatpush.msra.mxu0 %v1367
      %1866 = vmatpush.msra.mxu0 %v1366
      %1867 = vmatpush.msra.mxu0 %v1365
      %1868 = vmatmul.f32.gmra.mxu0 %v1729
      %v1869 = vpop.f32.mrf.mxu0
      %v1870 = vadd.f32 %v1823, %v1869
      %1871 = vmatmul.f32.gmra.mxu0 %v1732
      %v1872 = vpop.f32.mrf.mxu0
      %v1873 = vadd.f32 %v1826, %v1872
      %1874 = vmatmul.f32.gmra.mxu0 %v1735
      %v1875 = vpop.f32.mrf.mxu0
      %v1876 = vadd.f32 %v1829, %v1875
      %1877 = vmatmul.f32.gmra.mxu0 %v1738
      %v1878 = vpop.f32.mrf.mxu0
      %v1879 = vadd.f32 %v1832, %v1878
      %1880 = vmatmul.f32.gmra.mxu0 %v1741
      %v1881 = vpop.f32.mrf.mxu0
      %v1882 = vadd.f32 %v1835, %v1881
      %1883 = vmatmul.f32.gmra.mxu0 %v1744
      %v1884 = vpop.f32.mrf.mxu0
      %v1885 = vadd.f32 %v1838, %v1884
      %1886 = vmatmul.f32.gmra.mxu0 %v1747
      %v1887 = vpop.f32.mrf.mxu0
      %v1888 = vadd.f32 %v1841, %v1887
      %1889 = vmatmul.f32.gmra.mxu0 %v1750
      %v1890 = vpop.f32.mrf.mxu0
      %v1891 = vadd.f32 %v1844, %v1890
      %1892 = vmatmul.f32.gmra.mxu0 %v1753
      %v1893 = vpop.f32.mrf.mxu0
      %v1894 = vadd.f32 %v1847, %v1893
      %1895 = vmatmul.f32.gmra.mxu0 %v1756
      %v1896 = vpop.f32.mrf.mxu0
      %v1897 = vadd.f32 %v1850, %v1896
      %1898 = vdwg.mxu0
      %v1899 = vxor.u32 %v1870, 2147483648
      %v1900 = vxor.u32 %v1873, 2147483648
      %v1901 = vxor.u32 %v1876, 2147483648
      %v1902 = vxor.u32 %v1879, 2147483648
      %v1903 = vxor.u32 %v1882, 2147483648
      %v1904 = vxor.u32 %v1885, 2147483648
      %v1905 = vxor.u32 %v1888, 2147483648
      %v1906 = vxor.u32 %v1891, 2147483648
      %v1907 = vxor.u32 %v1894, 2147483648
      %v1908 = vxor.u32 %v1897, 2147483648
      %v1909 = vmul.f32 %v1899, 1.442695
      %v1910 = vpow.pop %v1909
      %v1911 = vmul.f32 %v1900, 1.442695
      %v1912 = vpow.pop %v1911
      %v1913 = vmul.f32 %v1901, 1.442695
      %v1914 = vpow.pop %v1913
      %v1915 = vmul.f32 %v1902, 1.442695
      %v1916 = vpow.pop %v1915
      %v1917 = vmul.f32 %v1903, 1.442695
      %v1918 = vpow.pop %v1917
      %v1919 = vmul.f32 %v1904, 1.442695
      %v1920 = vpow.pop %v1919
      %v1921 = vmul.f32 %v1905, 1.442695
      %v1922 = vpow.pop %v1921
      %v1923 = vmul.f32 %v1906, 1.442695
      %v1924 = vpow.pop %v1923
      %v1925 = vmul.f32 %v1907, 1.442695
      %v1926 = vpow.pop %v1925
      %v1927 = vmul.f32 %v1908, 1.442695
      %v1928 = vpow.pop %v1927
      %v1929 = vadd.f32 %v1910, 1.0
      %v1930 = vadd.f32 %v1912, 1.0
      %v1931 = vadd.f32 %v1914, 1.0
      %v1932 = vadd.f32 %v1916, 1.0
      %v1933 = vadd.f32 %v1918, 1.0
      %v1934 = vadd.f32 %v1920, 1.0
      %v1935 = vadd.f32 %v1922, 1.0
      %v1936 = vadd.f32 %v1924, 1.0
      %v1937 = vadd.f32 %v1926, 1.0
      %v1938 = vadd.f32 %v1928, 1.0
      %v1939 = vrcp.pop %v1929
      %v1940 = vmul.f32 %v1929, %v1939
      %v1941 = vsub.f32 1.0, %v1940
      %v1942 = vmul.f32 %v1939, %v1941
      %v1943 = vadd.f32 %v1939, %v1942
      %vm1944 = vweird.f32 %v1929
      %vm1945 = vweird.f32 %v1939
      %vm1946 = vmor %vm1944, %vm1945
      %v1947 = vsel %vm1946, %v1939, %v1943
      %v1948 = vand.u32 2147483647, %v1929
      %vm1949 = vcmp.eq.f32.partialorder %v1948, 8.507059e+37
      %v1950 = vand.u32 %v1929, 2147483648
      %v1951 = vor.u32 1.1754944e-38, %v1950
      %v1952 = vsel %vm1949, %v1951, %v1947
      %v1953 = vmul.f32 1.0, %v1952
      %v1954 = vrcp.pop %v1930
      %v1955 = vmul.f32 %v1930, %v1954
      %v1956 = vsub.f32 1.0, %v1955
      %v1957 = vmul.f32 %v1954, %v1956
      %v1958 = vadd.f32 %v1954, %v1957
      %vm1959 = vweird.f32 %v1930
      %vm1960 = vweird.f32 %v1954
      %vm1961 = vmor %vm1959, %vm1960
      %v1962 = vsel %vm1961, %v1954, %v1958
      %v1963 = vand.u32 2147483647, %v1930
      %vm1964 = vcmp.eq.f32.partialorder %v1963, 8.507059e+37
      %v1965 = vand.u32 %v1930, 2147483648
      %v1966 = vor.u32 1.1754944e-38, %v1965
      %v1967 = vsel %vm1964, %v1966, %v1962
      %v1968 = vmul.f32 1.0, %v1967
      %v1969 = vrcp.pop %v1931
      %v1970 = vmul.f32 %v1931, %v1969
      %v1971 = vsub.f32 1.0, %v1970
      %v1972 = vmul.f32 %v1969, %v1971
      %v1973 = vadd.f32 %v1969, %v1972
      %vm1974 = vweird.f32 %v1931
      %vm1975 = vweird.f32 %v1969
      %vm1976 = vmor %vm1974, %vm1975
      %v1977 = vsel %vm1976, %v1969, %v1973
      %v1978 = vand.u32 2147483647, %v1931
      %vm1979 = vcmp.eq.f32.partialorder %v1978, 8.507059e+37
      %v1980 = vand.u32 %v1931, 2147483648
      %v1981 = vor.u32 1.1754944e-38, %v1980
      %v1982 = vsel %vm1979, %v1981, %v1977
      %v1983 = vmul.f32 1.0, %v1982
      %v1984 = vrcp.pop %v1932
      %v1985 = vmul.f32 %v1932, %v1984
      %v1986 = vsub.f32 1.0, %v1985
      %v1987 = vmul.f32 %v1984, %v1986
      %v1988 = vadd.f32 %v1984, %v1987
      %vm1989 = vweird.f32 %v1932
      %vm1990 = vweird.f32 %v1984
      %vm1991 = vmor %vm1989, %vm1990
      %v1992 = vsel %vm1991, %v1984, %v1988
      %v1993 = vand.u32 2147483647, %v1932
      %vm1994 = vcmp.eq.f32.partialorder %v1993, 8.507059e+37
      %v1995 = vand.u32 %v1932, 2147483648
      %v1996 = vor.u32 1.1754944e-38, %v1995
      %v1997 = vsel %vm1994, %v1996, %v1992
      %v1998 = vmul.f32 1.0, %v1997
      %v1999 = vrcp.pop %v1933
      %v2000 = vmul.f32 %v1933, %v1999
      %v2001 = vsub.f32 1.0, %v2000
      %v2002 = vmul.f32 %v1999, %v2001
      %v2003 = vadd.f32 %v1999, %v2002
      %vm2004 = vweird.f32 %v1933
      %vm2005 = vweird.f32 %v1999
      %vm2006 = vmor %vm2004, %vm2005
      %v2007 = vsel %vm2006, %v1999, %v2003
      %v2008 = vand.u32 2147483647, %v1933
      %vm2009 = vcmp.eq.f32.partialorder %v2008, 8.507059e+37
      %v2010 = vand.u32 %v1933, 2147483648
      %v2011 = vor.u32 1.1754944e-38, %v2010
      %v2012 = vsel %vm2009, %v2011, %v2007
      %v2013 = vmul.f32 1.0, %v2012
      %v2014 = vrcp.pop %v1934
      %v2015 = vmul.f32 %v1934, %v2014
      %v2016 = vsub.f32 1.0, %v2015
      %v2017 = vmul.f32 %v2014, %v2016
      %v2018 = vadd.f32 %v2014, %v2017
      %vm2019 = vweird.f32 %v1934
      %vm2020 = vweird.f32 %v2014
      %vm2021 = vmor %vm2019, %vm2020
      %v2022 = vsel %vm2021, %v2014, %v2018
      %v2023 = vand.u32 2147483647, %v1934
      %vm2024 = vcmp.eq.f32.partialorder %v2023, 8.507059e+37
      %v2025 = vand.u32 %v1934, 2147483648
      %v2026 = vor.u32 1.1754944e-38, %v2025
      %v2027 = vsel %vm2024, %v2026, %v2022
      %v2028 = vmul.f32 1.0, %v2027
      %v2029 = vrcp.pop %v1935
      %v2030 = vmul.f32 %v1935, %v2029
      %v2031 = vsub.f32 1.0, %v2030
      %v2032 = vmul.f32 %v2029, %v2031
      %v2033 = vadd.f32 %v2029, %v2032
      %vm2034 = vweird.f32 %v1935
      %vm2035 = vweird.f32 %v2029
      %vm2036 = vmor %vm2034, %vm2035
      %v2037 = vsel %vm2036, %v2029, %v2033
      %v2038 = vand.u32 2147483647, %v1935
      %vm2039 = vcmp.eq.f32.partialorder %v2038, 8.507059e+37
      %v2040 = vand.u32 %v1935, 2147483648
      %v2041 = vor.u32 1.1754944e-38, %v2040
      %v2042 = vsel %vm2039, %v2041, %v2037
      %v2043 = vmul.f32 1.0, %v2042
      %v2044 = vrcp.pop %v1936
      %v2045 = vmul.f32 %v1936, %v2044
      %v2046 = vsub.f32 1.0, %v2045
      %v2047 = vmul.f32 %v2044, %v2046
      %v2048 = vadd.f32 %v2044, %v2047
      %vm2049 = vweird.f32 %v1936
      %vm2050 = vweird.f32 %v2044
      %vm2051 = vmor %vm2049, %vm2050
      %v2052 = vsel %vm2051, %v2044, %v2048
      %v2053 = vand.u32 2147483647, %v1936
      %vm2054 = vcmp.eq.f32.partialorder %v2053, 8.507059e+37
      %v2055 = vand.u32 %v1936, 2147483648
      %v2056 = vor.u32 1.1754944e-38, %v2055
      %v2057 = vsel %vm2054, %v2056, %v2052
      %v2058 = vmul.f32 1.0, %v2057
      %v2059 = vrcp.pop %v1937
      %v2060 = vmul.f32 %v1937, %v2059
      %v2061 = vsub.f32 1.0, %v2060
      %v2062 = vmul.f32 %v2059, %v2061
      %v2063 = vadd.f32 %v2059, %v2062
      %vm2064 = vweird.f32 %v1937
      %vm2065 = vweird.f32 %v2059
      %vm2066 = vmor %vm2064, %vm2065
      %v2067 = vsel %vm2066, %v2059, %v2063
      %v2068 = vand.u32 2147483647, %v1937
      %vm2069 = vcmp.eq.f32.partialorder %v2068, 8.507059e+37
      %v2070 = vand.u32 %v1937, 2147483648
      %v2071 = vor.u32 1.1754944e-38, %v2070
      %v2072 = vsel %vm2069, %v2071, %v2067
      %v2073 = vmul.f32 1.0, %v2072
      %v2074 = vrcp.pop %v1938
      %v2075 = vmul.f32 %v1938, %v2074
      %v2076 = vsub.f32 1.0, %v2075
      %v2077 = vmul.f32 %v2074, %v2076
      %v2078 = vadd.f32 %v2074, %v2077
      %vm2079 = vweird.f32 %v1938
      %vm2080 = vweird.f32 %v2074
      %vm2081 = vmor %vm2079, %vm2080
      %v2082 = vsel %vm2081, %v2074, %v2078
      %v2083 = vand.u32 2147483647, %v1938
      %vm2084 = vcmp.eq.f32.partialorder %v2083, 8.507059e+37
      %v2085 = vand.u32 %v1938, 2147483648
      %v2086 = vor.u32 1.1754944e-38, %v2085
      %v2087 = vsel %vm2084, %v2086, %v2082
      %v2088 = vmul.f32 1.0, %v2087
      %v2089 = vmul.f32 %v1870, %v1953
      %v2090 = vmul.f32 %v1873, %v1968
      %v2091 = vmul.f32 %v1876, %v1983
      %v2092 = vmul.f32 %v1879, %v1998
      %v2093 = vmul.f32 %v1882, %v2013
      %v2094 = vmul.f32 %v1885, %v2028
      %v2095 = vmul.f32 %v1888, %v2043
      %v2096 = vmul.f32 %v1891, %v2058
      %v2097 = vmul.f32 %v1894, %v2073
      %v2098 = vmul.f32 %v1897, %v2088
      %v2099 = vmul.f32 %v2089, %v683
      %v2100 = vmul.f32 %v2090, %v688
      %v2101 = vmul.f32 %v2091, %v693
      %v2102 = vmul.f32 %v2092, %v698
      %v2103 = vmul.f32 %v2093, %v703
      %v2104 = vmul.f32 %v2094, %v708
      %v2105 = vmul.f32 %v2095, %v713
      %v2106 = vmul.f32 %v2096, %v718
      %v2107 = vmul.f32 %v2097, %v723
      %v2108 = vmul.f32 %v2098, %v728
      %2109 = vst.msk [vmem:[#allocation3 + $0xb] sm:$0xff] %vm534, %v2099
      %2110 = vst.msk [vmem:[#allocation3 + $0x13] sm:$0xff] %vm534, %v2100
      %2111 = vst.msk [vmem:[#allocation3 + $0x1b] sm:$0xff] %vm534, %v2101
      %2112 = vst.msk [vmem:[#allocation3 + $0x23] sm:$0xff] %vm534, %v2102
      %2113 = vst.msk [vmem:[#allocation3 + $0x2b] sm:$0xff] %vm534, %v2103
      %2114 = vst.msk [vmem:[#allocation3 + $0x33] sm:$0xff] %vm534, %v2104
      %2115 = vst.msk [vmem:[#allocation3 + $0x3b] sm:$0xff] %vm534, %v2105
      %2116 = vst.msk [vmem:[#allocation3 + $0x43] sm:$0xff] %vm534, %v2106
      %2117 = vst.msk [vmem:[#allocation3 + $0x4b] sm:$0xff] %vm534, %v2107
      %2118 = vst.msk [vmem:[#allocation3 + $0x53] sm:$0xff] %vm534, %v2108
      %v2119 = vld [vmem:[%s1320] ss:$2 sm:$0xf]
      %2120 = vst.msk [vmem:[#allocation5 + $0x7] sm:$0xf] %vm1322, %v2119
      %v2121 = vld [vmem:[%s1324] ss:$2 sm:$0xf]
      %2122 = vst.msk [vmem:[#allocation5 + $0xd] sm:$0xf] %vm1322, %v2121
      %v2123 = vld [vmem:[%s1327] ss:$2 sm:$0xf]
      %2124 = vst.msk [vmem:[#allocation5 + $0x13] sm:$0xf] %vm1322, %v2123
      %v2125 = vld [vmem:[%s1330] ss:$2 sm:$0xf]
      %2126 = vst.msk [vmem:[#allocation5 + $0x19] sm:$0xf] %vm1322, %v2125
      %v2127 = vld [vmem:[%s7] sm:$0xff]
      %v2128 = vld [vmem:[%s7 + $0x8] sm:$0xff]
      %v2129 = vld [vmem:[%s7 + $0x10] sm:$0xff]
      %v2130 = vld [vmem:[%s7 + $0x18] sm:$0xff]
      %v2131 = vld [vmem:[%s7 + $0x20] sm:$0xff]
      %v2132 = vld [vmem:[%s7 + $0x28] sm:$0xff]
      %v2133 = vld [vmem:[%s7 + $0x30] sm:$0xff]
      %v2134 = vld [vmem:[%s7 + $0x38] sm:$0xff]
      %v2135 = vld [vmem:[%s7 + $0x40] sm:$0xff]
      %v2136 = vld [vmem:[%s7 + $0x48] sm:$0xff]
      %v2137 = vld [vmem:[%s7 + $0x50] sm:$0xff]
      %v2138 = vld [vmem:[%s7 + $0x58] sm:$0xff]
      %v2139 = vld [vmem:[%s7 + $0x60] sm:$0xff]
      %v2140 = vld [vmem:[%s7 + $0x68] sm:$0xff]
      %v2141 = vld [vmem:[%s7 + $0x70] sm:$0xff]
      %v2142 = vld [vmem:[%s7 + $0x78] sm:$0xff]
      %v2143 = vld [vmem:[%s7 + $0x80] sm:$0xff]
      %v2144 = vld [vmem:[%s7 + $0x88] sm:$0xff]
      %v2145 = vld [vmem:[%s7 + $0x90] sm:$0xff]
      %v2146 = vld [vmem:[%s7 + $0x98] sm:$0xff]
      %v2147 = vld [vmem:[%s7 + $0xa0] sm:$0xff]
      %v2148 = vld [vmem:[%s7 + $0xa8] sm:$0xff]
      %v2149 = vld [vmem:[%s7 + $0xb0] sm:$0xff]
      %v2150 = vld [vmem:[%s7 + $0xb8] sm:$0xff]
      %v2151 = vld [vmem:[%s7 + $0xc0] sm:$0xff]
      %v2152 = vld [vmem:[%s7 + $0xc8] sm:$0xff]
      %v2153 = vld [vmem:[%s7 + $0xd0] sm:$0xff]
      %v2154 = vld [vmem:[%s7 + $0xd8] sm:$0xff]
      %v2155 = vld [vmem:[%s7 + $0xe0] sm:$0xff]
      %v2156 = vld [vmem:[%s7 + $0xe8] sm:$0xff]
      %v2157 = vld [vmem:[%s7 + $0xf0] sm:$0xff]
      %v2158 = vld [vmem:[%s7 + $0xf8] sm:$0xff]
      %v2159 = vld [vmem:[%s7 + $0x100] sm:$0xff]
      %v2160 = vld [vmem:[%s7 + $0x108] sm:$0xff]
      %v2161 = vld [vmem:[%s7 + $0x110] sm:$0xff]
      %v2162 = vld [vmem:[%s7 + $0x118] sm:$0xff]
      %v2163 = vld [vmem:[%s8] sm:$0x1]
      %v2164 = vld [vmem:[#allocation5] sm:$0xff]
      %v2165 = vld [vmem:[#allocation5 + $0x8] sm:$0xff]
      %v2166 = vld [vmem:[#allocation5 + $0x10] sm:$0xff]
      %v2167 = vld [vmem:[#allocation5 + $0x1] sm:$0xff]
      %v2168 = vld [vmem:[#allocation5 + $0x9] sm:$0xff]
      %v2169 = vld [vmem:[#allocation5 + $0x11] sm:$0xff]
      %v2170 = vld [vmem:[#allocation5 + $0x2] sm:$0xff]
      %v2171 = vld [vmem:[#allocation5 + $0xa] sm:$0xff]
      %v2172 = vld [vmem:[#allocation5 + $0x12] sm:$0xff]
      %v2173 = vld [vmem:[#allocation5 + $0x6] sm:$0xff]
      %v2174 = vld [vmem:[#allocation5 + $0xe] sm:$0xff]
      %v2175 = vld [vmem:[#allocation5 + $0x16] sm:$0xff]
      %v2176 = vld [vmem:[#allocation5 + $0x7] sm:$0xff]
      %v2177 = vld [vmem:[#allocation5 + $0xf] sm:$0xff]
      %v2178 = vld [vmem:[#allocation5 + $0x17] sm:$0xff]
      %v2179 = vld [vmem:[#allocation5 + $0x18] sm:$0xff]
      %v2180 = vld [vmem:[#allocation5 + $0xc] sm:$0xff]
      %v2181 = vld [vmem:[#allocation5 + $0x14] sm:$0xff]
      %v2182 = vld [vmem:[#allocation5 + $0x1c] sm:$0xff]
      %v2183 = vld [vmem:[#allocation5 + $0xd] sm:$0xff]
      %v2184 = vld [vmem:[#allocation5 + $0x15] sm:$0xff]
      %v2185 = vld [vmem:[#allocation5 + $0x1d] sm:$0xff]
      %v2186 = vld [vmem:[#allocation5 + $0x1e] sm:$0xff]
      %2190 = vrot.lane.b32.xlu0 %v2167, 32
      %v2191 = vpop.permute.xlu0 %2190
      %2192 = vrot.lane.b32.xlu0 %v2168, 32
      %v2193 = vpop.permute.xlu0 %2192
      %2194 = vrot.lane.b32.xlu0 %v2169, 32
      %v2195 = vpop.permute.xlu0 %2194
      %2202 = vrot.lane.b32.xlu0 %v2170, 64
      %v2203 = vpop.permute.xlu0 %2202
      %2204 = vrot.lane.b32.xlu0 %v2171, 64
      %v2205 = vpop.permute.xlu0 %2204
      %2206 = vrot.lane.b32.xlu0 %v2172, 64
      %v2207 = vpop.permute.xlu0 %2206
      %2214 = vrot.lane.b32.xlu0 %v2173, 96
      %v2215 = vpop.permute.xlu0 %2214
      %2216 = vrot.lane.b32.xlu0 %v2174, 96
      %v2217 = vpop.permute.xlu0 %2216
      %2218 = vrot.lane.b32.xlu0 %v2175, 96
      %v2219 = vpop.permute.xlu0 %2218
      %2226 = vrot.lane.b32.xlu0 %v2165, 32
      %v2227 = vpop.permute.xlu0 %2226
      %2228 = vrot.lane.b32.xlu0 %v2166, 32
      %v2229 = vpop.permute.xlu0 %2228
      %2230 = vrot.lane.b32.xlu0 %v2179, 32
      %v2231 = vpop.permute.xlu0 %2230
      %2238 = vrot.lane.b32.xlu0 %v2180, 64
      %v2239 = vpop.permute.xlu0 %2238
      %2240 = vrot.lane.b32.xlu0 %v2181, 64
      %v2241 = vpop.permute.xlu0 %2240
      %2242 = vrot.lane.b32.xlu0 %v2182, 64
      %v2243 = vpop.permute.xlu0 %2242
      %2250 = vrot.lane.b32.xlu0 %v2183, 96
      %v2251 = vpop.permute.xlu0 %2250
      %2252 = vrot.lane.b32.xlu0 %v2184, 96
      %v2253 = vpop.permute.xlu0 %2252
      %2254 = vrot.lane.b32.xlu0 %v2185, 96
      %v2255 = vpop.permute.xlu0 %2254
      %v2259 = vsel %vm534, %v2164, %v2191
      %v2260 = vsel %vm534, %v2165, %v2193
      %v2261 = vsel %vm534, %v2166, %v2195
      %v2262 = vsel %vm1208, %v2259, %v2203
      %v2263 = vsel %vm1208, %v2260, %v2205
      %v2264 = vsel %vm1208, %v2261, %v2207
      %v2265 = vsel %vm1684, %v2262, %v2215
      %v2266 = vsel %vm1684, %v2263, %v2217
      %v2267 = vsel %vm1684, %v2264, %v2219
      %v2268 = vsel %vm534, %v2176, %v2227
      %v2269 = vsel %vm534, %v2177, %v2229
      %v2270 = vsel %vm534, %v2178, %v2231
      %v2271 = vsel %vm1208, %v2268, %v2239
      %v2272 = vsel %vm1208, %v2269, %v2241
      %v2273 = vsel %vm1208, %v2270, %v2243
      %v2274 = vsel %vm1684, %v2271, %v2251
      %v2275 = vsel %vm1684, %v2272, %v2253
      %v2276 = vsel %vm1684, %v2273, %v2255
      %v2278 = vperm.slane %v2163, 0
      %v2280 = vsel %vm534, %v2174, 0
      %v2282 = vsel %vm534, %v2175, 0
      %v2285 = vsel %vm534, %v2186, 0
      %2287 = vmatpush.msra.mxu0 %v2142
      %2288 = vmatpush.msra.mxu0 %v2141
      %2289 = vmatpush.msra.mxu0 %v2140
      %2290 = vmatpush.msra.mxu0 %v2139
      %2291 = vmatpush.msra.mxu0 %v2138
      %2292 = vmatpush.msra.mxu0 %v2137
      %2293 = vmatpush.msra.mxu0 %v2136
      %2294 = vmatpush.msra.mxu0 %v2135
      %2295 = vmatpush.msra.mxu0 %v2134
      %2296 = vmatpush.msra.mxu0 %v2133
      %2297 = vmatpush.msra.mxu0 %v2132
      %2298 = vmatpush.msra.mxu0 %v2131
      %2299 = vmatpush.msra.mxu0 %v2130
      %2300 = vmatpush.msra.mxu0 %v2129
      %2301 = vmatpush.msra.mxu0 %v2128
      %2302 = vmatpush.msra.mxu0 %v2127
      %2303 = vmatmul.f32.gmra.mxu0 %v2265
      %v2304 = vpop.f32.mrf.mxu0
      %v2305 = vadd.f32 %v2278, %v2304
      %2306 = vmatmul.f32.gmra.mxu0 %v2266
      %v2307 = vpop.f32.mrf.mxu0
      %v2308 = vadd.f32 %v2278, %v2307
      %2309 = vmatmul.f32.gmra.mxu0 %v2267
      %v2310 = vpop.f32.mrf.mxu0
      %v2311 = vadd.f32 %v2278, %v2310
      %2312 = vdwg.mxu0
      %2313 = vmatpush.msra.mxu0 %v2158
      %2314 = vmatpush.msra.mxu0 %v2157
      %2315 = vmatpush.msra.mxu0 %v2156
      %2316 = vmatpush.msra.mxu0 %v2155
      %2317 = vmatpush.msra.mxu0 %v2154
      %2318 = vmatpush.msra.mxu0 %v2153
      %2319 = vmatpush.msra.mxu0 %v2152
      %2320 = vmatpush.msra.mxu0 %v2151
      %2321 = vmatpush.msra.mxu0 %v2150
      %2322 = vmatpush.msra.mxu0 %v2149
      %2323 = vmatpush.msra.mxu0 %v2148
      %2324 = vmatpush.msra.mxu0 %v2147
      %2325 = vmatpush.msra.mxu0 %v2146
      %2326 = vmatpush.msra.mxu0 %v2145
      %2327 = vmatpush.msra.mxu0 %v2144
      %2328 = vmatpush.msra.mxu0 %v2143
      %2329 = vmatmul.f32.gmra.mxu0 %v2274
      %v2330 = vpop.f32.mrf.mxu0
      %v2331 = vadd.f32 %v2305, %v2330
      %2332 = vmatmul.f32.gmra.mxu0 %v2275
      %v2333 = vpop.f32.mrf.mxu0
      %v2334 = vadd.f32 %v2308, %v2333
      %2335 = vmatmul.f32.gmra.mxu0 %v2276
      %v2336 = vpop.f32.mrf.mxu0
      %v2337 = vadd.f32 %v2311, %v2336
      %2338 = vdwg.mxu0
      %2339 = vmatpush.msra.mxu0 0.0
      %2340 = vmatpush.msra.mxu0 0.0
      %2341 = vmatpush.msra.mxu0 0.0
      %2342 = vmatpush.msra.mxu0 0.0
      %2343 = vmatpush.msra.mxu0 0.0
      %2344 = vmatpush.msra.mxu0 0.0
      %2345 = vmatpush.msra.mxu0 0.0
      %2346 = vmatpush.msra.mxu0 0.0
      %2347 = vmatpush.msra.mxu0 0.0
      %2348 = vmatpush.msra.mxu0 0.0
      %2349 = vmatpush.msra.mxu0 0.0
      %2350 = vmatpush.msra.mxu0 0.0
      %2351 = vmatpush.msra.mxu0 %v2162
      %2352 = vmatpush.msra.mxu0 %v2161
      %2353 = vmatpush.msra.mxu0 %v2160
      %2354 = vmatpush.msra.mxu0 %v2159
      %2355 = vmatmul.f32.gmra.mxu0 %v2280
      %v2356 = vpop.f32.mrf.mxu0
      %v2357 = vadd.f32 %v2331, %v2356
      %2358 = vmatmul.f32.gmra.mxu0 %v2282
      %v2359 = vpop.f32.mrf.mxu0
      %v2360 = vadd.f32 %v2334, %v2359
      %2361 = vmatmul.f32.gmra.mxu0 %v2285
      %v2362 = vpop.f32.mrf.mxu0
      %v2363 = vadd.f32 %v2337, %v2362
      %2364 = vdwg.mxu0
      %v2365 = vld [vmem:[#allocation4 + $0x7] sm:$0xff]
      %v2366 = vld [vmem:[#allocation4 + $0xf] sm:$0xff]
      %v2367 = vld [vmem:[#allocation4 + $0x17] sm:$0xff]
      %v2368 = vld [vmem:[%s9] sm:$0xff]
      %v2369 = vld [vmem:[%s9 + $0x8] sm:$0xff]
      %v2370 = vld [vmem:[%s9 + $0x10] sm:$0xff]
      %v2371 = vld [vmem:[%s9 + $0x18] sm:$0xff]
      %v2372 = vld [vmem:[%s10] sm:$0x1]
      %v2374 = vperm.slane %v2372, 0
      %v2377 = vsel %vm534, %v2365, 0
      %v2380 = vsel %vm534, %v2366, 0
      %v2383 = vsel %vm534, %v2367, 0
      %2385 = vmatpush.msra.mxu0 0.0
      %2386 = vmatpush.msra.mxu0 0.0
      %2387 = vmatpush.msra.mxu0 0.0
      %2388 = vmatpush.msra.mxu0 0.0
      %2389 = vmatpush.msra.mxu0 0.0
      %2390 = vmatpush.msra.mxu0 0.0
      %2391 = vmatpush.msra.mxu0 0.0
      %2392 = vmatpush.msra.mxu0 0.0
      %2393 = vmatpush.msra.mxu0 0.0
      %2394 = vmatpush.msra.mxu0 0.0
      %2395 = vmatpush.msra.mxu0 0.0
      %2396 = vmatpush.msra.mxu0 0.0
      %2397 = vmatpush.msra.mxu0 %v2371
      %2398 = vmatpush.msra.mxu0 %v2370
      %2399 = vmatpush.msra.mxu0 %v2369
      %2400 = vmatpush.msra.mxu0 %v2368
      %2401 = vmatmul.f32.gmra.mxu0 %v2377
      %v2402 = vpop.f32.mrf.mxu0
      %v2403 = vadd.f32 %v2374, %v2402
      %2404 = vmatmul.f32.gmra.mxu0 %v2380
      %v2405 = vpop.f32.mrf.mxu0
      %v2406 = vadd.f32 %v2374, %v2405
      %2407 = vmatmul.f32.gmra.mxu0 %v2383
      %v2408 = vpop.f32.mrf.mxu0
      %v2409 = vadd.f32 %v2374, %v2408
      %2410 = vdwg.mxu0
      %v2411 = vadd.f32 %v2357, %v2403
      %v2412 = vadd.f32 %v2360, %v2406
      %v2413 = vadd.f32 %v2363, %v2409
      %v2414 = vxor.u32 %v2411, 2147483648
      %v2415 = vxor.u32 %v2412, 2147483648
      %v2416 = vxor.u32 %v2413, 2147483648
      %v2417 = vmul.f32 %v2414, 1.442695
      %v2418 = vpow.pop %v2417
      %v2419 = vmul.f32 %v2415, 1.442695
      %v2420 = vpow.pop %v2419
      %v2421 = vmul.f32 %v2416, 1.442695
      %v2422 = vpow.pop %v2421
      %v2423 = vadd.f32 %v2418, 1.0
      %v2424 = vadd.f32 %v2420, 1.0
      %v2425 = vadd.f32 %v2422, 1.0
      %v2426 = vrcp.pop %v2423
      %v2427 = vmul.f32 %v2423, %v2426
      %v2428 = vsub.f32 1.0, %v2427
      %v2429 = vmul.f32 %v2426, %v2428
      %v2430 = vadd.f32 %v2426, %v2429
      %vm2431 = vweird.f32 %v2423
      %vm2432 = vweird.f32 %v2426
      %vm2433 = vmor %vm2431, %vm2432
      %v2434 = vsel %vm2433, %v2426, %v2430
      %v2435 = vand.u32 2147483647, %v2423
      %vm2436 = vcmp.eq.f32.partialorder %v2435, 8.507059e+37
      %v2437 = vand.u32 %v2423, 2147483648
      %v2438 = vor.u32 1.1754944e-38, %v2437
      %v2439 = vsel %vm2436, %v2438, %v2434
      %v2440 = vmul.f32 1.0, %v2439
      %v2441 = vrcp.pop %v2424
      %v2442 = vmul.f32 %v2424, %v2441
      %v2443 = vsub.f32 1.0, %v2442
      %v2444 = vmul.f32 %v2441, %v2443
      %v2445 = vadd.f32 %v2441, %v2444
      %vm2446 = vweird.f32 %v2424
      %vm2447 = vweird.f32 %v2441
      %vm2448 = vmor %vm2446, %vm2447
      %v2449 = vsel %vm2448, %v2441, %v2445
      %v2450 = vand.u32 2147483647, %v2424
      %vm2451 = vcmp.eq.f32.partialorder %v2450, 8.507059e+37
      %v2452 = vand.u32 %v2424, 2147483648
      %v2453 = vor.u32 1.1754944e-38, %v2452
      %v2454 = vsel %vm2451, %v2453, %v2449
      %v2455 = vmul.f32 1.0, %v2454
      %v2456 = vrcp.pop %v2425
      %v2457 = vmul.f32 %v2425, %v2456
      %v2458 = vsub.f32 1.0, %v2457
      %v2459 = vmul.f32 %v2456, %v2458
      %v2460 = vadd.f32 %v2456, %v2459
      %vm2461 = vweird.f32 %v2425
      %vm2462 = vweird.f32 %v2456
      %vm2463 = vmor %vm2461, %vm2462
      %v2464 = vsel %vm2463, %v2456, %v2460
      %v2465 = vand.u32 2147483647, %v2425
      %vm2466 = vcmp.eq.f32.partialorder %v2465, 8.507059e+37
      %v2467 = vand.u32 %v2425, 2147483648
      %v2468 = vor.u32 1.1754944e-38, %v2467
      %v2469 = vsel %vm2466, %v2468, %v2464
      %v2470 = vmul.f32 1.0, %v2469
      %v2471 = vmul.f32 %v2411, %v2440
      %v2472 = vmul.f32 %v2412, %v2455
      %v2473 = vmul.f32 %v2413, %v2470
      %2475 = vset.pattern.permute.xlu0 0
      %2476 = vperm.xlu0 %2475, %v582
      %v2477 = vpop.permute.xlu0 %2476
      %2480 = vset.pattern.permute.xlu0 0
      %2481 = vperm.xlu0 %2480, %v583
      %v2482 = vpop.permute.xlu0 %2481
      %2485 = vset.pattern.permute.xlu0 0
      %2486 = vperm.xlu0 %2485, %v584
      %v2487 = vpop.permute.xlu0 %2486
      %v2489 = vmul.f32 %v2471, %v2477
      %v2490 = vmul.f32 %v2472, %v2482
      %v2491 = vmul.f32 %v2473, %v2487
      %2492 = vst.msk [vmem:[#allocation6 + $0x7] sm:$0xff] %vm534, %v2489
      %2493 = vst.msk [vmem:[#allocation6 + $0xf] sm:$0xff] %vm534, %v2490
      %2494 = vst.msk [vmem:[#allocation6 + $0x17] sm:$0xff] %vm534, %v2491
      %s2495 = scalar_lea.vmem [#allocation6], 7
      %v2496 = vld [vmem:[%s2495] ss:$2 sm:$0x3]
      %vm2497 = vcmask 254976
      %2498 = vst.msk [vmem:[#allocation7 + $0x5] sm:$0x3] %vm2497, %v2496
      %s2499 = scalar_lea.vmem [#allocation6], 19
      %v2500 = vld [vmem:[%s2499] ss:$2 sm:$0x3]
      %2501 = vst.msk [vmem:[#allocation7 + $0x9] sm:$0x3] %vm2497, %v2500
      %s2502 = scalar_lea.vmem %s5, 288
      %v2503 = vld [vmem:[%s2502] sm:$0xff]
      %v2504 = vld [vmem:[%s2502 + $0x8] sm:$0xff]
      %v2505 = vld [vmem:[%s2502 + $0x10] sm:$0xff]
      %v2506 = vld [vmem:[%s2502 + $0x18] sm:$0xff]
      %v2507 = vld [vmem:[%s2502 + $0x20] sm:$0xff]
      %v2508 = vld [vmem:[%s2502 + $0x28] sm:$0xff]
      %v2509 = vld [vmem:[%s2502 + $0x30] sm:$0xff]
      %v2510 = vld [vmem:[%s2502 + $0x38] sm:$0xff]
      %v2511 = vld [vmem:[%s2502 + $0x40] sm:$0xff]
      %v2512 = vld [vmem:[%s2502 + $0x48] sm:$0xff]
      %v2513 = vld [vmem:[%s2502 + $0x50] sm:$0xff]
      %v2514 = vld [vmem:[%s2502 + $0x58] sm:$0xff]
      %v2515 = vld [vmem:[%s2502 + $0x60] sm:$0xff]
      %v2516 = vld [vmem:[%s2502 + $0x68] sm:$0xff]
      %v2517 = vld [vmem:[%s2502 + $0x70] sm:$0xff]
      %v2518 = vld [vmem:[%s2502 + $0x78] sm:$0xff]
      %v2519 = vld [vmem:[%s2502 + $0x80] sm:$0xff]
      %v2520 = vld [vmem:[%s2502 + $0x88] sm:$0xff]
      %v2521 = vld [vmem:[%s2502 + $0x90] sm:$0xff]
      %v2522 = vld [vmem:[%s2502 + $0x98] sm:$0xff]
      %v2523 = vld [vmem:[%s2502 + $0xa0] sm:$0xff]
      %v2524 = vld [vmem:[%s2502 + $0xa8] sm:$0xff]
      %v2525 = vld [vmem:[%s2502 + $0xb0] sm:$0xff]
      %v2526 = vld [vmem:[%s2502 + $0xb8] sm:$0xff]
      %v2527 = vld [vmem:[%s2502 + $0xc0] sm:$0xff]
      %v2528 = vld [vmem:[%s2502 + $0xc8] sm:$0xff]
      %v2529 = vld [vmem:[%s2502 + $0xd0] sm:$0xff]
      %v2530 = vld [vmem:[%s2502 + $0xd8] sm:$0xff]
      %v2531 = vld [vmem:[%s2502 + $0xe0] sm:$0xff]
      %v2532 = vld [vmem:[%s2502 + $0xe8] sm:$0xff]
      %v2533 = vld [vmem:[%s2502 + $0xf0] sm:$0xff]
      %v2534 = vld [vmem:[%s2502 + $0xf8] sm:$0xff]
      %v2535 = vld [vmem:[%s2502 + $0x100] sm:$0xff]
      %v2536 = vld [vmem:[%s2502 + $0x108] sm:$0xff]
      %v2537 = vld [vmem:[%s2502 + $0x110] sm:$0xff]
      %v2538 = vld [vmem:[%s2502 + $0x118] sm:$0xff]
      %s2539 = scalar_lea.vmem %s6, 1
      %v2540 = vld [vmem:[%s2539] sm:$0x1]
      %v2541 = vld [vmem:[#allocation6] sm:$0xff]
      %v2542 = vld [vmem:[#allocation6 + $0x8] sm:$0xff]
      %v2543 = vld [vmem:[#allocation6 + $0x10] sm:$0xff]
      %v2544 = vld [vmem:[#allocation6 + $0x1] sm:$0xff]
      %v2545 = vld [vmem:[#allocation6 + $0x9] sm:$0xff]
      %v2546 = vld [vmem:[#allocation6 + $0x11] sm:$0xff]
      %v2547 = vld [vmem:[#allocation6 + $0x2] sm:$0xff]
      %v2548 = vld [vmem:[#allocation6 + $0xa] sm:$0xff]
      %v2549 = vld [vmem:[#allocation6 + $0x12] sm:$0xff]
      %v2550 = vld [vmem:[#allocation6 + $0x6] sm:$0xff]
      %v2551 = vld [vmem:[#allocation6 + $0xe] sm:$0xff]
      %v2552 = vld [vmem:[#allocation6 + $0x16] sm:$0xff]
      %v2553 = vld [vmem:[#allocation6 + $0x7] sm:$0xff]
      %v2554 = vld [vmem:[#allocation6 + $0xf] sm:$0xff]
      %v2555 = vld [vmem:[#allocation6 + $0x17] sm:$0xff]
      %v2556 = vld [vmem:[#allocation6 + $0x18] sm:$0xff]
      %v2557 = vld [vmem:[#allocation6 + $0xc] sm:$0xff]
      %v2558 = vld [vmem:[#allocation6 + $0x14] sm:$0xff]
      %v2559 = vld [vmem:[#allocation6 + $0x1c] sm:$0xff]
      %v2560 = vld [vmem:[#allocation6 + $0xd] sm:$0xff]
      %v2561 = vld [vmem:[#allocation6 + $0x15] sm:$0xff]
      %v2562 = vld [vmem:[#allocation6 + $0x1d] sm:$0xff]
      %v2563 = vld [vmem:[#allocation6 + $0x1e] sm:$0xff]
      %2567 = vrot.lane.b32.xlu0 %v2544, 32
      %v2568 = vpop.permute.xlu0 %2567
      %2569 = vrot.lane.b32.xlu0 %v2545, 32
      %v2570 = vpop.permute.xlu0 %2569
      %2571 = vrot.lane.b32.xlu0 %v2546, 32
      %v2572 = vpop.permute.xlu0 %2571
      %2579 = vrot.lane.b32.xlu0 %v2547, 64
      %v2580 = vpop.permute.xlu0 %2579
      %2581 = vrot.lane.b32.xlu0 %v2548, 64
      %v2582 = vpop.permute.xlu0 %2581
      %2583 = vrot.lane.b32.xlu0 %v2549, 64
      %v2584 = vpop.permute.xlu0 %2583
      %2591 = vrot.lane.b32.xlu0 %v2550, 96
      %v2592 = vpop.permute.xlu0 %2591
      %2593 = vrot.lane.b32.xlu0 %v2551, 96
      %v2594 = vpop.permute.xlu0 %2593
      %2595 = vrot.lane.b32.xlu0 %v2552, 96
      %v2596 = vpop.permute.xlu0 %2595
      %2603 = vrot.lane.b32.xlu0 %v2542, 32
      %v2604 = vpop.permute.xlu0 %2603
      %2605 = vrot.lane.b32.xlu0 %v2543, 32
      %v2606 = vpop.permute.xlu0 %2605
      %2607 = vrot.lane.b32.xlu0 %v2556, 32
      %v2608 = vpop.permute.xlu0 %2607
      %2615 = vrot.lane.b32.xlu0 %v2557, 64
      %v2616 = vpop.permute.xlu0 %2615
      %2617 = vrot.lane.b32.xlu0 %v2558, 64
      %v2618 = vpop.permute.xlu0 %2617
      %2619 = vrot.lane.b32.xlu0 %v2559, 64
      %v2620 = vpop.permute.xlu0 %2619
      %2627 = vrot.lane.b32.xlu0 %v2560, 96
      %v2628 = vpop.permute.xlu0 %2627
      %2629 = vrot.lane.b32.xlu0 %v2561, 96
      %v2630 = vpop.permute.xlu0 %2629
      %2631 = vrot.lane.b32.xlu0 %v2562, 96
      %v2632 = vpop.permute.xlu0 %2631
      %v2636 = vsel %vm534, %v2541, %v2568
      %v2637 = vsel %vm534, %v2542, %v2570
      %v2638 = vsel %vm534, %v2543, %v2572
      %v2639 = vsel %vm1208, %v2636, %v2580
      %v2640 = vsel %vm1208, %v2637, %v2582
      %v2641 = vsel %vm1208, %v2638, %v2584
      %v2642 = vsel %vm1684, %v2639, %v2592
      %v2643 = vsel %vm1684, %v2640, %v2594
      %v2644 = vsel %vm1684, %v2641, %v2596
      %v2645 = vsel %vm534, %v2553, %v2604
      %v2646 = vsel %vm534, %v2554, %v2606
      %v2647 = vsel %vm534, %v2555, %v2608
      %v2648 = vsel %vm1208, %v2645, %v2616
      %v2649 = vsel %vm1208, %v2646, %v2618
      %v2650 = vsel %vm1208, %v2647, %v2620
      %v2651 = vsel %vm1684, %v2648, %v2628
      %v2652 = vsel %vm1684, %v2649, %v2630
      %v2653 = vsel %vm1684, %v2650, %v2632
      %v2655 = vperm.slane %v2540, 0
      %v2657 = vsel %vm534, %v2551, 0
      %v2659 = vsel %vm534, %v2552, 0
      %v2662 = vsel %vm534, %v2563, 0
      %2664 = vmatpush.msra.mxu0 %v2518
      %2665 = vmatpush.msra.mxu0 %v2517
      %2666 = vmatpush.msra.mxu0 %v2516
      %2667 = vmatpush.msra.mxu0 %v2515
      %2668 = vmatpush.msra.mxu0 %v2514
      %2669 = vmatpush.msra.mxu0 %v2513
      %2670 = vmatpush.msra.mxu0 %v2512
      %2671 = vmatpush.msra.mxu0 %v2511
      %2672 = vmatpush.msra.mxu0 %v2510
      %2673 = vmatpush.msra.mxu0 %v2509
      %2674 = vmatpush.msra.mxu0 %v2508
      %2675 = vmatpush.msra.mxu0 %v2507
      %2676 = vmatpush.msra.mxu0 %v2506
      %2677 = vmatpush.msra.mxu0 %v2505
      %2678 = vmatpush.msra.mxu0 %v2504
      %2679 = vmatpush.msra.mxu0 %v2503
      %2680 = vmatmul.f32.gmra.mxu0 %v2642
      %v2681 = vpop.f32.mrf.mxu0
      %v2682 = vadd.f32 %v2655, %v2681
      %2683 = vmatmul.f32.gmra.mxu0 %v2643
      %v2684 = vpop.f32.mrf.mxu0
      %v2685 = vadd.f32 %v2655, %v2684
      %2686 = vmatmul.f32.gmra.mxu0 %v2644
      %v2687 = vpop.f32.mrf.mxu0
      %v2688 = vadd.f32 %v2655, %v2687
      %2689 = vdwg.mxu0
      %2690 = vmatpush.msra.mxu0 %v2534
      %2691 = vmatpush.msra.mxu0 %v2533
      %2692 = vmatpush.msra.mxu0 %v2532
      %2693 = vmatpush.msra.mxu0 %v2531
      %2694 = vmatpush.msra.mxu0 %v2530
      %2695 = vmatpush.msra.mxu0 %v2529
      %2696 = vmatpush.msra.mxu0 %v2528
      %2697 = vmatpush.msra.mxu0 %v2527
      %2698 = vmatpush.msra.mxu0 %v2526
      %2699 = vmatpush.msra.mxu0 %v2525
      %2700 = vmatpush.msra.mxu0 %v2524
      %2701 = vmatpush.msra.mxu0 %v2523
      %2702 = vmatpush.msra.mxu0 %v2522
      %2703 = vmatpush.msra.mxu0 %v2521
      %2704 = vmatpush.msra.mxu0 %v2520
      %2705 = vmatpush.msra.mxu0 %v2519
      %2706 = vmatmul.f32.gmra.mxu0 %v2651
      %v2707 = vpop.f32.mrf.mxu0
      %v2708 = vadd.f32 %v2682, %v2707
      %2709 = vmatmul.f32.gmra.mxu0 %v2652
      %v2710 = vpop.f32.mrf.mxu0
      %v2711 = vadd.f32 %v2685, %v2710
      %2712 = vmatmul.f32.gmra.mxu0 %v2653
      %v2713 = vpop.f32.mrf.mxu0
      %v2714 = vadd.f32 %v2688, %v2713
      %2715 = vdwg.mxu0
      %2716 = vmatpush.msra.mxu0 0.0
      %2717 = vmatpush.msra.mxu0 0.0
      %2718 = vmatpush.msra.mxu0 0.0
      %2719 = vmatpush.msra.mxu0 0.0
      %2720 = vmatpush.msra.mxu0 0.0
      %2721 = vmatpush.msra.mxu0 0.0
      %2722 = vmatpush.msra.mxu0 0.0
      %2723 = vmatpush.msra.mxu0 0.0
      %2724 = vmatpush.msra.mxu0 0.0
      %2725 = vmatpush.msra.mxu0 0.0
      %2726 = vmatpush.msra.mxu0 0.0
      %2727 = vmatpush.msra.mxu0 0.0
      %2728 = vmatpush.msra.mxu0 %v2538
      %2729 = vmatpush.msra.mxu0 %v2537
      %2730 = vmatpush.msra.mxu0 %v2536
      %2731 = vmatpush.msra.mxu0 %v2535
      %2732 = vmatmul.f32.gmra.mxu0 %v2657
      %v2733 = vpop.f32.mrf.mxu0
      %v2734 = vadd.f32 %v2708, %v2733
      %2735 = vmatmul.f32.gmra.mxu0 %v2659
      %v2736 = vpop.f32.mrf.mxu0
      %v2737 = vadd.f32 %v2711, %v2736
      %2738 = vmatmul.f32.gmra.mxu0 %v2662
      %v2739 = vpop.f32.mrf.mxu0
      %v2740 = vadd.f32 %v2714, %v2739
      %2741 = vdwg.mxu0
      %v2742 = vxor.u32 %v2734, 2147483648
      %v2743 = vxor.u32 %v2737, 2147483648
      %v2744 = vxor.u32 %v2740, 2147483648
      %v2745 = vmul.f32 %v2742, 1.442695
      %v2746 = vpow.pop %v2745
      %v2747 = vmul.f32 %v2743, 1.442695
      %v2748 = vpow.pop %v2747
      %v2749 = vmul.f32 %v2744, 1.442695
      %v2750 = vpow.pop %v2749
      %v2751 = vadd.f32 %v2746, 1.0
      %v2752 = vadd.f32 %v2748, 1.0
      %v2753 = vadd.f32 %v2750, 1.0
      %v2754 = vrcp.pop %v2751
      %v2755 = vmul.f32 %v2751, %v2754
      %v2756 = vsub.f32 1.0, %v2755
      %v2757 = vmul.f32 %v2754, %v2756
      %v2758 = vadd.f32 %v2754, %v2757
      %vm2759 = vweird.f32 %v2751
      %vm2760 = vweird.f32 %v2754
      %vm2761 = vmor %vm2759, %vm2760
      %v2762 = vsel %vm2761, %v2754, %v2758
      %v2763 = vand.u32 2147483647, %v2751
      %vm2764 = vcmp.eq.f32.partialorder %v2763, 8.507059e+37
      %v2765 = vand.u32 %v2751, 2147483648
      %v2766 = vor.u32 1.1754944e-38, %v2765
      %v2767 = vsel %vm2764, %v2766, %v2762
      %v2768 = vmul.f32 1.0, %v2767
      %v2769 = vrcp.pop %v2752
      %v2770 = vmul.f32 %v2752, %v2769
      %v2771 = vsub.f32 1.0, %v2770
      %v2772 = vmul.f32 %v2769, %v2771
      %v2773 = vadd.f32 %v2769, %v2772
      %vm2774 = vweird.f32 %v2752
      %vm2775 = vweird.f32 %v2769
      %vm2776 = vmor %vm2774, %vm2775
      %v2777 = vsel %vm2776, %v2769, %v2773
      %v2778 = vand.u32 2147483647, %v2752
      %vm2779 = vcmp.eq.f32.partialorder %v2778, 8.507059e+37
      %v2780 = vand.u32 %v2752, 2147483648
      %v2781 = vor.u32 1.1754944e-38, %v2780
      %v2782 = vsel %vm2779, %v2781, %v2777
      %v2783 = vmul.f32 1.0, %v2782
      %v2784 = vrcp.pop %v2753
      %v2785 = vmul.f32 %v2753, %v2784
      %v2786 = vsub.f32 1.0, %v2785
      %v2787 = vmul.f32 %v2784, %v2786
      %v2788 = vadd.f32 %v2784, %v2787
      %vm2789 = vweird.f32 %v2753
      %vm2790 = vweird.f32 %v2784
      %vm2791 = vmor %vm2789, %vm2790
      %v2792 = vsel %vm2791, %v2784, %v2788
      %v2793 = vand.u32 2147483647, %v2753
      %vm2794 = vcmp.eq.f32.partialorder %v2793, 8.507059e+37
      %v2795 = vand.u32 %v2753, 2147483648
      %v2796 = vor.u32 1.1754944e-38, %v2795
      %v2797 = vsel %vm2794, %v2796, %v2792
      %v2798 = vmul.f32 1.0, %v2797
      %v2799 = vmul.f32 %v2734, %v2768
      %v2800 = vmul.f32 %v2737, %v2783
      %v2801 = vmul.f32 %v2740, %v2798
      %v2802 = vmul.f32 %v2799, %v2477
      %v2803 = vmul.f32 %v2800, %v2482
      %v2804 = vmul.f32 %v2801, %v2487
      %2805 = vst.msk [vmem:[#allocation6 + $0x7] sm:$0xff] %vm534, %v2802
      %2806 = vst.msk [vmem:[#allocation6 + $0xf] sm:$0xff] %vm534, %v2803
      %2807 = vst.msk [vmem:[#allocation6 + $0x17] sm:$0xff] %vm534, %v2804
      %v2808 = vld [vmem:[%s2495] ss:$2 sm:$0x3]
      %2809 = vst.msk [vmem:[#allocation8 + $0x5] sm:$0x3] %vm2497, %v2808
      %v2810 = vld [vmem:[%s2499] ss:$2 sm:$0x3]
      %2811 = vst.msk [vmem:[#allocation8 + $0x9] sm:$0x3] %vm2497, %v2810
      %s2812 = scalar_lea.vmem %s7, 288
      %v2813 = vld [vmem:[%s2812] sm:$0xff]
      %v2814 = vld [vmem:[%s2812 + $0x8] sm:$0xff]
      %v2815 = vld [vmem:[%s2812 + $0x10] sm:$0xff]
      %v2816 = vld [vmem:[%s2812 + $0x18] sm:$0xff]
      %v2817 = vld [vmem:[%s2812 + $0x20] sm:$0xff]
      %v2818 = vld [vmem:[%s2812 + $0x28] sm:$0xff]
      %v2819 = vld [vmem:[%s2812 + $0x30] sm:$0xff]
      %v2820 = vld [vmem:[%s2812 + $0x38] sm:$0xff]
      %v2821 = vld [vmem:[%s2812 + $0x40] sm:$0xff]
      %v2822 = vld [vmem:[%s2812 + $0x48] sm:$0xff]
      %v2823 = vld [vmem:[%s2812 + $0x50] sm:$0xff]
      %v2824 = vld [vmem:[%s2812 + $0x58] sm:$0xff]
      %v2825 = vld [vmem:[%s2812 + $0x60] sm:$0xff]
      %v2826 = vld [vmem:[%s2812 + $0x68] sm:$0xff]
      %v2827 = vld [vmem:[%s2812 + $0x70] sm:$0xff]
      %v2828 = vld [vmem:[%s2812 + $0x78] sm:$0xff]
      %v2829 = vld [vmem:[%s2812 + $0x80] sm:$0xff]
      %v2830 = vld [vmem:[%s2812 + $0x88] sm:$0xff]
      %v2831 = vld [vmem:[%s2812 + $0x90] sm:$0xff]
      %v2832 = vld [vmem:[%s2812 + $0x98] sm:$0xff]
      %v2833 = vld [vmem:[%s2812 + $0xa0] sm:$0xff]
      %v2834 = vld [vmem:[%s2812 + $0xa8] sm:$0xff]
      %v2835 = vld [vmem:[%s2812 + $0xb0] sm:$0xff]
      %v2836 = vld [vmem:[%s2812 + $0xb8] sm:$0xff]
      %v2837 = vld [vmem:[%s2812 + $0xc0] sm:$0xff]
      %v2838 = vld [vmem:[%s2812 + $0xc8] sm:$0xff]
      %v2839 = vld [vmem:[%s2812 + $0xd0] sm:$0xff]
      %v2840 = vld [vmem:[%s2812 + $0xd8] sm:$0xff]
      %v2841 = vld [vmem:[%s2812 + $0xe0] sm:$0xff]
      %v2842 = vld [vmem:[%s2812 + $0xe8] sm:$0xff]
      %v2843 = vld [vmem:[%s2812 + $0xf0] sm:$0xff]
      %v2844 = vld [vmem:[%s2812 + $0xf8] sm:$0xff]
      %v2845 = vld [vmem:[%s2812 + $0x100] sm:$0xff]
      %v2846 = vld [vmem:[%s2812 + $0x108] sm:$0xff]
      %v2847 = vld [vmem:[%s2812 + $0x110] sm:$0xff]
      %v2848 = vld [vmem:[%s2812 + $0x118] sm:$0xff]
      %s2849 = scalar_lea.vmem %s8, 1
      %v2850 = vld [vmem:[%s2849] sm:$0x1]
      %v2851 = vld [vmem:[#allocation8] sm:$0xff]
      %v2852 = vld [vmem:[#allocation8 + $0x1] sm:$0xff]
      %v2853 = vld [vmem:[#allocation8 + $0x2] sm:$0xff]
      %v2854 = vld [vmem:[#allocation8 + $0x4] sm:$0xff]
      %v2855 = vld [vmem:[#allocation8 + $0x5] sm:$0xff]
      %v2856 = vld [vmem:[#allocation8 + $0x6] sm:$0xff]
      %v2857 = vld [vmem:[#allocation8 + $0x8] sm:$0xff]
      %v2858 = vld [vmem:[#allocation8 + $0x9] sm:$0xff]
      %v2859 = vld [vmem:[#allocation8 + $0xa] sm:$0xff]
      %2861 = vrot.lane.b32.xlu0 %v2852, 32
      %v2862 = vpop.permute.xlu0 %2861
      %2865 = vrot.lane.b32.xlu0 %v2853, 64
      %v2866 = vpop.permute.xlu0 %2865
      %2869 = vrot.lane.b32.xlu0 %v2854, 96
      %v2870 = vpop.permute.xlu0 %2869
      %2873 = vrot.lane.b32.xlu0 %v2856, 32
      %v2874 = vpop.permute.xlu0 %2873
      %2877 = vrot.lane.b32.xlu0 %v2857, 64
      %v2878 = vpop.permute.xlu0 %2877
      %2881 = vrot.lane.b32.xlu0 %v2858, 96
      %v2882 = vpop.permute.xlu0 %2881
      %v2884 = vsel %vm534, %v2851, %v2862
      %v2885 = vsel %vm1208, %v2884, %v2866
      %v2886 = vsel %vm1684, %v2885, %v2870
      %v2887 = vsel %vm534, %v2855, %v2874
      %v2888 = vsel %vm1208, %v2887, %v2878
      %v2889 = vsel %vm1684, %v2888, %v2882
      %v2891 = vperm.slane %v2850, 0
      %v2894 = vsel %vm534, %v2859, 0
      %2896 = vmatpush.msra.mxu0 %v2828
      %2897 = vmatpush.msra.mxu0 %v2827
      %2898 = vmatpush.msra.mxu0 %v2826
      %2899 = vmatpush.msra.mxu0 %v2825
      %2900 = vmatpush.msra.mxu0 %v2824
      %2901 = vmatpush.msra.mxu0 %v2823
      %2902 = vmatpush.msra.mxu0 %v2822
      %2903 = vmatpush.msra.mxu0 %v2821
      %2904 = vmatpush.msra.mxu0 %v2820
      %2905 = vmatpush.msra.mxu0 %v2819
      %2906 = vmatpush.msra.mxu0 %v2818
      %2907 = vmatpush.msra.mxu0 %v2817
      %2908 = vmatpush.msra.mxu0 %v2816
      %2909 = vmatpush.msra.mxu0 %v2815
      %2910 = vmatpush.msra.mxu0 %v2814
      %2911 = vmatpush.msra.mxu0 %v2813
      %2912 = vmatmul.f32.gmra.mxu0 %v2886
      %v2913 = vpop.f32.mrf.mxu0
      %v2914 = vadd.f32 %v2891, %v2913
      %2915 = vdwg.mxu0
      %2916 = vmatpush.msra.mxu0 %v2844
      %2917 = vmatpush.msra.mxu0 %v2843
      %2918 = vmatpush.msra.mxu0 %v2842
      %2919 = vmatpush.msra.mxu0 %v2841
      %2920 = vmatpush.msra.mxu0 %v2840
      %2921 = vmatpush.msra.mxu0 %v2839
      %2922 = vmatpush.msra.mxu0 %v2838
      %2923 = vmatpush.msra.mxu0 %v2837
      %2924 = vmatpush.msra.mxu0 %v2836
      %2925 = vmatpush.msra.mxu0 %v2835
      %2926 = vmatpush.msra.mxu0 %v2834
      %2927 = vmatpush.msra.mxu0 %v2833
      %2928 = vmatpush.msra.mxu0 %v2832
      %2929 = vmatpush.msra.mxu0 %v2831
      %2930 = vmatpush.msra.mxu0 %v2830
      %2931 = vmatpush.msra.mxu0 %v2829
      %2932 = vmatmul.f32.gmra.mxu0 %v2889
      %v2933 = vpop.f32.mrf.mxu0
      %v2934 = vadd.f32 %v2914, %v2933
      %2935 = vdwg.mxu0
      %2936 = vmatpush.msra.mxu0 0.0
      %2937 = vmatpush.msra.mxu0 0.0
      %2938 = vmatpush.msra.mxu0 0.0
      %2939 = vmatpush.msra.mxu0 0.0
      %2940 = vmatpush.msra.mxu0 0.0
      %2941 = vmatpush.msra.mxu0 0.0
      %2942 = vmatpush.msra.mxu0 0.0
      %2943 = vmatpush.msra.mxu0 0.0
      %2944 = vmatpush.msra.mxu0 0.0
      %2945 = vmatpush.msra.mxu0 0.0
      %2946 = vmatpush.msra.mxu0 0.0
      %2947 = vmatpush.msra.mxu0 0.0
      %2948 = vmatpush.msra.mxu0 %v2848
      %2949 = vmatpush.msra.mxu0 %v2847
      %2950 = vmatpush.msra.mxu0 %v2846
      %2951 = vmatpush.msra.mxu0 %v2845
      %2952 = vmatmul.f32.gmra.mxu0 %v2894
      %v2953 = vpop.f32.mrf.mxu0
      %v2954 = vadd.f32 %v2934, %v2953
      %2955 = vdwg.mxu0
      %v2956 = vld [vmem:[#allocation7 + $0x5] sm:$0xff]
      %s2957 = scalar_lea.vmem %s9, 32
      %v2958 = vld [vmem:[%s2957] sm:$0xff]
      %v2959 = vld [vmem:[%s2957 + $0x8] sm:$0xff]
      %v2960 = vld [vmem:[%s2957 + $0x10] sm:$0xff]
      %v2961 = vld [vmem:[%s2957 + $0x18] sm:$0xff]
      %s2962 = scalar_lea.vmem %s10, 1
      %v2963 = vld [vmem:[%s2962] sm:$0x1]
      %v2965 = vperm.slane %v2963, 0
      %v2968 = vsel %vm534, %v2956, 0
      %2970 = vmatpush.msra.mxu0 0.0
      %2971 = vmatpush.msra.mxu0 0.0
      %2972 = vmatpush.msra.mxu0 0.0
      %2973 = vmatpush.msra.mxu0 0.0
      %2974 = vmatpush.msra.mxu0 0.0
      %2975 = vmatpush.msra.mxu0 0.0
      %2976 = vmatpush.msra.mxu0 0.0
      %2977 = vmatpush.msra.mxu0 0.0
      %2978 = vmatpush.msra.mxu0 0.0
      %2979 = vmatpush.msra.mxu0 0.0
      %2980 = vmatpush.msra.mxu0 0.0
      %2981 = vmatpush.msra.mxu0 0.0
      %2982 = vmatpush.msra.mxu0 %v2961
      %2983 = vmatpush.msra.mxu0 %v2960
      %2984 = vmatpush.msra.mxu0 %v2959
      %2985 = vmatpush.msra.mxu0 %v2958
      %2986 = vmatmul.f32.gmra.mxu0 %v2968
      %v2987 = vpop.f32.mrf.mxu0
      %v2988 = vadd.f32 %v2965, %v2987
      %2989 = vdwg.mxu0
      %v2990 = vadd.f32 %v2954, %v2988
      %v2991 = vxor.u32 %v2990, 2147483648
      %v2992 = vmul.f32 %v2991, 1.442695
      %v2993 = vpow.pop %v2992
      %v2994 = vadd.f32 %v2993, 1.0
      %v2995 = vrcp.pop %v2994
      %v2996 = vmul.f32 %v2994, %v2995
      %v2997 = vsub.f32 1.0, %v2996
      %v2998 = vmul.f32 %v2995, %v2997
      %v2999 = vadd.f32 %v2995, %v2998
      %vm3000 = vweird.f32 %v2994
      %vm3001 = vweird.f32 %v2995
      %vm3002 = vmor %vm3000, %vm3001
      %v3003 = vsel %vm3002, %v2995, %v2999
      %v3004 = vand.u32 2147483647, %v2994
      %vm3005 = vcmp.eq.f32.partialorder %v3004, 8.507059e+37
      %v3006 = vand.u32 %v2994, 2147483648
      %v3007 = vor.u32 1.1754944e-38, %v3006
      %v3008 = vsel %vm3005, %v3007, %v3003
      %v3009 = vmul.f32 1.0, %v3008
      %v3010 = vmul.f32 %v2990, %v3009
      %3012 = vset.pattern.permute.xlu0 0
      %3013 = vperm.xlu0 %3012, %v585
      %v3014 = vpop.permute.xlu0 %3013
      %v3016 = vmul.f32 %v3010, %v3014
      %3017 = vst.msk [vmem:[#allocation9 + $0x5] sm:$0xff] %vm534, %v3016
      %s3018 = scalar_lea.vmem %s5, 576
      %v3019 = vld [vmem:[%s3018] sm:$0xff]
      %v3020 = vld [vmem:[%s3018 + $0x8] sm:$0xff]
      %v3021 = vld [vmem:[%s3018 + $0x10] sm:$0xff]
      %v3022 = vld [vmem:[%s3018 + $0x18] sm:$0xff]
      %v3023 = vld [vmem:[%s3018 + $0x20] sm:$0xff]
      %v3024 = vld [vmem:[%s3018 + $0x28] sm:$0xff]
      %v3025 = vld [vmem:[%s3018 + $0x30] sm:$0xff]
      %v3026 = vld [vmem:[%s3018 + $0x38] sm:$0xff]
      %v3027 = vld [vmem:[%s3018 + $0x40] sm:$0xff]
      %v3028 = vld [vmem:[%s3018 + $0x48] sm:$0xff]
      %v3029 = vld [vmem:[%s3018 + $0x50] sm:$0xff]
      %v3030 = vld [vmem:[%s3018 + $0x58] sm:$0xff]
      %v3031 = vld [vmem:[%s3018 + $0x60] sm:$0xff]
      %v3032 = vld [vmem:[%s3018 + $0x68] sm:$0xff]
      %v3033 = vld [vmem:[%s3018 + $0x70] sm:$0xff]
      %v3034 = vld [vmem:[%s3018 + $0x78] sm:$0xff]
      %v3035 = vld [vmem:[%s3018 + $0x80] sm:$0xff]
      %v3036 = vld [vmem:[%s3018 + $0x88] sm:$0xff]
      %v3037 = vld [vmem:[%s3018 + $0x90] sm:$0xff]
      %v3038 = vld [vmem:[%s3018 + $0x98] sm:$0xff]
      %v3039 = vld [vmem:[%s3018 + $0xa0] sm:$0xff]
      %v3040 = vld [vmem:[%s3018 + $0xa8] sm:$0xff]
      %v3041 = vld [vmem:[%s3018 + $0xb0] sm:$0xff]
      %v3042 = vld [vmem:[%s3018 + $0xb8] sm:$0xff]
      %v3043 = vld [vmem:[%s3018 + $0xc0] sm:$0xff]
      %v3044 = vld [vmem:[%s3018 + $0xc8] sm:$0xff]
      %v3045 = vld [vmem:[%s3018 + $0xd0] sm:$0xff]
      %v3046 = vld [vmem:[%s3018 + $0xd8] sm:$0xff]
      %v3047 = vld [vmem:[%s3018 + $0xe0] sm:$0xff]
      %v3048 = vld [vmem:[%s3018 + $0xe8] sm:$0xff]
      %v3049 = vld [vmem:[%s3018 + $0xf0] sm:$0xff]
      %v3050 = vld [vmem:[%s3018 + $0xf8] sm:$0xff]
      %v3051 = vld [vmem:[%s3018 + $0x100] sm:$0xff]
      %v3052 = vld [vmem:[%s3018 + $0x108] sm:$0xff]
      %v3053 = vld [vmem:[%s3018 + $0x110] sm:$0xff]
      %v3054 = vld [vmem:[%s3018 + $0x118] sm:$0xff]
      %s3055 = scalar_lea.vmem %s6, 2
      %v3056 = vld [vmem:[%s3055] sm:$0x1]
      %v3057 = vld [vmem:[#allocation9] sm:$0xff]
      %v3058 = vld [vmem:[#allocation9 + $0x1] sm:$0xff]
      %v3059 = vld [vmem:[#allocation9 + $0x2] sm:$0xff]
      %v3060 = vld [vmem:[#allocation9 + $0x4] sm:$0xff]
      %v3061 = vld [vmem:[#allocation9 + $0x5] sm:$0xff]
      %v3062 = vld [vmem:[#allocation9 + $0x6] sm:$0xff]
      %v3063 = vld [vmem:[#allocation9 + $0x8] sm:$0xff]
      %v3064 = vld [vmem:[#allocation9 + $0x9] sm:$0xff]
      %v3065 = vld [vmem:[#allocation9 + $0xa] sm:$0xff]
      %3067 = vrot.lane.b32.xlu0 %v3058, 32
      %v3068 = vpop.permute.xlu0 %3067
      %3071 = vrot.lane.b32.xlu0 %v3059, 64
      %v3072 = vpop.permute.xlu0 %3071
      %3075 = vrot.lane.b32.xlu0 %v3060, 96
      %v3076 = vpop.permute.xlu0 %3075
      %3079 = vrot.lane.b32.xlu0 %v3062, 32
      %v3080 = vpop.permute.xlu0 %3079
      %3083 = vrot.lane.b32.xlu0 %v3063, 64
      %v3084 = vpop.permute.xlu0 %3083
      %3087 = vrot.lane.b32.xlu0 %v3064, 96
      %v3088 = vpop.permute.xlu0 %3087
      %v3090 = vsel %vm534, %v3057, %v3068
      %v3091 = vsel %vm1208, %v3090, %v3072
      %v3092 = vsel %vm1684, %v3091, %v3076
      %v3093 = vsel %vm534, %v3061, %v3080
      %v3094 = vsel %vm1208, %v3093, %v3084
      %v3095 = vsel %vm1684, %v3094, %v3088
      %v3097 = vperm.slane %v3056, 0
      %v3100 = vsel %vm534, %v3065, 0
      %3102 = vmatpush.msra.mxu0 %v3034
      %3103 = vmatpush.msra.mxu0 %v3033
      %3104 = vmatpush.msra.mxu0 %v3032
      %3105 = vmatpush.msra.mxu0 %v3031
      %3106 = vmatpush.msra.mxu0 %v3030
      %3107 = vmatpush.msra.mxu0 %v3029
      %3108 = vmatpush.msra.mxu0 %v3028
      %3109 = vmatpush.msra.mxu0 %v3027
      %3110 = vmatpush.msra.mxu0 %v3026
      %3111 = vmatpush.msra.mxu0 %v3025
      %3112 = vmatpush.msra.mxu0 %v3024
      %3113 = vmatpush.msra.mxu0 %v3023
      %3114 = vmatpush.msra.mxu0 %v3022
      %3115 = vmatpush.msra.mxu0 %v3021
      %3116 = vmatpush.msra.mxu0 %v3020
      %3117 = vmatpush.msra.mxu0 %v3019
      %3118 = vmatmul.f32.gmra.mxu0 %v3092
      %v3119 = vpop.f32.mrf.mxu0
      %v3120 = vadd.f32 %v3097, %v3119
      %3121 = vdwg.mxu0
      %3122 = vmatpush.msra.mxu0 %v3050
      %3123 = vmatpush.msra.mxu0 %v3049
      %3124 = vmatpush.msra.mxu0 %v3048
      %3125 = vmatpush.msra.mxu0 %v3047
      %3126 = vmatpush.msra.mxu0 %v3046
      %3127 = vmatpush.msra.mxu0 %v3045
      %3128 = vmatpush.msra.mxu0 %v3044
      %3129 = vmatpush.msra.mxu0 %v3043
      %3130 = vmatpush.msra.mxu0 %v3042
      %3131 = vmatpush.msra.mxu0 %v3041
      %3132 = vmatpush.msra.mxu0 %v3040
      %3133 = vmatpush.msra.mxu0 %v3039
      %3134 = vmatpush.msra.mxu0 %v3038
      %3135 = vmatpush.msra.mxu0 %v3037
      %3136 = vmatpush.msra.mxu0 %v3036
      %3137 = vmatpush.msra.mxu0 %v3035
      %3138 = vmatmul.f32.gmra.mxu0 %v3095
      %v3139 = vpop.f32.mrf.mxu0
      %v3140 = vadd.f32 %v3120, %v3139
      %3141 = vdwg.mxu0
      %3142 = vmatpush.msra.mxu0 0.0
      %3143 = vmatpush.msra.mxu0 0.0
      %3144 = vmatpush.msra.mxu0 0.0
      %3145 = vmatpush.msra.mxu0 0.0
      %3146 = vmatpush.msra.mxu0 0.0
      %3147 = vmatpush.msra.mxu0 0.0
      %3148 = vmatpush.msra.mxu0 0.0
      %3149 = vmatpush.msra.mxu0 0.0
      %3150 = vmatpush.msra.mxu0 0.0
      %3151 = vmatpush.msra.mxu0 0.0
      %3152 = vmatpush.msra.mxu0 0.0
      %3153 = vmatpush.msra.mxu0 0.0
      %3154 = vmatpush.msra.mxu0 %v3054
      %3155 = vmatpush.msra.mxu0 %v3053
      %3156 = vmatpush.msra.mxu0 %v3052
      %3157 = vmatpush.msra.mxu0 %v3051
      %3158 = vmatmul.f32.gmra.mxu0 %v3100
      %v3159 = vpop.f32.mrf.mxu0
      %v3160 = vadd.f32 %v3140, %v3159
      %3161 = vdwg.mxu0
      %v3162 = vxor.u32 %v3160, 2147483648
      %v3163 = vmul.f32 %v3162, 1.442695
      %v3164 = vpow.pop %v3163
      %v3165 = vadd.f32 %v3164, 1.0
      %v3166 = vrcp.pop %v3165
      %v3167 = vmul.f32 %v3165, %v3166
      %v3168 = vsub.f32 1.0, %v3167
      %v3169 = vmul.f32 %v3166, %v3168
      %v3170 = vadd.f32 %v3166, %v3169
      %vm3171 = vweird.f32 %v3165
      %vm3172 = vweird.f32 %v3166
      %vm3173 = vmor %vm3171, %vm3172
      %v3174 = vsel %vm3173, %v3166, %v3170
      %v3175 = vand.u32 2147483647, %v3165
      %vm3176 = vcmp.eq.f32.partialorder %v3175, 8.507059e+37
      %v3177 = vand.u32 %v3165, 2147483648
      %v3178 = vor.u32 1.1754944e-38, %v3177
      %v3179 = vsel %vm3176, %v3178, %v3174
      %v3180 = vmul.f32 1.0, %v3179
      %v3181 = vmul.f32 %v3160, %v3180
      %v3182 = vmul.f32 %v3181, %v3014
      %3183 = vst.msk [vmem:[#allocation8 + $0x5] sm:$0xff] %vm534, %v3182
      %s3184 = scalar_lea.vmem %s7, 576
      %v3185 = vld [vmem:[%s3184] sm:$0xff]
      %v3186 = vld [vmem:[%s3184 + $0x8] sm:$0xff]
      %v3187 = vld [vmem:[%s3184 + $0x10] sm:$0xff]
      %v3188 = vld [vmem:[%s3184 + $0x18] sm:$0xff]
      %v3189 = vld [vmem:[%s3184 + $0x20] sm:$0xff]
      %v3190 = vld [vmem:[%s3184 + $0x28] sm:$0xff]
      %v3191 = vld [vmem:[%s3184 + $0x30] sm:$0xff]
      %v3192 = vld [vmem:[%s3184 + $0x38] sm:$0xff]
      %v3193 = vld [vmem:[%s3184 + $0x40] sm:$0xff]
      %v3194 = vld [vmem:[%s3184 + $0x48] sm:$0xff]
      %v3195 = vld [vmem:[%s3184 + $0x50] sm:$0xff]
      %v3196 = vld [vmem:[%s3184 + $0x58] sm:$0xff]
      %v3197 = vld [vmem:[%s3184 + $0x60] sm:$0xff]
      %v3198 = vld [vmem:[%s3184 + $0x68] sm:$0xff]
      %v3199 = vld [vmem:[%s3184 + $0x70] sm:$0xff]
      %v3200 = vld [vmem:[%s3184 + $0x78] sm:$0xff]
      %v3201 = vld [vmem:[%s3184 + $0x80] sm:$0xff]
      %v3202 = vld [vmem:[%s3184 + $0x88] sm:$0xff]
      %v3203 = vld [vmem:[%s3184 + $0x90] sm:$0xff]
      %v3204 = vld [vmem:[%s3184 + $0x98] sm:$0xff]
      %v3205 = vld [vmem:[%s3184 + $0xa0] sm:$0xff]
      %v3206 = vld [vmem:[%s3184 + $0xa8] sm:$0xff]
      %v3207 = vld [vmem:[%s3184 + $0xb0] sm:$0xff]
      %v3208 = vld [vmem:[%s3184 + $0xb8] sm:$0xff]
      %v3209 = vld [vmem:[%s3184 + $0xc0] sm:$0xff]
      %v3210 = vld [vmem:[%s3184 + $0xc8] sm:$0xff]
      %v3211 = vld [vmem:[%s3184 + $0xd0] sm:$0xff]
      %v3212 = vld [vmem:[%s3184 + $0xd8] sm:$0xff]
      %v3213 = vld [vmem:[%s3184 + $0xe0] sm:$0xff]
      %v3214 = vld [vmem:[%s3184 + $0xe8] sm:$0xff]
      %v3215 = vld [vmem:[%s3184 + $0xf0] sm:$0xff]
      %v3216 = vld [vmem:[%s3184 + $0xf8] sm:$0xff]
      %v3217 = vld [vmem:[%s3184 + $0x100] sm:$0xff]
      %v3218 = vld [vmem:[%s3184 + $0x108] sm:$0xff]
      %v3219 = vld [vmem:[%s3184 + $0x110] sm:$0xff]
      %v3220 = vld [vmem:[%s3184 + $0x118] sm:$0xff]
      %s3221 = scalar_lea.vmem %s8, 2
      %v3222 = vld [vmem:[%s3221] sm:$0x1]
      %v3223 = vld [vmem:[#allocation8] sm:$0xff]
      %v3224 = vld [vmem:[#allocation8 + $0x1] sm:$0xff]
      %v3225 = vld [vmem:[#allocation8 + $0x2] sm:$0xff]
      %v3226 = vld [vmem:[#allocation8 + $0x4] sm:$0xff]
      %v3227 = vld [vmem:[#allocation8 + $0x5] sm:$0xff]
      %v3228 = vld [vmem:[#allocation8 + $0x6] sm:$0xff]
      %v3229 = vld [vmem:[#allocation8 + $0x8] sm:$0xff]
      %v3230 = vld [vmem:[#allocation8 + $0x9] sm:$0xff]
      %v3231 = vld [vmem:[#allocation8 + $0xa] sm:$0xff]
      %3233 = vrot.lane.b32.xlu0 %v3224, 32
      %v3234 = vpop.permute.xlu0 %3233
      %3237 = vrot.lane.b32.xlu0 %v3225, 64
      %v3238 = vpop.permute.xlu0 %3237
      %3241 = vrot.lane.b32.xlu0 %v3226, 96
      %v3242 = vpop.permute.xlu0 %3241
      %3245 = vrot.lane.b32.xlu0 %v3228, 32
      %v3246 = vpop.permute.xlu0 %3245
      %3249 = vrot.lane.b32.xlu0 %v3229, 64
      %v3250 = vpop.permute.xlu0 %3249
      %3253 = vrot.lane.b32.xlu0 %v3230, 96
      %v3254 = vpop.permute.xlu0 %3253
      %v3256 = vsel %vm534, %v3223, %v3234
      %v3257 = vsel %vm1208, %v3256, %v3238
      %v3258 = vsel %vm1684, %v3257, %v3242
      %v3259 = vsel %vm534, %v3227, %v3246
      %v3260 = vsel %vm1208, %v3259, %v3250
      %v3261 = vsel %vm1684, %v3260, %v3254
      %v3263 = vperm.slane %v3222, 0
      %v3266 = vsel %vm534, %v3231, 0
      %3268 = vmatpush.msra.mxu0 %v3200
      %3269 = vmatpush.msra.mxu0 %v3199
      %3270 = vmatpush.msra.mxu0 %v3198
      %3271 = vmatpush.msra.mxu0 %v3197
      %3272 = vmatpush.msra.mxu0 %v3196
      %3273 = vmatpush.msra.mxu0 %v3195
      %3274 = vmatpush.msra.mxu0 %v3194
      %3275 = vmatpush.msra.mxu0 %v3193
      %3276 = vmatpush.msra.mxu0 %v3192
      %3277 = vmatpush.msra.mxu0 %v3191
      %3278 = vmatpush.msra.mxu0 %v3190
      %3279 = vmatpush.msra.mxu0 %v3189
      %3280 = vmatpush.msra.mxu0 %v3188
      %3281 = vmatpush.msra.mxu0 %v3187
      %3282 = vmatpush.msra.mxu0 %v3186
      %3283 = vmatpush.msra.mxu0 %v3185
      %3284 = vmatmul.f32.gmra.mxu0 %v3258
      %v3285 = vpop.f32.mrf.mxu0
      %v3286 = vadd.f32 %v3263, %v3285
      %3287 = vdwg.mxu0
      %3288 = vmatpush.msra.mxu0 %v3216
      %3289 = vmatpush.msra.mxu0 %v3215
      %3290 = vmatpush.msra.mxu0 %v3214
      %3291 = vmatpush.msra.mxu0 %v3213
      %3292 = vmatpush.msra.mxu0 %v3212
      %3293 = vmatpush.msra.mxu0 %v3211
      %3294 = vmatpush.msra.mxu0 %v3210
      %3295 = vmatpush.msra.mxu0 %v3209
      %3296 = vmatpush.msra.mxu0 %v3208
      %3297 = vmatpush.msra.mxu0 %v3207
      %3298 = vmatpush.msra.mxu0 %v3206
      %3299 = vmatpush.msra.mxu0 %v3205
      %3300 = vmatpush.msra.mxu0 %v3204
      %3301 = vmatpush.msra.mxu0 %v3203
      %3302 = vmatpush.msra.mxu0 %v3202
      %3303 = vmatpush.msra.mxu0 %v3201
      %3304 = vmatmul.f32.gmra.mxu0 %v3261
      %v3305 = vpop.f32.mrf.mxu0
      %v3306 = vadd.f32 %v3286, %v3305
      %3307 = vdwg.mxu0
      %3308 = vmatpush.msra.mxu0 0.0
      %3309 = vmatpush.msra.mxu0 0.0
      %3310 = vmatpush.msra.mxu0 0.0
      %3311 = vmatpush.msra.mxu0 0.0
      %3312 = vmatpush.msra.mxu0 0.0
      %3313 = vmatpush.msra.mxu0 0.0
      %3314 = vmatpush.msra.mxu0 0.0
      %3315 = vmatpush.msra.mxu0 0.0
      %3316 = vmatpush.msra.mxu0 0.0
      %3317 = vmatpush.msra.mxu0 0.0
      %3318 = vmatpush.msra.mxu0 0.0
      %3319 = vmatpush.msra.mxu0 0.0
      %3320 = vmatpush.msra.mxu0 %v3220
      %3321 = vmatpush.msra.mxu0 %v3219
      %3322 = vmatpush.msra.mxu0 %v3218
      %3323 = vmatpush.msra.mxu0 %v3217
      %3324 = vmatmul.f32.gmra.mxu0 %v3266
      %v3325 = vpop.f32.mrf.mxu0
      %v3326 = vadd.f32 %v3306, %v3325
      %3327 = vdwg.mxu0
      %v3328 = vld [vmem:[#allocation9 + $0x5] sm:$0xff]
      %v3329 = vadd.f32 %v3326, %v3328
      %v3330 = vxor.u32 %v3329, 2147483648
      %v3331 = vmul.f32 %v3330, 1.442695
      %v3332 = vpow.pop %v3331
      %v3333 = vadd.f32 %v3332, 1.0
      %v3334 = vrcp.pop %v3333
      %v3335 = vmul.f32 %v3333, %v3334
      %v3336 = vsub.f32 1.0, %v3335
      %v3337 = vmul.f32 %v3334, %v3336
      %v3338 = vadd.f32 %v3334, %v3337
      %vm3339 = vweird.f32 %v3333
      %vm3340 = vweird.f32 %v3334
      %vm3341 = vmor %vm3339, %vm3340
      %v3342 = vsel %vm3341, %v3334, %v3338
      %v3343 = vand.u32 2147483647, %v3333
      %vm3344 = vcmp.eq.f32.partialorder %v3343, 8.507059e+37
      %v3345 = vand.u32 %v3333, 2147483648
      %v3346 = vor.u32 1.1754944e-38, %v3345
      %v3347 = vsel %vm3344, %v3346, %v3342
      %v3348 = vmul.f32 1.0, %v3347
      %v3349 = vmul.f32 %v3329, %v3348
      %v3350 = vmul.f32 %v3349, %v3014
      %3351 = vst.msk [vmem:[#allocation9 + $0x5] sm:$0xff] %vm534, %v3350
      %s3352 = scalar_lea.vmem %s5, 864
      %v3353 = vld [vmem:[%s3352] sm:$0xff]
      %v3354 = vld [vmem:[%s3352 + $0x8] sm:$0xff]
      %v3355 = vld [vmem:[%s3352 + $0x10] sm:$0xff]
      %v3356 = vld [vmem:[%s3352 + $0x18] sm:$0xff]
      %v3357 = vld [vmem:[%s3352 + $0x20] sm:$0xff]
      %v3358 = vld [vmem:[%s3352 + $0x28] sm:$0xff]
      %v3359 = vld [vmem:[%s3352 + $0x30] sm:$0xff]
      %v3360 = vld [vmem:[%s3352 + $0x38] sm:$0xff]
      %v3361 = vld [vmem:[%s3352 + $0x40] sm:$0xff]
      %v3362 = vld [vmem:[%s3352 + $0x48] sm:$0xff]
      %v3363 = vld [vmem:[%s3352 + $0x50] sm:$0xff]
      %v3364 = vld [vmem:[%s3352 + $0x58] sm:$0xff]
      %v3365 = vld [vmem:[%s3352 + $0x60] sm:$0xff]
      %v3366 = vld [vmem:[%s3352 + $0x68] sm:$0xff]
      %v3367 = vld [vmem:[%s3352 + $0x70] sm:$0xff]
      %v3368 = vld [vmem:[%s3352 + $0x78] sm:$0xff]
      %v3369 = vld [vmem:[%s3352 + $0x80] sm:$0xff]
      %v3370 = vld [vmem:[%s3352 + $0x88] sm:$0xff]
      %v3371 = vld [vmem:[%s3352 + $0x90] sm:$0xff]
      %v3372 = vld [vmem:[%s3352 + $0x98] sm:$0xff]
      %v3373 = vld [vmem:[%s3352 + $0xa0] sm:$0xff]
      %v3374 = vld [vmem:[%s3352 + $0xa8] sm:$0xff]
      %v3375 = vld [vmem:[%s3352 + $0xb0] sm:$0xff]
      %v3376 = vld [vmem:[%s3352 + $0xb8] sm:$0xff]
      %v3377 = vld [vmem:[%s3352 + $0xc0] sm:$0xff]
      %v3378 = vld [vmem:[%s3352 + $0xc8] sm:$0xff]
      %v3379 = vld [vmem:[%s3352 + $0xd0] sm:$0xff]
      %v3380 = vld [vmem:[%s3352 + $0xd8] sm:$0xff]
      %v3381 = vld [vmem:[%s3352 + $0xe0] sm:$0xff]
      %v3382 = vld [vmem:[%s3352 + $0xe8] sm:$0xff]
      %v3383 = vld [vmem:[%s3352 + $0xf0] sm:$0xff]
      %v3384 = vld [vmem:[%s3352 + $0xf8] sm:$0xff]
      %v3385 = vld [vmem:[%s3352 + $0x100] sm:$0xff]
      %v3386 = vld [vmem:[%s3352 + $0x108] sm:$0xff]
      %v3387 = vld [vmem:[%s3352 + $0x110] sm:$0xff]
      %v3388 = vld [vmem:[%s3352 + $0x118] sm:$0xff]
      %s3389 = scalar_lea.vmem %s6, 3
      %v3390 = vld [vmem:[%s3389] sm:$0x1]
      %v3391 = vld [vmem:[#allocation9] sm:$0xff]
      %v3392 = vld [vmem:[#allocation9 + $0x1] sm:$0xff]
      %v3393 = vld [vmem:[#allocation9 + $0x2] sm:$0xff]
      %v3394 = vld [vmem:[#allocation9 + $0x4] sm:$0xff]
      %v3395 = vld [vmem:[#allocation9 + $0x5] sm:$0xff]
      %v3396 = vld [vmem:[#allocation9 + $0x6] sm:$0xff]
      %v3397 = vld [vmem:[#allocation9 + $0x8] sm:$0xff]
      %v3398 = vld [vmem:[#allocation9 + $0x9] sm:$0xff]
      %v3399 = vld [vmem:[#allocation9 + $0xa] sm:$0xff]
      %3401 = vrot.lane.b32.xlu0 %v3392, 32
      %v3402 = vpop.permute.xlu0 %3401
      %3405 = vrot.lane.b32.xlu0 %v3393, 64
      %v3406 = vpop.permute.xlu0 %3405
      %3409 = vrot.lane.b32.xlu0 %v3394, 96
      %v3410 = vpop.permute.xlu0 %3409
      %3413 = vrot.lane.b32.xlu0 %v3396, 32
      %v3414 = vpop.permute.xlu0 %3413
      %3417 = vrot.lane.b32.xlu0 %v3397, 64
      %v3418 = vpop.permute.xlu0 %3417
      %3421 = vrot.lane.b32.xlu0 %v3398, 96
      %v3422 = vpop.permute.xlu0 %3421
      %v3424 = vsel %vm534, %v3391, %v3402
      %v3425 = vsel %vm1208, %v3424, %v3406
      %v3426 = vsel %vm1684, %v3425, %v3410
      %v3427 = vsel %vm534, %v3395, %v3414
      %v3428 = vsel %vm1208, %v3427, %v3418
      %v3429 = vsel %vm1684, %v3428, %v3422
      %v3431 = vperm.slane %v3390, 0
      %v3434 = vsel %vm534, %v3399, 0
      %3436 = vmatpush.msra.mxu0 %v3368
      %3437 = vmatpush.msra.mxu0 %v3367
      %3438 = vmatpush.msra.mxu0 %v3366
      %3439 = vmatpush.msra.mxu0 %v3365
      %3440 = vmatpush.msra.mxu0 %v3364
      %3441 = vmatpush.msra.mxu0 %v3363
      %3442 = vmatpush.msra.mxu0 %v3362
      %3443 = vmatpush.msra.mxu0 %v3361
      %3444 = vmatpush.msra.mxu0 %v3360
      %3445 = vmatpush.msra.mxu0 %v3359
      %3446 = vmatpush.msra.mxu0 %v3358
      %3447 = vmatpush.msra.mxu0 %v3357
      %3448 = vmatpush.msra.mxu0 %v3356
      %3449 = vmatpush.msra.mxu0 %v3355
      %3450 = vmatpush.msra.mxu0 %v3354
      %3451 = vmatpush.msra.mxu0 %v3353
      %3452 = vmatmul.f32.gmra.mxu0 %v3426
      %v3453 = vpop.f32.mrf.mxu0
      %v3454 = vadd.f32 %v3431, %v3453
      %3455 = vdwg.mxu0
      %3456 = vmatpush.msra.mxu0 %v3384
      %3457 = vmatpush.msra.mxu0 %v3383
      %3458 = vmatpush.msra.mxu0 %v3382
      %3459 = vmatpush.msra.mxu0 %v3381
      %3460 = vmatpush.msra.mxu0 %v3380
      %3461 = vmatpush.msra.mxu0 %v3379
      %3462 = vmatpush.msra.mxu0 %v3378
      %3463 = vmatpush.msra.mxu0 %v3377
      %3464 = vmatpush.msra.mxu0 %v3376
      %3465 = vmatpush.msra.mxu0 %v3375
      %3466 = vmatpush.msra.mxu0 %v3374
      %3467 = vmatpush.msra.mxu0 %v3373
      %3468 = vmatpush.msra.mxu0 %v3372
      %3469 = vmatpush.msra.mxu0 %v3371
      %3470 = vmatpush.msra.mxu0 %v3370
      %3471 = vmatpush.msra.mxu0 %v3369
      %3472 = vmatmul.f32.gmra.mxu0 %v3429
      %v3473 = vpop.f32.mrf.mxu0
      %v3474 = vadd.f32 %v3454, %v3473
      %3475 = vdwg.mxu0
      %3476 = vmatpush.msra.mxu0 0.0
      %3477 = vmatpush.msra.mxu0 0.0
      %3478 = vmatpush.msra.mxu0 0.0
      %3479 = vmatpush.msra.mxu0 0.0
      %3480 = vmatpush.msra.mxu0 0.0
      %3481 = vmatpush.msra.mxu0 0.0
      %3482 = vmatpush.msra.mxu0 0.0
      %3483 = vmatpush.msra.mxu0 0.0
      %3484 = vmatpush.msra.mxu0 0.0
      %3485 = vmatpush.msra.mxu0 0.0
      %3486 = vmatpush.msra.mxu0 0.0
      %3487 = vmatpush.msra.mxu0 0.0
      %3488 = vmatpush.msra.mxu0 %v3388
      %3489 = vmatpush.msra.mxu0 %v3387
      %3490 = vmatpush.msra.mxu0 %v3386
      %3491 = vmatpush.msra.mxu0 %v3385
      %3492 = vmatmul.f32.gmra.mxu0 %v3434
      %v3493 = vpop.f32.mrf.mxu0
      %v3494 = vadd.f32 %v3474, %v3493
      %3495 = vdwg.mxu0
      %v3496 = vxor.u32 %v3494, 2147483648
      %v3497 = vmul.f32 %v3496, 1.442695
      %v3498 = vpow.pop %v3497
      %v3499 = vadd.f32 %v3498, 1.0
      %v3500 = vrcp.pop %v3499
      %v3501 = vmul.f32 %v3499, %v3500
      %v3502 = vsub.f32 1.0, %v3501
      %v3503 = vmul.f32 %v3500, %v3502
      %v3504 = vadd.f32 %v3500, %v3503
      %vm3505 = vweird.f32 %v3499
      %vm3506 = vweird.f32 %v3500
      %vm3507 = vmor %vm3505, %vm3506
      %v3508 = vsel %vm3507, %v3500, %v3504
      %v3509 = vand.u32 2147483647, %v3499
      %vm3510 = vcmp.eq.f32.partialorder %v3509, 8.507059e+37
      %v3511 = vand.u32 %v3499, 2147483648
      %v3512 = vor.u32 1.1754944e-38, %v3511
      %v3513 = vsel %vm3510, %v3512, %v3508
      %v3514 = vmul.f32 1.0, %v3513
      %v3515 = vmul.f32 %v3494, %v3514
      %v3516 = vmul.f32 %v3515, %v3014
      %3517 = vst.msk [vmem:[#allocation8 + $0x5] sm:$0xff] %vm534, %v3516
      %s3518 = scalar_lea.vmem %s7, 864
      %v3519 = vld [vmem:[%s3518] sm:$0xff]
      %v3520 = vld [vmem:[%s3518 + $0x8] sm:$0xff]
      %v3521 = vld [vmem:[%s3518 + $0x10] sm:$0xff]
      %v3522 = vld [vmem:[%s3518 + $0x18] sm:$0xff]
      %v3523 = vld [vmem:[%s3518 + $0x20] sm:$0xff]
      %v3524 = vld [vmem:[%s3518 + $0x28] sm:$0xff]
      %v3525 = vld [vmem:[%s3518 + $0x30] sm:$0xff]
      %v3526 = vld [vmem:[%s3518 + $0x38] sm:$0xff]
      %v3527 = vld [vmem:[%s3518 + $0x40] sm:$0xff]
      %v3528 = vld [vmem:[%s3518 + $0x48] sm:$0xff]
      %v3529 = vld [vmem:[%s3518 + $0x50] sm:$0xff]
      %v3530 = vld [vmem:[%s3518 + $0x58] sm:$0xff]
      %v3531 = vld [vmem:[%s3518 + $0x60] sm:$0xff]
      %v3532 = vld [vmem:[%s3518 + $0x68] sm:$0xff]
      %v3533 = vld [vmem:[%s3518 + $0x70] sm:$0xff]
      %v3534 = vld [vmem:[%s3518 + $0x78] sm:$0xff]
      %v3535 = vld [vmem:[%s3518 + $0x80] sm:$0xff]
      %v3536 = vld [vmem:[%s3518 + $0x88] sm:$0xff]
      %v3537 = vld [vmem:[%s3518 + $0x90] sm:$0xff]
      %v3538 = vld [vmem:[%s3518 + $0x98] sm:$0xff]
      %v3539 = vld [vmem:[%s3518 + $0xa0] sm:$0xff]
      %v3540 = vld [vmem:[%s3518 + $0xa8] sm:$0xff]
      %v3541 = vld [vmem:[%s3518 + $0xb0] sm:$0xff]
      %v3542 = vld [vmem:[%s3518 + $0xb8] sm:$0xff]
      %v3543 = vld [vmem:[%s3518 + $0xc0] sm:$0xff]
      %v3544 = vld [vmem:[%s3518 + $0xc8] sm:$0xff]
      %v3545 = vld [vmem:[%s3518 + $0xd0] sm:$0xff]
      %v3546 = vld [vmem:[%s3518 + $0xd8] sm:$0xff]
      %v3547 = vld [vmem:[%s3518 + $0xe0] sm:$0xff]
      %v3548 = vld [vmem:[%s3518 + $0xe8] sm:$0xff]
      %v3549 = vld [vmem:[%s3518 + $0xf0] sm:$0xff]
      %v3550 = vld [vmem:[%s3518 + $0xf8] sm:$0xff]
      %v3551 = vld [vmem:[%s3518 + $0x100] sm:$0xff]
      %v3552 = vld [vmem:[%s3518 + $0x108] sm:$0xff]
      %v3553 = vld [vmem:[%s3518 + $0x110] sm:$0xff]
      %v3554 = vld [vmem:[%s3518 + $0x118] sm:$0xff]
      %s3555 = scalar_lea.vmem %s8, 3
      %v3556 = vld [vmem:[%s3555] sm:$0x1]
      %v3557 = vld [vmem:[#allocation8] sm:$0xff]
      %v3558 = vld [vmem:[#allocation8 + $0x1] sm:$0xff]
      %v3559 = vld [vmem:[#allocation8 + $0x2] sm:$0xff]
      %v3560 = vld [vmem:[#allocation8 + $0x4] sm:$0xff]
      %v3561 = vld [vmem:[#allocation8 + $0x5] sm:$0xff]
      %v3562 = vld [vmem:[#allocation8 + $0x6] sm:$0xff]
      %v3563 = vld [vmem:[#allocation8 + $0x8] sm:$0xff]
      %v3564 = vld [vmem:[#allocation8 + $0x9] sm:$0xff]
      %v3565 = vld [vmem:[#allocation8 + $0xa] sm:$0xff]
      %3567 = vrot.lane.b32.xlu0 %v3558, 32
      %v3568 = vpop.permute.xlu0 %3567
      %3571 = vrot.lane.b32.xlu0 %v3559, 64
      %v3572 = vpop.permute.xlu0 %3571
      %3575 = vrot.lane.b32.xlu0 %v3560, 96
      %v3576 = vpop.permute.xlu0 %3575
      %3579 = vrot.lane.b32.xlu0 %v3562, 32
      %v3580 = vpop.permute.xlu0 %3579
      %3583 = vrot.lane.b32.xlu0 %v3563, 64
      %v3584 = vpop.permute.xlu0 %3583
      %3587 = vrot.lane.b32.xlu0 %v3564, 96
      %v3588 = vpop.permute.xlu0 %3587
      %v3590 = vsel %vm534, %v3557, %v3568
      %v3591 = vsel %vm1208, %v3590, %v3572
      %v3592 = vsel %vm1684, %v3591, %v3576
      %v3593 = vsel %vm534, %v3561, %v3580
      %v3594 = vsel %vm1208, %v3593, %v3584
      %v3595 = vsel %vm1684, %v3594, %v3588
      %v3597 = vperm.slane %v3556, 0
      %v3600 = vsel %vm534, %v3565, 0
      %3602 = vmatpush.msra.mxu0 %v3534
      %3603 = vmatpush.msra.mxu0 %v3533
      %3604 = vmatpush.msra.mxu0 %v3532
      %3605 = vmatpush.msra.mxu0 %v3531
      %3606 = vmatpush.msra.mxu0 %v3530
      %3607 = vmatpush.msra.mxu0 %v3529
      %3608 = vmatpush.msra.mxu0 %v3528
      %3609 = vmatpush.msra.mxu0 %v3527
      %3610 = vmatpush.msra.mxu0 %v3526
      %3611 = vmatpush.msra.mxu0 %v3525
      %3612 = vmatpush.msra.mxu0 %v3524
      %3613 = vmatpush.msra.mxu0 %v3523
      %3614 = vmatpush.msra.mxu0 %v3522
      %3615 = vmatpush.msra.mxu0 %v3521
      %3616 = vmatpush.msra.mxu0 %v3520
      %3617 = vmatpush.msra.mxu0 %v3519
      %3618 = vmatmul.f32.gmra.mxu0 %v3592
      %v3619 = vpop.f32.mrf.mxu0
      %v3620 = vadd.f32 %v3597, %v3619
      %3621 = vdwg.mxu0
      %3622 = vmatpush.msra.mxu0 %v3550
      %3623 = vmatpush.msra.mxu0 %v3549
      %3624 = vmatpush.msra.mxu0 %v3548
      %3625 = vmatpush.msra.mxu0 %v3547
      %3626 = vmatpush.msra.mxu0 %v3546
      %3627 = vmatpush.msra.mxu0 %v3545
      %3628 = vmatpush.msra.mxu0 %v3544
      %3629 = vmatpush.msra.mxu0 %v3543
      %3630 = vmatpush.msra.mxu0 %v3542
      %3631 = vmatpush.msra.mxu0 %v3541
      %3632 = vmatpush.msra.mxu0 %v3540
      %3633 = vmatpush.msra.mxu0 %v3539
      %3634 = vmatpush.msra.mxu0 %v3538
      %3635 = vmatpush.msra.mxu0 %v3537
      %3636 = vmatpush.msra.mxu0 %v3536
      %3637 = vmatpush.msra.mxu0 %v3535
      %3638 = vmatmul.f32.gmra.mxu0 %v3595
      %v3639 = vpop.f32.mrf.mxu0
      %v3640 = vadd.f32 %v3620, %v3639
      %3641 = vdwg.mxu0
      %3642 = vmatpush.msra.mxu0 0.0
      %3643 = vmatpush.msra.mxu0 0.0
      %3644 = vmatpush.msra.mxu0 0.0
      %3645 = vmatpush.msra.mxu0 0.0
      %3646 = vmatpush.msra.mxu0 0.0
      %3647 = vmatpush.msra.mxu0 0.0
      %3648 = vmatpush.msra.mxu0 0.0
      %3649 = vmatpush.msra.mxu0 0.0
      %3650 = vmatpush.msra.mxu0 0.0
      %3651 = vmatpush.msra.mxu0 0.0
      %3652 = vmatpush.msra.mxu0 0.0
      %3653 = vmatpush.msra.mxu0 0.0
      %3654 = vmatpush.msra.mxu0 %v3554
      %3655 = vmatpush.msra.mxu0 %v3553
      %3656 = vmatpush.msra.mxu0 %v3552
      %3657 = vmatpush.msra.mxu0 %v3551
      %3658 = vmatmul.f32.gmra.mxu0 %v3600
      %v3659 = vpop.f32.mrf.mxu0
      %v3660 = vadd.f32 %v3640, %v3659
      %3661 = vdwg.mxu0
      %v3662 = vld [vmem:[#allocation9 + $0x5] sm:$0xff]
      %v3663 = vadd.f32 %v3660, %v3662
      %v3664 = vxor.u32 %v3663, 2147483648
      %v3665 = vmul.f32 %v3664, 1.442695
      %v3666 = vpow.pop %v3665
      %v3667 = vadd.f32 %v3666, 1.0
      %v3668 = vrcp.pop %v3667
      %v3669 = vmul.f32 %v3667, %v3668
      %v3670 = vsub.f32 1.0, %v3669
      %v3671 = vmul.f32 %v3668, %v3670
      %v3672 = vadd.f32 %v3668, %v3671
      %vm3673 = vweird.f32 %v3667
      %vm3674 = vweird.f32 %v3668
      %vm3675 = vmor %vm3673, %vm3674
      %v3676 = vsel %vm3675, %v3668, %v3672
      %v3677 = vand.u32 2147483647, %v3667
      %vm3678 = vcmp.eq.f32.partialorder %v3677, 8.507059e+37
      %v3679 = vand.u32 %v3667, 2147483648
      %v3680 = vor.u32 1.1754944e-38, %v3679
      %v3681 = vsel %vm3678, %v3680, %v3676
      %v3682 = vmul.f32 1.0, %v3681
      %v3683 = vmul.f32 %v3663, %v3682
      %v3684 = vmul.f32 %v3683, %v3014
      %3685 = vst.msk [vmem:[#allocation9 + $0x5] sm:$0xff] %vm534, %v3684
      %s3686 = scalar_lea.vmem %s5, 1152
      %v3687 = vld [vmem:[%s3686] sm:$0xff]
      %v3688 = vld [vmem:[%s3686 + $0x8] sm:$0xff]
      %v3689 = vld [vmem:[%s3686 + $0x10] sm:$0xff]
      %v3690 = vld [vmem:[%s3686 + $0x18] sm:$0xff]
      %v3691 = vld [vmem:[%s3686 + $0x20] sm:$0xff]
      %v3692 = vld [vmem:[%s3686 + $0x28] sm:$0xff]
      %v3693 = vld [vmem:[%s3686 + $0x30] sm:$0xff]
      %v3694 = vld [vmem:[%s3686 + $0x38] sm:$0xff]
      %v3695 = vld [vmem:[%s3686 + $0x40] sm:$0xff]
      %v3696 = vld [vmem:[%s3686 + $0x48] sm:$0xff]
      %v3697 = vld [vmem:[%s3686 + $0x50] sm:$0xff]
      %v3698 = vld [vmem:[%s3686 + $0x58] sm:$0xff]
      %v3699 = vld [vmem:[%s3686 + $0x60] sm:$0xff]
      %v3700 = vld [vmem:[%s3686 + $0x68] sm:$0xff]
      %v3701 = vld [vmem:[%s3686 + $0x70] sm:$0xff]
      %v3702 = vld [vmem:[%s3686 + $0x78] sm:$0xff]
      %v3703 = vld [vmem:[%s3686 + $0x80] sm:$0xff]
      %v3704 = vld [vmem:[%s3686 + $0x88] sm:$0xff]
      %v3705 = vld [vmem:[%s3686 + $0x90] sm:$0xff]
      %v3706 = vld [vmem:[%s3686 + $0x98] sm:$0xff]
      %v3707 = vld [vmem:[%s3686 + $0xa0] sm:$0xff]
      %v3708 = vld [vmem:[%s3686 + $0xa8] sm:$0xff]
      %v3709 = vld [vmem:[%s3686 + $0xb0] sm:$0xff]
      %v3710 = vld [vmem:[%s3686 + $0xb8] sm:$0xff]
      %v3711 = vld [vmem:[%s3686 + $0xc0] sm:$0xff]
      %v3712 = vld [vmem:[%s3686 + $0xc8] sm:$0xff]
      %v3713 = vld [vmem:[%s3686 + $0xd0] sm:$0xff]
      %v3714 = vld [vmem:[%s3686 + $0xd8] sm:$0xff]
      %v3715 = vld [vmem:[%s3686 + $0xe0] sm:$0xff]
      %v3716 = vld [vmem:[%s3686 + $0xe8] sm:$0xff]
      %v3717 = vld [vmem:[%s3686 + $0xf0] sm:$0xff]
      %v3718 = vld [vmem:[%s3686 + $0xf8] sm:$0xff]
      %v3719 = vld [vmem:[%s3686 + $0x100] sm:$0xff]
      %v3720 = vld [vmem:[%s3686 + $0x108] sm:$0xff]
      %v3721 = vld [vmem:[%s3686 + $0x110] sm:$0xff]
      %v3722 = vld [vmem:[%s3686 + $0x118] sm:$0xff]
      %s3723 = scalar_lea.vmem %s6, 4
      %v3724 = vld [vmem:[%s3723] sm:$0x1]
      %v3725 = vld [vmem:[#allocation9] sm:$0xff]
      %v3726 = vld [vmem:[#allocation9 + $0x1] sm:$0xff]
      %v3727 = vld [vmem:[#allocation9 + $0x2] sm:$0xff]
      %v3728 = vld [vmem:[#allocation9 + $0x4] sm:$0xff]
      %v3729 = vld [vmem:[#allocation9 + $0x5] sm:$0xff]
      %v3730 = vld [vmem:[#allocation9 + $0x6] sm:$0xff]
      %v3731 = vld [vmem:[#allocation9 + $0x8] sm:$0xff]
      %v3732 = vld [vmem:[#allocation9 + $0x9] sm:$0xff]
      %v3733 = vld [vmem:[#allocation9 + $0xa] sm:$0xff]
      %3735 = vrot.lane.b32.xlu0 %v3726, 32
      %v3736 = vpop.permute.xlu0 %3735
      %3739 = vrot.lane.b32.xlu0 %v3727, 64
      %v3740 = vpop.permute.xlu0 %3739
      %3743 = vrot.lane.b32.xlu0 %v3728, 96
      %v3744 = vpop.permute.xlu0 %3743
      %3747 = vrot.lane.b32.xlu0 %v3730, 32
      %v3748 = vpop.permute.xlu0 %3747
      %3751 = vrot.lane.b32.xlu0 %v3731, 64
      %v3752 = vpop.permute.xlu0 %3751
      %3755 = vrot.lane.b32.xlu0 %v3732, 96
      %v3756 = vpop.permute.xlu0 %3755
      %v3758 = vsel %vm534, %v3725, %v3736
      %v3759 = vsel %vm1208, %v3758, %v3740
      %v3760 = vsel %vm1684, %v3759, %v3744
      %v3761 = vsel %vm534, %v3729, %v3748
      %v3762 = vsel %vm1208, %v3761, %v3752
      %v3763 = vsel %vm1684, %v3762, %v3756
      %v3765 = vperm.slane %v3724, 0
      %v3768 = vsel %vm534, %v3733, 0
      %3770 = vmatpush.msra.mxu0 %v3702
      %3771 = vmatpush.msra.mxu0 %v3701
      %3772 = vmatpush.msra.mxu0 %v3700
      %3773 = vmatpush.msra.mxu0 %v3699
      %3774 = vmatpush.msra.mxu0 %v3698
      %3775 = vmatpush.msra.mxu0 %v3697
      %3776 = vmatpush.msra.mxu0 %v3696
      %3777 = vmatpush.msra.mxu0 %v3695
      %3778 = vmatpush.msra.mxu0 %v3694
      %3779 = vmatpush.msra.mxu0 %v3693
      %3780 = vmatpush.msra.mxu0 %v3692
      %3781 = vmatpush.msra.mxu0 %v3691
      %3782 = vmatpush.msra.mxu0 %v3690
      %3783 = vmatpush.msra.mxu0 %v3689
      %3784 = vmatpush.msra.mxu0 %v3688
      %3785 = vmatpush.msra.mxu0 %v3687
      %3786 = vmatmul.f32.gmra.mxu0 %v3760
      %v3787 = vpop.f32.mrf.mxu0
      %v3788 = vadd.f32 %v3765, %v3787
      %3789 = vdwg.mxu0
      %3790 = vmatpush.msra.mxu0 %v3718
      %3791 = vmatpush.msra.mxu0 %v3717
      %3792 = vmatpush.msra.mxu0 %v3716
      %3793 = vmatpush.msra.mxu0 %v3715
      %3794 = vmatpush.msra.mxu0 %v3714
      %3795 = vmatpush.msra.mxu0 %v3713
      %3796 = vmatpush.msra.mxu0 %v3712
      %3797 = vmatpush.msra.mxu0 %v3711
      %3798 = vmatpush.msra.mxu0 %v3710
      %3799 = vmatpush.msra.mxu0 %v3709
      %3800 = vmatpush.msra.mxu0 %v3708
      %3801 = vmatpush.msra.mxu0 %v3707
      %3802 = vmatpush.msra.mxu0 %v3706
      %3803 = vmatpush.msra.mxu0 %v3705
      %3804 = vmatpush.msra.mxu0 %v3704
      %3805 = vmatpush.msra.mxu0 %v3703
      %3806 = vmatmul.f32.gmra.mxu0 %v3763
      %v3807 = vpop.f32.mrf.mxu0
      %v3808 = vadd.f32 %v3788, %v3807
      %3809 = vdwg.mxu0
      %3810 = vmatpush.msra.mxu0 0.0
      %3811 = vmatpush.msra.mxu0 0.0
      %3812 = vmatpush.msra.mxu0 0.0
      %3813 = vmatpush.msra.mxu0 0.0
      %3814 = vmatpush.msra.mxu0 0.0
      %3815 = vmatpush.msra.mxu0 0.0
      %3816 = vmatpush.msra.mxu0 0.0
      %3817 = vmatpush.msra.mxu0 0.0
      %3818 = vmatpush.msra.mxu0 0.0
      %3819 = vmatpush.msra.mxu0 0.0
      %3820 = vmatpush.msra.mxu0 0.0
      %3821 = vmatpush.msra.mxu0 0.0
      %3822 = vmatpush.msra.mxu0 %v3722
      %3823 = vmatpush.msra.mxu0 %v3721
      %3824 = vmatpush.msra.mxu0 %v3720
      %3825 = vmatpush.msra.mxu0 %v3719
      %3826 = vmatmul.f32.gmra.mxu0 %v3768
      %v3827 = vpop.f32.mrf.mxu0
      %v3828 = vadd.f32 %v3808, %v3827
      %3829 = vdwg.mxu0
      %v3830 = vxor.u32 %v3828, 2147483648
      %v3831 = vmul.f32 %v3830, 1.442695
      %v3832 = vpow.pop %v3831
      %v3833 = vadd.f32 %v3832, 1.0
      %v3834 = vrcp.pop %v3833
      %v3835 = vmul.f32 %v3833, %v3834
      %v3836 = vsub.f32 1.0, %v3835
      %v3837 = vmul.f32 %v3834, %v3836
      %v3838 = vadd.f32 %v3834, %v3837
      %vm3839 = vweird.f32 %v3833
      %vm3840 = vweird.f32 %v3834
      %vm3841 = vmor %vm3839, %vm3840
      %v3842 = vsel %vm3841, %v3834, %v3838
      %v3843 = vand.u32 2147483647, %v3833
      %vm3844 = vcmp.eq.f32.partialorder %v3843, 8.507059e+37
      %v3845 = vand.u32 %v3833, 2147483648
      %v3846 = vor.u32 1.1754944e-38, %v3845
      %v3847 = vsel %vm3844, %v3846, %v3842
      %v3848 = vmul.f32 1.0, %v3847
      %v3849 = vmul.f32 %v3828, %v3848
      %v3850 = vmul.f32 %v3849, %v3014
      %3851 = vst.msk [vmem:[#allocation8 + $0x5] sm:$0xff] %vm534, %v3850
      %s3852 = scalar_lea.vmem %s7, 1152
      %v3853 = vld [vmem:[%s3852] sm:$0xff]
      %v3854 = vld [vmem:[%s3852 + $0x8] sm:$0xff]
      %v3855 = vld [vmem:[%s3852 + $0x10] sm:$0xff]
      %v3856 = vld [vmem:[%s3852 + $0x18] sm:$0xff]
      %v3857 = vld [vmem:[%s3852 + $0x20] sm:$0xff]
      %v3858 = vld [vmem:[%s3852 + $0x28] sm:$0xff]
      %v3859 = vld [vmem:[%s3852 + $0x30] sm:$0xff]
      %v3860 = vld [vmem:[%s3852 + $0x38] sm:$0xff]
      %v3861 = vld [vmem:[%s3852 + $0x40] sm:$0xff]
      %v3862 = vld [vmem:[%s3852 + $0x48] sm:$0xff]
      %v3863 = vld [vmem:[%s3852 + $0x50] sm:$0xff]
      %v3864 = vld [vmem:[%s3852 + $0x58] sm:$0xff]
      %v3865 = vld [vmem:[%s3852 + $0x60] sm:$0xff]
      %v3866 = vld [vmem:[%s3852 + $0x68] sm:$0xff]
      %v3867 = vld [vmem:[%s3852 + $0x70] sm:$0xff]
      %v3868 = vld [vmem:[%s3852 + $0x78] sm:$0xff]
      %v3869 = vld [vmem:[%s3852 + $0x80] sm:$0xff]
      %v3870 = vld [vmem:[%s3852 + $0x88] sm:$0xff]
      %v3871 = vld [vmem:[%s3852 + $0x90] sm:$0xff]
      %v3872 = vld [vmem:[%s3852 + $0x98] sm:$0xff]
      %v3873 = vld [vmem:[%s3852 + $0xa0] sm:$0xff]
      %v3874 = vld [vmem:[%s3852 + $0xa8] sm:$0xff]
      %v3875 = vld [vmem:[%s3852 + $0xb0] sm:$0xff]
      %v3876 = vld [vmem:[%s3852 + $0xb8] sm:$0xff]
      %v3877 = vld [vmem:[%s3852 + $0xc0] sm:$0xff]
      %v3878 = vld [vmem:[%s3852 + $0xc8] sm:$0xff]
      %v3879 = vld [vmem:[%s3852 + $0xd0] sm:$0xff]
      %v3880 = vld [vmem:[%s3852 + $0xd8] sm:$0xff]
      %v3881 = vld [vmem:[%s3852 + $0xe0] sm:$0xff]
      %v3882 = vld [vmem:[%s3852 + $0xe8] sm:$0xff]
      %v3883 = vld [vmem:[%s3852 + $0xf0] sm:$0xff]
      %v3884 = vld [vmem:[%s3852 + $0xf8] sm:$0xff]
      %v3885 = vld [vmem:[%s3852 + $0x100] sm:$0xff]
      %v3886 = vld [vmem:[%s3852 + $0x108] sm:$0xff]
      %v3887 = vld [vmem:[%s3852 + $0x110] sm:$0xff]
      %v3888 = vld [vmem:[%s3852 + $0x118] sm:$0xff]
      %s3889 = scalar_lea.vmem %s8, 4
      %v3890 = vld [vmem:[%s3889] sm:$0x1]
      %v3891 = vld [vmem:[#allocation8] sm:$0xff]
      %v3892 = vld [vmem:[#allocation8 + $0x1] sm:$0xff]
      %v3893 = vld [vmem:[#allocation8 + $0x2] sm:$0xff]
      %v3894 = vld [vmem:[#allocation8 + $0x4] sm:$0xff]
      %v3895 = vld [vmem:[#allocation8 + $0x5] sm:$0xff]
      %v3896 = vld [vmem:[#allocation8 + $0x6] sm:$0xff]
      %v3897 = vld [vmem:[#allocation8 + $0x8] sm:$0xff]
      %v3898 = vld [vmem:[#allocation8 + $0x9] sm:$0xff]
      %v3899 = vld [vmem:[#allocation8 + $0xa] sm:$0xff]
      %3901 = vrot.lane.b32.xlu0 %v3892, 32
      %v3902 = vpop.permute.xlu0 %3901
      %3905 = vrot.lane.b32.xlu0 %v3893, 64
      %v3906 = vpop.permute.xlu0 %3905
      %3909 = vrot.lane.b32.xlu0 %v3894, 96
      %v3910 = vpop.permute.xlu0 %3909
      %3913 = vrot.lane.b32.xlu0 %v3896, 32
      %v3914 = vpop.permute.xlu0 %3913
      %3917 = vrot.lane.b32.xlu0 %v3897, 64
      %v3918 = vpop.permute.xlu0 %3917
      %3921 = vrot.lane.b32.xlu0 %v3898, 96
      %v3922 = vpop.permute.xlu0 %3921
      %v3924 = vsel %vm534, %v3891, %v3902
      %v3925 = vsel %vm1208, %v3924, %v3906
      %v3926 = vsel %vm1684, %v3925, %v3910
      %v3927 = vsel %vm534, %v3895, %v3914
      %v3928 = vsel %vm1208, %v3927, %v3918
      %v3929 = vsel %vm1684, %v3928, %v3922
      %v3931 = vperm.slane %v3890, 0
      %v3934 = vsel %vm534, %v3899, 0
      %3936 = vmatpush.msra.mxu0 %v3868
      %3937 = vmatpush.msra.mxu0 %v3867
      %3938 = vmatpush.msra.mxu0 %v3866
      %3939 = vmatpush.msra.mxu0 %v3865
      %3940 = vmatpush.msra.mxu0 %v3864
      %3941 = vmatpush.msra.mxu0 %v3863
      %3942 = vmatpush.msra.mxu0 %v3862
      %3943 = vmatpush.msra.mxu0 %v3861
      %3944 = vmatpush.msra.mxu0 %v3860
      %3945 = vmatpush.msra.mxu0 %v3859
      %3946 = vmatpush.msra.mxu0 %v3858
      %3947 = vmatpush.msra.mxu0 %v3857
      %3948 = vmatpush.msra.mxu0 %v3856
      %3949 = vmatpush.msra.mxu0 %v3855
      %3950 = vmatpush.msra.mxu0 %v3854
      %3951 = vmatpush.msra.mxu0 %v3853
      %3952 = vmatmul.f32.gmra.mxu0 %v3926
      %v3953 = vpop.f32.mrf.mxu0
      %v3954 = vadd.f32 %v3931, %v3953
      %3955 = vdwg.mxu0
      %3956 = vmatpush.msra.mxu0 %v3884
      %3957 = vmatpush.msra.mxu0 %v3883
      %3958 = vmatpush.msra.mxu0 %v3882
      %3959 = vmatpush.msra.mxu0 %v3881
      %3960 = vmatpush.msra.mxu0 %v3880
      %3961 = vmatpush.msra.mxu0 %v3879
      %3962 = vmatpush.msra.mxu0 %v3878
      %3963 = vmatpush.msra.mxu0 %v3877
      %3964 = vmatpush.msra.mxu0 %v3876
      %3965 = vmatpush.msra.mxu0 %v3875
      %3966 = vmatpush.msra.mxu0 %v3874
      %3967 = vmatpush.msra.mxu0 %v3873
      %3968 = vmatpush.msra.mxu0 %v3872
      %3969 = vmatpush.msra.mxu0 %v3871
      %3970 = vmatpush.msra.mxu0 %v3870
      %3971 = vmatpush.msra.mxu0 %v3869
      %3972 = vmatmul.f32.gmra.mxu0 %v3929
      %v3973 = vpop.f32.mrf.mxu0
      %v3974 = vadd.f32 %v3954, %v3973
      %3975 = vdwg.mxu0
      %3976 = vmatpush.msra.mxu0 0.0
      %3977 = vmatpush.msra.mxu0 0.0
      %3978 = vmatpush.msra.mxu0 0.0
      %3979 = vmatpush.msra.mxu0 0.0
      %3980 = vmatpush.msra.mxu0 0.0
      %3981 = vmatpush.msra.mxu0 0.0
      %3982 = vmatpush.msra.mxu0 0.0
      %3983 = vmatpush.msra.mxu0 0.0
      %3984 = vmatpush.msra.mxu0 0.0
      %3985 = vmatpush.msra.mxu0 0.0
      %3986 = vmatpush.msra.mxu0 0.0
      %3987 = vmatpush.msra.mxu0 0.0
      %3988 = vmatpush.msra.mxu0 %v3888
      %3989 = vmatpush.msra.mxu0 %v3887
      %3990 = vmatpush.msra.mxu0 %v3886
      %3991 = vmatpush.msra.mxu0 %v3885
      %3992 = vmatmul.f32.gmra.mxu0 %v3934
      %v3993 = vpop.f32.mrf.mxu0
      %v3994 = vadd.f32 %v3974, %v3993
      %3995 = vdwg.mxu0
      %v3996 = vld [vmem:[#allocation9 + $0x5] sm:$0xff]
      %v3997 = vadd.f32 %v3994, %v3996
      %v3998 = vxor.u32 %v3997, 2147483648
      %v3999 = vmul.f32 %v3998, 1.442695
      %v4000 = vpow.pop %v3999
      %v4001 = vadd.f32 %v4000, 1.0
      %v4002 = vrcp.pop %v4001
      %v4003 = vmul.f32 %v4001, %v4002
      %v4004 = vsub.f32 1.0, %v4003
      %v4005 = vmul.f32 %v4002, %v4004
      %v4006 = vadd.f32 %v4002, %v4005
      %vm4007 = vweird.f32 %v4001
      %vm4008 = vweird.f32 %v4002
      %vm4009 = vmor %vm4007, %vm4008
      %v4010 = vsel %vm4009, %v4002, %v4006
      %v4011 = vand.u32 2147483647, %v4001
      %vm4012 = vcmp.eq.f32.partialorder %v4011, 8.507059e+37
      %v4013 = vand.u32 %v4001, 2147483648
      %v4014 = vor.u32 1.1754944e-38, %v4013
      %v4015 = vsel %vm4012, %v4014, %v4010
      %v4016 = vmul.f32 1.0, %v4015
      %v4017 = vmul.f32 %v3997, %v4016
      %v4018 = vmul.f32 %v4017, %v3014
      %4019 = vst.msk [vmem:[#allocation9 + $0x5] sm:$0xff] %vm534, %v4018
      %s4020 = scalar_lea.vmem %s5, 1440
      %v4021 = vld [vmem:[%s4020] sm:$0xff]
      %v4022 = vld [vmem:[%s4020 + $0x8] sm:$0xff]
      %v4023 = vld [vmem:[%s4020 + $0x10] sm:$0xff]
      %v4024 = vld [vmem:[%s4020 + $0x18] sm:$0xff]
      %v4025 = vld [vmem:[%s4020 + $0x20] sm:$0xff]
      %v4026 = vld [vmem:[%s4020 + $0x28] sm:$0xff]
      %v4027 = vld [vmem:[%s4020 + $0x30] sm:$0xff]
      %v4028 = vld [vmem:[%s4020 + $0x38] sm:$0xff]
      %v4029 = vld [vmem:[%s4020 + $0x40] sm:$0xff]
      %v4030 = vld [vmem:[%s4020 + $0x48] sm:$0xff]
      %v4031 = vld [vmem:[%s4020 + $0x50] sm:$0xff]
      %v4032 = vld [vmem:[%s4020 + $0x58] sm:$0xff]
      %v4033 = vld [vmem:[%s4020 + $0x60] sm:$0xff]
      %v4034 = vld [vmem:[%s4020 + $0x68] sm:$0xff]
      %v4035 = vld [vmem:[%s4020 + $0x70] sm:$0xff]
      %v4036 = vld [vmem:[%s4020 + $0x78] sm:$0xff]
      %v4037 = vld [vmem:[%s4020 + $0x80] sm:$0xff]
      %v4038 = vld [vmem:[%s4020 + $0x88] sm:$0xff]
      %v4039 = vld [vmem:[%s4020 + $0x90] sm:$0xff]
      %v4040 = vld [vmem:[%s4020 + $0x98] sm:$0xff]
      %v4041 = vld [vmem:[%s4020 + $0xa0] sm:$0xff]
      %v4042 = vld [vmem:[%s4020 + $0xa8] sm:$0xff]
      %v4043 = vld [vmem:[%s4020 + $0xb0] sm:$0xff]
      %v4044 = vld [vmem:[%s4020 + $0xb8] sm:$0xff]
      %v4045 = vld [vmem:[%s4020 + $0xc0] sm:$0xff]
      %v4046 = vld [vmem:[%s4020 + $0xc8] sm:$0xff]
      %v4047 = vld [vmem:[%s4020 + $0xd0] sm:$0xff]
      %v4048 = vld [vmem:[%s4020 + $0xd8] sm:$0xff]
      %v4049 = vld [vmem:[%s4020 + $0xe0] sm:$0xff]
      %v4050 = vld [vmem:[%s4020 + $0xe8] sm:$0xff]
      %v4051 = vld [vmem:[%s4020 + $0xf0] sm:$0xff]
      %v4052 = vld [vmem:[%s4020 + $0xf8] sm:$0xff]
      %v4053 = vld [vmem:[%s4020 + $0x100] sm:$0xff]
      %v4054 = vld [vmem:[%s4020 + $0x108] sm:$0xff]
      %v4055 = vld [vmem:[%s4020 + $0x110] sm:$0xff]
      %v4056 = vld [vmem:[%s4020 + $0x118] sm:$0xff]
      %s4057 = scalar_lea.vmem %s6, 5
      %v4058 = vld [vmem:[%s4057] sm:$0x1]
      %v4059 = vld [vmem:[#allocation9] sm:$0xff]
      %v4060 = vld [vmem:[#allocation9 + $0x1] sm:$0xff]
      %v4061 = vld [vmem:[#allocation9 + $0x2] sm:$0xff]
      %v4062 = vld [vmem:[#allocation9 + $0x4] sm:$0xff]
      %v4063 = vld [vmem:[#allocation9 + $0x5] sm:$0xff]
      %v4064 = vld [vmem:[#allocation9 + $0x6] sm:$0xff]
      %v4065 = vld [vmem:[#allocation9 + $0x8] sm:$0xff]
      %v4066 = vld [vmem:[#allocation9 + $0x9] sm:$0xff]
      %v4067 = vld [vmem:[#allocation9 + $0xa] sm:$0xff]
      %4069 = vrot.lane.b32.xlu0 %v4060, 32
      %v4070 = vpop.permute.xlu0 %4069
      %4073 = vrot.lane.b32.xlu0 %v4061, 64
      %v4074 = vpop.permute.xlu0 %4073
      %4077 = vrot.lane.b32.xlu0 %v4062, 96
      %v4078 = vpop.permute.xlu0 %4077
      %4081 = vrot.lane.b32.xlu0 %v4064, 32
      %v4082 = vpop.permute.xlu0 %4081
      %4085 = vrot.lane.b32.xlu0 %v4065, 64
      %v4086 = vpop.permute.xlu0 %4085
      %4089 = vrot.lane.b32.xlu0 %v4066, 96
      %v4090 = vpop.permute.xlu0 %4089
      %v4092 = vsel %vm534, %v4059, %v4070
      %v4093 = vsel %vm1208, %v4092, %v4074
      %v4094 = vsel %vm1684, %v4093, %v4078
      %v4095 = vsel %vm534, %v4063, %v4082
      %v4096 = vsel %vm1208, %v4095, %v4086
      %v4097 = vsel %vm1684, %v4096, %v4090
      %v4099 = vperm.slane %v4058, 0
      %v4102 = vsel %vm534, %v4067, 0
      %4104 = vmatpush.msra.mxu0 %v4036
      %4105 = vmatpush.msra.mxu0 %v4035
      %4106 = vmatpush.msra.mxu0 %v4034
      %4107 = vmatpush.msra.mxu0 %v4033
      %4108 = vmatpush.msra.mxu0 %v4032
      %4109 = vmatpush.msra.mxu0 %v4031
      %4110 = vmatpush.msra.mxu0 %v4030
      %4111 = vmatpush.msra.mxu0 %v4029
      %4112 = vmatpush.msra.mxu0 %v4028
      %4113 = vmatpush.msra.mxu0 %v4027
      %4114 = vmatpush.msra.mxu0 %v4026
      %4115 = vmatpush.msra.mxu0 %v4025
      %4116 = vmatpush.msra.mxu0 %v4024
      %4117 = vmatpush.msra.mxu0 %v4023
      %4118 = vmatpush.msra.mxu0 %v4022
      %4119 = vmatpush.msra.mxu0 %v4021
      %4120 = vmatmul.f32.gmra.mxu0 %v4094
      %v4121 = vpop.f32.mrf.mxu0
      %v4122 = vadd.f32 %v4099, %v4121
      %4123 = vdwg.mxu0
      %4124 = vmatpush.msra.mxu0 %v4052
      %4125 = vmatpush.msra.mxu0 %v4051
      %4126 = vmatpush.msra.mxu0 %v4050
      %4127 = vmatpush.msra.mxu0 %v4049
      %4128 = vmatpush.msra.mxu0 %v4048
      %4129 = vmatpush.msra.mxu0 %v4047
      %4130 = vmatpush.msra.mxu0 %v4046
      %4131 = vmatpush.msra.mxu0 %v4045
      %4132 = vmatpush.msra.mxu0 %v4044
      %4133 = vmatpush.msra.mxu0 %v4043
      %4134 = vmatpush.msra.mxu0 %v4042
      %4135 = vmatpush.msra.mxu0 %v4041
      %4136 = vmatpush.msra.mxu0 %v4040
      %4137 = vmatpush.msra.mxu0 %v4039
      %4138 = vmatpush.msra.mxu0 %v4038
      %4139 = vmatpush.msra.mxu0 %v4037
      %4140 = vmatmul.f32.gmra.mxu0 %v4097
      %v4141 = vpop.f32.mrf.mxu0
      %v4142 = vadd.f32 %v4122, %v4141
      %4143 = vdwg.mxu0
      %4144 = vmatpush.msra.mxu0 0.0
      %4145 = vmatpush.msra.mxu0 0.0
      %4146 = vmatpush.msra.mxu0 0.0
      %4147 = vmatpush.msra.mxu0 0.0
      %4148 = vmatpush.msra.mxu0 0.0
      %4149 = vmatpush.msra.mxu0 0.0
      %4150 = vmatpush.msra.mxu0 0.0
      %4151 = vmatpush.msra.mxu0 0.0
      %4152 = vmatpush.msra.mxu0 0.0
      %4153 = vmatpush.msra.mxu0 0.0
      %4154 = vmatpush.msra.mxu0 0.0
      %4155 = vmatpush.msra.mxu0 0.0
      %4156 = vmatpush.msra.mxu0 %v4056
      %4157 = vmatpush.msra.mxu0 %v4055
      %4158 = vmatpush.msra.mxu0 %v4054
      %4159 = vmatpush.msra.mxu0 %v4053
      %4160 = vmatmul.f32.gmra.mxu0 %v4102
      %v4161 = vpop.f32.mrf.mxu0
      %v4162 = vadd.f32 %v4142, %v4161
      %4163 = vdwg.mxu0
      %v4164 = vxor.u32 %v4162, 2147483648
      %v4165 = vmul.f32 %v4164, 1.442695
      %v4166 = vpow.pop %v4165
      %v4167 = vadd.f32 %v4166, 1.0
      %v4168 = vrcp.pop %v4167
      %v4169 = vmul.f32 %v4167, %v4168
      %v4170 = vsub.f32 1.0, %v4169
      %v4171 = vmul.f32 %v4168, %v4170
      %v4172 = vadd.f32 %v4168, %v4171
      %vm4173 = vweird.f32 %v4167
      %vm4174 = vweird.f32 %v4168
      %vm4175 = vmor %vm4173, %vm4174
      %v4176 = vsel %vm4175, %v4168, %v4172
      %v4177 = vand.u32 2147483647, %v4167
      %vm4178 = vcmp.eq.f32.partialorder %v4177, 8.507059e+37
      %v4179 = vand.u32 %v4167, 2147483648
      %v4180 = vor.u32 1.1754944e-38, %v4179
      %v4181 = vsel %vm4178, %v4180, %v4176
      %v4182 = vmul.f32 1.0, %v4181
      %v4183 = vmul.f32 %v4162, %v4182
      %v4184 = vmul.f32 %v4183, %v3014
      %4185 = vst.msk [vmem:[#allocation8 + $0x5] sm:$0xff] %vm534, %v4184
      %s4186 = scalar_lea.vmem %s7, 1440
      %v4187 = vld [vmem:[%s4186] sm:$0xff]
      %v4188 = vld [vmem:[%s4186 + $0x8] sm:$0xff]
      %v4189 = vld [vmem:[%s4186 + $0x10] sm:$0xff]
      %v4190 = vld [vmem:[%s4186 + $0x18] sm:$0xff]
      %v4191 = vld [vmem:[%s4186 + $0x20] sm:$0xff]
      %v4192 = vld [vmem:[%s4186 + $0x28] sm:$0xff]
      %v4193 = vld [vmem:[%s4186 + $0x30] sm:$0xff]
      %v4194 = vld [vmem:[%s4186 + $0x38] sm:$0xff]
      %v4195 = vld [vmem:[%s4186 + $0x40] sm:$0xff]
      %v4196 = vld [vmem:[%s4186 + $0x48] sm:$0xff]
      %v4197 = vld [vmem:[%s4186 + $0x50] sm:$0xff]
      %v4198 = vld [vmem:[%s4186 + $0x58] sm:$0xff]
      %v4199 = vld [vmem:[%s4186 + $0x60] sm:$0xff]
      %v4200 = vld [vmem:[%s4186 + $0x68] sm:$0xff]
      %v4201 = vld [vmem:[%s4186 + $0x70] sm:$0xff]
      %v4202 = vld [vmem:[%s4186 + $0x78] sm:$0xff]
      %v4203 = vld [vmem:[%s4186 + $0x80] sm:$0xff]
      %v4204 = vld [vmem:[%s4186 + $0x88] sm:$0xff]
      %v4205 = vld [vmem:[%s4186 + $0x90] sm:$0xff]
      %v4206 = vld [vmem:[%s4186 + $0x98] sm:$0xff]
      %v4207 = vld [vmem:[%s4186 + $0xa0] sm:$0xff]
      %v4208 = vld [vmem:[%s4186 + $0xa8] sm:$0xff]
      %v4209 = vld [vmem:[%s4186 + $0xb0] sm:$0xff]
      %v4210 = vld [vmem:[%s4186 + $0xb8] sm:$0xff]
      %v4211 = vld [vmem:[%s4186 + $0xc0] sm:$0xff]
      %v4212 = vld [vmem:[%s4186 + $0xc8] sm:$0xff]
      %v4213 = vld [vmem:[%s4186 + $0xd0] sm:$0xff]
      %v4214 = vld [vmem:[%s4186 + $0xd8] sm:$0xff]
      %v4215 = vld [vmem:[%s4186 + $0xe0] sm:$0xff]
      %v4216 = vld [vmem:[%s4186 + $0xe8] sm:$0xff]
      %v4217 = vld [vmem:[%s4186 + $0xf0] sm:$0xff]
      %v4218 = vld [vmem:[%s4186 + $0xf8] sm:$0xff]
      %v4219 = vld [vmem:[%s4186 + $0x100] sm:$0xff]
      %v4220 = vld [vmem:[%s4186 + $0x108] sm:$0xff]
      %v4221 = vld [vmem:[%s4186 + $0x110] sm:$0xff]
      %v4222 = vld [vmem:[%s4186 + $0x118] sm:$0xff]
      %s4223 = scalar_lea.vmem %s8, 5
      %v4224 = vld [vmem:[%s4223] sm:$0x1]
      %v4225 = vld [vmem:[#allocation8] sm:$0xff]
      %v4226 = vld [vmem:[#allocation8 + $0x1] sm:$0xff]
      %v4227 = vld [vmem:[#allocation8 + $0x2] sm:$0xff]
      %v4228 = vld [vmem:[#allocation8 + $0x4] sm:$0xff]
      %v4229 = vld [vmem:[#allocation8 + $0x5] sm:$0xff]
      %v4230 = vld [vmem:[#allocation8 + $0x6] sm:$0xff]
      %v4231 = vld [vmem:[#allocation8 + $0x8] sm:$0xff]
      %v4232 = vld [vmem:[#allocation8 + $0x9] sm:$0xff]
      %v4233 = vld [vmem:[#allocation8 + $0xa] sm:$0xff]
      %4235 = vrot.lane.b32.xlu0 %v4226, 32
      %v4236 = vpop.permute.xlu0 %4235
      %4239 = vrot.lane.b32.xlu0 %v4227, 64
      %v4240 = vpop.permute.xlu0 %4239
      %4243 = vrot.lane.b32.xlu0 %v4228, 96
      %v4244 = vpop.permute.xlu0 %4243
      %4247 = vrot.lane.b32.xlu0 %v4230, 32
      %v4248 = vpop.permute.xlu0 %4247
      %4251 = vrot.lane.b32.xlu0 %v4231, 64
      %v4252 = vpop.permute.xlu0 %4251
      %4255 = vrot.lane.b32.xlu0 %v4232, 96
      %v4256 = vpop.permute.xlu0 %4255
      %v4258 = vsel %vm534, %v4225, %v4236
      %v4259 = vsel %vm1208, %v4258, %v4240
      %v4260 = vsel %vm1684, %v4259, %v4244
      %v4261 = vsel %vm534, %v4229, %v4248
      %v4262 = vsel %vm1208, %v4261, %v4252
      %v4263 = vsel %vm1684, %v4262, %v4256
      %v4265 = vperm.slane %v4224, 0
      %v4268 = vsel %vm534, %v4233, 0
      %4270 = vmatpush.msra.mxu0 %v4202
      %4271 = vmatpush.msra.mxu0 %v4201
      %4272 = vmatpush.msra.mxu0 %v4200
      %4273 = vmatpush.msra.mxu0 %v4199
      %4274 = vmatpush.msra.mxu0 %v4198
      %4275 = vmatpush.msra.mxu0 %v4197
      %4276 = vmatpush.msra.mxu0 %v4196
      %4277 = vmatpush.msra.mxu0 %v4195
      %4278 = vmatpush.msra.mxu0 %v4194
      %4279 = vmatpush.msra.mxu0 %v4193
      %4280 = vmatpush.msra.mxu0 %v4192
      %4281 = vmatpush.msra.mxu0 %v4191
      %4282 = vmatpush.msra.mxu0 %v4190
      %4283 = vmatpush.msra.mxu0 %v4189
      %4284 = vmatpush.msra.mxu0 %v4188
      %4285 = vmatpush.msra.mxu0 %v4187
      %4286 = vmatmul.f32.gmra.mxu0 %v4260
      %v4287 = vpop.f32.mrf.mxu0
      %v4288 = vadd.f32 %v4265, %v4287
      %4289 = vdwg.mxu0
      %4290 = vmatpush.msra.mxu0 %v4218
      %4291 = vmatpush.msra.mxu0 %v4217
      %4292 = vmatpush.msra.mxu0 %v4216
      %4293 = vmatpush.msra.mxu0 %v4215
      %4294 = vmatpush.msra.mxu0 %v4214
      %4295 = vmatpush.msra.mxu0 %v4213
      %4296 = vmatpush.msra.mxu0 %v4212
      %4297 = vmatpush.msra.mxu0 %v4211
      %4298 = vmatpush.msra.mxu0 %v4210
      %4299 = vmatpush.msra.mxu0 %v4209
      %4300 = vmatpush.msra.mxu0 %v4208
      %4301 = vmatpush.msra.mxu0 %v4207
      %4302 = vmatpush.msra.mxu0 %v4206
      %4303 = vmatpush.msra.mxu0 %v4205
      %4304 = vmatpush.msra.mxu0 %v4204
      %4305 = vmatpush.msra.mxu0 %v4203
      %4306 = vmatmul.f32.gmra.mxu0 %v4263
      %v4307 = vpop.f32.mrf.mxu0
      %v4308 = vadd.f32 %v4288, %v4307
      %4309 = vdwg.mxu0
      %4310 = vmatpush.msra.mxu0 0.0
      %4311 = vmatpush.msra.mxu0 0.0
      %4312 = vmatpush.msra.mxu0 0.0
      %4313 = vmatpush.msra.mxu0 0.0
      %4314 = vmatpush.msra.mxu0 0.0
      %4315 = vmatpush.msra.mxu0 0.0
      %4316 = vmatpush.msra.mxu0 0.0
      %4317 = vmatpush.msra.mxu0 0.0
      %4318 = vmatpush.msra.mxu0 0.0
      %4319 = vmatpush.msra.mxu0 0.0
      %4320 = vmatpush.msra.mxu0 0.0
      %4321 = vmatpush.msra.mxu0 0.0
      %4322 = vmatpush.msra.mxu0 %v4222
      %4323 = vmatpush.msra.mxu0 %v4221
      %4324 = vmatpush.msra.mxu0 %v4220
      %4325 = vmatpush.msra.mxu0 %v4219
      %4326 = vmatmul.f32.gmra.mxu0 %v4268
      %v4327 = vpop.f32.mrf.mxu0
      %v4328 = vadd.f32 %v4308, %v4327
      %4329 = vdwg.mxu0
      %v4330 = vld [vmem:[#allocation9 + $0x5] sm:$0xff]
      %v4331 = vadd.f32 %v4328, %v4330
      %v4332 = vxor.u32 %v4331, 2147483648
      %v4333 = vmul.f32 %v4332, 1.442695
      %v4334 = vpow.pop %v4333
      %v4335 = vadd.f32 %v4334, 1.0
      %v4336 = vrcp.pop %v4335
      %v4337 = vmul.f32 %v4335, %v4336
      %v4338 = vsub.f32 1.0, %v4337
      %v4339 = vmul.f32 %v4336, %v4338
      %v4340 = vadd.f32 %v4336, %v4339
      %vm4341 = vweird.f32 %v4335
      %vm4342 = vweird.f32 %v4336
      %vm4343 = vmor %vm4341, %vm4342
      %v4344 = vsel %vm4343, %v4336, %v4340
      %v4345 = vand.u32 2147483647, %v4335
      %vm4346 = vcmp.eq.f32.partialorder %v4345, 8.507059e+37
      %v4347 = vand.u32 %v4335, 2147483648
      %v4348 = vor.u32 1.1754944e-38, %v4347
      %v4349 = vsel %vm4346, %v4348, %v4344
      %v4350 = vmul.f32 1.0, %v4349
      %v4351 = vmul.f32 %v4331, %v4350
      %v4352 = vmul.f32 %v4351, %v3014
      %4353 = vst.msk [vmem:[#allocation9 + $0x5] sm:$0xff] %vm534, %v4352
      %s4354 = scalar_lea.vmem %s5, 1728
      %v4355 = vld [vmem:[%s4354] sm:$0xff]
      %v4356 = vld [vmem:[%s4354 + $0x8] sm:$0xff]
      %v4357 = vld [vmem:[%s4354 + $0x10] sm:$0xff]
      %v4358 = vld [vmem:[%s4354 + $0x18] sm:$0xff]
      %v4359 = vld [vmem:[%s4354 + $0x20] sm:$0xff]
      %v4360 = vld [vmem:[%s4354 + $0x28] sm:$0xff]
      %v4361 = vld [vmem:[%s4354 + $0x30] sm:$0xff]
      %v4362 = vld [vmem:[%s4354 + $0x38] sm:$0xff]
      %v4363 = vld [vmem:[%s4354 + $0x40] sm:$0xff]
      %v4364 = vld [vmem:[%s4354 + $0x48] sm:$0xff]
      %v4365 = vld [vmem:[%s4354 + $0x50] sm:$0xff]
      %v4366 = vld [vmem:[%s4354 + $0x58] sm:$0xff]
      %v4367 = vld [vmem:[%s4354 + $0x60] sm:$0xff]
      %v4368 = vld [vmem:[%s4354 + $0x68] sm:$0xff]
      %v4369 = vld [vmem:[%s4354 + $0x70] sm:$0xff]
      %v4370 = vld [vmem:[%s4354 + $0x78] sm:$0xff]
      %v4371 = vld [vmem:[%s4354 + $0x80] sm:$0xff]
      %v4372 = vld [vmem:[%s4354 + $0x88] sm:$0xff]
      %v4373 = vld [vmem:[%s4354 + $0x90] sm:$0xff]
      %v4374 = vld [vmem:[%s4354 + $0x98] sm:$0xff]
      %v4375 = vld [vmem:[%s4354 + $0xa0] sm:$0xff]
      %v4376 = vld [vmem:[%s4354 + $0xa8] sm:$0xff]
      %v4377 = vld [vmem:[%s4354 + $0xb0] sm:$0xff]
      %v4378 = vld [vmem:[%s4354 + $0xb8] sm:$0xff]
      %v4379 = vld [vmem:[%s4354 + $0xc0] sm:$0xff]
      %v4380 = vld [vmem:[%s4354 + $0xc8] sm:$0xff]
      %v4381 = vld [vmem:[%s4354 + $0xd0] sm:$0xff]
      %v4382 = vld [vmem:[%s4354 + $0xd8] sm:$0xff]
      %v4383 = vld [vmem:[%s4354 + $0xe0] sm:$0xff]
      %v4384 = vld [vmem:[%s4354 + $0xe8] sm:$0xff]
      %v4385 = vld [vmem:[%s4354 + $0xf0] sm:$0xff]
      %v4386 = vld [vmem:[%s4354 + $0xf8] sm:$0xff]
      %v4387 = vld [vmem:[%s4354 + $0x100] sm:$0xff]
      %v4388 = vld [vmem:[%s4354 + $0x108] sm:$0xff]
      %v4389 = vld [vmem:[%s4354 + $0x110] sm:$0xff]
      %v4390 = vld [vmem:[%s4354 + $0x118] sm:$0xff]
      %s4391 = scalar_lea.vmem %s6, 6
      %v4392 = vld [vmem:[%s4391] sm:$0x1]
      %v4393 = vld [vmem:[#allocation9] sm:$0xff]
      %v4394 = vld [vmem:[#allocation9 + $0x1] sm:$0xff]
      %v4395 = vld [vmem:[#allocation9 + $0x2] sm:$0xff]
      %v4396 = vld [vmem:[#allocation9 + $0x4] sm:$0xff]
      %v4397 = vld [vmem:[#allocation9 + $0x5] sm:$0xff]
      %v4398 = vld [vmem:[#allocation9 + $0x6] sm:$0xff]
      %v4399 = vld [vmem:[#allocation9 + $0x8] sm:$0xff]
      %v4400 = vld [vmem:[#allocation9 + $0x9] sm:$0xff]
      %v4401 = vld [vmem:[#allocation9 + $0xa] sm:$0xff]
      %4403 = vrot.lane.b32.xlu0 %v4394, 32
      %v4404 = vpop.permute.xlu0 %4403
      %4407 = vrot.lane.b32.xlu0 %v4395, 64
      %v4408 = vpop.permute.xlu0 %4407
      %4411 = vrot.lane.b32.xlu0 %v4396, 96
      %v4412 = vpop.permute.xlu0 %4411
      %4415 = vrot.lane.b32.xlu0 %v4398, 32
      %v4416 = vpop.permute.xlu0 %4415
      %4419 = vrot.lane.b32.xlu0 %v4399, 64
      %v4420 = vpop.permute.xlu0 %4419
      %4423 = vrot.lane.b32.xlu0 %v4400, 96
      %v4424 = vpop.permute.xlu0 %4423
      %v4426 = vsel %vm534, %v4393, %v4404
      %v4427 = vsel %vm1208, %v4426, %v4408
      %v4428 = vsel %vm1684, %v4427, %v4412
      %v4429 = vsel %vm534, %v4397, %v4416
      %v4430 = vsel %vm1208, %v4429, %v4420
      %v4431 = vsel %vm1684, %v4430, %v4424
      %v4433 = vperm.slane %v4392, 0
      %v4436 = vsel %vm534, %v4401, 0
      %4438 = vmatpush.msra.mxu0 %v4370
      %4439 = vmatpush.msra.mxu0 %v4369
      %4440 = vmatpush.msra.mxu0 %v4368
      %4441 = vmatpush.msra.mxu0 %v4367
      %4442 = vmatpush.msra.mxu0 %v4366
      %4443 = vmatpush.msra.mxu0 %v4365
      %4444 = vmatpush.msra.mxu0 %v4364
      %4445 = vmatpush.msra.mxu0 %v4363
      %4446 = vmatpush.msra.mxu0 %v4362
      %4447 = vmatpush.msra.mxu0 %v4361
      %4448 = vmatpush.msra.mxu0 %v4360
      %4449 = vmatpush.msra.mxu0 %v4359
      %4450 = vmatpush.msra.mxu0 %v4358
      %4451 = vmatpush.msra.mxu0 %v4357
      %4452 = vmatpush.msra.mxu0 %v4356
      %4453 = vmatpush.msra.mxu0 %v4355
      %4454 = vmatmul.f32.gmra.mxu0 %v4428
      %v4455 = vpop.f32.mrf.mxu0
      %v4456 = vadd.f32 %v4433, %v4455
      %4457 = vdwg.mxu0
      %4458 = vmatpush.msra.mxu0 %v4386
      %4459 = vmatpush.msra.mxu0 %v4385
      %4460 = vmatpush.msra.mxu0 %v4384
      %4461 = vmatpush.msra.mxu0 %v4383
      %4462 = vmatpush.msra.mxu0 %v4382
      %4463 = vmatpush.msra.mxu0 %v4381
      %4464 = vmatpush.msra.mxu0 %v4380
      %4465 = vmatpush.msra.mxu0 %v4379
      %4466 = vmatpush.msra.mxu0 %v4378
      %4467 = vmatpush.msra.mxu0 %v4377
      %4468 = vmatpush.msra.mxu0 %v4376
      %4469 = vmatpush.msra.mxu0 %v4375
      %4470 = vmatpush.msra.mxu0 %v4374
      %4471 = vmatpush.msra.mxu0 %v4373
      %4472 = vmatpush.msra.mxu0 %v4372
      %4473 = vmatpush.msra.mxu0 %v4371
      %4474 = vmatmul.f32.gmra.mxu0 %v4431
      %v4475 = vpop.f32.mrf.mxu0
      %v4476 = vadd.f32 %v4456, %v4475
      %4477 = vdwg.mxu0
      %4478 = vmatpush.msra.mxu0 0.0
      %4479 = vmatpush.msra.mxu0 0.0
      %4480 = vmatpush.msra.mxu0 0.0
      %4481 = vmatpush.msra.mxu0 0.0
      %4482 = vmatpush.msra.mxu0 0.0
      %4483 = vmatpush.msra.mxu0 0.0
      %4484 = vmatpush.msra.mxu0 0.0
      %4485 = vmatpush.msra.mxu0 0.0
      %4486 = vmatpush.msra.mxu0 0.0
      %4487 = vmatpush.msra.mxu0 0.0
      %4488 = vmatpush.msra.mxu0 0.0
      %4489 = vmatpush.msra.mxu0 0.0
      %4490 = vmatpush.msra.mxu0 %v4390
      %4491 = vmatpush.msra.mxu0 %v4389
      %4492 = vmatpush.msra.mxu0 %v4388
      %4493 = vmatpush.msra.mxu0 %v4387
      %4494 = vmatmul.f32.gmra.mxu0 %v4436
      %v4495 = vpop.f32.mrf.mxu0
      %v4496 = vadd.f32 %v4476, %v4495
      %4497 = vdwg.mxu0
      %v4498 = vxor.u32 %v4496, 2147483648
      %v4499 = vmul.f32 %v4498, 1.442695
      %v4500 = vpow.pop %v4499
      %v4501 = vadd.f32 %v4500, 1.0
      %v4502 = vrcp.pop %v4501
      %v4503 = vmul.f32 %v4501, %v4502
      %v4504 = vsub.f32 1.0, %v4503
      %v4505 = vmul.f32 %v4502, %v4504
      %v4506 = vadd.f32 %v4502, %v4505
      %vm4507 = vweird.f32 %v4501
      %vm4508 = vweird.f32 %v4502
      %vm4509 = vmor %vm4507, %vm4508
      %v4510 = vsel %vm4509, %v4502, %v4506
      %v4511 = vand.u32 2147483647, %v4501
      %vm4512 = vcmp.eq.f32.partialorder %v4511, 8.507059e+37
      %v4513 = vand.u32 %v4501, 2147483648
      %v4514 = vor.u32 1.1754944e-38, %v4513
      %v4515 = vsel %vm4512, %v4514, %v4510
      %v4516 = vmul.f32 1.0, %v4515
      %v4517 = vmul.f32 %v4496, %v4516
      %v4518 = vmul.f32 %v4517, %v3014
      %4519 = vst.msk [vmem:[#allocation8 + $0x5] sm:$0xff] %vm534, %v4518
      %s4520 = scalar_lea.vmem %s7, 1728
      %v4521 = vld [vmem:[%s4520] sm:$0xff]
      %v4522 = vld [vmem:[%s4520 + $0x8] sm:$0xff]
      %v4523 = vld [vmem:[%s4520 + $0x10] sm:$0xff]
      %v4524 = vld [vmem:[%s4520 + $0x18] sm:$0xff]
      %v4525 = vld [vmem:[%s4520 + $0x20] sm:$0xff]
      %v4526 = vld [vmem:[%s4520 + $0x28] sm:$0xff]
      %v4527 = vld [vmem:[%s4520 + $0x30] sm:$0xff]
      %v4528 = vld [vmem:[%s4520 + $0x38] sm:$0xff]
      %v4529 = vld [vmem:[%s4520 + $0x40] sm:$0xff]
      %v4530 = vld [vmem:[%s4520 + $0x48] sm:$0xff]
      %v4531 = vld [vmem:[%s4520 + $0x50] sm:$0xff]
      %v4532 = vld [vmem:[%s4520 + $0x58] sm:$0xff]
      %v4533 = vld [vmem:[%s4520 + $0x60] sm:$0xff]
      %v4534 = vld [vmem:[%s4520 + $0x68] sm:$0xff]
      %v4535 = vld [vmem:[%s4520 + $0x70] sm:$0xff]
      %v4536 = vld [vmem:[%s4520 + $0x78] sm:$0xff]
      %v4537 = vld [vmem:[%s4520 + $0x80] sm:$0xff]
      %v4538 = vld [vmem:[%s4520 + $0x88] sm:$0xff]
      %v4539 = vld [vmem:[%s4520 + $0x90] sm:$0xff]
      %v4540 = vld [vmem:[%s4520 + $0x98] sm:$0xff]
      %v4541 = vld [vmem:[%s4520 + $0xa0] sm:$0xff]
      %v4542 = vld [vmem:[%s4520 + $0xa8] sm:$0xff]
      %v4543 = vld [vmem:[%s4520 + $0xb0] sm:$0xff]
      %v4544 = vld [vmem:[%s4520 + $0xb8] sm:$0xff]
      %v4545 = vld [vmem:[%s4520 + $0xc0] sm:$0xff]
      %v4546 = vld [vmem:[%s4520 + $0xc8] sm:$0xff]
      %v4547 = vld [vmem:[%s4520 + $0xd0] sm:$0xff]
      %v4548 = vld [vmem:[%s4520 + $0xd8] sm:$0xff]
      %v4549 = vld [vmem:[%s4520 + $0xe0] sm:$0xff]
      %v4550 = vld [vmem:[%s4520 + $0xe8] sm:$0xff]
      %v4551 = vld [vmem:[%s4520 + $0xf0] sm:$0xff]
      %v4552 = vld [vmem:[%s4520 + $0xf8] sm:$0xff]
      %v4553 = vld [vmem:[%s4520 + $0x100] sm:$0xff]
      %v4554 = vld [vmem:[%s4520 + $0x108] sm:$0xff]
      %v4555 = vld [vmem:[%s4520 + $0x110] sm:$0xff]
      %v4556 = vld [vmem:[%s4520 + $0x118] sm:$0xff]
      %s4557 = scalar_lea.vmem %s8, 6
      %v4558 = vld [vmem:[%s4557] sm:$0x1]
      %v4559 = vld [vmem:[#allocation8] sm:$0xff]
      %v4560 = vld [vmem:[#allocation8 + $0x1] sm:$0xff]
      %v4561 = vld [vmem:[#allocation8 + $0x2] sm:$0xff]
      %v4562 = vld [vmem:[#allocation8 + $0x4] sm:$0xff]
      %v4563 = vld [vmem:[#allocation8 + $0x5] sm:$0xff]
      %v4564 = vld [vmem:[#allocation8 + $0x6] sm:$0xff]
      %v4565 = vld [vmem:[#allocation8 + $0x8] sm:$0xff]
      %v4566 = vld [vmem:[#allocation8 + $0x9] sm:$0xff]
      %v4567 = vld [vmem:[#allocation8 + $0xa] sm:$0xff]
      %4569 = vrot.lane.b32.xlu0 %v4560, 32
      %v4570 = vpop.permute.xlu0 %4569
      %4573 = vrot.lane.b32.xlu0 %v4561, 64
      %v4574 = vpop.permute.xlu0 %4573
      %4577 = vrot.lane.b32.xlu0 %v4562, 96
      %v4578 = vpop.permute.xlu0 %4577
      %4581 = vrot.lane.b32.xlu0 %v4564, 32
      %v4582 = vpop.permute.xlu0 %4581
      %4585 = vrot.lane.b32.xlu0 %v4565, 64
      %v4586 = vpop.permute.xlu0 %4585
      %4589 = vrot.lane.b32.xlu0 %v4566, 96
      %v4590 = vpop.permute.xlu0 %4589
      %v4592 = vsel %vm534, %v4559, %v4570
      %v4593 = vsel %vm1208, %v4592, %v4574
      %v4594 = vsel %vm1684, %v4593, %v4578
      %v4595 = vsel %vm534, %v4563, %v4582
      %v4596 = vsel %vm1208, %v4595, %v4586
      %v4597 = vsel %vm1684, %v4596, %v4590
      %v4599 = vperm.slane %v4558, 0
      %v4602 = vsel %vm534, %v4567, 0
      %4604 = vmatpush.msra.mxu0 %v4536
      %4605 = vmatpush.msra.mxu0 %v4535
      %4606 = vmatpush.msra.mxu0 %v4534
      %4607 = vmatpush.msra.mxu0 %v4533
      %4608 = vmatpush.msra.mxu0 %v4532
      %4609 = vmatpush.msra.mxu0 %v4531
      %4610 = vmatpush.msra.mxu0 %v4530
      %4611 = vmatpush.msra.mxu0 %v4529
      %4612 = vmatpush.msra.mxu0 %v4528
      %4613 = vmatpush.msra.mxu0 %v4527
      %4614 = vmatpush.msra.mxu0 %v4526
      %4615 = vmatpush.msra.mxu0 %v4525
      %4616 = vmatpush.msra.mxu0 %v4524
      %4617 = vmatpush.msra.mxu0 %v4523
      %4618 = vmatpush.msra.mxu0 %v4522
      %4619 = vmatpush.msra.mxu0 %v4521
      %4620 = vmatmul.f32.gmra.mxu0 %v4594
      %v4621 = vpop.f32.mrf.mxu0
      %v4622 = vadd.f32 %v4599, %v4621
      %4623 = vdwg.mxu0
      %4624 = vmatpush.msra.mxu0 %v4552
      %4625 = vmatpush.msra.mxu0 %v4551
      %4626 = vmatpush.msra.mxu0 %v4550
      %4627 = vmatpush.msra.mxu0 %v4549
      %4628 = vmatpush.msra.mxu0 %v4548
      %4629 = vmatpush.msra.mxu0 %v4547
      %4630 = vmatpush.msra.mxu0 %v4546
      %4631 = vmatpush.msra.mxu0 %v4545
      %4632 = vmatpush.msra.mxu0 %v4544
      %4633 = vmatpush.msra.mxu0 %v4543
      %4634 = vmatpush.msra.mxu0 %v4542
      %4635 = vmatpush.msra.mxu0 %v4541
      %4636 = vmatpush.msra.mxu0 %v4540
      %4637 = vmatpush.msra.mxu0 %v4539
      %4638 = vmatpush.msra.mxu0 %v4538
      %4639 = vmatpush.msra.mxu0 %v4537
      %4640 = vmatmul.f32.gmra.mxu0 %v4597
      %v4641 = vpop.f32.mrf.mxu0
      %v4642 = vadd.f32 %v4622, %v4641
      %4643 = vdwg.mxu0
      %4644 = vmatpush.msra.mxu0 0.0
      %4645 = vmatpush.msra.mxu0 0.0
      %4646 = vmatpush.msra.mxu0 0.0
      %4647 = vmatpush.msra.mxu0 0.0
      %4648 = vmatpush.msra.mxu0 0.0
      %4649 = vmatpush.msra.mxu0 0.0
      %4650 = vmatpush.msra.mxu0 0.0
      %4651 = vmatpush.msra.mxu0 0.0
      %4652 = vmatpush.msra.mxu0 0.0
      %4653 = vmatpush.msra.mxu0 0.0
      %4654 = vmatpush.msra.mxu0 0.0
      %4655 = vmatpush.msra.mxu0 0.0
      %4656 = vmatpush.msra.mxu0 %v4556
      %4657 = vmatpush.msra.mxu0 %v4555
      %4658 = vmatpush.msra.mxu0 %v4554
      %4659 = vmatpush.msra.mxu0 %v4553
      %4660 = vmatmul.f32.gmra.mxu0 %v4602
      %v4661 = vpop.f32.mrf.mxu0
      %v4662 = vadd.f32 %v4642, %v4661
      %4663 = vdwg.mxu0
      %v4664 = vld [vmem:[#allocation9 + $0x5] sm:$0xff]
      %v4665 = vadd.f32 %v4662, %v4664
      %v4666 = vxor.u32 %v4665, 2147483648
      %v4667 = vmul.f32 %v4666, 1.442695
      %v4668 = vpow.pop %v4667
      %v4669 = vadd.f32 %v4668, 1.0
      %v4670 = vrcp.pop %v4669
      %v4671 = vmul.f32 %v4669, %v4670
      %v4672 = vsub.f32 1.0, %v4671
      %v4673 = vmul.f32 %v4670, %v4672
      %v4674 = vadd.f32 %v4670, %v4673
      %vm4675 = vweird.f32 %v4669
      %vm4676 = vweird.f32 %v4670
      %vm4677 = vmor %vm4675, %vm4676
      %v4678 = vsel %vm4677, %v4670, %v4674
      %v4679 = vand.u32 2147483647, %v4669
      %vm4680 = vcmp.eq.f32.partialorder %v4679, 8.507059e+37
      %v4681 = vand.u32 %v4669, 2147483648
      %v4682 = vor.u32 1.1754944e-38, %v4681
      %v4683 = vsel %vm4680, %v4682, %v4678
      %v4684 = vmul.f32 1.0, %v4683
      %v4685 = vmul.f32 %v4665, %v4684
      %v4686 = vmul.f32 %v4685, %v3014
      %4687 = vst.msk [vmem:[#allocation9 + $0x5] sm:$0xff] %vm534, %v4686
      %s4688 = scalar_lea.vmem %s5, 2016
      %v4689 = vld [vmem:[%s4688] sm:$0xff]
      %v4690 = vld [vmem:[%s4688 + $0x8] sm:$0xff]
      %v4691 = vld [vmem:[%s4688 + $0x10] sm:$0xff]
      %v4692 = vld [vmem:[%s4688 + $0x18] sm:$0xff]
      %v4693 = vld [vmem:[%s4688 + $0x20] sm:$0xff]
      %v4694 = vld [vmem:[%s4688 + $0x28] sm:$0xff]
      %v4695 = vld [vmem:[%s4688 + $0x30] sm:$0xff]
      %v4696 = vld [vmem:[%s4688 + $0x38] sm:$0xff]
      %v4697 = vld [vmem:[%s4688 + $0x40] sm:$0xff]
      %v4698 = vld [vmem:[%s4688 + $0x48] sm:$0xff]
      %v4699 = vld [vmem:[%s4688 + $0x50] sm:$0xff]
      %v4700 = vld [vmem:[%s4688 + $0x58] sm:$0xff]
      %v4701 = vld [vmem:[%s4688 + $0x60] sm:$0xff]
      %v4702 = vld [vmem:[%s4688 + $0x68] sm:$0xff]
      %v4703 = vld [vmem:[%s4688 + $0x70] sm:$0xff]
      %v4704 = vld [vmem:[%s4688 + $0x78] sm:$0xff]
      %v4705 = vld [vmem:[%s4688 + $0x80] sm:$0xff]
      %v4706 = vld [vmem:[%s4688 + $0x88] sm:$0xff]
      %v4707 = vld [vmem:[%s4688 + $0x90] sm:$0xff]
      %v4708 = vld [vmem:[%s4688 + $0x98] sm:$0xff]
      %v4709 = vld [vmem:[%s4688 + $0xa0] sm:$0xff]
      %v4710 = vld [vmem:[%s4688 + $0xa8] sm:$0xff]
      %v4711 = vld [vmem:[%s4688 + $0xb0] sm:$0xff]
      %v4712 = vld [vmem:[%s4688 + $0xb8] sm:$0xff]
      %v4713 = vld [vmem:[%s4688 + $0xc0] sm:$0xff]
      %v4714 = vld [vmem:[%s4688 + $0xc8] sm:$0xff]
      %v4715 = vld [vmem:[%s4688 + $0xd0] sm:$0xff]
      %v4716 = vld [vmem:[%s4688 + $0xd8] sm:$0xff]
      %v4717 = vld [vmem:[%s4688 + $0xe0] sm:$0xff]
      %v4718 = vld [vmem:[%s4688 + $0xe8] sm:$0xff]
      %v4719 = vld [vmem:[%s4688 + $0xf0] sm:$0xff]
      %v4720 = vld [vmem:[%s4688 + $0xf8] sm:$0xff]
      %v4721 = vld [vmem:[%s4688 + $0x100] sm:$0xff]
      %v4722 = vld [vmem:[%s4688 + $0x108] sm:$0xff]
      %v4723 = vld [vmem:[%s4688 + $0x110] sm:$0xff]
      %v4724 = vld [vmem:[%s4688 + $0x118] sm:$0xff]
      %s4725 = scalar_lea.vmem %s6, 7
      %v4726 = vld [vmem:[%s4725] sm:$0x1]
      %v4727 = vld [vmem:[#allocation9] sm:$0xff]
      %v4728 = vld [vmem:[#allocation9 + $0x1] sm:$0xff]
      %v4729 = vld [vmem:[#allocation9 + $0x2] sm:$0xff]
      %v4730 = vld [vmem:[#allocation9 + $0x4] sm:$0xff]
      %v4731 = vld [vmem:[#allocation9 + $0x5] sm:$0xff]
      %v4732 = vld [vmem:[#allocation9 + $0x6] sm:$0xff]
      %v4733 = vld [vmem:[#allocation9 + $0x8] sm:$0xff]
      %v4734 = vld [vmem:[#allocation9 + $0x9] sm:$0xff]
      %v4735 = vld [vmem:[#allocation9 + $0xa] sm:$0xff]
      %4737 = vrot.lane.b32.xlu0 %v4728, 32
      %v4738 = vpop.permute.xlu0 %4737
      %4741 = vrot.lane.b32.xlu0 %v4729, 64
      %v4742 = vpop.permute.xlu0 %4741
      %4745 = vrot.lane.b32.xlu0 %v4730, 96
      %v4746 = vpop.permute.xlu0 %4745
      %4749 = vrot.lane.b32.xlu0 %v4732, 32
      %v4750 = vpop.permute.xlu0 %4749
      %4753 = vrot.lane.b32.xlu0 %v4733, 64
      %v4754 = vpop.permute.xlu0 %4753
      %4757 = vrot.lane.b32.xlu0 %v4734, 96
      %v4758 = vpop.permute.xlu0 %4757
      %v4760 = vsel %vm534, %v4727, %v4738
      %v4761 = vsel %vm1208, %v4760, %v4742
      %v4762 = vsel %vm1684, %v4761, %v4746
      %v4763 = vsel %vm534, %v4731, %v4750
      %v4764 = vsel %vm1208, %v4763, %v4754
      %v4765 = vsel %vm1684, %v4764, %v4758
      %v4767 = vperm.slane %v4726, 0
      %v4770 = vsel %vm534, %v4735, 0
      %4772 = vmatpush.msra.mxu0 %v4704
      %4773 = vmatpush.msra.mxu0 %v4703
      %4774 = vmatpush.msra.mxu0 %v4702
      %4775 = vmatpush.msra.mxu0 %v4701
      %4776 = vmatpush.msra.mxu0 %v4700
      %4777 = vmatpush.msra.mxu0 %v4699
      %4778 = vmatpush.msra.mxu0 %v4698
      %4779 = vmatpush.msra.mxu0 %v4697
      %4780 = vmatpush.msra.mxu0 %v4696
      %4781 = vmatpush.msra.mxu0 %v4695
      %4782 = vmatpush.msra.mxu0 %v4694
      %4783 = vmatpush.msra.mxu0 %v4693
      %4784 = vmatpush.msra.mxu0 %v4692
      %4785 = vmatpush.msra.mxu0 %v4691
      %4786 = vmatpush.msra.mxu0 %v4690
      %4787 = vmatpush.msra.mxu0 %v4689
      %4788 = vmatmul.f32.gmra.mxu0 %v4762
      %v4789 = vpop.f32.mrf.mxu0
      %v4790 = vadd.f32 %v4767, %v4789
      %4791 = vdwg.mxu0
      %4792 = vmatpush.msra.mxu0 %v4720
      %4793 = vmatpush.msra.mxu0 %v4719
      %4794 = vmatpush.msra.mxu0 %v4718
      %4795 = vmatpush.msra.mxu0 %v4717
      %4796 = vmatpush.msra.mxu0 %v4716
      %4797 = vmatpush.msra.mxu0 %v4715
      %4798 = vmatpush.msra.mxu0 %v4714
      %4799 = vmatpush.msra.mxu0 %v4713
      %4800 = vmatpush.msra.mxu0 %v4712
      %4801 = vmatpush.msra.mxu0 %v4711
      %4802 = vmatpush.msra.mxu0 %v4710
      %4803 = vmatpush.msra.mxu0 %v4709
      %4804 = vmatpush.msra.mxu0 %v4708
      %4805 = vmatpush.msra.mxu0 %v4707
      %4806 = vmatpush.msra.mxu0 %v4706
      %4807 = vmatpush.msra.mxu0 %v4705
      %4808 = vmatmul.f32.gmra.mxu0 %v4765
      %v4809 = vpop.f32.mrf.mxu0
      %v4810 = vadd.f32 %v4790, %v4809
      %4811 = vdwg.mxu0
      %4812 = vmatpush.msra.mxu0 0.0
      %4813 = vmatpush.msra.mxu0 0.0
      %4814 = vmatpush.msra.mxu0 0.0
      %4815 = vmatpush.msra.mxu0 0.0
      %4816 = vmatpush.msra.mxu0 0.0
      %4817 = vmatpush.msra.mxu0 0.0
      %4818 = vmatpush.msra.mxu0 0.0
      %4819 = vmatpush.msra.mxu0 0.0
      %4820 = vmatpush.msra.mxu0 0.0
      %4821 = vmatpush.msra.mxu0 0.0
      %4822 = vmatpush.msra.mxu0 0.0
      %4823 = vmatpush.msra.mxu0 0.0
      %4824 = vmatpush.msra.mxu0 %v4724
      %4825 = vmatpush.msra.mxu0 %v4723
      %4826 = vmatpush.msra.mxu0 %v4722
      %4827 = vmatpush.msra.mxu0 %v4721
      %4828 = vmatmul.f32.gmra.mxu0 %v4770
      %v4829 = vpop.f32.mrf.mxu0
      %v4830 = vadd.f32 %v4810, %v4829
      %4831 = vdwg.mxu0
      %v4832 = vxor.u32 %v4830, 2147483648
      %v4833 = vmul.f32 %v4832, 1.442695
      %v4834 = vpow.pop %v4833
      %v4835 = vadd.f32 %v4834, 1.0
      %v4836 = vrcp.pop %v4835
      %v4837 = vmul.f32 %v4835, %v4836
      %v4838 = vsub.f32 1.0, %v4837
      %v4839 = vmul.f32 %v4836, %v4838
      %v4840 = vadd.f32 %v4836, %v4839
      %vm4841 = vweird.f32 %v4835
      %vm4842 = vweird.f32 %v4836
      %vm4843 = vmor %vm4841, %vm4842
      %v4844 = vsel %vm4843, %v4836, %v4840
      %v4845 = vand.u32 2147483647, %v4835
      %vm4846 = vcmp.eq.f32.partialorder %v4845, 8.507059e+37
      %v4847 = vand.u32 %v4835, 2147483648
      %v4848 = vor.u32 1.1754944e-38, %v4847
      %v4849 = vsel %vm4846, %v4848, %v4844
      %v4850 = vmul.f32 1.0, %v4849
      %v4851 = vmul.f32 %v4830, %v4850
      %v4852 = vmul.f32 %v4851, %v3014
      %4853 = vst.msk [vmem:[#allocation8 + $0x5] sm:$0xff] %vm534, %v4852
      %s4854 = scalar_lea.vmem %s7, 2016
      %v4855 = vld [vmem:[%s4854] sm:$0xff]
      %v4856 = vld [vmem:[%s4854 + $0x8] sm:$0xff]
      %v4857 = vld [vmem:[%s4854 + $0x10] sm:$0xff]
      %v4858 = vld [vmem:[%s4854 + $0x18] sm:$0xff]
      %v4859 = vld [vmem:[%s4854 + $0x20] sm:$0xff]
      %v4860 = vld [vmem:[%s4854 + $0x28] sm:$0xff]
      %v4861 = vld [vmem:[%s4854 + $0x30] sm:$0xff]
      %v4862 = vld [vmem:[%s4854 + $0x38] sm:$0xff]
      %v4863 = vld [vmem:[%s4854 + $0x40] sm:$0xff]
      %v4864 = vld [vmem:[%s4854 + $0x48] sm:$0xff]
      %v4865 = vld [vmem:[%s4854 + $0x50] sm:$0xff]
      %v4866 = vld [vmem:[%s4854 + $0x58] sm:$0xff]
      %v4867 = vld [vmem:[%s4854 + $0x60] sm:$0xff]
      %v4868 = vld [vmem:[%s4854 + $0x68] sm:$0xff]
      %v4869 = vld [vmem:[%s4854 + $0x70] sm:$0xff]
      %v4870 = vld [vmem:[%s4854 + $0x78] sm:$0xff]
      %v4871 = vld [vmem:[%s4854 + $0x80] sm:$0xff]
      %v4872 = vld [vmem:[%s4854 + $0x88] sm:$0xff]
      %v4873 = vld [vmem:[%s4854 + $0x90] sm:$0xff]
      %v4874 = vld [vmem:[%s4854 + $0x98] sm:$0xff]
      %v4875 = vld [vmem:[%s4854 + $0xa0] sm:$0xff]
      %v4876 = vld [vmem:[%s4854 + $0xa8] sm:$0xff]
      %v4877 = vld [vmem:[%s4854 + $0xb0] sm:$0xff]
      %v4878 = vld [vmem:[%s4854 + $0xb8] sm:$0xff]
      %v4879 = vld [vmem:[%s4854 + $0xc0] sm:$0xff]
      %v4880 = vld [vmem:[%s4854 + $0xc8] sm:$0xff]
      %v4881 = vld [vmem:[%s4854 + $0xd0] sm:$0xff]
      %v4882 = vld [vmem:[%s4854 + $0xd8] sm:$0xff]
      %v4883 = vld [vmem:[%s4854 + $0xe0] sm:$0xff]
      %v4884 = vld [vmem:[%s4854 + $0xe8] sm:$0xff]
      %v4885 = vld [vmem:[%s4854 + $0xf0] sm:$0xff]
      %v4886 = vld [vmem:[%s4854 + $0xf8] sm:$0xff]
      %v4887 = vld [vmem:[%s4854 + $0x100] sm:$0xff]
      %v4888 = vld [vmem:[%s4854 + $0x108] sm:$0xff]
      %v4889 = vld [vmem:[%s4854 + $0x110] sm:$0xff]
      %v4890 = vld [vmem:[%s4854 + $0x118] sm:$0xff]
      %s4891 = scalar_lea.vmem %s8, 7
      %v4892 = vld [vmem:[%s4891] sm:$0x1]
      %v4893 = vld [vmem:[#allocation8] sm:$0xff]
      %v4894 = vld [vmem:[#allocation8 + $0x1] sm:$0xff]
      %v4895 = vld [vmem:[#allocation8 + $0x2] sm:$0xff]
      %v4896 = vld [vmem:[#allocation8 + $0x4] sm:$0xff]
      %v4897 = vld [vmem:[#allocation8 + $0x5] sm:$0xff]
      %v4898 = vld [vmem:[#allocation8 + $0x6] sm:$0xff]
      %v4899 = vld [vmem:[#allocation8 + $0x8] sm:$0xff]
      %v4900 = vld [vmem:[#allocation8 + $0x9] sm:$0xff]
      %v4901 = vld [vmem:[#allocation8 + $0xa] sm:$0xff]
      %4903 = vrot.lane.b32.xlu0 %v4894, 32
      %v4904 = vpop.permute.xlu0 %4903
      %4907 = vrot.lane.b32.xlu0 %v4895, 64
      %v4908 = vpop.permute.xlu0 %4907
      %4911 = vrot.lane.b32.xlu0 %v4896, 96
      %v4912 = vpop.permute.xlu0 %4911
      %4915 = vrot.lane.b32.xlu0 %v4898, 32
      %v4916 = vpop.permute.xlu0 %4915
      %4919 = vrot.lane.b32.xlu0 %v4899, 64
      %v4920 = vpop.permute.xlu0 %4919
      %4923 = vrot.lane.b32.xlu0 %v4900, 96
      %v4924 = vpop.permute.xlu0 %4923
      %v4926 = vsel %vm534, %v4893, %v4904
      %v4927 = vsel %vm1208, %v4926, %v4908
      %v4928 = vsel %vm1684, %v4927, %v4912
      %v4929 = vsel %vm534, %v4897, %v4916
      %v4930 = vsel %vm1208, %v4929, %v4920
      %v4931 = vsel %vm1684, %v4930, %v4924
      %v4933 = vperm.slane %v4892, 0
      %v4936 = vsel %vm534, %v4901, 0
      %4938 = vmatpush.msra.mxu0 %v4870
      %4939 = vmatpush.msra.mxu0 %v4869
      %4940 = vmatpush.msra.mxu0 %v4868
      %4941 = vmatpush.msra.mxu0 %v4867
      %4942 = vmatpush.msra.mxu0 %v4866
      %4943 = vmatpush.msra.mxu0 %v4865
      %4944 = vmatpush.msra.mxu0 %v4864
      %4945 = vmatpush.msra.mxu0 %v4863
      %4946 = vmatpush.msra.mxu0 %v4862
      %4947 = vmatpush.msra.mxu0 %v4861
      %4948 = vmatpush.msra.mxu0 %v4860
      %4949 = vmatpush.msra.mxu0 %v4859
      %4950 = vmatpush.msra.mxu0 %v4858
      %4951 = vmatpush.msra.mxu0 %v4857
      %4952 = vmatpush.msra.mxu0 %v4856
      %4953 = vmatpush.msra.mxu0 %v4855
      %4954 = vmatmul.f32.gmra.mxu0 %v4928
      %v4955 = vpop.f32.mrf.mxu0
      %v4956 = vadd.f32 %v4933, %v4955
      %4957 = vdwg.mxu0
      %4958 = vmatpush.msra.mxu0 %v4886
      %4959 = vmatpush.msra.mxu0 %v4885
      %4960 = vmatpush.msra.mxu0 %v4884
      %4961 = vmatpush.msra.mxu0 %v4883
      %4962 = vmatpush.msra.mxu0 %v4882
      %4963 = vmatpush.msra.mxu0 %v4881
      %4964 = vmatpush.msra.mxu0 %v4880
      %4965 = vmatpush.msra.mxu0 %v4879
      %4966 = vmatpush.msra.mxu0 %v4878
      %4967 = vmatpush.msra.mxu0 %v4877
      %4968 = vmatpush.msra.mxu0 %v4876
      %4969 = vmatpush.msra.mxu0 %v4875
      %4970 = vmatpush.msra.mxu0 %v4874
      %4971 = vmatpush.msra.mxu0 %v4873
      %4972 = vmatpush.msra.mxu0 %v4872
      %4973 = vmatpush.msra.mxu0 %v4871
      %4974 = vmatmul.f32.gmra.mxu0 %v4931
      %v4975 = vpop.f32.mrf.mxu0
      %v4976 = vadd.f32 %v4956, %v4975
      %4977 = vdwg.mxu0
      %4978 = vmatpush.msra.mxu0 0.0
      %4979 = vmatpush.msra.mxu0 0.0
      %4980 = vmatpush.msra.mxu0 0.0
      %4981 = vmatpush.msra.mxu0 0.0
      %4982 = vmatpush.msra.mxu0 0.0
      %4983 = vmatpush.msra.mxu0 0.0
      %4984 = vmatpush.msra.mxu0 0.0
      %4985 = vmatpush.msra.mxu0 0.0
      %4986 = vmatpush.msra.mxu0 0.0
      %4987 = vmatpush.msra.mxu0 0.0
      %4988 = vmatpush.msra.mxu0 0.0
      %4989 = vmatpush.msra.mxu0 0.0
      %4990 = vmatpush.msra.mxu0 %v4890
      %4991 = vmatpush.msra.mxu0 %v4889
      %4992 = vmatpush.msra.mxu0 %v4888
      %4993 = vmatpush.msra.mxu0 %v4887
      %4994 = vmatmul.f32.gmra.mxu0 %v4936
      %v4995 = vpop.f32.mrf.mxu0
      %v4996 = vadd.f32 %v4976, %v4995
      %4997 = vdwg.mxu0
      %v4998 = vld [vmem:[#allocation9 + $0x5] sm:$0xff]
      %v4999 = vadd.f32 %v4996, %v4998
      %v5000 = vxor.u32 %v4999, 2147483648
      %v5001 = vmul.f32 %v5000, 1.442695
      %v5002 = vpow.pop %v5001
      %v5003 = vadd.f32 %v5002, 1.0
      %v5004 = vrcp.pop %v5003
      %v5005 = vmul.f32 %v5003, %v5004
      %v5006 = vsub.f32 1.0, %v5005
      %v5007 = vmul.f32 %v5004, %v5006
      %v5008 = vadd.f32 %v5004, %v5007
      %vm5009 = vweird.f32 %v5003
      %vm5010 = vweird.f32 %v5004
      %vm5011 = vmor %vm5009, %vm5010
      %v5012 = vsel %vm5011, %v5004, %v5008
      %v5013 = vand.u32 2147483647, %v5003
      %vm5014 = vcmp.eq.f32.partialorder %v5013, 8.507059e+37
      %v5015 = vand.u32 %v5003, 2147483648
      %v5016 = vor.u32 1.1754944e-38, %v5015
      %v5017 = vsel %vm5014, %v5016, %v5012
      %v5018 = vmul.f32 1.0, %v5017
      %v5019 = vmul.f32 %v4999, %v5018
      %v5020 = vmul.f32 %v5019, %v3014
      %5021 = vst.msk [vmem:[#allocation9 + $0x5] sm:$0xff] %vm534, %v5020
      %v5022 = vld [vmem:[#allocation9 + $0x5] sm:$0xff]
      %v5023 = vsel %vm534, %v5022, 0.0
      %v5024 = vrot.slane %v5023, 4
      %v5025 = vadd.f32 %v5023, %v5024
      %v5026 = vrot.slane %v5025, 2
      %v5027 = vadd.f32 %v5025, %v5026
      %v5028 = vrot.slane %v5027, 1
      %v5029 = vadd.f32 %v5027, %v5028
      %v5030 = vmul.f32 %v5029, 0.25
      %v5031 = vld [vmem:[%s11] sm:$0x1]
      %v5032 = vmul.f32 %v5030, %v5031
      %vm5033 = vcmask 253952
      %v5034 = vsel %vm5033, %v5032, 0.0
      %5035 = vadd.xlane.f32.xlu0 %v5034
      %v5036 = vpop.xlane.xlu0 %5035
      %v5037 = vld [vmem:[#allocation10] sm:$0x1]
      %v5038 = vadd.f32 %v5036, %v5037
      %vm5039 = vcmask 0
      %5040 = vst.msk [vmem:[%s519] sm:$0x1] %vm5039, %v5038
      %p5041 = scmp.lt.s32.totalorder %s29, 1
      %s5042 = scalar_select %p5041, %s29, 1
      %s5043 = scalar_lea.vmem %s16, %s5042
      // Predicated region
      $region85: #{tpu_custom_call.1} parent=83 // pred_check
        %p5044 = pneg %p388
      $region86: #{tpu_custom_call.1} parent=83 // pred_check_branch
        %5046 = sbr.rel (%p5044) target = $region88
      $region87: #{tpu_custom_call.1} parent=83 // pred_region
        _
      $region88: #{tpu_custom_call.1} parent=83 // pred_fallthru
        _
    $region84: #{tpu_custom_call.1} parent=5 // pred_fallthru
      _
    %p5047 = scmp.le.s32.totalorder 2, %s24
    // Predicated region
    $region89: #{tpu_custom_call.1} parent=5 // pred_check
      %p5048 = pneg %p5047
    $region90: #{tpu_custom_call.1} parent=5 // pred_check_branch
      %5050 = sbr.rel (%p5048) target = $region92
    $region91: #{tpu_custom_call.1} parent=5 // pred_region
      %s5051 = ssub.s32 %s24, 2
      // Predicated region
      $region93: #{tpu_custom_call.1} parent=91 // pred_check
        %p5052 = pneg %p394
      $region94: #{tpu_custom_call.1} parent=91 // pred_check_branch
        %5054 = sbr.rel (%p5052) target = $region96
      $region95: #{tpu_custom_call.1} parent=91 // pred_region
        %p5055 = scmp.lt.s32.totalorder %s30, 1
        %s5056 = scalar_select %p5055, %s30, 1
        %s5057 = scalar_lea.vmem %s16, %s5056
      $region96: #{tpu_custom_call.1} parent=91 // pred_fallthru
        _
    $region92: #{tpu_custom_call.1} parent=5 // pred_fallthru
      _
  $region6: #{tpu_custom_call.1} parent=0 // loop_footer
    %s28 = sadd.s32 1, %s24
  $region7: #{tpu_custom_call.1} parent=0 // loop_footer_branch
    %23 = sbr.rel target = $region3
  $region8: #{tpu_custom_call.1} parent=0 // loop_exit
    _

</llo_original>
